<compile_context>
chip_gen: v7x
topology: tpu7x:2x2x1
jax: 0.10.0
libtpu: 0.0.40
codegen_flags: <defaults>
</compile_context>

<pallas_src>
import functools
import math

import numpy as np
import jax
import jax.numpy as jnp
from jax.experimental import pallas as pl
from jax.experimental.pallas import tpu as pltpu


_EPS = 1e-3


def _round_up(x, m):
    return ((x + m - 1) // m) * m


def _vmem_limit_bytes():
    # Generation-aware scoped-VMEM limit: half of physical, clamped to
    # [32 MiB, 64 MiB]  (v5e/v6e: 64 of 128 MiB; v7x: 32 of 64 MiB).
    default = 32 * 1024 * 1024
    try:
        phys = int(pltpu.get_tpu_info().vmem_capacity_bytes)
        return max(default, min(phys // 2, 64 * 1024 * 1024))
    except Exception:
        return default


_VMEM_LIMIT = _vmem_limit_bytes()


def _compiler_params():
    return pltpu.CompilerParams(
        dimension_semantics=("parallel",),   # grid=(N,): batch elems are independent
        vmem_limit_bytes=_VMEM_LIMIT,
    )


# ----------------------------------------------------------------------------
# Pallas kernels
# ----------------------------------------------------------------------------
def _matmul_bias_relu_kernel(x_ref, w_ref, shift_ref, o_ref):
    # x_ref: (1, M, K) bf16; w_ref: (K, Coutp) bf16 (BN scale folded in)
    # shift_ref: (1, Coutp) f32;  o_ref: (1, M, Coutp) bf16, lane-dense
    acc = jnp.dot(x_ref[0], w_ref[...], preferred_element_type=jnp.float32)
    o_ref[0] = jnp.maximum(acc + shift_ref[...], 0.0).astype(o_ref.dtype)


def _conv_taps_kernel(x_ref, w_ref, shift_ref, o_ref, *, taps, rows):
    # Stride-1 KxK conv without im2col.
    # x_ref:     (1, Hp*Wp, Cin)  flattened, spatially padded image (bf16)
    # w_ref:     (K*K, Cin, Coutp) per-tap weights, BN scale folded (bf16)
    # shift_ref: (1, Coutp) f32
    # o_ref:     (1, rows, Coutp) with rows = OH*Wp (width-padded flat output)
    coutp = o_ref.shape[-1]
    acc = jnp.zeros((rows, coutp), jnp.float32)
    for t, off in enumerate(taps):
        patch = x_ref[0, pl.ds(off, rows), :]          # static row-offset slice
        acc = acc + jnp.dot(patch, w_ref[t], preferred_element_type=jnp.float32)
    o_ref[0] = jnp.maximum(acc + shift_ref[...], 0.0).astype(o_ref.dtype)


def _maxpool3x3s2_kernel(a_ref, b_ref, c_ref, d_ref, o_ref):
    # 3x3 stride-2 max-pool from the 4 stride-2 phases of x:
    #   a = x[2i, 2j], b = x[2i, 2j+1], c = x[2i+1, 2j], d = x[2i+1, 2j+1]
    oh = o_ref.shape[1]
    ow = o_ref.shape[2]
    a = a_ref[0]   # (oh+1, ow+1, C)
    b = b_ref[0]   # (oh+1, ow,   C)
    c = c_ref[0]   # (oh,   ow+1, C)
    d = d_ref[0]   # (oh,   ow,   C)
    m = a[:oh, :ow]
    m = jnp.maximum(m, a[:oh, 1:ow + 1])
    m = jnp.maximum(m, a[1:oh + 1, :ow])
    m = jnp.maximum(m, a[1:oh + 1, 1:ow + 1])
    m = jnp.maximum(m, b[:oh, :])
    m = jnp.maximum(m, b[1:oh + 1, :])
    m = jnp.maximum(m, c[:, :ow])
    m = jnp.maximum(m, c[:, 1:ow + 1])
    m = jnp.maximum(m, d[...])
    o_ref[0] = m


# ----------------------------------------------------------------------------
# pallas_call wrappers
# ----------------------------------------------------------------------------
def _matmul_bias_relu(xf, wk, shiftp):
    # xf: (N, M, K) bf16; wk: (K, Coutp) bf16; shiftp: (Coutp,) f32
    n, m, k = xf.shape
    coutp = wk.shape[-1]
    return pl.pallas_call(
        _matmul_bias_relu_kernel,
        grid=(n,),
        in_specs=[
            pl.BlockSpec((1, m, k), lambda i: (i, 0, 0)),
            pl.BlockSpec((k, coutp), lambda i: (0, 0)),      # resident weights
            pl.BlockSpec((1, coutp), lambda i: (0, 0)),      # resident shift
        ],
        out_specs=pl.BlockSpec((1, m, coutp), lambda i: (i, 0, 0)),
        out_shape=jax.ShapeDtypeStruct((n, m, coutp), jnp.bfloat16),
        compiler_params=_compiler_params(),
    )(xf, wk, shiftp.reshape(1, coutp))


def conv_bn_relu_1x1(x, p):
    """1x1 Conv + BN + ReLU: a plain per-image matmul, no im2col."""
    n, h, w, c = x.shape
    wk = p["wk"]
    assert wk.shape[0] == c
    out = _matmul_bias_relu(x.reshape(n, h * w, c), wk, p["shiftp"])
    return out.reshape(n, h, w, wk.shape[-1])


def conv_bn_relu_s2_im2col(x, p, *, k=3, stride=2):
    """Stem conv (3->32, k3 s2).  K = k*k*cin = 27 stays UNPADDED: narrow-K
    input loads are cheap; padding K to 128 would inflate patch traffic ~4.7x."""
    n, h, w, c = x.shape
    oh = (h - k) // stride + 1
    ow = (w - k) // stride + 1
    cols = []
    for i in range(k):
        for j in range(k):
            cols.append(x[:, i:i + stride * (oh - 1) + 1:stride,
                             j:j + stride * (ow - 1) + 1:stride, :])
    patches = jnp.concatenate(cols, axis=-1).reshape(n, oh * ow, k * k * c)
    out = _matmul_bias_relu(patches, p["wk"], p["shiftp"])
    return out.reshape(n, oh, ow, p["wk"].shape[-1])


def conv_bn_relu_taps(x, p, *, padding=0):
    """Stride-1 KxK Conv + BN + ReLU with NO im2col in HBM.

    The image is spatially padded so the padded width Wp is a multiple of 8
    (plus one guard row at the bottom), flattened to (Hp*Wp, Cin), and the
    kernel builds each of the K*K taps as a static row-offset slice
    (offset = i*Wp + j) of that flat image — positions whose column lands in
    the width padding are garbage and are stripped by the wrapper slice.
    """
    wk, shiftp = p["wk"], p["shiftp"]
    t, cinp, coutp = wk.shape
    k = math.isqrt(t)
    assert k * k == t
    n, h, w, c = x.shape
    assert c == cinp, (c, cinp)

    oh = h + 2 * padding - k + 1
    ow = w + 2 * padding - k + 1
    wp = _round_up(ow + k - 1, 8)        # sublane-aligned padded width
    hp = oh + k                          # padded height (+1 guard row)
    xp = jnp.pad(x, ((0, 0),
                     (padding, hp - h - padding),
                     (padding, wp - w - padding),
                     (0, 0)))
    xf = xp.reshape(n, hp * wp, cinp)
    rows = oh * wp
    taps = tuple(i * wp + j for i in range(k) for j in range(k))

    kernel = functools.partial(_conv_taps_kernel, taps=taps, rows=rows)
    out = pl.pallas_call(
        kernel,
        grid=(n,),
        in_specs=[
            pl.BlockSpec((1, hp * wp, cinp), lambda i: (i, 0, 0)),
            pl.BlockSpec((t, cinp, coutp), lambda i: (0, 0, 0)),   # resident
            pl.BlockSpec((1, coutp), lambda i: (0, 0)),            # resident
        ],
        out_specs=pl.BlockSpec((1, rows, coutp), lambda i: (i, 0, 0)),
        out_shape=jax.ShapeDtypeStruct((n, rows, coutp), jnp.bfloat16),
        compiler_params=_compiler_params(),
    )(xf, wk, shiftp.reshape(1, coutp))

    # Strip the width padding; XLA fuses this slice with the next layer's pad.
    return out.reshape(n, oh, wp, coutp)[:, :, :ow, :]


def max_pool_3x3_s2(x):
    """MaxPool2d(kernel=3, stride=2, VALID) from 4 stride-2 phase views."""
    n, h, w, c = x.shape
    oh = (h - 3) // 2 + 1
    ow = (w - 3) // 2 + 1
    a = x[:, 0:2 * oh + 1:2, 0:2 * ow + 1:2, :]   # (n, oh+1, ow+1, c)
    b = x[:, 0:2 * oh + 1:2, 1:2 * ow:2, :]       # (n, oh+1, ow,   c)
    cc = x[:, 1:2 * oh:2, 0:2 * ow + 1:2, :]      # (n, oh,   ow+1, c)
    d = x[:, 1:2 * oh:2, 1:2 * ow:2, :]           # (n, oh,   ow,   c)
    return pl.pallas_call(
        _maxpool3x3s2_kernel,
        grid=(n,),
        in_specs=[
            pl.BlockSpec((1, oh + 1, ow + 1, c), lambda i: (i, 0, 0, 0)),
            pl.BlockSpec((1, oh + 1, ow, c), lambda i: (i, 0, 0, 0)),
            pl.BlockSpec((1, oh, ow + 1, c), lambda i: (i, 0, 0, 0)),
            pl.BlockSpec((1, oh, ow, c), lambda i: (i, 0, 0, 0)),
        ],
        out_specs=pl.BlockSpec((1, oh, ow, c), lambda i: (i, 0, 0, 0)),
        out_shape=jax.ShapeDtypeStruct((n, oh, ow, c), x.dtype),
        compiler_params=_compiler_params(),
    )(a, b, cc, d)


# ----------------------------------------------------------------------------
# Parameters (deterministic synthetic init; BN + conv bias folded)
# ----------------------------------------------------------------------------
def make_basic_conv_params(key, cin, cout, k, *, kind, cin_pad=None):
    cout_pad = _round_up(cout, 128)
    ks = jax.random.split(key, 6)
    w = jax.random.normal(ks[0], (k, k, cin, cout), jnp.float32) / np.sqrt(k * k * cin)
    bias = 0.1 * jax.random.normal(ks[1], (cout,), jnp.float32)
    gamma = 1.0 + 0.1 * jax.random.normal(ks[2], (cout,), jnp.float32)
    beta = 0.1 * jax.random.normal(ks[3], (cout,), jnp.float32)
    mean = 0.1 * jax.random.normal(ks[4], (cout,), jnp.float32)
    var = 1.0 + 0.1 * jnp.abs(jax.random.normal(ks[5], (cout,), jnp.float32))

    scale = gamma / jnp.sqrt(var + _EPS)
    shift = (bias - mean) * scale + beta
    wf = w * scale                                   # fold BN scale into weights

    shiftp = jnp.zeros((cout_pad,), jnp.float32).at[:cout].set(shift)
    if kind == "im2col":                             # (K*K*Cin, Coutp) — K unpadded
        wk = jnp.zeros((k * k * cin, cout_pad), jnp.float32)
        wk = wk.at[:, :cout].set(wf.reshape(k * k * cin, cout))
    elif kind == "taps":                             # (K*K, Cinp, Coutp)
        wk = jnp.zeros((k * k, cin_pad, cout_pad), jnp.float32)
        wk = wk.at[:, :cin, :cout].set(wf.reshape(k * k, cin, cout))
    else:                                            # "1x1": (Cinp, Coutp)
        wk = jnp.zeros((cin_pad, cout_pad), jnp.float32)
        wk = wk.at[:cin, :cout].set(wf.reshape(cin, cout))

    return dict(wk=wk.astype(jnp.bfloat16), shiftp=shiftp,     # kernel params
                w=w, scale=scale, shift=shift)                  # f32 reference


_LAYERS = {
    # name:        cin  cout  k  path      activation-channel pad of the input
    "conv2d_1a": dict(cin=3, cout=32, k=3, kind="im2col"),
    "conv2d_2a": dict(cin=32, cout=32, k=3, kind="taps", cin_pad=128),
    "conv2d_2b": dict(cin=32, cout=64, k=3, kind="taps", cin_pad=128),
    "conv2d_3b": dict(cin=64, cout=80, k=1, kind="1x1", cin_pad=128),
    "conv2d_4a": dict(cin=80, cout=192, k=3, kind="taps", cin_pad=128),
}


def make_inception_head_params(key):
    keys = jax.random.split(key, len(_LAYERS))
    return {name: make_basic_conv_params(kk, **cfg)
            for kk, (name, cfg) in zip(keys, _LAYERS.items())}


# ----------------------------------------------------------------------------
# Forward pass (matches InceptionHead.forward)
# ----------------------------------------------------------------------------
def inception_head_forward(x_nchw, params):
    x = jnp.transpose(x_nchw, (0, 2, 3, 1)).astype(jnp.bfloat16)   # NCHW -> NHWC
    x = conv_bn_relu_s2_im2col(x, params["conv2d_1a"])             # 3 -> 32(128), k3 s2
    x = conv_bn_relu_taps(x, params["conv2d_2a"], padding=0)       # 32 -> 32(128), k3
    x = conv_bn_relu_taps(x, params["conv2d_2b"], padding=1)       # 32 -> 64(128), k3 p1
    x = max_pool_3x3_s2(x)                                         # k3 s2
    x = conv_bn_relu_1x1(x, params["conv2d_3b"])                   # 64 -> 80(128), k1
    x = conv_bn_relu_taps(x, params["conv2d_4a"], padding=0)       # 80 -> 192(256), k3
    x = max_pool_3x3_s2(x)                                         # k3 s2
    x = x[..., :192]                                               # strip channel pad
    return jnp.transpose(x, (0, 3, 1, 2)).astype(jnp.float32)      # NHWC -> NCHW


# ----------------------------------------------------------------------------
# Pure-JAX f32 reference (sanity check only)
# ----------------------------------------------------------------------------
def _ref_forward(x_nchw, params):
    def cbr(x, p, stride=1, padding=0):
        y = jax.lax.conv_general_dilated(
            x, p["w"], window_strides=(stride, stride),
            padding=[(padding, padding), (padding, padding)],
            dimension_numbers=("NHWC", "HWIO", "NHWC"))
        return jnp.maximum(y * p["scale"] + p["shift"], 0.0)

    def mp(x):
        return jax.lax.reduce_window(x, -jnp.inf, jax.lax.max,
                                     (1, 3, 3, 1), (1, 2, 2, 1), "VALID")

    x = jnp.transpose(x_nchw, (0, 2, 3, 1))
    x = cbr(x, params["conv2d_1a"], stride=2)
    x = cbr(x, params["conv2d_2a"])
    x = cbr(x, params["conv2d_2b"], padding=1)
    x = mp(x)
    x = cbr(x, params["conv2d_3b"])
    x = cbr(x, params["conv2d_4a"])
    x = mp(x)
    return jnp.transpose(x, (0, 3, 1, 2))


if __name__ == "__main__":
    key = jax.random.PRNGKey(0)
    kx, kp = jax.random.split(key)

    # 32x32 spatial is the smallest "round" size that survives the two
    # stride-2 convs/pools of the head; NCHW like PyTorch.
    x = jax.random.normal(kx, (2, 3, 32, 32), jnp.float32)
    params = make_inception_head_params(kp)

    fwd = jax.jit(inception_head_forward)
    out = jax.block_until_ready(fwd(x, params))

    assert out.shape == (2, 192, 1, 1), out.shape
    ref = _ref_forward(x, params)
    # bf16 operands with f32 accumulation vs. a pure-f32 reference.
    np.testing.assert_allclose(np.asarray(out), np.asarray(ref),
                               rtol=5e-2, atol=5e-2)
    print("KERNEL_OK")
</pallas_src>

<mosaic_0001>
module attributes {stable_mosaic.version = 11 : i64} {
  func.func @_matmul_bias_relu_kernel(%arg0: i32, %arg1: memref<1x225x27xbf16, #tpu.memory_space<vmem>>, %arg2: memref<27x128xbf16, #tpu.memory_space<vmem>>, %arg3: memref<1x128xf32, #tpu.memory_space<vmem>>, %arg4: memref<1x225x128xbf16, #tpu.memory_space<vmem>>) attributes {dimension_semantics = [#tpu.dimension_semantics<parallel>], iteration_bounds = array<i64: 2>, scalar_prefetch = 0 : i64, scratch_operands = 0 : i64, tpu.core_type = #tpu.core_type<tc>, window_params = [{transform_indices = @transform_0, window_bounds = array<i64: 1, 225, 27>}, {pipeline_mode = #tpu.pipeline_mode<synchronous>, transform_indices = @transform_1, window_bounds = array<i64: 27, 128>}, {pipeline_mode = #tpu.pipeline_mode<synchronous>, transform_indices = @transform_2, window_bounds = array<i64: 1, 128>}, {transform_indices = @transform_3, window_bounds = array<i64: 1, 225, 128>}]} {
    %c0 = arith.constant 0 : index
    %c0_0 = arith.constant 0 : index
    %c0_1 = arith.constant 0 : index
    %0 = vector.load %arg1[%c0, %c0_0, %c0_1] : memref<1x225x27xbf16, #tpu.memory_space<vmem>>, vector<1x225x27xbf16>
    %1 = vector.shape_cast %0 : vector<1x225x27xbf16> to vector<225x27xbf16>
    %c0_2 = arith.constant 0 : index
    %c0_3 = arith.constant 0 : index
    %2 = vector.load %arg2[%c0_2, %c0_3] : memref<27x128xbf16, #tpu.memory_space<vmem>>, vector<27x128xbf16>
    %cst = arith.constant dense<0.000000e+00> : vector<225x128xf32>
    %3 = tpu.matmul %1, %2, %cst {dimension_numbers = #tpu.dot_dimension_numbers<[1], [0], [0], [1], [0, 0, 1, 1], [], []>} : vector<225x27xbf16>, vector<27x128xbf16>, vector<225x128xf32> -> vector<225x128xf32>
    %c0_4 = arith.constant 0 : index
    %c0_5 = arith.constant 0 : index
    %4 = vector.load %arg3[%c0_4, %c0_5] : memref<1x128xf32, #tpu.memory_space<vmem>>, vector<1x128xf32>
    %5 = vector.broadcast %4 : vector<1x128xf32> to vector<225x128xf32>
    %6 = arith.addf %3, %5 : vector<225x128xf32>
    %cst_6 = arith.constant 0.000000e+00 : f32
    %7 = vector.broadcast %cst_6 : f32 to vector<225x128xf32>
    %8 = arith.maximumf %6, %7 : vector<225x128xf32>
    %9 = arith.truncf %8 : vector<225x128xf32> to vector<225x128xbf16>
    %c0_7 = arith.constant 0 : index
    %c0_8 = arith.constant 0 : index
    %c0_9 = arith.constant 0 : index
    %10 = vector.load %arg4[%c0_7, %c0_8, %c0_9] : memref<1x225x128xbf16, #tpu.memory_space<vmem>>, vector<1x225x128xbf16>
    %11 = vector.shape_cast %10 : vector<1x225x128xbf16> to vector<225x128xbf16>
    %12 = vector.shape_cast %9 : vector<225x128xbf16> to vector<1x225x128xbf16>
    tpu.vector_store %arg4[%c0_7, %c0_8, %c0_9], %12 {strides = array<i32>} : memref<1x225x128xbf16, #tpu.memory_space<vmem>>, vector<1x225x128xbf16>,
    return
  }
  func.func @transform_0(%arg0: i32) -> (i32, i32, i32) {
    %c0_i32 = arith.constant 0 : i32
    %c0_i32_0 = arith.constant 0 : i32
    %c0_i32_1 = arith.constant 0 : i32
    return %arg0, %c0_i32, %c0_i32_0 : i32, i32, i32
  }
  func.func @transform_1(%arg0: i32) -> (i32, i32) {
    %c0_i32 = arith.constant 0 : i32
    %c0_i32_0 = arith.constant 0 : i32
    %c0_i32_1 = arith.constant 0 : i32
    return %c0_i32, %c0_i32_0 : i32, i32
  }
  func.func @transform_2(%arg0: i32) -> (i32, i32) {
    %c0_i32 = arith.constant 0 : i32
    %c0_i32_0 = arith.constant 0 : i32
    %c0_i32_1 = arith.constant 0 : i32
    return %c0_i32, %c0_i32_0 : i32, i32
  }
  func.func @transform_3(%arg0: i32) -> (i32, i32, i32) {
    %c0_i32 = arith.constant 0 : i32
    %c0_i32_0 = arith.constant 0 : i32
    %c0_i32_1 = arith.constant 0 : i32
    return %arg0, %c0_i32, %c0_i32_0 : i32, i32, i32
  }
}

module attributes {stable_mosaic.version = 11 : i64} {
  func.func @_conv_taps_kernel(%arg0: i32, %arg1: memref<1x256x128xbf16, #tpu.memory_space<vmem>>, %arg2: memref<9x128x128xbf16, #tpu.memory_space<vmem>>, %arg3: memref<1x128xf32, #tpu.memory_space<vmem>>, %arg4: memref<1x208x128xbf16, #tpu.memory_space<vmem>>) attributes {dimension_semantics = [#tpu.dimension_semantics<parallel>], iteration_bounds = array<i64: 2>, scalar_prefetch = 0 : i64, scratch_operands = 0 : i64, tpu.core_type = #tpu.core_type<tc>, window_params = [{transform_indices = @transform_0, window_bounds = array<i64: 1, 256, 128>}, {pipeline_mode = #tpu.pipeline_mode<synchronous>, transform_indices = @transform_1, window_bounds = array<i64: 9, 128, 128>}, {pipeline_mode = #tpu.pipeline_mode<synchronous>, transform_indices = @transform_2, window_bounds = array<i64: 1, 128>}, {transform_indices = @transform_3, window_bounds = array<i64: 1, 208, 128>}]} {
    %cst = arith.constant 0.000000e+00 : f32
    %0 = vector.broadcast %cst : f32 to vector<208x128xf32>
    %c0 = arith.constant 0 : index
    %c0_0 = arith.constant 0 : index
    %c0_1 = arith.constant 0 : index
    %1 = vector.load %arg1[%c0, %c0_0, %c0_1] : memref<1x256x128xbf16, #tpu.memory_space<vmem>>, vector<1x208x128xbf16>
    %2 = vector.shape_cast %1 : vector<1x208x128xbf16> to vector<208x128xbf16>
    %c0_2 = arith.constant 0 : index
    %c0_3 = arith.constant 0 : index
    %c0_4 = arith.constant 0 : index
    %3 = vector.load %arg2[%c0_2, %c0_3, %c0_4] : memref<9x128x128xbf16, #tpu.memory_space<vmem>>, vector<1x128x128xbf16>
    %4 = vector.shape_cast %3 : vector<1x128x128xbf16> to vector<128x128xbf16>
    %cst_5 = arith.constant dense<0.000000e+00> : vector<208x128xf32>
    %5 = tpu.matmul %2, %4, %cst_5 {dimension_numbers = #tpu.dot_dimension_numbers<[1], [0], [0], [1], [0, 0, 1, 1], [], []>} : vector<208x128xbf16>, vector<128x128xbf16>, vector<208x128xf32> -> vector<208x128xf32>
    %6 = arith.addf %0, %5 : vector<208x128xf32>
    %c0_6 = arith.constant 0 : index
    %c1 = arith.constant 1 : index
    %c0_7 = arith.constant 0 : index
    %7 = vector.load %arg1[%c0_6, %c1, %c0_7] : memref<1x256x128xbf16, #tpu.memory_space<vmem>>, vector<1x208x128xbf16>
    %8 = vector.shape_cast %7 : vector<1x208x128xbf16> to vector<208x128xbf16>
    %c1_8 = arith.constant 1 : index
    %c0_9 = arith.constant 0 : index
    %c0_10 = arith.constant 0 : index
    %9 = vector.load %arg2[%c1_8, %c0_9, %c0_10] : memref<9x128x128xbf16, #tpu.memory_space<vmem>>, vector<1x128x128xbf16>
    %10 = vector.shape_cast %9 : vector<1x128x128xbf16> to vector<128x128xbf16>
    %cst_11 = arith.constant dense<0.000000e+00> : vector<208x128xf32>
    %11 = tpu.matmul %8, %10, %cst_11 {dimension_numbers = #tpu.dot_dimension_numbers<[1], [0], [0], [1], [0, 0, 1, 1], [], []>} : vector<208x128xbf16>, vector<128x128xbf16>, vector<208x128xf32> -> vector<208x128xf32>
    %12 = arith.addf %6, %11 : vector<208x128xf32>
    %c0_12 = arith.constant 0 : index
    %c2 = arith.constant 2 : index
    %c0_13 = arith.constant 0 : index
    %13 = vector.load %arg1[%c0_12, %c2, %c0_13] : memref<1x256x128xbf16, #tpu.memory_space<vmem>>, vector<1x208x128xbf16>
    %14 = vector.shape_cast %13 : vector<1x208x128xbf16> to vector<208x128xbf16>
    %c2_14 = arith.constant 2 : index
    %c0_15 = arith.constant 0 : index
    %c0_16 = arith.constant 0 : index
    %15 = vector.load %arg2[%c2_14, %c0_15, %c0_16] : memref<9x128x128xbf16, #tpu.memory_space<vmem>>, vector<1x128x128xbf16>
    %16 = vector.shape_cast %15 : vector<1x128x128xbf16> to vector<128x128xbf16>
    %cst_17 = arith.constant dense<0.000000e+00> : vector<208x128xf32>
    %17 = tpu.matmul %14, %16, %cst_17 {dimension_numbers = #tpu.dot_dimension_numbers<[1], [0], [0], [1], [0, 0, 1, 1], [], []>} : vector<208x128xbf16>, vector<128x128xbf16>, vector<208x128xf32> -> vector<208x128xf32>
    %18 = arith.addf %12, %17 : vector<208x128xf32>
    %c0_18 = arith.constant 0 : index
    %c16 = arith.constant 16 : index
    %c0_19 = arith.constant 0 : index
    %19 = vector.load %arg1[%c0_18, %c16, %c0_19] : memref<1x256x128xbf16, #tpu.memory_space<vmem>>, vector<1x208x128xbf16>
    %20 = vector.shape_cast %19 : vector<1x208x128xbf16> to vector<208x128xbf16>
    %c3 = arith.constant 3 : index
    %c0_20 = arith.constant 0 : index
    %c0_21 = arith.constant 0 : index
    %21 = vector.load %arg2[%c3, %c0_20, %c0_21] : memref<9x128x128xbf16, #tpu.memory_space<vmem>>, vector<1x128x128xbf16>
    %22 = vector.shape_cast %21 : vector<1x128x128xbf16> to vector<128x128xbf16>
    %cst_22 = arith.constant dense<0.000000e+00> : vector<208x128xf32>
    %23 = tpu.matmul %20, %22, %cst_22 {dimension_numbers = #tpu.dot_dimension_numbers<[1], [0], [0], [1], [0, 0, 1, 1], [], []>} : vector<208x128xbf16>, vector<128x128xbf16>, vector<208x128xf32> -> vector<208x128xf32>
    %24 = arith.addf %18, %23 : vector<208x128xf32>
    %c0_23 = arith.constant 0 : index
    %c17 = arith.constant 17 : index
    %c0_24 = arith.constant 0 : index
    %25 = vector.load %arg1[%c0_23, %c17, %c0_24] : memref<1x256x128xbf16, #tpu.memory_space<vmem>>, vector<1x208x128xbf16>
    %26 = vector.shape_cast %25 : vector<1x208x128xbf16> to vector<208x128xbf16>
    %c4 = arith.constant 4 : index
    %c0_25 = arith.constant 0 : index
    %c0_26 = arith.constant 0 : index
    %27 = vector.load %arg2[%c4, %c0_25, %c0_26] : memref<9x128x128xbf16, #tpu.memory_space<vmem>>, vector<1x128x128xbf16>
    %28 = vector.shape_cast %27 : vector<1x128x128xbf16> to vector<128x128xbf16>
    %cst_27 = arith.constant dense<0.000000e+00> : vector<208x128xf32>
    %29 = tpu.matmul %26, %28, %cst_27 {dimension_numbers = #tpu.dot_dimension_numbers<[1], [0], [0], [1], [0, 0, 1, 1], [], []>} : vector<208x128xbf16>, vector<128x128xbf16>, vector<208x128xf32> -> vector<208x128xf32>
    %30 = arith.addf %24, %29 : vector<208x128xf32>
    %c0_28 = arith.constant 0 : index
    %c18 = arith.constant 18 : index
    %c0_29 = arith.constant 0 : index
    %31 = vector.load %arg1[%c0_28, %c18, %c0_29] : memref<1x256x128xbf16, #tpu.memory_space<vmem>>, vector<1x208x128xbf16>
    %32 = vector.shape_cast %31 : vector<1x208x128xbf16> to vector<208x128xbf16>
    %c5 = arith.constant 5 : index
    %c0_30 = arith.constant 0 : index
    %c0_31 = arith.constant 0 : index
    %33 = vector.load %arg2[%c5, %c0_30, %c0_31] : memref<9x128x128xbf16, #tpu.memory_space<vmem>>, vector<1x128x128xbf16>
    %34 = vector.shape_cast %33 : vector<1x128x128xbf16> to vector<128x128xbf16>
    %cst_32 = arith.constant dense<0.000000e+00> : vector<208x128xf32>
    %35 = tpu.matmul %32, %34, %cst_32 {dimension_numbers = #tpu.dot_dimension_numbers<[1], [0], [0], [1], [0, 0, 1, 1], [], []>} : vector<208x128xbf16>, vector<128x128xbf16>, vector<208x128xf32> -> vector<208x128xf32>
    %36 = arith.addf %30, %35 : vector<208x128xf32>
    %c0_33 = arith.constant 0 : index
    %c32 = arith.constant 32 : index
    %c0_34 = arith.constant 0 : index
    %37 = vector.load %arg1[%c0_33, %c32, %c0_34] : memref<1x256x128xbf16, #tpu.memory_space<vmem>>, vector<1x208x128xbf16>
    %38 = vector.shape_cast %37 : vector<1x208x128xbf16> to vector<208x128xbf16>
    %c6 = arith.constant 6 : index
    %c0_35 = arith.constant 0 : index
    %c0_36 = arith.constant 0 : index
    %39 = vector.load %arg2[%c6, %c0_35, %c0_36] : memref<9x128x128xbf16, #tpu.memory_space<vmem>>, vector<1x128x128xbf16>
    %40 = vector.shape_cast %39 : vector<1x128x128xbf16> to vector<128x128xbf16>
    %cst_37 = arith.constant dense<0.000000e+00> : vector<208x128xf32>
    %41 = tpu.matmul %38, %40, %cst_37 {dimension_numbers = #tpu.dot_dimension_numbers<[1], [0], [0], [1], [0, 0, 1, 1], [], []>} : vector<208x128xbf16>, vector<128x128xbf16>, vector<208x128xf32> -> vector<208x128xf32>
    %42 = arith.addf %36, %41 : vector<208x128xf32>
    %c0_38 = arith.constant 0 : index
    %c33 = arith.constant 33 : index
    %c0_39 = arith.constant 0 : index
    %43 = vector.load %arg1[%c0_38, %c33, %c0_39] : memref<1x256x128xbf16, #tpu.memory_space<vmem>>, vector<1x208x128xbf16>
    %44 = vector.shape_cast %43 : vector<1x208x128xbf16> to vector<208x128xbf16>
    %c7 = arith.constant 7 : index
    %c0_40 = arith.constant 0 : index
    %c0_41 = arith.constant 0 : index
    %45 = vector.load %arg2[%c7, %c0_40, %c0_41] : memref<9x128x128xbf16, #tpu.memory_space<vmem>>, vector<1x128x128xbf16>
    %46 = vector.shape_cast %45 : vector<1x128x128xbf16> to vector<128x128xbf16>
    %cst_42 = arith.constant dense<0.000000e+00> : vector<208x128xf32>
    %47 = tpu.matmul %44, %46, %cst_42 {dimension_numbers = #tpu.dot_dimension_numbers<[1], [0], [0], [1], [0, 0, 1, 1], [], []>} : vector<208x128xbf16>, vector<128x128xbf16>, vector<208x128xf32> -> vector<208x128xf32>
    %48 = arith.addf %42, %47 : vector<208x128xf32>
    %c0_43 = arith.constant 0 : index
    %c34 = arith.constant 34 : index
    %c0_44 = arith.constant 0 : index
    %49 = vector.load %arg1[%c0_43, %c34, %c0_44] : memref<1x256x128xbf16, #tpu.memory_space<vmem>>, vector<1x208x128xbf16>
    %50 = vector.shape_cast %49 : vector<1x208x128xbf16> to vector<208x128xbf16>
    %c8 = arith.constant 8 : index
    %c0_45 = arith.constant 0 : index
    %c0_46 = arith.constant 0 : index
    %51 = vector.load %arg2[%c8, %c0_45, %c0_46] : memref<9x128x128xbf16, #tpu.memory_space<vmem>>, vector<1x128x128xbf16>
    %52 = vector.shape_cast %51 : vector<1x128x128xbf16> to vector<128x128xbf16>
    %cst_47 = arith.constant dense<0.000000e+00> : vector<208x128xf32>
    %53 = tpu.matmul %50, %52, %cst_47 {dimension_numbers = #tpu.dot_dimension_numbers<[1], [0], [0], [1], [0, 0, 1, 1], [], []>} : vector<208x128xbf16>, vector<128x128xbf16>, vector<208x128xf32> -> vector<208x128xf32>
    %54 = arith.addf %48, %53 : vector<208x128xf32>
    %c0_48 = arith.constant 0 : index
    %c0_49 = arith.constant 0 : index
    %55 = vector.load %arg3[%c0_48, %c0_49] : memref<1x128xf32, #tpu.memory_space<vmem>>, vector<1x128xf32>
    %56 = vector.broadcast %55 : vector<1x128xf32> to vector<208x128xf32>
    %57 = arith.addf %54, %56 : vector<208x128xf32>
    %cst_50 = arith.constant 0.000000e+00 : f32
    %58 = vector.broadcast %cst_50 : f32 to vector<208x128xf32>
    %59 = arith.maximumf %57, %58 : vector<208x128xf32>
    %60 = arith.truncf %59 : vector<208x128xf32> to vector<208x128xbf16>
    %c0_51 = arith.constant 0 : index
    %c0_52 = arith.constant 0 : index
    %c0_53 = arith.constant 0 : index
    %61 = vector.load %arg4[%c0_51, %c0_52, %c0_53] : memref<1x208x128xbf16, #tpu.memory_space<vmem>>, vector<1x208x128xbf16>
    %62 = vector.shape_cast %61 : vector<1x208x128xbf16> to vector<208x128xbf16>
    %63 = vector.shape_cast %60 : vector<208x128xbf16> to vector<1x208x128xbf16>
    tpu.vector_store %arg4[%c0_51, %c0_52, %c0_53], %63 {strides = array<i32>} : memref<1x208x128xbf16, #tpu.memory_space<vmem>>, vector<1x208x128xbf16>,
    return
  }
  func.func @transform_0(%arg0: i32) -> (i32, i32, i32) {
    %c0_i32 = arith.constant 0 : i32
    %c0_i32_0 = arith.constant 0 : i32
    %c0_i32_1 = arith.constant 0 : i32
    return %arg0, %c0_i32, %c0_i32_0 : i32, i32, i32
  }
  func.func @transform_1(%arg0: i32) -> (i32, i32, i32) {
    %c0_i32 = arith.constant 0 : i32
    %c0_i32_0 = arith.constant 0 : i32
    %c0_i32_1 = arith.constant 0 : i32
    %c0_i32_2 = arith.constant 0 : i32
    return %c0_i32, %c0_i32_0, %c0_i32_1 : i32, i32, i32
  }
  func.func @transform_2(%arg0: i32) -> (i32, i32) {
    %c0_i32 = arith.constant 0 : i32
    %c0_i32_0 = arith.constant 0 : i32
    %c0_i32_1 = arith.constant 0 : i32
    return %c0_i32, %c0_i32_0 : i32, i32
  }
  func.func @transform_3(%arg0: i32) -> (i32, i32, i32) {
    %c0_i32 = arith.constant 0 : i32
    %c0_i32_0 = arith.constant 0 : i32
    %c0_i32_1 = arith.constant 0 : i32
    return %arg0, %c0_i32, %c0_i32_0 : i32, i32, i32
  }
}

module attributes {stable_mosaic.version = 11 : i64} {
  func.func @_matmul_bias_relu_kernel(%arg0: i32, %arg1: memref<1x36x128xbf16, #tpu.memory_space<vmem>>, %arg2: memref<128x128xbf16, #tpu.memory_space<vmem>>, %arg3: memref<1x128xf32, #tpu.memory_space<vmem>>, %arg4: memref<1x36x128xbf16, #tpu.memory_space<vmem>>) attributes {dimension_semantics = [#tpu.dimension_semantics<parallel>], iteration_bounds = array<i64: 2>, scalar_prefetch = 0 : i64, scratch_operands = 0 : i64, tpu.core_type = #tpu.core_type<tc>, window_params = [{transform_indices = @transform_0, window_bounds = array<i64: 1, 36, 128>}, {pipeline_mode = #tpu.pipeline_mode<synchronous>, transform_indices = @transform_1, window_bounds = array<i64: 128, 128>}, {pipeline_mode = #tpu.pipeline_mode<synchronous>, transform_indices = @transform_2, window_bounds = array<i64: 1, 128>}, {transform_indices = @transform_3, window_bounds = array<i64: 1, 36, 128>}]} {
    %c0 = arith.constant 0 : index
    %c0_0 = arith.constant 0 : index
    %c0_1 = arith.constant 0 : index
    %0 = vector.load %arg1[%c0, %c0_0, %c0_1] : memref<1x36x128xbf16, #tpu.memory_space<vmem>>, vector<1x36x128xbf16>
    %1 = vector.shape_cast %0 : vector<1x36x128xbf16> to vector<36x128xbf16>
    %c0_2 = arith.constant 0 : index
    %c0_3 = arith.constant 0 : index
    %2 = vector.load %arg2[%c0_2, %c0_3] : memref<128x128xbf16, #tpu.memory_space<vmem>>, vector<128x128xbf16>
    %cst = arith.constant dense<0.000000e+00> : vector<36x128xf32>
    %3 = tpu.matmul %1, %2, %cst {dimension_numbers = #tpu.dot_dimension_numbers<[1], [0], [0], [1], [0, 0, 1, 1], [], []>} : vector<36x128xbf16>, vector<128x128xbf16>, vector<36x128xf32> -> vector<36x128xf32>
    %c0_4 = arith.constant 0 : index
    %c0_5 = arith.constant 0 : index
    %4 = vector.load %arg3[%c0_4, %c0_5] : memref<1x128xf32, #tpu.memory_space<vmem>>, vector<1x128xf32>
    %5 = vector.broadcast %4 : vector<1x128xf32> to vector<36x128xf32>
    %6 = arith.addf %3, %5 : vector<36x128xf32>
    %cst_6 = arith.constant 0.000000e+00 : f32
    %7 = vector.broadcast %cst_6 : f32 to vector<36x128xf32>
    %8 = arith.maximumf %6, %7 : vector<36x128xf32>
    %9 = arith.truncf %8 : vector<36x128xf32> to vector<36x128xbf16>
    %c0_7 = arith.constant 0 : index
    %c0_8 = arith.constant 0 : index
    %c0_9 = arith.constant 0 : index
    %10 = vector.load %arg4[%c0_7, %c0_8, %c0_9] : memref<1x36x128xbf16, #tpu.memory_space<vmem>>, vector<1x36x128xbf16>
    %11 = vector.shape_cast %10 : vector<1x36x128xbf16> to vector<36x128xbf16>
    %12 = vector.shape_cast %9 : vector<36x128xbf16> to vector<1x36x128xbf16>
    tpu.vector_store %arg4[%c0_7, %c0_8, %c0_9], %12 {strides = array<i32>} : memref<1x36x128xbf16, #tpu.memory_space<vmem>>, vector<1x36x128xbf16>,
    return
  }
  func.func @transform_0(%arg0: i32) -> (i32, i32, i32) {
    %c0_i32 = arith.constant 0 : i32
    %c0_i32_0 = arith.constant 0 : i32
    %c0_i32_1 = arith.constant 0 : i32
    return %arg0, %c0_i32, %c0_i32_0 : i32, i32, i32
  }
  func.func @transform_1(%arg0: i32) -> (i32, i32) {
    %c0_i32 = arith.constant 0 : i32
    %c0_i32_0 = arith.constant 0 : i32
    %c0_i32_1 = arith.constant 0 : i32
    return %c0_i32, %c0_i32_0 : i32, i32
  }
  func.func @transform_2(%arg0: i32) -> (i32, i32) {
    %c0_i32 = arith.constant 0 : i32
    %c0_i32_0 = arith.constant 0 : i32
    %c0_i32_1 = arith.constant 0 : i32
    return %c0_i32, %c0_i32_0 : i32, i32
  }
  func.func @transform_3(%arg0: i32) -> (i32, i32, i32) {
    %c0_i32 = arith.constant 0 : i32
    %c0_i32_0 = arith.constant 0 : i32
    %c0_i32_1 = arith.constant 0 : i32
    return %arg0, %c0_i32, %c0_i32_0 : i32, i32, i32
  }
}

module attributes {stable_mosaic.version = 11 : i64} {
  func.func @_maxpool3x3s2_kernel(%arg0: i32, %arg1: memref<1x7x7x128xbf16, #tpu.memory_space<vmem>>, %arg2: memref<1x7x6x128xbf16, #tpu.memory_space<vmem>>, %arg3: memref<1x6x7x128xbf16, #tpu.memory_space<vmem>>, %arg4: memref<1x6x6x128xbf16, #tpu.memory_space<vmem>>, %arg5: memref<1x6x6x128xbf16, #tpu.memory_space<vmem>>) attributes {dimension_semantics = [#tpu.dimension_semantics<parallel>], iteration_bounds = array<i64: 2>, scalar_prefetch = 0 : i64, scratch_operands = 0 : i64, tpu.core_type = #tpu.core_type<tc>, window_params = [{transform_indices = @transform_0, window_bounds = array<i64: 1, 7, 7, 128>}, {transform_indices = @transform_1, window_bounds = array<i64: 1, 7, 6, 128>}, {transform_indices = @transform_2, window_bounds = array<i64: 1, 6, 7, 128>}, {transform_indices = @transform_3, window_bounds = array<i64: 1, 6, 6, 128>}, {transform_indices = @transform_4, window_bounds = array<i64: 1, 6, 6, 128>}]} {
    %c0 = arith.constant 0 : index
    %c0_0 = arith.constant 0 : index
    %c0_1 = arith.constant 0 : index
    %c0_2 = arith.constant 0 : index
    %0 = vector.load %arg1[%c0, %c0_0, %c0_1, %c0_2] : memref<1x7x7x128xbf16, #tpu.memory_space<vmem>>, vector<1x7x7x128xbf16>
    %1 = vector.shape_cast %0 : vector<1x7x7x128xbf16> to vector<7x7x128xbf16>
    %c0_3 = arith.constant 0 : index
    %c0_4 = arith.constant 0 : index
    %c0_5 = arith.constant 0 : index
    %c0_6 = arith.constant 0 : index
    %2 = vector.load %arg2[%c0_3, %c0_4, %c0_5, %c0_6] : memref<1x7x6x128xbf16, #tpu.memory_space<vmem>>, vector<1x7x6x128xbf16>
    %3 = vector.shape_cast %2 : vector<1x7x6x128xbf16> to vector<7x6x128xbf16>
    %c0_7 = arith.constant 0 : index
    %c0_8 = arith.constant 0 : index
    %c0_9 = arith.constant 0 : index
    %c0_10 = arith.constant 0 : index
    %4 = vector.load %arg3[%c0_7, %c0_8, %c0_9, %c0_10] : memref<1x6x7x128xbf16, #tpu.memory_space<vmem>>, vector<1x6x7x128xbf16>
    %5 = vector.shape_cast %4 : vector<1x6x7x128xbf16> to vector<6x7x128xbf16>
    %c0_11 = arith.constant 0 : index
    %c0_12 = arith.constant 0 : index
    %c0_13 = arith.constant 0 : index
    %c0_14 = arith.constant 0 : index
    %6 = vector.load %arg4[%c0_11, %c0_12, %c0_13, %c0_14] : memref<1x6x6x128xbf16, #tpu.memory_space<vmem>>, vector<1x6x6x128xbf16>
    %7 = vector.shape_cast %6 : vector<1x6x6x128xbf16> to vector<6x6x128xbf16>
    %8 = vector.extract_strided_slice %1 {offsets = [0, 0, 0], sizes = [6, 6, 128], strides = [1, 1, 1]} : vector<7x7x128xbf16> to vector<6x6x128xbf16>
    %9 = vector.extract_strided_slice %1 {offsets = [0, 1, 0], sizes = [6, 6, 128], strides = [1, 1, 1]} : vector<7x7x128xbf16> to vector<6x6x128xbf16>
    %10 = arith.maximumf %8, %9 : vector<6x6x128xbf16>
    %11 = vector.extract_strided_slice %1 {offsets = [1, 0, 0], sizes = [6, 6, 128], strides = [1, 1, 1]} : vector<7x7x128xbf16> to vector<6x6x128xbf16>
    %12 = arith.maximumf %10, %11 : vector<6x6x128xbf16>
    %13 = vector.extract_strided_slice %1 {offsets = [1, 1, 0], sizes = [6, 6, 128], strides = [1, 1, 1]} : vector<7x7x128xbf16> to vector<6x6x128xbf16>
    %14 = arith.maximumf %12, %13 : vector<6x6x128xbf16>
    %15 = vector.extract_strided_slice %3 {offsets = [0, 0, 0], sizes = [6, 6, 128], strides = [1, 1, 1]} : vector<7x6x128xbf16> to vector<6x6x128xbf16>
    %16 = arith.maximumf %14, %15 : vector<6x6x128xbf16>
    %17 = vector.extract_strided_slice %3 {offsets = [1, 0, 0], sizes = [6, 6, 128], strides = [1, 1, 1]} : vector<7x6x128xbf16> to vector<6x6x128xbf16>
    %18 = arith.maximumf %16, %17 : vector<6x6x128xbf16>
    %19 = vector.extract_strided_slice %5 {offsets = [0, 0, 0], sizes = [6, 6, 128], strides = [1, 1, 1]} : vector<6x7x128xbf16> to vector<6x6x128xbf16>
    %20 = arith.maximumf %18, %19 : vector<6x6x128xbf16>
    %21 = vector.extract_strided_slice %5 {offsets = [0, 1, 0], sizes = [6, 6, 128], strides = [1, 1, 1]} : vector<6x7x128xbf16> to vector<6x6x128xbf16>
    %22 = arith.maximumf %20, %21 : vector<6x6x128xbf16>
    %23 = arith.maximumf %22, %7 : vector<6x6x128xbf16>
    %c0_15 = arith.constant 0 : index
    %c0_16 = arith.constant 0 : index
    %c0_17 = arith.constant 0 : index
    %c0_18 = arith.constant 0 : index
    %24 = vector.load %arg5[%c0_15, %c0_16, %c0_17, %c0_18] : memref<1x6x6x128xbf16, #tpu.memory_space<vmem>>, vector<1x6x6x128xbf16>
    %25 = vector.shape_cast %24 : vector<1x6x6x128xbf16> to vector<6x6x128xbf16>
    %26 = vector.shape_cast %23 : vector<6x6x128xbf16> to vector<1x6x6x128xbf16>
    tpu.vector_store %arg5[%c0_15, %c0_16, %c0_17, %c0_18], %26 {strides = array<i32>} : memref<1x6x6x128xbf16, #tpu.memory_space<vmem>>, vector<1x6x6x128xbf16>,
    return
  }
  func.func @transform_0(%arg0: i32) -> (i32, i32, i32, i32) {
    %c0_i32 = arith.constant 0 : i32
    %c0_i32_0 = arith.constant 0 : i32
    %c0_i32_1 = arith.constant 0 : i32
    %c0_i32_2 = arith.constant 0 : i32
    return %arg0, %c0_i32, %c0_i32_0, %c0_i32_1 : i32, i32, i32, i32
  }
  func.func @transform_1(%arg0: i32) -> (i32, i32, i32, i32) {
    %c0_i32 = arith.constant 0 : i32
    %c0_i32_0 = arith.constant 0 : i32
    %c0_i32_1 = arith.constant 0 : i32
    %c0_i32_2 = arith.constant 0 : i32
    return %arg0, %c0_i32, %c0_i32_0, %c0_i32_1 : i32, i32, i32, i32
  }
  func.func @transform_2(%arg0: i32) -> (i32, i32, i32, i32) {
    %c0_i32 = arith.constant 0 : i32
    %c0_i32_0 = arith.constant 0 : i32
    %c0_i32_1 = arith.constant 0 : i32
    %c0_i32_2 = arith.constant 0 : i32
    return %arg0, %c0_i32, %c0_i32_0, %c0_i32_1 : i32, i32, i32, i32
  }
  func.func @transform_3(%arg0: i32) -> (i32, i32, i32, i32) {
    %c0_i32 = arith.constant 0 : i32
    %c0_i32_0 = arith.constant 0 : i32
    %c0_i32_1 = arith.constant 0 : i32
    %c0_i32_2 = arith.constant 0 : i32
    return %arg0, %c0_i32, %c0_i32_0, %c0_i32_1 : i32, i32, i32, i32
  }
  func.func @transform_4(%arg0: i32) -> (i32, i32, i32, i32) {
    %c0_i32 = arith.constant 0 : i32
    %c0_i32_0 = arith.constant 0 : i32
    %c0_i32_1 = arith.constant 0 : i32
    %c0_i32_2 = arith.constant 0 : i32
    return %arg0, %c0_i32, %c0_i32_0, %c0_i32_1 : i32, i32, i32, i32
  }
}

module attributes {stable_mosaic.version = 11 : i64} {
  func.func @_conv_taps_kernel(%arg0: i32, %arg1: memref<1x56x128xbf16, #tpu.memory_space<vmem>>, %arg2: memref<9x128x256xbf16, #tpu.memory_space<vmem>>, %arg3: memref<1x256xf32, #tpu.memory_space<vmem>>, %arg4: memref<1x32x256xbf16, #tpu.memory_space<vmem>>) attributes {dimension_semantics = [#tpu.dimension_semantics<parallel>], iteration_bounds = array<i64: 2>, scalar_prefetch = 0 : i64, scratch_operands = 0 : i64, tpu.core_type = #tpu.core_type<tc>, window_params = [{transform_indices = @transform_0, window_bounds = array<i64: 1, 56, 128>}, {pipeline_mode = #tpu.pipeline_mode<synchronous>, transform_indices = @transform_1, window_bounds = array<i64: 9, 128, 256>}, {pipeline_mode = #tpu.pipeline_mode<synchronous>, transform_indices = @transform_2, window_bounds = array<i64: 1, 256>}, {transform_indices = @transform_3, window_bounds = array<i64: 1, 32, 256>}]} {
    %cst = arith.constant 0.000000e+00 : f32
    %0 = vector.broadcast %cst : f32 to vector<32x256xf32>
    %c0 = arith.constant 0 : index
    %c0_0 = arith.constant 0 : index
    %c0_1 = arith.constant 0 : index
    %1 = vector.load %arg1[%c0, %c0_0, %c0_1] : memref<1x56x128xbf16, #tpu.memory_space<vmem>>, vector<1x32x128xbf16>
    %2 = vector.shape_cast %1 : vector<1x32x128xbf16> to vector<32x128xbf16>
    %c0_2 = arith.constant 0 : index
    %c0_3 = arith.constant 0 : index
    %c0_4 = arith.constant 0 : index
    %3 = vector.load %arg2[%c0_2, %c0_3, %c0_4] : memref<9x128x256xbf16, #tpu.memory_space<vmem>>, vector<1x128x256xbf16>
    %4 = vector.shape_cast %3 : vector<1x128x256xbf16> to vector<128x256xbf16>
    %cst_5 = arith.constant dense<0.000000e+00> : vector<32x256xf32>
    %5 = tpu.matmul %2, %4, %cst_5 {dimension_numbers = #tpu.dot_dimension_numbers<[1], [0], [0], [1], [0, 0, 1, 1], [], []>} : vector<32x128xbf16>, vector<128x256xbf16>, vector<32x256xf32> -> vector<32x256xf32>
    %6 = arith.addf %0, %5 : vector<32x256xf32>
    %c0_6 = arith.constant 0 : index
    %c1 = arith.constant 1 : index
    %c0_7 = arith.constant 0 : index
    %7 = vector.load %arg1[%c0_6, %c1, %c0_7] : memref<1x56x128xbf16, #tpu.memory_space<vmem>>, vector<1x32x128xbf16>
    %8 = vector.shape_cast %7 : vector<1x32x128xbf16> to vector<32x128xbf16>
    %c1_8 = arith.constant 1 : index
    %c0_9 = arith.constant 0 : index
    %c0_10 = arith.constant 0 : index
    %9 = vector.load %arg2[%c1_8, %c0_9, %c0_10] : memref<9x128x256xbf16, #tpu.memory_space<vmem>>, vector<1x128x256xbf16>
    %10 = vector.shape_cast %9 : vector<1x128x256xbf16> to vector<128x256xbf16>
    %cst_11 = arith.constant dense<0.000000e+00> : vector<32x256xf32>
    %11 = tpu.matmul %8, %10, %cst_11 {dimension_numbers = #tpu.dot_dimension_numbers<[1], [0], [0], [1], [0, 0, 1, 1], [], []>} : vector<32x128xbf16>, vector<128x256xbf16>, vector<32x256xf32> -> vector<32x256xf32>
    %12 = arith.addf %6, %11 : vector<32x256xf32>
    %c0_12 = arith.constant 0 : index
    %c2 = arith.constant 2 : index
    %c0_13 = arith.constant 0 : index
    %13 = vector.load %arg1[%c0_12, %c2, %c0_13] : memref<1x56x128xbf16, #tpu.memory_space<vmem>>, vector<1x32x128xbf16>
    %14 = vector.shape_cast %13 : vector<1x32x128xbf16> to vector<32x128xbf16>
    %c2_14 = arith.constant 2 : index
    %c0_15 = arith.constant 0 : index
    %c0_16 = arith.constant 0 : index
    %15 = vector.load %arg2[%c2_14, %c0_15, %c0_16] : memref<9x128x256xbf16, #tpu.memory_space<vmem>>, vector<1x128x256xbf16>
    %16 = vector.shape_cast %15 : vector<1x128x256xbf16> to vector<128x256xbf16>
    %cst_17 = arith.constant dense<0.000000e+00> : vector<32x256xf32>
    %17 = tpu.matmul %14, %16, %cst_17 {dimension_numbers = #tpu.dot_dimension_numbers<[1], [0], [0], [1], [0, 0, 1, 1], [], []>} : vector<32x128xbf16>, vector<128x256xbf16>, vector<32x256xf32> -> vector<32x256xf32>
    %18 = arith.addf %12, %17 : vector<32x256xf32>
    %c0_18 = arith.constant 0 : index
    %c8 = arith.constant 8 : index
    %c0_19 = arith.constant 0 : index
    %19 = vector.load %arg1[%c0_18, %c8, %c0_19] : memref<1x56x128xbf16, #tpu.memory_space<vmem>>, vector<1x32x128xbf16>
    %20 = vector.shape_cast %19 : vector<1x32x128xbf16> to vector<32x128xbf16>
    %c3 = arith.constant 3 : index
    %c0_20 = arith.constant 0 : index
    %c0_21 = arith.constant 0 : index
    %21 = vector.load %arg2[%c3, %c0_20, %c0_21] : memref<9x128x256xbf16, #tpu.memory_space<vmem>>, vector<1x128x256xbf16>
    %22 = vector.shape_cast %21 : vector<1x128x256xbf16> to vector<128x256xbf16>
    %cst_22 = arith.constant dense<0.000000e+00> : vector<32x256xf32>
    %23 = tpu.matmul %20, %22, %cst_22 {dimension_numbers = #tpu.dot_dimension_numbers<[1], [0], [0], [1], [0, 0, 1, 1], [], []>} : vector<32x128xbf16>, vector<128x256xbf16>, vector<32x256xf32> -> vector<32x256xf32>
    %24 = arith.addf %18, %23 : vector<32x256xf32>
    %c0_23 = arith.constant 0 : index
    %c9 = arith.constant 9 : index
    %c0_24 = arith.constant 0 : index
    %25 = vector.load %arg1[%c0_23, %c9, %c0_24] : memref<1x56x128xbf16, #tpu.memory_space<vmem>>, vector<1x32x128xbf16>
    %26 = vector.shape_cast %25 : vector<1x32x128xbf16> to vector<32x128xbf16>
    %c4 = arith.constant 4 : index
    %c0_25 = arith.constant 0 : index
    %c0_26 = arith.constant 0 : index
    %27 = vector.load %arg2[%c4, %c0_25, %c0_26] : memref<9x128x256xbf16, #tpu.memory_space<vmem>>, vector<1x128x256xbf16>
    %28 = vector.shape_cast %27 : vector<1x128x256xbf16> to vector<128x256xbf16>
    %cst_27 = arith.constant dense<0.000000e+00> : vector<32x256xf32>
    %29 = tpu.matmul %26, %28, %cst_27 {dimension_numbers = #tpu.dot_dimension_numbers<[1], [0], [0], [1], [0, 0, 1, 1], [], []>} : vector<32x128xbf16>, vector<128x256xbf16>, vector<32x256xf32> -> vector<32x256xf32>
    %30 = arith.addf %24, %29 : vector<32x256xf32>
    %c0_28 = arith.constant 0 : index
    %c10 = arith.constant 10 : index
    %c0_29 = arith.constant 0 : index
    %31 = vector.load %arg1[%c0_28, %c10, %c0_29] : memref<1x56x128xbf16, #tpu.memory_space<vmem>>, vector<1x32x128xbf16>
    %32 = vector.shape_cast %31 : vector<1x32x128xbf16> to vector<32x128xbf16>
    %c5 = arith.constant 5 : index
    %c0_30 = arith.constant 0 : index
    %c0_31 = arith.constant 0 : index
    %33 = vector.load %arg2[%c5, %c0_30, %c0_31] : memref<9x128x256xbf16, #tpu.memory_space<vmem>>, vector<1x128x256xbf16>
    %34 = vector.shape_cast %33 : vector<1x128x256xbf16> to vector<128x256xbf16>
    %cst_32 = arith.constant dense<0.000000e+00> : vector<32x256xf32>
    %35 = tpu.matmul %32, %34, %cst_32 {dimension_numbers = #tpu.dot_dimension_numbers<[1], [0], [0], [1], [0, 0, 1, 1], [], []>} : vector<32x128xbf16>, vector<128x256xbf16>, vector<32x256xf32> -> vector<32x256xf32>
    %36 = arith.addf %30, %35 : vector<32x256xf32>
    %c0_33 = arith.constant 0 : index
    %c16 = arith.constant 16 : index
    %c0_34 = arith.constant 0 : index
    %37 = vector.load %arg1[%c0_33, %c16, %c0_34] : memref<1x56x128xbf16, #tpu.memory_space<vmem>>, vector<1x32x128xbf16>
    %38 = vector.shape_cast %37 : vector<1x32x128xbf16> to vector<32x128xbf16>
    %c6 = arith.constant 6 : index
    %c0_35 = arith.constant 0 : index
    %c0_36 = arith.constant 0 : index
    %39 = vector.load %arg2[%c6, %c0_35, %c0_36] : memref<9x128x256xbf16, #tpu.memory_space<vmem>>, vector<1x128x256xbf16>
    %40 = vector.shape_cast %39 : vector<1x128x256xbf16> to vector<128x256xbf16>
    %cst_37 = arith.constant dense<0.000000e+00> : vector<32x256xf32>
    %41 = tpu.matmul %38, %40, %cst_37 {dimension_numbers = #tpu.dot_dimension_numbers<[1], [0], [0], [1], [0, 0, 1, 1], [], []>} : vector<32x128xbf16>, vector<128x256xbf16>, vector<32x256xf32> -> vector<32x256xf32>
    %42 = arith.addf %36, %41 : vector<32x256xf32>
    %c0_38 = arith.constant 0 : index
    %c17 = arith.constant 17 : index
    %c0_39 = arith.constant 0 : index
    %43 = vector.load %arg1[%c0_38, %c17, %c0_39] : memref<1x56x128xbf16, #tpu.memory_space<vmem>>, vector<1x32x128xbf16>
    %44 = vector.shape_cast %43 : vector<1x32x128xbf16> to vector<32x128xbf16>
    %c7 = arith.constant 7 : index
    %c0_40 = arith.constant 0 : index
    %c0_41 = arith.constant 0 : index
    %45 = vector.load %arg2[%c7, %c0_40, %c0_41] : memref<9x128x256xbf16, #tpu.memory_space<vmem>>, vector<1x128x256xbf16>
    %46 = vector.shape_cast %45 : vector<1x128x256xbf16> to vector<128x256xbf16>
    %cst_42 = arith.constant dense<0.000000e+00> : vector<32x256xf32>
    %47 = tpu.matmul %44, %46, %cst_42 {dimension_numbers = #tpu.dot_dimension_numbers<[1], [0], [0], [1], [0, 0, 1, 1], [], []>} : vector<32x128xbf16>, vector<128x256xbf16>, vector<32x256xf32> -> vector<32x256xf32>
    %48 = arith.addf %42, %47 : vector<32x256xf32>
    %c0_43 = arith.constant 0 : index
    %c18 = arith.constant 18 : index
    %c0_44 = arith.constant 0 : index
    %49 = vector.load %arg1[%c0_43, %c18, %c0_44] : memref<1x56x128xbf16, #tpu.memory_space<vmem>>, vector<1x32x128xbf16>
    %50 = vector.shape_cast %49 : vector<1x32x128xbf16> to vector<32x128xbf16>
    %c8_45 = arith.constant 8 : index
    %c0_46 = arith.constant 0 : index
    %c0_47 = arith.constant 0 : index
    %51 = vector.load %arg2[%c8_45, %c0_46, %c0_47] : memref<9x128x256xbf16, #tpu.memory_space<vmem>>, vector<1x128x256xbf16>
    %52 = vector.shape_cast %51 : vector<1x128x256xbf16> to vector<128x256xbf16>
    %cst_48 = arith.constant dense<0.000000e+00> : vector<32x256xf32>
    %53 = tpu.matmul %50, %52, %cst_48 {dimension_numbers = #tpu.dot_dimension_numbers<[1], [0], [0], [1], [0, 0, 1, 1], [], []>} : vector<32x128xbf16>, vector<128x256xbf16>, vector<32x256xf32> -> vector<32x256xf32>
    %54 = arith.addf %48, %53 : vector<32x256xf32>
    %c0_49 = arith.constant 0 : index
    %c0_50 = arith.constant 0 : index
    %55 = vector.load %arg3[%c0_49, %c0_50] : memref<1x256xf32, #tpu.memory_space<vmem>>, vector<1x256xf32>
    %56 = vector.broadcast %55 : vector<1x256xf32> to vector<32x256xf32>
    %57 = arith.addf %54, %56 : vector<32x256xf32>
    %cst_51 = arith.constant 0.000000e+00 : f32
    %58 = vector.broadcast %cst_51 : f32 to vector<32x256xf32>
    %59 = arith.maximumf %57, %58 : vector<32x256xf32>
    %60 = arith.truncf %59 : vector<32x256xf32> to vector<32x256xbf16>
    %c0_52 = arith.constant 0 : index
    %c0_53 = arith.constant 0 : index
    %c0_54 = arith.constant 0 : index
    %61 = vector.load %arg4[%c0_52, %c0_53, %c0_54] : memref<1x32x256xbf16, #tpu.memory_space<vmem>>, vector<1x32x256xbf16>
    %62 = vector.shape_cast %61 : vector<1x32x256xbf16> to vector<32x256xbf16>
    %63 = vector.shape_cast %60 : vector<32x256xbf16> to vector<1x32x256xbf16>
    tpu.vector_store %arg4[%c0_52, %c0_53, %c0_54], %63 {strides = array<i32>} : memref<1x32x256xbf16, #tpu.memory_space<vmem>>, vector<1x32x256xbf16>,
    return
  }
  func.func @transform_0(%arg0: i32) -> (i32, i32, i32) {
    %c0_i32 = arith.constant 0 : i32
    %c0_i32_0 = arith.constant 0 : i32
    %c0_i32_1 = arith.constant 0 : i32
    return %arg0, %c0_i32, %c0_i32_0 : i32, i32, i32
  }
  func.func @transform_1(%arg0: i32) -> (i32, i32, i32) {
    %c0_i32 = arith.constant 0 : i32
    %c0_i32_0 = arith.constant 0 : i32
    %c0_i32_1 = arith.constant 0 : i32
    %c0_i32_2 = arith.constant 0 : i32
    return %c0_i32, %c0_i32_0, %c0_i32_1 : i32, i32, i32
  }
  func.func @transform_2(%arg0: i32) -> (i32, i32) {
    %c0_i32 = arith.constant 0 : i32
    %c0_i32_0 = arith.constant 0 : i32
    %c0_i32_1 = arith.constant 0 : i32
    return %c0_i32, %c0_i32_0 : i32, i32
  }
  func.func @transform_3(%arg0: i32) -> (i32, i32, i32) {
    %c0_i32 = arith.constant 0 : i32
    %c0_i32_0 = arith.constant 0 : i32
    %c0_i32_1 = arith.constant 0 : i32
    return %arg0, %c0_i32, %c0_i32_0 : i32, i32, i32
  }
}

module attributes {stable_mosaic.version = 11 : i64} {
  func.func @_maxpool3x3s2_kernel(%arg0: i32, %arg1: memref<1x2x2x256xbf16, #tpu.memory_space<vmem>>, %arg2: memref<1x2x1x256xbf16, #tpu.memory_space<vmem>>, %arg3: memref<1x1x2x256xbf16, #tpu.memory_space<vmem>>, %arg4: memref<1x1x1x256xbf16, #tpu.memory_space<vmem>>, %arg5: memref<1x1x1x256xbf16, #tpu.memory_space<vmem>>) attributes {dimension_semantics = [#tpu.dimension_semantics<parallel>], iteration_bounds = array<i64: 2>, scalar_prefetch = 0 : i64, scratch_operands = 0 : i64, tpu.core_type = #tpu.core_type<tc>, window_params = [{transform_indices = @transform_0, window_bounds = array<i64: 1, 2, 2, 256>}, {transform_indices = @transform_1, window_bounds = array<i64: 1, 2, 1, 256>}, {transform_indices = @transform_2, window_bounds = array<i64: 1, 1, 2, 256>}, {transform_indices = @transform_3, window_bounds = array<i64: 1, 1, 1, 256>}, {transform_indices = @transform_4, window_bounds = array<i64: 1, 1, 1, 256>}]} {
    %c0 = arith.constant 0 : index
    %c0_0 = arith.constant 0 : index
    %c0_1 = arith.constant 0 : index
    %c0_2 = arith.constant 0 : index
    %0 = vector.load %arg1[%c0, %c0_0, %c0_1, %c0_2] : memref<1x2x2x256xbf16, #tpu.memory_space<vmem>>, vector<1x2x2x256xbf16>
    %1 = vector.shape_cast %0 : vector<1x2x2x256xbf16> to vector<2x2x256xbf16>
    %c0_3 = arith.constant 0 : index
    %c0_4 = arith.constant 0 : index
    %c0_5 = arith.constant 0 : index
    %c0_6 = arith.constant 0 : index
    %2 = vector.load %arg2[%c0_3, %c0_4, %c0_5, %c0_6] : memref<1x2x1x256xbf16, #tpu.memory_space<vmem>>, vector<1x2x1x256xbf16>
    %3 = vector.shape_cast %2 : vector<1x2x1x256xbf16> to vector<2x1x256xbf16>
    %c0_7 = arith.constant 0 : index
    %c0_8 = arith.constant 0 : index
    %c0_9 = arith.constant 0 : index
    %c0_10 = arith.constant 0 : index
    %4 = vector.load %arg3[%c0_7, %c0_8, %c0_9, %c0_10] : memref<1x1x2x256xbf16, #tpu.memory_space<vmem>>, vector<1x1x2x256xbf16>
    %5 = vector.shape_cast %4 : vector<1x1x2x256xbf16> to vector<1x2x256xbf16>
    %c0_11 = arith.constant 0 : index
    %c0_12 = arith.constant 0 : index
    %c0_13 = arith.constant 0 : index
    %c0_14 = arith.constant 0 : index
    %6 = vector.load %arg4[%c0_11, %c0_12, %c0_13, %c0_14] : memref<1x1x1x256xbf16, #tpu.memory_space<vmem>>, vector<1x1x1x256xbf16>
    %7 = vector.shape_cast %6 : vector<1x1x1x256xbf16> to vector<1x1x256xbf16>
    %8 = vector.extract_strided_slice %1 {offsets = [0, 0, 0], sizes = [1, 1, 256], strides = [1, 1, 1]} : vector<2x2x256xbf16> to vector<1x1x256xbf16>
    %9 = vector.extract_strided_slice %1 {offsets = [0, 1, 0], sizes = [1, 1, 256], strides = [1, 1, 1]} : vector<2x2x256xbf16> to vector<1x1x256xbf16>
    %10 = arith.maximumf %8, %9 : vector<1x1x256xbf16>
    %11 = vector.extract_strided_slice %1 {offsets = [1, 0, 0], sizes = [1, 1, 256], strides = [1, 1, 1]} : vector<2x2x256xbf16> to vector<1x1x256xbf16>
    %12 = arith.maximumf %10, %11 : vector<1x1x256xbf16>
    %13 = vector.extract_strided_slice %1 {offsets = [1, 1, 0], sizes = [1, 1, 256], strides = [1, 1, 1]} : vector<2x2x256xbf16> to vector<1x1x256xbf16>
    %14 = arith.maximumf %12, %13 : vector<1x1x256xbf16>
    %15 = vector.extract_strided_slice %3 {offsets = [0, 0, 0], sizes = [1, 1, 256], strides = [1, 1, 1]} : vector<2x1x256xbf16> to vector<1x1x256xbf16>
    %16 = arith.maximumf %14, %15 : vector<1x1x256xbf16>
    %17 = vector.extract_strided_slice %3 {offsets = [1, 0, 0], sizes = [1, 1, 256], strides = [1, 1, 1]} : vector<2x1x256xbf16> to vector<1x1x256xbf16>
    %18 = arith.maximumf %16, %17 : vector<1x1x256xbf16>
    %19 = vector.extract_strided_slice %5 {offsets = [0, 0, 0], sizes = [1, 1, 256], strides = [1, 1, 1]} : vector<1x2x256xbf16> to vector<1x1x256xbf16>
    %20 = arith.maximumf %18, %19 : vector<1x1x256xbf16>
    %21 = vector.extract_strided_slice %5 {offsets = [0, 1, 0], sizes = [1, 1, 256], strides = [1, 1, 1]} : vector<1x2x256xbf16> to vector<1x1x256xbf16>
    %22 = arith.maximumf %20, %21 : vector<1x1x256xbf16>
    %23 = arith.maximumf %22, %7 : vector<1x1x256xbf16>
    %c0_15 = arith.constant 0 : index
    %c0_16 = arith.constant 0 : index
    %c0_17 = arith.constant 0 : index
    %c0_18 = arith.constant 0 : index
    %24 = vector.load %arg5[%c0_15, %c0_16, %c0_17, %c0_18] : memref<1x1x1x256xbf16, #tpu.memory_space<vmem>>, vector<1x1x1x256xbf16>
    %25 = vector.shape_cast %24 : vector<1x1x1x256xbf16> to vector<1x1x256xbf16>
    %26 = vector.shape_cast %23 : vector<1x1x256xbf16> to vector<1x1x1x256xbf16>
    tpu.vector_store %arg5[%c0_15, %c0_16, %c0_17, %c0_18], %26 {strides = array<i32>} : memref<1x1x1x256xbf16, #tpu.memory_space<vmem>>, vector<1x1x1x256xbf16>,
    return
  }
  func.func @transform_0(%arg0: i32) -> (i32, i32, i32, i32) {
    %c0_i32 = arith.constant 0 : i32
    %c0_i32_0 = arith.constant 0 : i32
    %c0_i32_1 = arith.constant 0 : i32
    %c0_i32_2 = arith.constant 0 : i32
    return %arg0, %c0_i32, %c0_i32_0, %c0_i32_1 : i32, i32, i32, i32
  }
  func.func @transform_1(%arg0: i32) -> (i32, i32, i32, i32) {
    %c0_i32 = arith.constant 0 : i32
    %c0_i32_0 = arith.constant 0 : i32
    %c0_i32_1 = arith.constant 0 : i32
    %c0_i32_2 = arith.constant 0 : i32
    return %arg0, %c0_i32, %c0_i32_0, %c0_i32_1 : i32, i32, i32, i32
  }
  func.func @transform_2(%arg0: i32) -> (i32, i32, i32, i32) {
    %c0_i32 = arith.constant 0 : i32
    %c0_i32_0 = arith.constant 0 : i32
    %c0_i32_1 = arith.constant 0 : i32
    %c0_i32_2 = arith.constant 0 : i32
    return %arg0, %c0_i32, %c0_i32_0, %c0_i32_1 : i32, i32, i32, i32
  }
  func.func @transform_3(%arg0: i32) -> (i32, i32, i32, i32) {
    %c0_i32 = arith.constant 0 : i32
    %c0_i32_0 = arith.constant 0 : i32
    %c0_i32_1 = arith.constant 0 : i32
    %c0_i32_2 = arith.constant 0 : i32
    return %arg0, %c0_i32, %c0_i32_0, %c0_i32_1 : i32, i32, i32, i32
  }
  func.func @transform_4(%arg0: i32) -> (i32, i32, i32, i32) {
    %c0_i32 = arith.constant 0 : i32
    %c0_i32_0 = arith.constant 0 : i32
    %c0_i32_1 = arith.constant 0 : i32
    %c0_i32_2 = arith.constant 0 : i32
    return %arg0, %c0_i32, %c0_i32_0, %c0_i32_1 : i32, i32, i32, i32
  }
}

</mosaic_0001>

<llo_original>
// kernel: inception_head_forward.7
$region0: #{inception_head_forward.7}
  #allocation0 [shape = 'u32[]', space=smem, size = 0x4, offset = 0x4, fixed_abs, tag = 'smem constant byte address 0x4 - core index']
  #allocation1 [shape = 'u32[144,128]{1,0:T(1,128)}', space=vmem, size = 0x12000, scoped, tag = 'internal scratch']
  %s0 = inlined_call_operand.vmem [shape: bf16[2,225,27], index: 0, kind: input, shape index: {}]
  %s1 = inlined_call_operand.vmem [shape: bf16[27,128], index: 1, kind: input, shape index: {}]
  %s2 = inlined_call_operand.vmem [shape: f32[1,128], index: 2, kind: input, shape index: {}]
  %s3 = inlined_call_operand.vmem [shape: bf16[2,225,128], index: 3, kind: output, shape index: {}]
  %s4 = sld [smem:[#allocation0]]
  $region45: #{inception_head_forward.7} parent=0
    _
  %s6 = ssub.s32 1, %s4
  %s7 = scalar_select 0, %s6, %s4
  loop: start=0, step=1, limit=4
  $region2: #{inception_head_forward.7} parent=0 // loop_pre_header
    _
  $region3: #{inception_head_forward.7} parent=0 // loop_header
    %s9 = sphi 0, %s13
    %p10 = scmp.ge.s32.totalorder %s9, 4
    %s19 = sphi 0, %s21
    %s22 = sphi 0, %s19
    %s23 = sphi 0, %s22
    %s39 = sphi 0, %s23
    %s43 = sphi 0, %s43
    %s45 = sphi 0, %s43
    %s46 = sphi 0, %s45
    %s60 = sphi 0, %s46
    %s64 = sphi 0, %s64
    %s66 = sphi 0, %s64
    %s67 = sphi 0, %s66
    %s81 = sphi 0, %s67
    %s87 = sphi 0, %s89
    %s90 = sphi 0, %s87
    %s91 = sphi 0, %s90
    %s107 = sphi 0, %s91
  $region4: #{inception_head_forward.7} parent=0 // loop_header_branch
    %12 = sbr.rel (%p10) target = $region8
  $region5: #{inception_head_forward.7} parent=0 // loop_body
    %s14 = ssub.s32 %s9, 1
    %s15 = ssub.s32 %s9, 2
    %s16 = sadd.s32 %s9, 1
    %s17 = ssub.s32 %s9, %s16
    %p18 = scmp.eq.s32.totalorder %s17, 0
    %s20 = sadd.s32 %s19, 1
    %s21 = scalar_select %p18, %s19, %s20
    %p24 = pneg %p18
    %p25 = scmp.eq.s32.totalorder %s9, 1
    %p26 = por %p24, %p25
    %p27 = scmp.ne.s32.totalorder %s19, %s22
    %p28 = scmp.eq.s32.totalorder %s9, 0
    %p29 = por %p27, %p28
    %p30 = scmp.ne.s32.totalorder %s19, %s22
    %p31 = scmp.eq.s32.totalorder %s14, 1
    %p32 = por %p30, %p31
    %p33 = scmp.ne.s32.totalorder %s22, %s23
    %p34 = scmp.eq.s32.totalorder %s14, 0
    %p35 = por %p33, %p34
    %p36 = scmp.ne.s32.totalorder %s22, %s23
    %p37 = scmp.eq.s32.totalorder %s15, 1
    %p38 = por %p36, %p37
    %p40 = scmp.ne.s32.totalorder %s23, %s39
    %p41 = scmp.eq.s32.totalorder %s15, 0
    %p42 = por %p40, %p41
    %s44 = sadd.s32 %s43, 1
    %p47 = scmp.eq.s32.totalorder %s9, 1
    %p48 = scmp.ne.s32.totalorder %s43, %s45
    %p49 = scmp.eq.s32.totalorder %s9, 0
    %p50 = por %p48, %p49
    %p51 = scmp.ne.s32.totalorder %s43, %s45
    %p52 = scmp.eq.s32.totalorder %s14, 1
    %p53 = por %p51, %p52
    %p54 = scmp.ne.s32.totalorder %s45, %s46
    %p55 = scmp.eq.s32.totalorder %s14, 0
    %p56 = por %p54, %p55
    %p57 = scmp.ne.s32.totalorder %s45, %s46
    %p58 = scmp.eq.s32.totalorder %s15, 1
    %p59 = por %p57, %p58
    %p61 = scmp.ne.s32.totalorder %s46, %s60
    %p62 = scmp.eq.s32.totalorder %s15, 0
    %p63 = por %p61, %p62
    %s65 = sadd.s32 %s64, 1
    %p68 = scmp.eq.s32.totalorder %s9, 1
    %p69 = scmp.ne.s32.totalorder %s64, %s66
    %p70 = scmp.eq.s32.totalorder %s9, 0
    %p71 = por %p69, %p70
    %p72 = scmp.ne.s32.totalorder %s64, %s66
    %p73 = scmp.eq.s32.totalorder %s14, 1
    %p74 = por %p72, %p73
    %p75 = scmp.ne.s32.totalorder %s66, %s67
    %p76 = scmp.eq.s32.totalorder %s14, 0
    %p77 = por %p75, %p76
    %p78 = scmp.ne.s32.totalorder %s66, %s67
    %p79 = scmp.eq.s32.totalorder %s15, 1
    %p80 = por %p78, %p79
    %p82 = scmp.ne.s32.totalorder %s67, %s81
    %p83 = scmp.eq.s32.totalorder %s15, 0
    %p84 = por %p82, %p83
    %s85 = ssub.s32 %s9, %s16
    %p86 = scmp.eq.s32.totalorder %s85, 0
    %s88 = sadd.s32 %s87, 1
    %s89 = scalar_select %p86, %s87, %s88
    %p92 = pneg %p86
    %p93 = scmp.eq.s32.totalorder %s9, 1
    %p94 = por %p92, %p93
    %p95 = scmp.ne.s32.totalorder %s87, %s90
    %p96 = scmp.eq.s32.totalorder %s9, 0
    %p97 = por %p95, %p96
    %p98 = scmp.ne.s32.totalorder %s87, %s90
    %p99 = scmp.eq.s32.totalorder %s14, 1
    %p100 = por %p98, %p99
    %p101 = scmp.ne.s32.totalorder %s90, %s91
    %p102 = scmp.eq.s32.totalorder %s14, 0
    %p103 = por %p101, %p102
    %p104 = scmp.ne.s32.totalorder %s90, %s91
    %p105 = scmp.eq.s32.totalorder %s15, 1
    %p106 = por %p104, %p105
    %p108 = scmp.ne.s32.totalorder %s91, %s107
    %p109 = scmp.eq.s32.totalorder %s15, 0
    %p110 = por %p108, %p109
    %p111 = scmp.le.s32.totalorder 1, %s9
    %p112 = scmp.lt.s32.totalorder %s9, 3
    %p113 = pnand %p111, %p112
    %p114 = pneg %p113
    // Predicated region
    $region9: #{inception_head_forward.7} parent=5 // pred_check
      _
    $region10: #{inception_head_forward.7} parent=5 // pred_check_branch
      %116 = sbr.rel (%p113) target = $region12
    $region11: #{inception_head_forward.7} parent=5 // pred_region
      %s117 = ssub.s32 %s9, 1
      // Predicated region
      $region13: #{inception_head_forward.7} parent=11 // pred_check
        %p118 = pneg %p56
      $region14: #{inception_head_forward.7} parent=11 // pred_check_branch
        %120 = sbr.rel (%p118) target = $region16
      $region15: #{inception_head_forward.7} parent=11 // pred_region
        _
      $region16: #{inception_head_forward.7} parent=11 // pred_fallthru
        _
      // Predicated region
      $region17: #{inception_head_forward.7} parent=11 // pred_check
        %p121 = pneg %p77
      $region18: #{inception_head_forward.7} parent=11 // pred_check_branch
        %123 = sbr.rel (%p121) target = $region20
      $region19: #{inception_head_forward.7} parent=11 // pred_region
        _
      $region20: #{inception_head_forward.7} parent=11 // pred_fallthru
        _
    $region12: #{inception_head_forward.7} parent=5 // pred_fallthru
      _
    %p124 = scmp.lt.s32.totalorder %s9, 2
    // Predicated region
    $region21: #{inception_head_forward.7} parent=5 // pred_check
      %p125 = pneg %p124
    $region22: #{inception_head_forward.7} parent=5 // pred_check_branch
      %127 = sbr.rel (%p125) target = $region24
    $region23: #{inception_head_forward.7} parent=5 // pred_region
      // Predicated region
      $region25: #{inception_head_forward.7} parent=23 // pred_check
        %p128 = pneg %p29
      $region26: #{inception_head_forward.7} parent=23 // pred_check_branch
        %130 = sbr.rel (%p128) target = $region28
      $region27: #{inception_head_forward.7} parent=23 // pred_region
        %p131 = scmp.lt.s32.totalorder %s9, 1
        %s132 = scalar_select %p131, %s9, 1
        %s133 = smul.addr %s132, 29
        %s134 = smul.addr %s133, 4
        %s135 = scalar_lea.vmem %s0, %s134
      $region28: #{inception_head_forward.7} parent=23 // pred_fallthru
        _
    $region24: #{inception_head_forward.7} parent=5 // pred_fallthru
      _
    %p136 = scmp.le.s32.totalorder 1, %s9
    %p137 = scmp.lt.s32.totalorder %s9, 3
    %p138 = pnand %p136, %p137
    %p139 = pneg %p138
    // Predicated region
    $region29: #{inception_head_forward.7} parent=5 // pred_check
      _
    $region30: #{inception_head_forward.7} parent=5 // pred_check_branch
      %141 = sbr.rel (%p138) target = $region32
    $region31: #{inception_head_forward.7} parent=5 // pred_region
      %s142 = ssub.s32 %s9, 1
      %p143 = scmp.lt.s32.totalorder %s14, 1
      %s144 = scalar_select %p143, %s14, 1
      %s145 = smul.addr %s144, 29
      %s146 = smul.addr %s145, 4
      %s147 = scalar_lea.vmem %s0, %s146
      %p148 = pneg %p35
      %p149 = pneg %p32
      %p150 = pneg %p56
      %p151 = pneg %p53
      %p152 = pneg %p77
      %p153 = pneg %p74
      %p154 = pneg %p103
      %p155 = pneg %p100
      %p156 = scmp.lt.s32.totalorder %s14, 1
      %s157 = scalar_select %p156, %s14, 1
      %s158 = smul.addr %s157, 29
      %s159 = smul.addr %s158, 4
      %s160 = scalar_lea.vmem %s3, %s159
      %p161 = scmp.lt.s32.totalorder %s14, 1
      %s162 = scalar_select %p161, %s14, 1
      %s163 = smul.addr %s162, 29
      %s164 = smul.addr %s163, 4
      %s165 = scalar_lea.vmem %s0, %s164
      %p166 = scmp.lt.s32.totalorder %s14, 1
      %s167 = scalar_select %p166, %s14, 1
      %s168 = smul.addr %s167, 29
      %s169 = smul.addr %s168, 4
      %s170 = scalar_lea.vmem %s3, %s169
      %v172 = vld [vmem:[%s165] sm:$0xf]
      %v173 = vld [vmem:[%s165 + $0x4] sm:$0xf]
      %v174 = vld [vmem:[%s165 + $0x8] sm:$0xf]
      %v175 = vld [vmem:[%s165 + $0xc] sm:$0xf]
      %v176 = vld [vmem:[%s165 + $0x10] sm:$0xf]
      %v177 = vld [vmem:[%s165 + $0x14] sm:$0xf]
      %v178 = vld [vmem:[%s165 + $0x18] sm:$0xf]
      %v179 = vld [vmem:[%s165 + $0x1c] sm:$0xf]
      %v180 = vld [vmem:[%s165 + $0x20] sm:$0xf]
      %v181 = vld [vmem:[%s165 + $0x24] sm:$0xf]
      %v182 = vld [vmem:[%s165 + $0x28] sm:$0xf]
      %v183 = vld [vmem:[%s165 + $0x2c] sm:$0xf]
      %v184 = vld [vmem:[%s165 + $0x30] sm:$0xf]
      %v185 = vld [vmem:[%s165 + $0x34] sm:$0xf]
      %v186 = vld [vmem:[%s165 + $0x38] sm:$0xf]
      %v187 = vld [vmem:[%s165 + $0x3c] sm:$0xf]
      %v188 = vld [vmem:[%s165 + $0x40] sm:$0xf]
      %v189 = vld [vmem:[%s165 + $0x44] sm:$0xf]
      %v190 = vld [vmem:[%s165 + $0x48] sm:$0xf]
      %v191 = vld [vmem:[%s165 + $0x4c] sm:$0xf]
      %v192 = vld [vmem:[%s165 + $0x50] sm:$0xf]
      %v193 = vld [vmem:[%s165 + $0x54] sm:$0xf]
      %v194 = vld [vmem:[%s165 + $0x58] sm:$0xf]
      %v195 = vld [vmem:[%s165 + $0x5c] sm:$0xf]
      %v196 = vld [vmem:[%s165 + $0x60] sm:$0xf]
      %v197 = vld [vmem:[%s165 + $0x64] sm:$0xf]
      %v198 = vld [vmem:[%s165 + $0x68] sm:$0xf]
      %v199 = vld [vmem:[%s165 + $0x6c] sm:$0xf]
      %v200 = vld [vmem:[%s165 + $0x70] sm:$0x1]
      %v201 = vld [vmem:[%s1] sm:$0xf]
      %v202 = vld [vmem:[%s1 + $0x4] sm:$0xf]
      %v203 = vld [vmem:[%s1 + $0x8] sm:$0xf]
      %v204 = vld [vmem:[%s1 + $0xc] sm:$0x3]
      %v205 = vld [vmem:[%s2] sm:$0x1]
      %v207 = vlaneseq
      %v208 = vshrl.u32 %v207, 7
      %v209 = vsub.s32 0, %v208
      %v210 = vrot.slane %v205, %v209
      %v241 = vunpack.c.l.b16 %v172
      %v242 = vunpack.c.l.b16 %v173
      %v243 = vunpack.c.l.b16 %v174
      %v244 = vunpack.c.l.b16 %v175
      %v245 = vunpack.c.l.b16 %v176
      %v246 = vunpack.c.l.b16 %v177
      %v247 = vunpack.c.l.b16 %v178
      %v248 = vunpack.c.l.b16 %v179
      %v249 = vunpack.c.l.b16 %v180
      %v250 = vunpack.c.l.b16 %v181
      %v251 = vunpack.c.l.b16 %v182
      %v252 = vunpack.c.l.b16 %v183
      %v253 = vunpack.c.l.b16 %v184
      %v254 = vunpack.c.l.b16 %v185
      %v255 = vunpack.c.l.b16 %v186
      %v256 = vunpack.c.l.b16 %v187
      %v257 = vunpack.c.l.b16 %v188
      %v258 = vunpack.c.l.b16 %v189
      %v259 = vunpack.c.l.b16 %v190
      %v260 = vunpack.c.l.b16 %v191
      %v261 = vunpack.c.l.b16 %v192
      %v262 = vunpack.c.l.b16 %v193
      %v263 = vunpack.c.l.b16 %v194
      %v264 = vunpack.c.l.b16 %v195
      %v265 = vunpack.c.l.b16 %v196
      %v266 = vunpack.c.l.b16 %v197
      %v267 = vunpack.c.l.b16 %v198
      %v268 = vunpack.c.l.b16 %v199
      %v269 = vunpack.c.l.b16 %v200
      %v270 = vpack.c.b16 %v242, %v241
      %v271 = vpack.c.b16 %v244, %v243
      %v272 = vpack.c.b16 %v246, %v245
      %v273 = vpack.c.b16 %v248, %v247
      %v274 = vpack.c.b16 %v250, %v249
      %v275 = vpack.c.b16 %v252, %v251
      %v276 = vpack.c.b16 %v254, %v253
      %v277 = vpack.c.b16 %v256, %v255
      %v278 = vpack.c.b16 %v258, %v257
      %v279 = vpack.c.b16 %v260, %v259
      %v280 = vpack.c.b16 %v262, %v261
      %v281 = vpack.c.b16 %v264, %v263
      %v282 = vpack.c.b16 %v266, %v265
      %v283 = vpack.c.b16 %v268, %v267
      %v284 = vpack.c.b16 %v269, %v269
      %v289 = vunpack.c.l.b16 %v201
      %v290 = vunpack.c.l.b16 %v202
      %v291 = vunpack.c.l.b16 %v203
      %v292 = vunpack.c.l.b16 %v204
      %v293 = vpack.c.b16 %v290, %v289
      %v294 = vpack.c.b16 %v292, %v291
      %vm296 = vcmask 220160
      %v298 = vsel %vm296, %v270, 0
      %v301 = vsel %vm296, %v271, 0
      %v304 = vsel %vm296, %v272, 0
      %v307 = vsel %vm296, %v273, 0
      %v310 = vsel %vm296, %v274, 0
      %v313 = vsel %vm296, %v275, 0
      %v316 = vsel %vm296, %v276, 0
      %v319 = vsel %vm296, %v277, 0
      %v322 = vsel %vm296, %v278, 0
      %v325 = vsel %vm296, %v279, 0
      %v328 = vsel %vm296, %v280, 0
      %v331 = vsel %vm296, %v281, 0
      %v334 = vsel %vm296, %v282, 0
      %v337 = vsel %vm296, %v283, 0
      %v340 = vsel %vm296, %v284, 0
      %vm342 = vcmask 1044480
      %vm343 = vcmask 1045504
      %v344 = vsel %vm342, 4294967295, 65535
      %v345 = vsel %vm343, %v344, 0
      %v347 = vand.u32 %v294, %v345
      %349 = vmatprep.subr.bf16.mxu0 0
      %350 = vmatpush1.bf16.msra.mxu0 %v293
      %351 = vmatprep.subr.bf16.mxu0 0
      %352 = vmatpush1.bf16.msra.mxu0 %v347
      %353 = vmatprep.subr.bf16.mxu0 0
      %354 = vmatpush1.bf16.msra.mxu0 0
      %355 = vmatprep.subr.bf16.mxu0 0
      %356 = vmatpush1.bf16.msra.mxu0 0
      %357 = vmatprep.subr.bf16.mxu0 0
      %358 = vmatpush1.bf16.msra.mxu0 0
      %359 = vmatprep.subr.bf16.mxu0 0
      %360 = vmatpush1.bf16.msra.mxu0 0
      %361 = vmatprep.subr.bf16.mxu0 0
      %362 = vmatpush1.bf16.msra.mxu0 0
      %363 = vmatprep.subr.bf16.mxu0 0
      %364 = vmatpush1.bf16.msra.mxu0 0
      %365 = vmatprep.subr.bf16.mxu0 0
      %366 = vmatpush1.bf16.msra.mxu0 0
      %367 = vmatprep.subr.bf16.mxu0 0
      %368 = vmatpush1.bf16.msra.mxu0 0
      %369 = vmatprep.subr.bf16.mxu0 0
      %370 = vmatpush1.bf16.msra.mxu0 0
      %371 = vmatprep.subr.bf16.mxu0 0
      %372 = vmatpush1.bf16.msra.mxu0 0
      %373 = vmatprep.subr.bf16.mxu0 0
      %374 = vmatpush1.bf16.msra.mxu0 0
      %375 = vmatprep.subr.bf16.mxu0 0
      %376 = vmatpush1.bf16.msra.mxu0 0
      %377 = vmatprep.subr.bf16.mxu0 0
      %378 = vmatpush1.bf16.msra.mxu0 0
      %379 = vmatprep.subr.bf16.mxu0 0
      %380 = vmatpush1.bf16.msra.mxu0 0
      %381 = vmatprep.mubr.bf16.mxu0 0
      %382 = vmatmul.mubr.bf16.gmra.mrb[0].mxu0 %v298
      %v383 = vpop.f32.mrb[0].mxu0
      %v384 = vadd.f32 %v210, %v383
      %v385 = vpop.f32.mrb[0].mxu0
      %v386 = vpop.f32.mrb[0].mxu0
      %v387 = vadd.f32 %v210, %v386
      %v388 = vpop.f32.mrb[0].mxu0
      %389 = vmatprep.mubr.bf16.mxu0 0
      %390 = vmatmul.mubr.bf16.gmra.mrb[0].mxu0 %v301
      %v391 = vpop.f32.mrb[0].mxu0
      %v392 = vadd.f32 %v210, %v391
      %v393 = vpop.f32.mrb[0].mxu0
      %v394 = vpop.f32.mrb[0].mxu0
      %v395 = vadd.f32 %v210, %v394
      %v396 = vpop.f32.mrb[0].mxu0
      %397 = vmatprep.mubr.bf16.mxu0 0
      %398 = vmatmul.mubr.bf16.gmra.mrb[0].mxu0 %v304
      %v399 = vpop.f32.mrb[0].mxu0
      %v400 = vadd.f32 %v210, %v399
      %v401 = vpop.f32.mrb[0].mxu0
      %v402 = vpop.f32.mrb[0].mxu0
      %v403 = vadd.f32 %v210, %v402
      %v404 = vpop.f32.mrb[0].mxu0
      %405 = vmatprep.mubr.bf16.mxu0 0
      %406 = vmatmul.mubr.bf16.gmra.mrb[0].mxu0 %v307
      %v407 = vpop.f32.mrb[0].mxu0
      %v408 = vadd.f32 %v210, %v407
      %v409 = vpop.f32.mrb[0].mxu0
      %v410 = vpop.f32.mrb[0].mxu0
      %v411 = vadd.f32 %v210, %v410
      %v412 = vpop.f32.mrb[0].mxu0
      %413 = vmatprep.mubr.bf16.mxu0 0
      %414 = vmatmul.mubr.bf16.gmra.mrb[0].mxu0 %v310
      %v415 = vpop.f32.mrb[0].mxu0
      %v416 = vadd.f32 %v210, %v415
      %v417 = vpop.f32.mrb[0].mxu0
      %v418 = vpop.f32.mrb[0].mxu0
      %v419 = vadd.f32 %v210, %v418
      %v420 = vpop.f32.mrb[0].mxu0
      %421 = vmatprep.mubr.bf16.mxu0 0
      %422 = vmatmul.mubr.bf16.gmra.mrb[0].mxu0 %v313
      %v423 = vpop.f32.mrb[0].mxu0
      %v424 = vadd.f32 %v210, %v423
      %v425 = vpop.f32.mrb[0].mxu0
      %v426 = vpop.f32.mrb[0].mxu0
      %v427 = vadd.f32 %v210, %v426
      %v428 = vpop.f32.mrb[0].mxu0
      %429 = vmatprep.mubr.bf16.mxu0 0
      %430 = vmatmul.mubr.bf16.gmra.mrb[0].mxu0 %v316
      %v431 = vpop.f32.mrb[0].mxu0
      %v432 = vadd.f32 %v210, %v431
      %v433 = vpop.f32.mrb[0].mxu0
      %v434 = vpop.f32.mrb[0].mxu0
      %v435 = vadd.f32 %v210, %v434
      %v436 = vpop.f32.mrb[0].mxu0
      %437 = vmatprep.mubr.bf16.mxu0 0
      %438 = vmatmul.mubr.bf16.gmra.mrb[0].mxu0 %v319
      %v439 = vpop.f32.mrb[0].mxu0
      %v440 = vadd.f32 %v210, %v439
      %v441 = vpop.f32.mrb[0].mxu0
      %v442 = vpop.f32.mrb[0].mxu0
      %v443 = vadd.f32 %v210, %v442
      %v444 = vpop.f32.mrb[0].mxu0
      %445 = vmatprep.mubr.bf16.mxu0 0
      %446 = vmatmul.mubr.bf16.gmra.mrb[0].mxu0 %v322
      %v447 = vpop.f32.mrb[0].mxu0
      %v448 = vadd.f32 %v210, %v447
      %v449 = vpop.f32.mrb[0].mxu0
      %v450 = vpop.f32.mrb[0].mxu0
      %v451 = vadd.f32 %v210, %v450
      %v452 = vpop.f32.mrb[0].mxu0
      %453 = vmatprep.mubr.bf16.mxu0 0
      %454 = vmatmul.mubr.bf16.gmra.mrb[0].mxu0 %v325
      %v455 = vpop.f32.mrb[0].mxu0
      %v456 = vadd.f32 %v210, %v455
      %v457 = vpop.f32.mrb[0].mxu0
      %v458 = vpop.f32.mrb[0].mxu0
      %v459 = vadd.f32 %v210, %v458
      %v460 = vpop.f32.mrb[0].mxu0
      %461 = vmatprep.mubr.bf16.mxu0 0
      %462 = vmatmul.mubr.bf16.gmra.mrb[0].mxu0 %v328
      %v463 = vpop.f32.mrb[0].mxu0
      %v464 = vadd.f32 %v210, %v463
      %v465 = vpop.f32.mrb[0].mxu0
      %v466 = vpop.f32.mrb[0].mxu0
      %v467 = vadd.f32 %v210, %v466
      %v468 = vpop.f32.mrb[0].mxu0
      %469 = vmatprep.mubr.bf16.mxu0 0
      %470 = vmatmul.mubr.bf16.gmra.mrb[0].mxu0 %v331
      %v471 = vpop.f32.mrb[0].mxu0
      %v472 = vadd.f32 %v210, %v471
      %v473 = vpop.f32.mrb[0].mxu0
      %v474 = vpop.f32.mrb[0].mxu0
      %v475 = vadd.f32 %v210, %v474
      %v476 = vpop.f32.mrb[0].mxu0
      %477 = vmatprep.mubr.bf16.mxu0 0
      %478 = vmatmul.mubr.bf16.gmra.mrb[0].mxu0 %v334
      %v479 = vpop.f32.mrb[0].mxu0
      %v480 = vadd.f32 %v210, %v479
      %v481 = vpop.f32.mrb[0].mxu0
      %v482 = vpop.f32.mrb[0].mxu0
      %v483 = vadd.f32 %v210, %v482
      %v484 = vpop.f32.mrb[0].mxu0
      %485 = vmatprep.mubr.bf16.mxu0 0
      %486 = vmatmul.mubr.bf16.gmra.mrb[0].mxu0 %v337
      %v487 = vpop.f32.mrb[0].mxu0
      %v488 = vadd.f32 %v210, %v487
      %v489 = vpop.f32.mrb[0].mxu0
      %v490 = vpop.f32.mrb[0].mxu0
      %v491 = vadd.f32 %v210, %v490
      %v492 = vpop.f32.mrb[0].mxu0
      %493 = vmatprep.mubr.bf16.mxu0 0
      %494 = vmatmul.mubr.bf16.gmra.mrb[0].mxu0 %v340
      %v495 = vpop.f32.mrb[0].mxu0
      %v496 = vadd.f32 %v210, %v495
      %v497 = vpop.f32.mrb[0].mxu0
      %v498 = vpop.f32.mrb[0].mxu0
      %v499 = vpop.f32.mrb[0].mxu0
      %500 = vdwg.mxu0
      %v501 = vmax.f32 %v384, 0.0
      %v502 = vmax.f32 %v387, 0.0
      %v503 = vmax.f32 %v392, 0.0
      %v504 = vmax.f32 %v395, 0.0
      %v505 = vmax.f32 %v400, 0.0
      %v506 = vmax.f32 %v403, 0.0
      %v507 = vmax.f32 %v408, 0.0
      %v508 = vmax.f32 %v411, 0.0
      %v509 = vmax.f32 %v416, 0.0
      %v510 = vmax.f32 %v419, 0.0
      %v511 = vmax.f32 %v424, 0.0
      %v512 = vmax.f32 %v427, 0.0
      %v513 = vmax.f32 %v432, 0.0
      %v514 = vmax.f32 %v435, 0.0
      %v515 = vmax.f32 %v440, 0.0
      %v516 = vmax.f32 %v443, 0.0
      %v517 = vmax.f32 %v448, 0.0
      %v518 = vmax.f32 %v451, 0.0
      %v519 = vmax.f32 %v456, 0.0
      %v520 = vmax.f32 %v459, 0.0
      %v521 = vmax.f32 %v464, 0.0
      %v522 = vmax.f32 %v467, 0.0
      %v523 = vmax.f32 %v472, 0.0
      %v524 = vmax.f32 %v475, 0.0
      %v525 = vmax.f32 %v480, 0.0
      %v526 = vmax.f32 %v483, 0.0
      %v527 = vmax.f32 %v488, 0.0
      %v528 = vmax.f32 %v491, 0.0
      %v529 = vmax.f32 %v496, 0.0
      %v530 = vpack.c.bf16 %v502, %v501
      %v531 = vpack.c.bf16 %v504, %v503
      %v532 = vpack.c.bf16 %v506, %v505
      %v533 = vpack.c.bf16 %v508, %v507
      %v534 = vpack.c.bf16 %v510, %v509
      %v535 = vpack.c.bf16 %v512, %v511
      %v536 = vpack.c.bf16 %v514, %v513
      %v537 = vpack.c.bf16 %v516, %v515
      %v538 = vpack.c.bf16 %v518, %v517
      %v539 = vpack.c.bf16 %v520, %v519
      %v540 = vpack.c.bf16 %v522, %v521
      %v541 = vpack.c.bf16 %v524, %v523
      %v542 = vpack.c.bf16 %v526, %v525
      %v543 = vpack.c.bf16 %v528, %v527
      %v544 = vpack.c.bf16 %v529, %v529
      %v560 = vunpack.c.l.b16 %v530
      %v561 = vunpack.c.h.b16 %v530
      %v562 = vunpack.c.l.b16 %v531
      %v563 = vunpack.c.h.b16 %v531
      %v564 = vunpack.c.l.b16 %v532
      %v565 = vunpack.c.h.b16 %v532
      %v566 = vunpack.c.l.b16 %v533
      %v567 = vunpack.c.h.b16 %v533
      %v568 = vunpack.c.l.b16 %v534
      %v569 = vunpack.c.h.b16 %v534
      %v570 = vunpack.c.l.b16 %v535
      %v571 = vunpack.c.h.b16 %v535
      %v572 = vunpack.c.l.b16 %v536
      %v573 = vunpack.c.h.b16 %v536
      %v574 = vunpack.c.l.b16 %v537
      %v575 = vunpack.c.h.b16 %v537
      %v576 = vunpack.c.l.b16 %v538
      %v577 = vunpack.c.h.b16 %v538
      %v578 = vunpack.c.l.b16 %v539
      %v579 = vunpack.c.h.b16 %v539
      %v580 = vunpack.c.l.b16 %v540
      %v581 = vunpack.c.h.b16 %v540
      %v582 = vunpack.c.l.b16 %v541
      %v583 = vunpack.c.h.b16 %v541
      %v584 = vunpack.c.l.b16 %v542
      %v585 = vunpack.c.h.b16 %v542
      %v586 = vunpack.c.l.b16 %v543
      %v587 = vunpack.c.h.b16 %v543
      %v588 = vunpack.c.l.b16 %v544
      %v589 = vpack.c.b16 %v560, %v560
      %v590 = vpack.c.b16 %v561, %v561
      %v591 = vpack.c.b16 %v562, %v562
      %v592 = vpack.c.b16 %v563, %v563
      %v593 = vpack.c.b16 %v564, %v564
      %v594 = vpack.c.b16 %v565, %v565
      %v595 = vpack.c.b16 %v566, %v566
      %v596 = vpack.c.b16 %v567, %v567
      %v597 = vpack.c.b16 %v568, %v568
      %v598 = vpack.c.b16 %v569, %v569
      %v599 = vpack.c.b16 %v570, %v570
      %v600 = vpack.c.b16 %v571, %v571
      %v601 = vpack.c.b16 %v572, %v572
      %v602 = vpack.c.b16 %v573, %v573
      %v603 = vpack.c.b16 %v574, %v574
      %v604 = vpack.c.b16 %v575, %v575
      %v605 = vpack.c.b16 %v576, %v576
      %v606 = vpack.c.b16 %v577, %v577
      %v607 = vpack.c.b16 %v578, %v578
      %v608 = vpack.c.b16 %v579, %v579
      %v609 = vpack.c.b16 %v580, %v580
      %v610 = vpack.c.b16 %v581, %v581
      %v611 = vpack.c.b16 %v582, %v582
      %v612 = vpack.c.b16 %v583, %v583
      %v613 = vpack.c.b16 %v584, %v584
      %v614 = vpack.c.b16 %v585, %v585
      %v615 = vpack.c.b16 %v586, %v586
      %v616 = vpack.c.b16 %v587, %v587
      %v617 = vpack.c.b16 %v588, %v588
      %647 = vst [vmem:[%s170] sm:$0xf] %v589
      %648 = vst [vmem:[%s170 + $0x4] sm:$0xf] %v590
      %649 = vst [vmem:[%s170 + $0x8] sm:$0xf] %v591
      %650 = vst [vmem:[%s170 + $0xc] sm:$0xf] %v592
      %651 = vst [vmem:[%s170 + $0x10] sm:$0xf] %v593
      %652 = vst [vmem:[%s170 + $0x14] sm:$0xf] %v594
      %653 = vst [vmem:[%s170 + $0x18] sm:$0xf] %v595
      %654 = vst [vmem:[%s170 + $0x1c] sm:$0xf] %v596
      %655 = vst [vmem:[%s170 + $0x20] sm:$0xf] %v597
      %656 = vst [vmem:[%s170 + $0x24] sm:$0xf] %v598
      %657 = vst [vmem:[%s170 + $0x28] sm:$0xf] %v599
      %658 = vst [vmem:[%s170 + $0x2c] sm:$0xf] %v600
      %659 = vst [vmem:[%s170 + $0x30] sm:$0xf] %v601
      %660 = vst [vmem:[%s170 + $0x34] sm:$0xf] %v602
      %661 = vst [vmem:[%s170 + $0x38] sm:$0xf] %v603
      %662 = vst [vmem:[%s170 + $0x3c] sm:$0xf] %v604
      %663 = vst [vmem:[%s170 + $0x40] sm:$0xf] %v605
      %664 = vst [vmem:[%s170 + $0x44] sm:$0xf] %v606
      %665 = vst [vmem:[%s170 + $0x48] sm:$0xf] %v607
      %666 = vst [vmem:[%s170 + $0x4c] sm:$0xf] %v608
      %667 = vst [vmem:[%s170 + $0x50] sm:$0xf] %v609
      %668 = vst [vmem:[%s170 + $0x54] sm:$0xf] %v610
      %669 = vst [vmem:[%s170 + $0x58] sm:$0xf] %v611
      %670 = vst [vmem:[%s170 + $0x5c] sm:$0xf] %v612
      %671 = vst [vmem:[%s170 + $0x60] sm:$0xf] %v613
      %672 = vst [vmem:[%s170 + $0x64] sm:$0xf] %v614
      %673 = vst [vmem:[%s170 + $0x68] sm:$0xf] %v615
      %674 = vst [vmem:[%s170 + $0x6c] sm:$0xf] %v616
      %vm675 = vcmask 1040384
      %vm676 = vsmask.f32 256
      %vm677 = vmand %vm675, %vm676
      %v678 = vld [vmem:[%s170 + $0x70] sm:$0x1]
      %v679 = vsel %vm677, %v617, %v678
      %680 = vst [vmem:[%s170 + $0x70] sm:$0x1] %v679
      %p681 = scmp.lt.s32.totalorder %s14, 1
      %s682 = scalar_select %p681, %s14, 1
      %s683 = smul.addr %s682, 29
      %s684 = smul.addr %s683, 4
      %s685 = scalar_lea.vmem %s3, %s684
      // Predicated region
      $region33: #{inception_head_forward.7} parent=31 // pred_check
        %p686 = pneg %p100
      $region34: #{inception_head_forward.7} parent=31 // pred_check_branch
        %688 = sbr.rel (%p686) target = $region36
      $region35: #{inception_head_forward.7} parent=31 // pred_region
        _
      $region36: #{inception_head_forward.7} parent=31 // pred_fallthru
        _
    $region32: #{inception_head_forward.7} parent=5 // pred_fallthru
      _
    %p689 = scmp.le.s32.totalorder 2, %s9
    // Predicated region
    $region37: #{inception_head_forward.7} parent=5 // pred_check
      %p690 = pneg %p689
    $region38: #{inception_head_forward.7} parent=5 // pred_check_branch
      %692 = sbr.rel (%p690) target = $region40
    $region39: #{inception_head_forward.7} parent=5 // pred_region
      %s693 = ssub.s32 %s9, 2
      // Predicated region
      $region41: #{inception_head_forward.7} parent=39 // pred_check
        %p694 = pneg %p106
      $region42: #{inception_head_forward.7} parent=39 // pred_check_branch
        %696 = sbr.rel (%p694) target = $region44
      $region43: #{inception_head_forward.7} parent=39 // pred_region
        %p697 = scmp.lt.s32.totalorder %s15, 1
        %s698 = scalar_select %p697, %s15, 1
        %s699 = smul.addr %s698, 29
        %s700 = smul.addr %s699, 4
        %s701 = scalar_lea.vmem %s3, %s700
      $region44: #{inception_head_forward.7} parent=39 // pred_fallthru
        _
    $region40: #{inception_head_forward.7} parent=5 // pred_fallthru
      _
  $region6: #{inception_head_forward.7} parent=0 // loop_footer
    %s13 = sadd.s32 1, %s9
  $region7: #{inception_head_forward.7} parent=0 // loop_footer_branch
    %8 = sbr.rel target = $region3
  $region8: #{inception_head_forward.7} parent=0 // loop_exit
    _

// kernel: inception_head_forward.11
$region0: #{inception_head_forward.11}
  #allocation0 [shape = 'u32[]', space=smem, size = 0x4, offset = 0x4, fixed_abs, tag = 'smem constant byte address 0x4 - core index']
  #allocation1 [shape = 'u32[144,128]{1,0:T(1,128)}', space=vmem, size = 0x12000, scoped, tag = 'internal scratch']
  %s0 = inlined_call_operand.vmem [shape: bf16[2,36,128], index: 0, kind: input, shape index: {}]
  %s1 = inlined_call_operand.vmem [shape: bf16[128,128], index: 1, kind: input, shape index: {}]
  %s2 = inlined_call_operand.vmem [shape: f32[1,128], index: 2, kind: input, shape index: {}]
  %s3 = inlined_call_operand.vmem [shape: bf16[2,36,128], index: 3, kind: output, shape index: {}]
  %s4 = sld [smem:[#allocation0]]
  $region45: #{inception_head_forward.11} parent=0
    _
  %s6 = ssub.s32 1, %s4
  %s7 = scalar_select 0, %s6, %s4
  loop: start=0, step=1, limit=4
  $region2: #{inception_head_forward.11} parent=0 // loop_pre_header
    _
  $region3: #{inception_head_forward.11} parent=0 // loop_header
    %s9 = sphi 0, %s13
    %p10 = scmp.ge.s32.totalorder %s9, 4
    %s19 = sphi 0, %s21
    %s22 = sphi 0, %s19
    %s23 = sphi 0, %s22
    %s39 = sphi 0, %s23
    %s43 = sphi 0, %s43
    %s45 = sphi 0, %s43
    %s46 = sphi 0, %s45
    %s60 = sphi 0, %s46
    %s64 = sphi 0, %s64
    %s66 = sphi 0, %s64
    %s67 = sphi 0, %s66
    %s81 = sphi 0, %s67
    %s87 = sphi 0, %s89
    %s90 = sphi 0, %s87
    %s91 = sphi 0, %s90
    %s107 = sphi 0, %s91
  $region4: #{inception_head_forward.11} parent=0 // loop_header_branch
    %12 = sbr.rel (%p10) target = $region8
  $region5: #{inception_head_forward.11} parent=0 // loop_body
    %s14 = ssub.s32 %s9, 1
    %s15 = ssub.s32 %s9, 2
    %s16 = sadd.s32 %s9, 1
    %s17 = ssub.s32 %s9, %s16
    %p18 = scmp.eq.s32.totalorder %s17, 0
    %s20 = sadd.s32 %s19, 1
    %s21 = scalar_select %p18, %s19, %s20
    %p24 = pneg %p18
    %p25 = scmp.eq.s32.totalorder %s9, 1
    %p26 = por %p24, %p25
    %p27 = scmp.ne.s32.totalorder %s19, %s22
    %p28 = scmp.eq.s32.totalorder %s9, 0
    %p29 = por %p27, %p28
    %p30 = scmp.ne.s32.totalorder %s19, %s22
    %p31 = scmp.eq.s32.totalorder %s14, 1
    %p32 = por %p30, %p31
    %p33 = scmp.ne.s32.totalorder %s22, %s23
    %p34 = scmp.eq.s32.totalorder %s14, 0
    %p35 = por %p33, %p34
    %p36 = scmp.ne.s32.totalorder %s22, %s23
    %p37 = scmp.eq.s32.totalorder %s15, 1
    %p38 = por %p36, %p37
    %p40 = scmp.ne.s32.totalorder %s23, %s39
    %p41 = scmp.eq.s32.totalorder %s15, 0
    %p42 = por %p40, %p41
    %s44 = sadd.s32 %s43, 1
    %p47 = scmp.eq.s32.totalorder %s9, 1
    %p48 = scmp.ne.s32.totalorder %s43, %s45
    %p49 = scmp.eq.s32.totalorder %s9, 0
    %p50 = por %p48, %p49
    %p51 = scmp.ne.s32.totalorder %s43, %s45
    %p52 = scmp.eq.s32.totalorder %s14, 1
    %p53 = por %p51, %p52
    %p54 = scmp.ne.s32.totalorder %s45, %s46
    %p55 = scmp.eq.s32.totalorder %s14, 0
    %p56 = por %p54, %p55
    %p57 = scmp.ne.s32.totalorder %s45, %s46
    %p58 = scmp.eq.s32.totalorder %s15, 1
    %p59 = por %p57, %p58
    %p61 = scmp.ne.s32.totalorder %s46, %s60
    %p62 = scmp.eq.s32.totalorder %s15, 0
    %p63 = por %p61, %p62
    %s65 = sadd.s32 %s64, 1
    %p68 = scmp.eq.s32.totalorder %s9, 1
    %p69 = scmp.ne.s32.totalorder %s64, %s66
    %p70 = scmp.eq.s32.totalorder %s9, 0
    %p71 = por %p69, %p70
    %p72 = scmp.ne.s32.totalorder %s64, %s66
    %p73 = scmp.eq.s32.totalorder %s14, 1
    %p74 = por %p72, %p73
    %p75 = scmp.ne.s32.totalorder %s66, %s67
    %p76 = scmp.eq.s32.totalorder %s14, 0
    %p77 = por %p75, %p76
    %p78 = scmp.ne.s32.totalorder %s66, %s67
    %p79 = scmp.eq.s32.totalorder %s15, 1
    %p80 = por %p78, %p79
    %p82 = scmp.ne.s32.totalorder %s67, %s81
    %p83 = scmp.eq.s32.totalorder %s15, 0
    %p84 = por %p82, %p83
    %s85 = ssub.s32 %s9, %s16
    %p86 = scmp.eq.s32.totalorder %s85, 0
    %s88 = sadd.s32 %s87, 1
    %s89 = scalar_select %p86, %s87, %s88
    %p92 = pneg %p86
    %p93 = scmp.eq.s32.totalorder %s9, 1
    %p94 = por %p92, %p93
    %p95 = scmp.ne.s32.totalorder %s87, %s90
    %p96 = scmp.eq.s32.totalorder %s9, 0
    %p97 = por %p95, %p96
    %p98 = scmp.ne.s32.totalorder %s87, %s90
    %p99 = scmp.eq.s32.totalorder %s14, 1
    %p100 = por %p98, %p99
    %p101 = scmp.ne.s32.totalorder %s90, %s91
    %p102 = scmp.eq.s32.totalorder %s14, 0
    %p103 = por %p101, %p102
    %p104 = scmp.ne.s32.totalorder %s90, %s91
    %p105 = scmp.eq.s32.totalorder %s15, 1
    %p106 = por %p104, %p105
    %p108 = scmp.ne.s32.totalorder %s91, %s107
    %p109 = scmp.eq.s32.totalorder %s15, 0
    %p110 = por %p108, %p109
    %p111 = scmp.le.s32.totalorder 1, %s9
    %p112 = scmp.lt.s32.totalorder %s9, 3
    %p113 = pnand %p111, %p112
    %p114 = pneg %p113
    // Predicated region
    $region9: #{inception_head_forward.11} parent=5 // pred_check
      _
    $region10: #{inception_head_forward.11} parent=5 // pred_check_branch
      %116 = sbr.rel (%p113) target = $region12
    $region11: #{inception_head_forward.11} parent=5 // pred_region
      %s117 = ssub.s32 %s9, 1
      // Predicated region
      $region13: #{inception_head_forward.11} parent=11 // pred_check
        %p118 = pneg %p56
      $region14: #{inception_head_forward.11} parent=11 // pred_check_branch
        %120 = sbr.rel (%p118) target = $region16
      $region15: #{inception_head_forward.11} parent=11 // pred_region
        _
      $region16: #{inception_head_forward.11} parent=11 // pred_fallthru
        _
      // Predicated region
      $region17: #{inception_head_forward.11} parent=11 // pred_check
        %p121 = pneg %p77
      $region18: #{inception_head_forward.11} parent=11 // pred_check_branch
        %123 = sbr.rel (%p121) target = $region20
      $region19: #{inception_head_forward.11} parent=11 // pred_region
        _
      $region20: #{inception_head_forward.11} parent=11 // pred_fallthru
        _
    $region12: #{inception_head_forward.11} parent=5 // pred_fallthru
      _
    %p124 = scmp.lt.s32.totalorder %s9, 2
    // Predicated region
    $region21: #{inception_head_forward.11} parent=5 // pred_check
      %p125 = pneg %p124
    $region22: #{inception_head_forward.11} parent=5 // pred_check_branch
      %127 = sbr.rel (%p125) target = $region24
    $region23: #{inception_head_forward.11} parent=5 // pred_region
      // Predicated region
      $region25: #{inception_head_forward.11} parent=23 // pred_check
        %p128 = pneg %p29
      $region26: #{inception_head_forward.11} parent=23 // pred_check_branch
        %130 = sbr.rel (%p128) target = $region28
      $region27: #{inception_head_forward.11} parent=23 // pred_region
        %p131 = scmp.lt.s32.totalorder %s9, 1
        %s132 = scalar_select %p131, %s9, 1
        %s133 = smul.addr %s132, 5
        %s134 = smul.addr %s133, 4
        %s135 = scalar_lea.vmem %s0, %s134
      $region28: #{inception_head_forward.11} parent=23 // pred_fallthru
        _
    $region24: #{inception_head_forward.11} parent=5 // pred_fallthru
      _
    %p136 = scmp.le.s32.totalorder 1, %s9
    %p137 = scmp.lt.s32.totalorder %s9, 3
    %p138 = pnand %p136, %p137
    %p139 = pneg %p138
    // Predicated region
    $region29: #{inception_head_forward.11} parent=5 // pred_check
      _
    $region30: #{inception_head_forward.11} parent=5 // pred_check_branch
      %141 = sbr.rel (%p138) target = $region32
    $region31: #{inception_head_forward.11} parent=5 // pred_region
      %s142 = ssub.s32 %s9, 1
      %p143 = scmp.lt.s32.totalorder %s14, 1
      %s144 = scalar_select %p143, %s14, 1
      %s145 = smul.addr %s144, 5
      %s146 = smul.addr %s145, 4
      %s147 = scalar_lea.vmem %s0, %s146
      %p148 = pneg %p35
      %p149 = pneg %p32
      %p150 = pneg %p56
      %p151 = pneg %p53
      %p152 = pneg %p77
      %p153 = pneg %p74
      %p154 = pneg %p103
      %p155 = pneg %p100
      %p156 = scmp.lt.s32.totalorder %s14, 1
      %s157 = scalar_select %p156, %s14, 1
      %s158 = smul.addr %s157, 5
      %s159 = smul.addr %s158, 4
      %s160 = scalar_lea.vmem %s3, %s159
      %p161 = scmp.lt.s32.totalorder %s14, 1
      %s162 = scalar_select %p161, %s14, 1
      %s163 = smul.addr %s162, 5
      %s164 = smul.addr %s163, 4
      %s165 = scalar_lea.vmem %s0, %s164
      %p166 = scmp.lt.s32.totalorder %s14, 1
      %s167 = scalar_select %p166, %s14, 1
      %s168 = smul.addr %s167, 5
      %s169 = smul.addr %s168, 4
      %s170 = scalar_lea.vmem %s3, %s169
      %v172 = vld [vmem:[%s165] sm:$0xf]
      %v173 = vld [vmem:[%s165 + $0x4] sm:$0xf]
      %v174 = vld [vmem:[%s165 + $0x8] sm:$0xf]
      %v175 = vld [vmem:[%s165 + $0xc] sm:$0xf]
      %v176 = vld [vmem:[%s165 + $0x10] sm:$0x3]
      %v177 = vld [vmem:[%s1] sm:$0xf]
      %v178 = vld [vmem:[%s1 + $0x4] sm:$0xf]
      %v179 = vld [vmem:[%s1 + $0x8] sm:$0xf]
      %v180 = vld [vmem:[%s1 + $0xc] sm:$0xf]
      %v181 = vld [vmem:[%s1 + $0x10] sm:$0xf]
      %v182 = vld [vmem:[%s1 + $0x14] sm:$0xf]
      %v183 = vld [vmem:[%s1 + $0x18] sm:$0xf]
      %v184 = vld [vmem:[%s1 + $0x1c] sm:$0xf]
      %v185 = vld [vmem:[%s1 + $0x20] sm:$0xf]
      %v186 = vld [vmem:[%s1 + $0x24] sm:$0xf]
      %v187 = vld [vmem:[%s1 + $0x28] sm:$0xf]
      %v188 = vld [vmem:[%s1 + $0x2c] sm:$0xf]
      %v189 = vld [vmem:[%s1 + $0x30] sm:$0xf]
      %v190 = vld [vmem:[%s1 + $0x34] sm:$0xf]
      %v191 = vld [vmem:[%s1 + $0x38] sm:$0xf]
      %v192 = vld [vmem:[%s1 + $0x3c] sm:$0xf]
      %v193 = vld [vmem:[%s2] sm:$0x1]
      %v195 = vlaneseq
      %v196 = vshrl.u32 %v195, 7
      %v197 = vsub.s32 0, %v196
      %v198 = vrot.slane %v193, %v197
      %v205 = vunpack.c.l.b16 %v172
      %v206 = vunpack.c.l.b16 %v173
      %v207 = vunpack.c.l.b16 %v174
      %v208 = vunpack.c.l.b16 %v175
      %v209 = vunpack.c.l.b16 %v176
      %v210 = vpack.c.b16 %v206, %v205
      %v211 = vpack.c.b16 %v208, %v207
      %v212 = vpack.c.b16 %v209, %v209
      %v232 = vunpack.c.l.b16 %v177
      %v233 = vunpack.c.l.b16 %v178
      %v234 = vunpack.c.l.b16 %v179
      %v235 = vunpack.c.l.b16 %v180
      %v236 = vunpack.c.l.b16 %v181
      %v237 = vunpack.c.l.b16 %v182
      %v238 = vunpack.c.l.b16 %v183
      %v239 = vunpack.c.l.b16 %v184
      %v240 = vunpack.c.l.b16 %v185
      %v241 = vunpack.c.l.b16 %v186
      %v242 = vunpack.c.l.b16 %v187
      %v243 = vunpack.c.l.b16 %v188
      %v244 = vunpack.c.l.b16 %v189
      %v245 = vunpack.c.l.b16 %v190
      %v246 = vunpack.c.l.b16 %v191
      %v247 = vunpack.c.l.b16 %v192
      %v248 = vpack.c.b16 %v233, %v232
      %v249 = vpack.c.b16 %v235, %v234
      %v250 = vpack.c.b16 %v237, %v236
      %v251 = vpack.c.b16 %v239, %v238
      %v252 = vpack.c.b16 %v241, %v240
      %v253 = vpack.c.b16 %v243, %v242
      %v254 = vpack.c.b16 %v245, %v244
      %v255 = vpack.c.b16 %v247, %v246
      %264 = vmatprep.subr.bf16.mxu0 0
      %265 = vmatpush1.bf16.msra.mxu0 %v248
      %266 = vmatprep.subr.bf16.mxu0 0
      %267 = vmatpush1.bf16.msra.mxu0 %v249
      %268 = vmatprep.subr.bf16.mxu0 0
      %269 = vmatpush1.bf16.msra.mxu0 %v250
      %270 = vmatprep.subr.bf16.mxu0 0
      %271 = vmatpush1.bf16.msra.mxu0 %v251
      %272 = vmatprep.subr.bf16.mxu0 0
      %273 = vmatpush1.bf16.msra.mxu0 %v252
      %274 = vmatprep.subr.bf16.mxu0 0
      %275 = vmatpush1.bf16.msra.mxu0 %v253
      %276 = vmatprep.subr.bf16.mxu0 0
      %277 = vmatpush1.bf16.msra.mxu0 %v254
      %278 = vmatprep.subr.bf16.mxu0 0
      %279 = vmatpush1.bf16.msra.mxu0 %v255
      %280 = vmatprep.subr.bf16.mxu0 0
      %281 = vmatpush1.bf16.msra.mxu0 0
      %282 = vmatprep.subr.bf16.mxu0 0
      %283 = vmatpush1.bf16.msra.mxu0 0
      %284 = vmatprep.subr.bf16.mxu0 0
      %285 = vmatpush1.bf16.msra.mxu0 0
      %286 = vmatprep.subr.bf16.mxu0 0
      %287 = vmatpush1.bf16.msra.mxu0 0
      %288 = vmatprep.subr.bf16.mxu0 0
      %289 = vmatpush1.bf16.msra.mxu0 0
      %290 = vmatprep.subr.bf16.mxu0 0
      %291 = vmatpush1.bf16.msra.mxu0 0
      %292 = vmatprep.subr.bf16.mxu0 0
      %293 = vmatpush1.bf16.msra.mxu0 0
      %294 = vmatprep.subr.bf16.mxu0 0
      %295 = vmatpush1.bf16.msra.mxu0 0
      %296 = vmatprep.mubr.bf16.mxu0 0
      %297 = vmatmul.mubr.bf16.gmra.mrb[0].mxu0 %v210
      %v298 = vpop.f32.mrb[0].mxu0
      %v299 = vadd.f32 %v198, %v298
      %v300 = vpop.f32.mrb[0].mxu0
      %v301 = vpop.f32.mrb[0].mxu0
      %v302 = vadd.f32 %v198, %v301
      %v303 = vpop.f32.mrb[0].mxu0
      %304 = vmatprep.mubr.bf16.mxu0 0
      %305 = vmatmul.mubr.bf16.gmra.mrb[0].mxu0 %v211
      %v306 = vpop.f32.mrb[0].mxu0
      %v307 = vadd.f32 %v198, %v306
      %v308 = vpop.f32.mrb[0].mxu0
      %v309 = vpop.f32.mrb[0].mxu0
      %v310 = vadd.f32 %v198, %v309
      %v311 = vpop.f32.mrb[0].mxu0
      %312 = vmatprep.mubr.bf16.mxu0 0
      %313 = vmatmul.mubr.bf16.gmra.mrb[0].mxu0 %v212
      %v314 = vpop.f32.mrb[0].mxu0
      %v315 = vadd.f32 %v198, %v314
      %v316 = vpop.f32.mrb[0].mxu0
      %v317 = vpop.f32.mrb[0].mxu0
      %v318 = vpop.f32.mrb[0].mxu0
      %319 = vdwg.mxu0
      %v320 = vmax.f32 %v299, 0.0
      %v321 = vmax.f32 %v302, 0.0
      %v322 = vmax.f32 %v307, 0.0
      %v323 = vmax.f32 %v310, 0.0
      %v324 = vmax.f32 %v315, 0.0
      %v325 = vpack.c.bf16 %v321, %v320
      %v326 = vpack.c.bf16 %v323, %v322
      %v327 = vpack.c.bf16 %v324, %v324
      %v331 = vunpack.c.l.b16 %v325
      %v332 = vunpack.c.h.b16 %v325
      %v333 = vunpack.c.l.b16 %v326
      %v334 = vunpack.c.h.b16 %v326
      %v335 = vunpack.c.l.b16 %v327
      %v336 = vpack.c.b16 %v331, %v331
      %v337 = vpack.c.b16 %v332, %v332
      %v338 = vpack.c.b16 %v333, %v333
      %v339 = vpack.c.b16 %v334, %v334
      %v340 = vpack.c.b16 %v335, %v335
      %346 = vst [vmem:[%s170] sm:$0xf] %v336
      %347 = vst [vmem:[%s170 + $0x4] sm:$0xf] %v337
      %348 = vst [vmem:[%s170 + $0x8] sm:$0xf] %v338
      %349 = vst [vmem:[%s170 + $0xc] sm:$0xf] %v339
      %350 = vst [vmem:[%s170 + $0x10] sm:$0x3] %v340
      %p351 = scmp.lt.s32.totalorder %s14, 1
      %s352 = scalar_select %p351, %s14, 1
      %s353 = smul.addr %s352, 5
      %s354 = smul.addr %s353, 4
      %s355 = scalar_lea.vmem %s3, %s354
      // Predicated region
      $region33: #{inception_head_forward.11} parent=31 // pred_check
        %p356 = pneg %p100
      $region34: #{inception_head_forward.11} parent=31 // pred_check_branch
        %358 = sbr.rel (%p356) target = $region36
      $region35: #{inception_head_forward.11} parent=31 // pred_region
        _
      $region36: #{inception_head_forward.11} parent=31 // pred_fallthru
        _
    $region32: #{inception_head_forward.11} parent=5 // pred_fallthru
      _
    %p359 = scmp.le.s32.totalorder 2, %s9
    // Predicated region
    $region37: #{inception_head_forward.11} parent=5 // pred_check
      %p360 = pneg %p359
    $region38: #{inception_head_forward.11} parent=5 // pred_check_branch
      %362 = sbr.rel (%p360) target = $region40
    $region39: #{inception_head_forward.11} parent=5 // pred_region
      %s363 = ssub.s32 %s9, 2
      // Predicated region
      $region41: #{inception_head_forward.11} parent=39 // pred_check
        %p364 = pneg %p106
      $region42: #{inception_head_forward.11} parent=39 // pred_check_branch
        %366 = sbr.rel (%p364) target = $region44
      $region43: #{inception_head_forward.11} parent=39 // pred_region
        %p367 = scmp.lt.s32.totalorder %s15, 1
        %s368 = scalar_select %p367, %s15, 1
        %s369 = smul.addr %s368, 5
        %s370 = smul.addr %s369, 4
        %s371 = scalar_lea.vmem %s3, %s370
      $region44: #{inception_head_forward.11} parent=39 // pred_fallthru
        _
    $region40: #{inception_head_forward.11} parent=5 // pred_fallthru
      _
  $region6: #{inception_head_forward.11} parent=0 // loop_footer
    %s13 = sadd.s32 1, %s9
  $region7: #{inception_head_forward.11} parent=0 // loop_footer_branch
    %8 = sbr.rel target = $region3
  $region8: #{inception_head_forward.11} parent=0 // loop_exit
    _

// kernel: inception_head_forward.10
$region0: #{inception_head_forward.10}
  #allocation0 [shape = 'u32[]', space=smem, size = 0x4, offset = 0x4, fixed_abs, tag = 'smem constant byte address 0x4 - core index']
  #allocation1 [shape = 'u32[144,128]{1,0:T(1,128)}', space=vmem, size = 0x12000, scoped, tag = 'internal scratch']
  %s0 = inlined_call_operand.vmem [shape: bf16[2,7,7,128], index: 0, kind: input, shape index: {}]
  %s1 = inlined_call_operand.vmem [shape: bf16[2,7,6,128], index: 1, kind: input, shape index: {}]
  %s2 = inlined_call_operand.vmem [shape: bf16[2,6,7,128], index: 2, kind: input, shape index: {}]
  %s3 = inlined_call_operand.vmem [shape: bf16[2,6,6,128], index: 3, kind: input, shape index: {}]
  %s4 = inlined_call_operand.vmem [shape: bf16[2,6,6,128], index: 4, kind: output, shape index: {}]
  %s5 = sld [smem:[#allocation0]]
  $region49: #{inception_head_forward.10} parent=0
    _
  %s7 = ssub.s32 1, %s5
  %s8 = scalar_select 0, %s7, %s5
  loop: start=0, step=1, limit=4
  $region2: #{inception_head_forward.10} parent=0 // loop_pre_header
    _
  $region3: #{inception_head_forward.10} parent=0 // loop_header
    %s10 = sphi 0, %s14
    %p11 = scmp.ge.s32.totalorder %s10, 4
    %s20 = sphi 0, %s22
    %s23 = sphi 0, %s20
    %s24 = sphi 0, %s23
    %s40 = sphi 0, %s24
    %s46 = sphi 0, %s48
    %s49 = sphi 0, %s46
    %s50 = sphi 0, %s49
    %s66 = sphi 0, %s50
    %s72 = sphi 0, %s74
    %s75 = sphi 0, %s72
    %s76 = sphi 0, %s75
    %s92 = sphi 0, %s76
    %s98 = sphi 0, %s100
    %s101 = sphi 0, %s98
    %s102 = sphi 0, %s101
    %s118 = sphi 0, %s102
    %s124 = sphi 0, %s126
    %s127 = sphi 0, %s124
    %s128 = sphi 0, %s127
    %s144 = sphi 0, %s128
  $region4: #{inception_head_forward.10} parent=0 // loop_header_branch
    %13 = sbr.rel (%p11) target = $region8
  $region5: #{inception_head_forward.10} parent=0 // loop_body
    %s15 = ssub.s32 %s10, 1
    %s16 = ssub.s32 %s10, 2
    %s17 = sadd.s32 %s10, 1
    %s18 = ssub.s32 %s10, %s17
    %p19 = scmp.eq.s32.totalorder %s18, 0
    %s21 = sadd.s32 %s20, 1
    %s22 = scalar_select %p19, %s20, %s21
    %p25 = pneg %p19
    %p26 = scmp.eq.s32.totalorder %s10, 1
    %p27 = por %p25, %p26
    %p28 = scmp.ne.s32.totalorder %s20, %s23
    %p29 = scmp.eq.s32.totalorder %s10, 0
    %p30 = por %p28, %p29
    %p31 = scmp.ne.s32.totalorder %s20, %s23
    %p32 = scmp.eq.s32.totalorder %s15, 1
    %p33 = por %p31, %p32
    %p34 = scmp.ne.s32.totalorder %s23, %s24
    %p35 = scmp.eq.s32.totalorder %s15, 0
    %p36 = por %p34, %p35
    %p37 = scmp.ne.s32.totalorder %s23, %s24
    %p38 = scmp.eq.s32.totalorder %s16, 1
    %p39 = por %p37, %p38
    %p41 = scmp.ne.s32.totalorder %s24, %s40
    %p42 = scmp.eq.s32.totalorder %s16, 0
    %p43 = por %p41, %p42
    %s44 = ssub.s32 %s10, %s17
    %p45 = scmp.eq.s32.totalorder %s44, 0
    %s47 = sadd.s32 %s46, 1
    %s48 = scalar_select %p45, %s46, %s47
    %p51 = pneg %p45
    %p52 = scmp.eq.s32.totalorder %s10, 1
    %p53 = por %p51, %p52
    %p54 = scmp.ne.s32.totalorder %s46, %s49
    %p55 = scmp.eq.s32.totalorder %s10, 0
    %p56 = por %p54, %p55
    %p57 = scmp.ne.s32.totalorder %s46, %s49
    %p58 = scmp.eq.s32.totalorder %s15, 1
    %p59 = por %p57, %p58
    %p60 = scmp.ne.s32.totalorder %s49, %s50
    %p61 = scmp.eq.s32.totalorder %s15, 0
    %p62 = por %p60, %p61
    %p63 = scmp.ne.s32.totalorder %s49, %s50
    %p64 = scmp.eq.s32.totalorder %s16, 1
    %p65 = por %p63, %p64
    %p67 = scmp.ne.s32.totalorder %s50, %s66
    %p68 = scmp.eq.s32.totalorder %s16, 0
    %p69 = por %p67, %p68
    %s70 = ssub.s32 %s10, %s17
    %p71 = scmp.eq.s32.totalorder %s70, 0
    %s73 = sadd.s32 %s72, 1
    %s74 = scalar_select %p71, %s72, %s73
    %p77 = pneg %p71
    %p78 = scmp.eq.s32.totalorder %s10, 1
    %p79 = por %p77, %p78
    %p80 = scmp.ne.s32.totalorder %s72, %s75
    %p81 = scmp.eq.s32.totalorder %s10, 0
    %p82 = por %p80, %p81
    %p83 = scmp.ne.s32.totalorder %s72, %s75
    %p84 = scmp.eq.s32.totalorder %s15, 1
    %p85 = por %p83, %p84
    %p86 = scmp.ne.s32.totalorder %s75, %s76
    %p87 = scmp.eq.s32.totalorder %s15, 0
    %p88 = por %p86, %p87
    %p89 = scmp.ne.s32.totalorder %s75, %s76
    %p90 = scmp.eq.s32.totalorder %s16, 1
    %p91 = por %p89, %p90
    %p93 = scmp.ne.s32.totalorder %s76, %s92
    %p94 = scmp.eq.s32.totalorder %s16, 0
    %p95 = por %p93, %p94
    %s96 = ssub.s32 %s10, %s17
    %p97 = scmp.eq.s32.totalorder %s96, 0
    %s99 = sadd.s32 %s98, 1
    %s100 = scalar_select %p97, %s98, %s99
    %p103 = pneg %p97
    %p104 = scmp.eq.s32.totalorder %s10, 1
    %p105 = por %p103, %p104
    %p106 = scmp.ne.s32.totalorder %s98, %s101
    %p107 = scmp.eq.s32.totalorder %s10, 0
    %p108 = por %p106, %p107
    %p109 = scmp.ne.s32.totalorder %s98, %s101
    %p110 = scmp.eq.s32.totalorder %s15, 1
    %p111 = por %p109, %p110
    %p112 = scmp.ne.s32.totalorder %s101, %s102
    %p113 = scmp.eq.s32.totalorder %s15, 0
    %p114 = por %p112, %p113
    %p115 = scmp.ne.s32.totalorder %s101, %s102
    %p116 = scmp.eq.s32.totalorder %s16, 1
    %p117 = por %p115, %p116
    %p119 = scmp.ne.s32.totalorder %s102, %s118
    %p120 = scmp.eq.s32.totalorder %s16, 0
    %p121 = por %p119, %p120
    %s122 = ssub.s32 %s10, %s17
    %p123 = scmp.eq.s32.totalorder %s122, 0
    %s125 = sadd.s32 %s124, 1
    %s126 = scalar_select %p123, %s124, %s125
    %p129 = pneg %p123
    %p130 = scmp.eq.s32.totalorder %s10, 1
    %p131 = por %p129, %p130
    %p132 = scmp.ne.s32.totalorder %s124, %s127
    %p133 = scmp.eq.s32.totalorder %s10, 0
    %p134 = por %p132, %p133
    %p135 = scmp.ne.s32.totalorder %s124, %s127
    %p136 = scmp.eq.s32.totalorder %s15, 1
    %p137 = por %p135, %p136
    %p138 = scmp.ne.s32.totalorder %s127, %s128
    %p139 = scmp.eq.s32.totalorder %s15, 0
    %p140 = por %p138, %p139
    %p141 = scmp.ne.s32.totalorder %s127, %s128
    %p142 = scmp.eq.s32.totalorder %s16, 1
    %p143 = por %p141, %p142
    %p145 = scmp.ne.s32.totalorder %s128, %s144
    %p146 = scmp.eq.s32.totalorder %s16, 0
    %p147 = por %p145, %p146
    %p148 = scmp.le.s32.totalorder 1, %s10
    %p149 = scmp.lt.s32.totalorder %s10, 3
    %p150 = pnand %p148, %p149
    %p151 = pneg %p150
    // Predicated region
    $region9: #{inception_head_forward.10} parent=5 // pred_check
      _
    $region10: #{inception_head_forward.10} parent=5 // pred_check_branch
      %153 = sbr.rel (%p150) target = $region12
    $region11: #{inception_head_forward.10} parent=5 // pred_region
      %s154 = ssub.s32 %s10, 1
    $region12: #{inception_head_forward.10} parent=5 // pred_fallthru
      _
    %p155 = scmp.lt.s32.totalorder %s10, 2
    // Predicated region
    $region13: #{inception_head_forward.10} parent=5 // pred_check
      %p156 = pneg %p155
    $region14: #{inception_head_forward.10} parent=5 // pred_check_branch
      %158 = sbr.rel (%p156) target = $region16
    $region15: #{inception_head_forward.10} parent=5 // pred_region
      // Predicated region
      $region17: #{inception_head_forward.10} parent=15 // pred_check
        %p159 = pneg %p30
      $region18: #{inception_head_forward.10} parent=15 // pred_check_branch
        %161 = sbr.rel (%p159) target = $region20
      $region19: #{inception_head_forward.10} parent=15 // pred_region
        %p162 = scmp.lt.s32.totalorder %s10, 1
        %s163 = scalar_select %p162, %s10, 1
        %s164 = smul.addr %s163, 7
        %s165 = smul.addr %s164, 4
        %s166 = scalar_lea.vmem %s0, %s165
      $region20: #{inception_head_forward.10} parent=15 // pred_fallthru
        _
      // Predicated region
      $region21: #{inception_head_forward.10} parent=15 // pred_check
        %p167 = pneg %p56
      $region22: #{inception_head_forward.10} parent=15 // pred_check_branch
        %169 = sbr.rel (%p167) target = $region24
      $region23: #{inception_head_forward.10} parent=15 // pred_region
        %p170 = scmp.lt.s32.totalorder %s10, 1
        %s171 = scalar_select %p170, %s10, 1
        %s172 = smul.addr %s171, 7
        %s173 = smul.addr %s172, 4
        %s174 = scalar_lea.vmem %s1, %s173
      $region24: #{inception_head_forward.10} parent=15 // pred_fallthru
        _
      // Predicated region
      $region25: #{inception_head_forward.10} parent=15 // pred_check
        %p175 = pneg %p82
      $region26: #{inception_head_forward.10} parent=15 // pred_check_branch
        %177 = sbr.rel (%p175) target = $region28
      $region27: #{inception_head_forward.10} parent=15 // pred_region
        %p178 = scmp.lt.s32.totalorder %s10, 1
        %s179 = scalar_select %p178, %s10, 1
        %s180 = smul.addr %s179, 6
        %s181 = smul.addr %s180, 4
        %s182 = scalar_lea.vmem %s2, %s181
      $region28: #{inception_head_forward.10} parent=15 // pred_fallthru
        _
      // Predicated region
      $region29: #{inception_head_forward.10} parent=15 // pred_check
        %p183 = pneg %p108
      $region30: #{inception_head_forward.10} parent=15 // pred_check_branch
        %185 = sbr.rel (%p183) target = $region32
      $region31: #{inception_head_forward.10} parent=15 // pred_region
        %p186 = scmp.lt.s32.totalorder %s10, 1
        %s187 = scalar_select %p186, %s10, 1
        %s188 = smul.addr %s187, 6
        %s189 = smul.addr %s188, 4
        %s190 = scalar_lea.vmem %s3, %s189
      $region32: #{inception_head_forward.10} parent=15 // pred_fallthru
        _
    $region16: #{inception_head_forward.10} parent=5 // pred_fallthru
      _
    %p191 = scmp.le.s32.totalorder 1, %s10
    %p192 = scmp.lt.s32.totalorder %s10, 3
    %p193 = pnand %p191, %p192
    %p194 = pneg %p193
    // Predicated region
    $region33: #{inception_head_forward.10} parent=5 // pred_check
      _
    $region34: #{inception_head_forward.10} parent=5 // pred_check_branch
      %196 = sbr.rel (%p193) target = $region36
    $region35: #{inception_head_forward.10} parent=5 // pred_region
      %s197 = ssub.s32 %s10, 1
      %p198 = scmp.lt.s32.totalorder %s15, 1
      %s199 = scalar_select %p198, %s15, 1
      %s200 = smul.addr %s199, 7
      %s201 = smul.addr %s200, 4
      %s202 = scalar_lea.vmem %s0, %s201
      %p203 = pneg %p36
      %p204 = pneg %p33
      %p205 = scmp.lt.s32.totalorder %s15, 1
      %s206 = scalar_select %p205, %s15, 1
      %s207 = smul.addr %s206, 7
      %s208 = smul.addr %s207, 4
      %s209 = scalar_lea.vmem %s1, %s208
      %p210 = pneg %p62
      %p211 = pneg %p59
      %p212 = scmp.lt.s32.totalorder %s15, 1
      %s213 = scalar_select %p212, %s15, 1
      %s214 = smul.addr %s213, 6
      %s215 = smul.addr %s214, 4
      %s216 = scalar_lea.vmem %s2, %s215
      %p217 = pneg %p88
      %p218 = pneg %p85
      %p219 = scmp.lt.s32.totalorder %s15, 1
      %s220 = scalar_select %p219, %s15, 1
      %s221 = smul.addr %s220, 6
      %s222 = smul.addr %s221, 4
      %s223 = scalar_lea.vmem %s3, %s222
      %p224 = pneg %p114
      %p225 = pneg %p111
      %p226 = pneg %p140
      %p227 = pneg %p137
      %p228 = scmp.lt.s32.totalorder %s15, 1
      %s229 = scalar_select %p228, %s15, 1
      %s230 = smul.addr %s229, 6
      %s231 = smul.addr %s230, 4
      %s232 = scalar_lea.vmem %s4, %s231
      %p233 = scmp.lt.s32.totalorder %s15, 1
      %s234 = scalar_select %p233, %s15, 1
      %s235 = smul.addr %s234, 7
      %s236 = smul.addr %s235, 4
      %s237 = scalar_lea.vmem %s0, %s236
      %p238 = scmp.lt.s32.totalorder %s15, 1
      %s239 = scalar_select %p238, %s15, 1
      %s240 = smul.addr %s239, 7
      %s241 = smul.addr %s240, 4
      %s242 = scalar_lea.vmem %s1, %s241
      %p243 = scmp.lt.s32.totalorder %s15, 1
      %s244 = scalar_select %p243, %s15, 1
      %s245 = smul.addr %s244, 6
      %s246 = smul.addr %s245, 4
      %s247 = scalar_lea.vmem %s2, %s246
      %p248 = scmp.lt.s32.totalorder %s15, 1
      %s249 = scalar_select %p248, %s15, 1
      %s250 = smul.addr %s249, 6
      %s251 = smul.addr %s250, 4
      %s252 = scalar_lea.vmem %s3, %s251
      %p253 = scmp.lt.s32.totalorder %s15, 1
      %s254 = scalar_select %p253, %s15, 1
      %s255 = smul.addr %s254, 6
      %s256 = smul.addr %s255, 4
      %s257 = scalar_lea.vmem %s4, %s256
      %v258 = vld [vmem:[%s237] sm:$0xf]
      %v259 = vld [vmem:[%s237 + $0x4] sm:$0xf]
      %v260 = vld [vmem:[%s237 + $0x8] sm:$0xf]
      %v261 = vld [vmem:[%s237 + $0xc] sm:$0xf]
      %v262 = vld [vmem:[%s237 + $0x10] sm:$0xf]
      %v263 = vld [vmem:[%s237 + $0x14] sm:$0xf]
      %v264 = vld [vmem:[%s237 + $0x18] sm:$0xf]
      %v265 = vld [vmem:[%s242] sm:$0x7]
      %v266 = vld [vmem:[%s242 + $0x4] sm:$0x7]
      %v267 = vld [vmem:[%s242 + $0x8] sm:$0x7]
      %v268 = vld [vmem:[%s242 + $0xc] sm:$0x7]
      %v269 = vld [vmem:[%s242 + $0x10] sm:$0x7]
      %v270 = vld [vmem:[%s242 + $0x14] sm:$0x7]
      %v271 = vld [vmem:[%s242 + $0x18] sm:$0x7]
      %v272 = vld [vmem:[%s247] sm:$0xf]
      %v273 = vld [vmem:[%s247 + $0x4] sm:$0xf]
      %v274 = vld [vmem:[%s247 + $0x8] sm:$0xf]
      %v275 = vld [vmem:[%s247 + $0xc] sm:$0xf]
      %v276 = vld [vmem:[%s247 + $0x10] sm:$0xf]
      %v277 = vld [vmem:[%s247 + $0x14] sm:$0xf]
      %v278 = vld [vmem:[%s252] sm:$0x7]
      %v279 = vld [vmem:[%s252 + $0x4] sm:$0x7]
      %v280 = vld [vmem:[%s252 + $0x8] sm:$0x7]
      %v281 = vld [vmem:[%s252 + $0xc] sm:$0x7]
      %v282 = vld [vmem:[%s252 + $0x10] sm:$0x7]
      %v283 = vld [vmem:[%s252 + $0x14] sm:$0x7]
      %v285 = vshrl.u32 %v258, 16
      %v287 = vrot.slane %v285, 4
      %v288 = vshll.u32 %v258, 16
      %v290 = vrot.slane %v288, 5
      %v291 = vor.u32 %v287, %v290
      %v292 = vrot.slane %v291, 4
      %v294 = vshrl.u32 %v259, 16
      %v296 = vrot.slane %v294, 4
      %v297 = vshll.u32 %v259, 16
      %v299 = vrot.slane %v297, 5
      %v300 = vor.u32 %v296, %v299
      %v301 = vrot.slane %v300, 4
      %v303 = vshrl.u32 %v260, 16
      %v305 = vrot.slane %v303, 4
      %v306 = vshll.u32 %v260, 16
      %v308 = vrot.slane %v306, 5
      %v309 = vor.u32 %v305, %v308
      %v310 = vrot.slane %v309, 4
      %v312 = vshrl.u32 %v261, 16
      %v314 = vrot.slane %v312, 4
      %v315 = vshll.u32 %v261, 16
      %v317 = vrot.slane %v315, 5
      %v318 = vor.u32 %v314, %v317
      %v319 = vrot.slane %v318, 4
      %v321 = vshrl.u32 %v262, 16
      %v323 = vrot.slane %v321, 4
      %v324 = vshll.u32 %v262, 16
      %v326 = vrot.slane %v324, 5
      %v327 = vor.u32 %v323, %v326
      %v328 = vrot.slane %v327, 4
      %v330 = vshrl.u32 %v263, 16
      %v332 = vrot.slane %v330, 4
      %v333 = vshll.u32 %v263, 16
      %v335 = vrot.slane %v333, 5
      %v336 = vor.u32 %v332, %v335
      %v337 = vrot.slane %v336, 4
      %v344 = vmax.bf16 %v258, %v292
      %v345 = vmax.bf16 %v259, %v301
      %v346 = vmax.bf16 %v260, %v310
      %v347 = vmax.bf16 %v261, %v319
      %v348 = vmax.bf16 %v262, %v328
      %v349 = vmax.bf16 %v263, %v337
      %v350 = vmax.bf16 %v344, %v259
      %v351 = vmax.bf16 %v345, %v260
      %v352 = vmax.bf16 %v346, %v261
      %v353 = vmax.bf16 %v347, %v262
      %v354 = vmax.bf16 %v348, %v263
      %v355 = vmax.bf16 %v349, %v264
      %v357 = vshrl.u32 %v264, 16
      %v359 = vrot.slane %v357, 4
      %v360 = vshll.u32 %v264, 16
      %v362 = vrot.slane %v360, 5
      %v363 = vor.u32 %v359, %v362
      %v364 = vrot.slane %v363, 4
      %v366 = vmax.bf16 %v350, %v301
      %v367 = vmax.bf16 %v351, %v310
      %v368 = vmax.bf16 %v352, %v319
      %v369 = vmax.bf16 %v353, %v328
      %v370 = vmax.bf16 %v354, %v337
      %v371 = vmax.bf16 %v355, %v364
      %v372 = vmax.bf16 %v366, %v265
      %v373 = vmax.bf16 %v367, %v266
      %v374 = vmax.bf16 %v368, %v267
      %v375 = vmax.bf16 %v369, %v268
      %v376 = vmax.bf16 %v370, %v269
      %v377 = vmax.bf16 %v371, %v270
      %v378 = vmax.bf16 %v372, %v266
      %v379 = vmax.bf16 %v373, %v267
      %v380 = vmax.bf16 %v374, %v268
      %v381 = vmax.bf16 %v375, %v269
      %v382 = vmax.bf16 %v376, %v270
      %v383 = vmax.bf16 %v377, %v271
      %v384 = vmax.bf16 %v378, %v272
      %v385 = vmax.bf16 %v379, %v273
      %v386 = vmax.bf16 %v380, %v274
      %v387 = vmax.bf16 %v381, %v275
      %v388 = vmax.bf16 %v382, %v276
      %v389 = vmax.bf16 %v383, %v277
      %v391 = vshrl.u32 %v272, 16
      %v393 = vrot.slane %v391, 4
      %v394 = vshll.u32 %v272, 16
      %v396 = vrot.slane %v394, 5
      %v397 = vor.u32 %v393, %v396
      %v398 = vrot.slane %v397, 4
      %v400 = vshrl.u32 %v273, 16
      %v402 = vrot.slane %v400, 4
      %v403 = vshll.u32 %v273, 16
      %v405 = vrot.slane %v403, 5
      %v406 = vor.u32 %v402, %v405
      %v407 = vrot.slane %v406, 4
      %v409 = vshrl.u32 %v274, 16
      %v411 = vrot.slane %v409, 4
      %v412 = vshll.u32 %v274, 16
      %v414 = vrot.slane %v412, 5
      %v415 = vor.u32 %v411, %v414
      %v416 = vrot.slane %v415, 4
      %v418 = vshrl.u32 %v275, 16
      %v420 = vrot.slane %v418, 4
      %v421 = vshll.u32 %v275, 16
      %v423 = vrot.slane %v421, 5
      %v424 = vor.u32 %v420, %v423
      %v425 = vrot.slane %v424, 4
      %v427 = vshrl.u32 %v276, 16
      %v429 = vrot.slane %v427, 4
      %v430 = vshll.u32 %v276, 16
      %v432 = vrot.slane %v430, 5
      %v433 = vor.u32 %v429, %v432
      %v434 = vrot.slane %v433, 4
      %v436 = vshrl.u32 %v277, 16
      %v438 = vrot.slane %v436, 4
      %v439 = vshll.u32 %v277, 16
      %v441 = vrot.slane %v439, 5
      %v442 = vor.u32 %v438, %v441
      %v443 = vrot.slane %v442, 4
      %v450 = vmax.bf16 %v384, %v398
      %v451 = vmax.bf16 %v385, %v407
      %v452 = vmax.bf16 %v386, %v416
      %v453 = vmax.bf16 %v387, %v425
      %v454 = vmax.bf16 %v388, %v434
      %v455 = vmax.bf16 %v389, %v443
      %v456 = vmax.bf16 %v450, %v278
      %v457 = vmax.bf16 %v451, %v279
      %v458 = vmax.bf16 %v452, %v280
      %v459 = vmax.bf16 %v453, %v281
      %v460 = vmax.bf16 %v454, %v282
      %v461 = vmax.bf16 %v455, %v283
      %462 = vst [vmem:[%s257] sm:$0x7] %v456
      %463 = vst [vmem:[%s257 + $0x4] sm:$0x7] %v457
      %464 = vst [vmem:[%s257 + $0x8] sm:$0x7] %v458
      %465 = vst [vmem:[%s257 + $0xc] sm:$0x7] %v459
      %466 = vst [vmem:[%s257 + $0x10] sm:$0x7] %v460
      %467 = vst [vmem:[%s257 + $0x14] sm:$0x7] %v461
      %p468 = scmp.lt.s32.totalorder %s15, 1
      %s469 = scalar_select %p468, %s15, 1
      %s470 = smul.addr %s469, 6
      %s471 = smul.addr %s470, 4
      %s472 = scalar_lea.vmem %s4, %s471
      // Predicated region
      $region37: #{inception_head_forward.10} parent=35 // pred_check
        %p473 = pneg %p137
      $region38: #{inception_head_forward.10} parent=35 // pred_check_branch
        %475 = sbr.rel (%p473) target = $region40
      $region39: #{inception_head_forward.10} parent=35 // pred_region
        _
      $region40: #{inception_head_forward.10} parent=35 // pred_fallthru
        _
    $region36: #{inception_head_forward.10} parent=5 // pred_fallthru
      _
    %p476 = scmp.le.s32.totalorder 2, %s10
    // Predicated region
    $region41: #{inception_head_forward.10} parent=5 // pred_check
      %p477 = pneg %p476
    $region42: #{inception_head_forward.10} parent=5 // pred_check_branch
      %479 = sbr.rel (%p477) target = $region44
    $region43: #{inception_head_forward.10} parent=5 // pred_region
      %s480 = ssub.s32 %s10, 2
      // Predicated region
      $region45: #{inception_head_forward.10} parent=43 // pred_check
        %p481 = pneg %p143
      $region46: #{inception_head_forward.10} parent=43 // pred_check_branch
        %483 = sbr.rel (%p481) target = $region48
      $region47: #{inception_head_forward.10} parent=43 // pred_region
        %p484 = scmp.lt.s32.totalorder %s16, 1
        %s485 = scalar_select %p484, %s16, 1
        %s486 = smul.addr %s485, 6
        %s487 = smul.addr %s486, 4
        %s488 = scalar_lea.vmem %s4, %s487
      $region48: #{inception_head_forward.10} parent=43 // pred_fallthru
        _
    $region44: #{inception_head_forward.10} parent=5 // pred_fallthru
      _
  $region6: #{inception_head_forward.10} parent=0 // loop_footer
    %s14 = sadd.s32 1, %s10
  $region7: #{inception_head_forward.10} parent=0 // loop_footer_branch
    %9 = sbr.rel target = $region3
  $region8: #{inception_head_forward.10} parent=0 // loop_exit
    _

// kernel: inception_head_forward.13
$region0: #{inception_head_forward.13}
  #allocation0 [shape = 'u32[]', space=smem, size = 0x4, offset = 0x4, fixed_abs, tag = 'smem constant byte address 0x4 - core index']
  #allocation1 [shape = 'u32[144,128]{1,0:T(1,128)}', space=vmem, size = 0x12000, scoped, tag = 'internal scratch']
  %s0 = inlined_call_operand.vmem [shape: bf16[2,2,2,256], index: 0, kind: input, shape index: {}]
  %s1 = inlined_call_operand.vmem [shape: bf16[2,2,1,256], index: 1, kind: input, shape index: {}]
  %s2 = inlined_call_operand.vmem [shape: bf16[2,1,2,256], index: 2, kind: input, shape index: {}]
  %s3 = inlined_call_operand.vmem [shape: bf16[2,1,1,256], index: 3, kind: input, shape index: {}]
  %s4 = inlined_call_operand.vmem [shape: bf16[2,1,1,256], index: 4, kind: output, shape index: {}]
  %s5 = sld [smem:[#allocation0]]
  $region49: #{inception_head_forward.13} parent=0
    _
  %s7 = ssub.s32 1, %s5
  %s8 = scalar_select 0, %s7, %s5
  loop: start=0, step=1, limit=4
  $region2: #{inception_head_forward.13} parent=0 // loop_pre_header
    _
  $region3: #{inception_head_forward.13} parent=0 // loop_header
    %s10 = sphi 0, %s14
    %p11 = scmp.ge.s32.totalorder %s10, 4
    %s20 = sphi 0, %s22
    %s23 = sphi 0, %s20
    %s24 = sphi 0, %s23
    %s40 = sphi 0, %s24
    %s46 = sphi 0, %s48
    %s49 = sphi 0, %s46
    %s50 = sphi 0, %s49
    %s66 = sphi 0, %s50
    %s72 = sphi 0, %s74
    %s75 = sphi 0, %s72
    %s76 = sphi 0, %s75
    %s92 = sphi 0, %s76
    %s98 = sphi 0, %s100
    %s101 = sphi 0, %s98
    %s102 = sphi 0, %s101
    %s118 = sphi 0, %s102
    %s124 = sphi 0, %s126
    %s127 = sphi 0, %s124
    %s128 = sphi 0, %s127
    %s144 = sphi 0, %s128
  $region4: #{inception_head_forward.13} parent=0 // loop_header_branch
    %13 = sbr.rel (%p11) target = $region8
  $region5: #{inception_head_forward.13} parent=0 // loop_body
    %s15 = ssub.s32 %s10, 1
    %s16 = ssub.s32 %s10, 2
    %s17 = sadd.s32 %s10, 1
    %s18 = ssub.s32 %s10, %s17
    %p19 = scmp.eq.s32.totalorder %s18, 0
    %s21 = sadd.s32 %s20, 1
    %s22 = scalar_select %p19, %s20, %s21
    %p25 = pneg %p19
    %p26 = scmp.eq.s32.totalorder %s10, 1
    %p27 = por %p25, %p26
    %p28 = scmp.ne.s32.totalorder %s20, %s23
    %p29 = scmp.eq.s32.totalorder %s10, 0
    %p30 = por %p28, %p29
    %p31 = scmp.ne.s32.totalorder %s20, %s23
    %p32 = scmp.eq.s32.totalorder %s15, 1
    %p33 = por %p31, %p32
    %p34 = scmp.ne.s32.totalorder %s23, %s24
    %p35 = scmp.eq.s32.totalorder %s15, 0
    %p36 = por %p34, %p35
    %p37 = scmp.ne.s32.totalorder %s23, %s24
    %p38 = scmp.eq.s32.totalorder %s16, 1
    %p39 = por %p37, %p38
    %p41 = scmp.ne.s32.totalorder %s24, %s40
    %p42 = scmp.eq.s32.totalorder %s16, 0
    %p43 = por %p41, %p42
    %s44 = ssub.s32 %s10, %s17
    %p45 = scmp.eq.s32.totalorder %s44, 0
    %s47 = sadd.s32 %s46, 1
    %s48 = scalar_select %p45, %s46, %s47
    %p51 = pneg %p45
    %p52 = scmp.eq.s32.totalorder %s10, 1
    %p53 = por %p51, %p52
    %p54 = scmp.ne.s32.totalorder %s46, %s49
    %p55 = scmp.eq.s32.totalorder %s10, 0
    %p56 = por %p54, %p55
    %p57 = scmp.ne.s32.totalorder %s46, %s49
    %p58 = scmp.eq.s32.totalorder %s15, 1
    %p59 = por %p57, %p58
    %p60 = scmp.ne.s32.totalorder %s49, %s50
    %p61 = scmp.eq.s32.totalorder %s15, 0
    %p62 = por %p60, %p61
    %p63 = scmp.ne.s32.totalorder %s49, %s50
    %p64 = scmp.eq.s32.totalorder %s16, 1
    %p65 = por %p63, %p64
    %p67 = scmp.ne.s32.totalorder %s50, %s66
    %p68 = scmp.eq.s32.totalorder %s16, 0
    %p69 = por %p67, %p68
    %s70 = ssub.s32 %s10, %s17
    %p71 = scmp.eq.s32.totalorder %s70, 0
    %s73 = sadd.s32 %s72, 1
    %s74 = scalar_select %p71, %s72, %s73
    %p77 = pneg %p71
    %p78 = scmp.eq.s32.totalorder %s10, 1
    %p79 = por %p77, %p78
    %p80 = scmp.ne.s32.totalorder %s72, %s75
    %p81 = scmp.eq.s32.totalorder %s10, 0
    %p82 = por %p80, %p81
    %p83 = scmp.ne.s32.totalorder %s72, %s75
    %p84 = scmp.eq.s32.totalorder %s15, 1
    %p85 = por %p83, %p84
    %p86 = scmp.ne.s32.totalorder %s75, %s76
    %p87 = scmp.eq.s32.totalorder %s15, 0
    %p88 = por %p86, %p87
    %p89 = scmp.ne.s32.totalorder %s75, %s76
    %p90 = scmp.eq.s32.totalorder %s16, 1
    %p91 = por %p89, %p90
    %p93 = scmp.ne.s32.totalorder %s76, %s92
    %p94 = scmp.eq.s32.totalorder %s16, 0
    %p95 = por %p93, %p94
    %s96 = ssub.s32 %s10, %s17
    %p97 = scmp.eq.s32.totalorder %s96, 0
    %s99 = sadd.s32 %s98, 1
    %s100 = scalar_select %p97, %s98, %s99
    %p103 = pneg %p97
    %p104 = scmp.eq.s32.totalorder %s10, 1
    %p105 = por %p103, %p104
    %p106 = scmp.ne.s32.totalorder %s98, %s101
    %p107 = scmp.eq.s32.totalorder %s10, 0
    %p108 = por %p106, %p107
    %p109 = scmp.ne.s32.totalorder %s98, %s101
    %p110 = scmp.eq.s32.totalorder %s15, 1
    %p111 = por %p109, %p110
    %p112 = scmp.ne.s32.totalorder %s101, %s102
    %p113 = scmp.eq.s32.totalorder %s15, 0
    %p114 = por %p112, %p113
    %p115 = scmp.ne.s32.totalorder %s101, %s102
    %p116 = scmp.eq.s32.totalorder %s16, 1
    %p117 = por %p115, %p116
    %p119 = scmp.ne.s32.totalorder %s102, %s118
    %p120 = scmp.eq.s32.totalorder %s16, 0
    %p121 = por %p119, %p120
    %s122 = ssub.s32 %s10, %s17
    %p123 = scmp.eq.s32.totalorder %s122, 0
    %s125 = sadd.s32 %s124, 1
    %s126 = scalar_select %p123, %s124, %s125
    %p129 = pneg %p123
    %p130 = scmp.eq.s32.totalorder %s10, 1
    %p131 = por %p129, %p130
    %p132 = scmp.ne.s32.totalorder %s124, %s127
    %p133 = scmp.eq.s32.totalorder %s10, 0
    %p134 = por %p132, %p133
    %p135 = scmp.ne.s32.totalorder %s124, %s127
    %p136 = scmp.eq.s32.totalorder %s15, 1
    %p137 = por %p135, %p136
    %p138 = scmp.ne.s32.totalorder %s127, %s128
    %p139 = scmp.eq.s32.totalorder %s15, 0
    %p140 = por %p138, %p139
    %p141 = scmp.ne.s32.totalorder %s127, %s128
    %p142 = scmp.eq.s32.totalorder %s16, 1
    %p143 = por %p141, %p142
    %p145 = scmp.ne.s32.totalorder %s128, %s144
    %p146 = scmp.eq.s32.totalorder %s16, 0
    %p147 = por %p145, %p146
    %p148 = scmp.le.s32.totalorder 1, %s10
    %p149 = scmp.lt.s32.totalorder %s10, 3
    %p150 = pnand %p148, %p149
    %p151 = pneg %p150
    // Predicated region
    $region9: #{inception_head_forward.13} parent=5 // pred_check
      _
    $region10: #{inception_head_forward.13} parent=5 // pred_check_branch
      %153 = sbr.rel (%p150) target = $region12
    $region11: #{inception_head_forward.13} parent=5 // pred_region
      %s154 = ssub.s32 %s10, 1
    $region12: #{inception_head_forward.13} parent=5 // pred_fallthru
      _
    %p155 = scmp.lt.s32.totalorder %s10, 2
    // Predicated region
    $region13: #{inception_head_forward.13} parent=5 // pred_check
      %p156 = pneg %p155
    $region14: #{inception_head_forward.13} parent=5 // pred_check_branch
      %158 = sbr.rel (%p156) target = $region16
    $region15: #{inception_head_forward.13} parent=5 // pred_region
      // Predicated region
      $region17: #{inception_head_forward.13} parent=15 // pred_check
        %p159 = pneg %p30
      $region18: #{inception_head_forward.13} parent=15 // pred_check_branch
        %161 = sbr.rel (%p159) target = $region20
      $region19: #{inception_head_forward.13} parent=15 // pred_region
        %p162 = scmp.lt.s32.totalorder %s10, 1
        %s163 = scalar_select %p162, %s10, 1
        %s164 = smul.addr %s163, 4
        %s165 = scalar_lea.vmem %s0, %s164
      $region20: #{inception_head_forward.13} parent=15 // pred_fallthru
        _
      // Predicated region
      $region21: #{inception_head_forward.13} parent=15 // pred_check
        %p166 = pneg %p56
      $region22: #{inception_head_forward.13} parent=15 // pred_check_branch
        %168 = sbr.rel (%p166) target = $region24
      $region23: #{inception_head_forward.13} parent=15 // pred_region
        %p169 = scmp.lt.s32.totalorder %s10, 1
        %s170 = scalar_select %p169, %s10, 1
        %s171 = smul.addr %s170, 4
        %s172 = scalar_lea.vmem %s1, %s171
      $region24: #{inception_head_forward.13} parent=15 // pred_fallthru
        _
      // Predicated region
      $region25: #{inception_head_forward.13} parent=15 // pred_check
        %p173 = pneg %p82
      $region26: #{inception_head_forward.13} parent=15 // pred_check_branch
        %175 = sbr.rel (%p173) target = $region28
      $region27: #{inception_head_forward.13} parent=15 // pred_region
        %p176 = scmp.lt.s32.totalorder %s10, 1
        %s177 = scalar_select %p176, %s10, 1
        %s178 = smul.addr %s177, 2
        %s179 = scalar_lea.vmem %s2, %s178
      $region28: #{inception_head_forward.13} parent=15 // pred_fallthru
        _
      // Predicated region
      $region29: #{inception_head_forward.13} parent=15 // pred_check
        %p180 = pneg %p108
      $region30: #{inception_head_forward.13} parent=15 // pred_check_branch
        %182 = sbr.rel (%p180) target = $region32
      $region31: #{inception_head_forward.13} parent=15 // pred_region
        %p183 = scmp.lt.s32.totalorder %s10, 1
        %s184 = scalar_select %p183, %s10, 1
        %s185 = smul.addr %s184, 2
        %s186 = scalar_lea.vmem %s3, %s185
      $region32: #{inception_head_forward.13} parent=15 // pred_fallthru
        _
    $region16: #{inception_head_forward.13} parent=5 // pred_fallthru
      _
    %p187 = scmp.le.s32.totalorder 1, %s10
    %p188 = scmp.lt.s32.totalorder %s10, 3
    %p189 = pnand %p187, %p188
    %p190 = pneg %p189
    // Predicated region
    $region33: #{inception_head_forward.13} parent=5 // pred_check
      _
    $region34: #{inception_head_forward.13} parent=5 // pred_check_branch
      %192 = sbr.rel (%p189) target = $region36
    $region35: #{inception_head_forward.13} parent=5 // pred_region
      %s193 = ssub.s32 %s10, 1
      %p194 = scmp.lt.s32.totalorder %s15, 1
      %s195 = scalar_select %p194, %s15, 1
      %s196 = smul.addr %s195, 4
      %s197 = scalar_lea.vmem %s0, %s196
      %p198 = pneg %p36
      %p199 = pneg %p33
      %p200 = scmp.lt.s32.totalorder %s15, 1
      %s201 = scalar_select %p200, %s15, 1
      %s202 = smul.addr %s201, 4
      %s203 = scalar_lea.vmem %s1, %s202
      %p204 = pneg %p62
      %p205 = pneg %p59
      %p206 = scmp.lt.s32.totalorder %s15, 1
      %s207 = scalar_select %p206, %s15, 1
      %s208 = smul.addr %s207, 2
      %s209 = scalar_lea.vmem %s2, %s208
      %p210 = pneg %p88
      %p211 = pneg %p85
      %p212 = scmp.lt.s32.totalorder %s15, 1
      %s213 = scalar_select %p212, %s15, 1
      %s214 = smul.addr %s213, 2
      %s215 = scalar_lea.vmem %s3, %s214
      %p216 = pneg %p114
      %p217 = pneg %p111
      %p218 = pneg %p140
      %p219 = pneg %p137
      %p220 = scmp.lt.s32.totalorder %s15, 1
      %s221 = scalar_select %p220, %s15, 1
      %s222 = smul.addr %s221, 2
      %s223 = scalar_lea.vmem %s4, %s222
      %p224 = scmp.lt.s32.totalorder %s15, 1
      %s225 = scalar_select %p224, %s15, 1
      %s226 = smul.addr %s225, 4
      %s227 = scalar_lea.vmem %s0, %s226
      %p228 = scmp.lt.s32.totalorder %s15, 1
      %s229 = scalar_select %p228, %s15, 1
      %s230 = smul.addr %s229, 4
      %s231 = scalar_lea.vmem %s1, %s230
      %p232 = scmp.lt.s32.totalorder %s15, 1
      %s233 = scalar_select %p232, %s15, 1
      %s234 = smul.addr %s233, 2
      %s235 = scalar_lea.vmem %s2, %s234
      %p236 = scmp.lt.s32.totalorder %s15, 1
      %s237 = scalar_select %p236, %s15, 1
      %s238 = smul.addr %s237, 2
      %s239 = scalar_lea.vmem %s3, %s238
      %p240 = scmp.lt.s32.totalorder %s15, 1
      %s241 = scalar_select %p240, %s15, 1
      %s242 = smul.addr %s241, 2
      %s243 = scalar_lea.vmem %s4, %s242
      %v244 = vld [vmem:[%s227] sm:$0x3]
      %v245 = vld [vmem:[%s227 + $0x2] sm:$0x3]
      %v246 = vld [vmem:[%s231] sm:$0x3]
      %v247 = vld [vmem:[%s231 + $0x2] sm:$0x3]
      %v248 = vld [vmem:[%s235] sm:$0x3]
      %v249 = vld [vmem:[%s239] sm:$0x3]
      %v251 = vshrl.u32 %v244, 16
      %v253 = vrot.slane %v251, 7
      %v254 = vrot.slane %v253, 1
      %v256 = vmax.bf16 %v244, %v254
      %v257 = vmax.bf16 %v256, %v245
      %v259 = vshrl.u32 %v245, 16
      %v261 = vrot.slane %v259, 7
      %v262 = vrot.slane %v261, 1
      %v264 = vmax.bf16 %v257, %v262
      %v265 = vmax.bf16 %v264, %v246
      %v266 = vmax.bf16 %v265, %v247
      %v267 = vmax.bf16 %v266, %v248
      %v269 = vshrl.u32 %v248, 16
      %v271 = vrot.slane %v269, 7
      %v272 = vrot.slane %v271, 1
      %v274 = vmax.bf16 %v267, %v272
      %v275 = vmax.bf16 %v274, %v249
      %vm276 = vcmask 1040384
      %vm277 = vsmask.f32 256
      %vm278 = vmand %vm276, %vm277
      %vm279 = vcmask 1041409
      %vm280 = vsmask.f32 1280
      %vm281 = vmand %vm279, %vm280
      %vm282 = vmor %vm281, %vm278
      %v283 = vld [vmem:[%s243] sm:$0x3]
      %v284 = vsel %vm282, %v275, %v283
      %285 = vst [vmem:[%s243] sm:$0x3] %v284
      %p286 = scmp.lt.s32.totalorder %s15, 1
      %s287 = scalar_select %p286, %s15, 1
      %s288 = smul.addr %s287, 2
      %s289 = scalar_lea.vmem %s4, %s288
      // Predicated region
      $region37: #{inception_head_forward.13} parent=35 // pred_check
        %p290 = pneg %p137
      $region38: #{inception_head_forward.13} parent=35 // pred_check_branch
        %292 = sbr.rel (%p290) target = $region40
      $region39: #{inception_head_forward.13} parent=35 // pred_region
        _
      $region40: #{inception_head_forward.13} parent=35 // pred_fallthru
        _
    $region36: #{inception_head_forward.13} parent=5 // pred_fallthru
      _
    %p293 = scmp.le.s32.totalorder 2, %s10
    // Predicated region
    $region41: #{inception_head_forward.13} parent=5 // pred_check
      %p294 = pneg %p293
    $region42: #{inception_head_forward.13} parent=5 // pred_check_branch
      %296 = sbr.rel (%p294) target = $region44
    $region43: #{inception_head_forward.13} parent=5 // pred_region
      %s297 = ssub.s32 %s10, 2
      // Predicated region
      $region45: #{inception_head_forward.13} parent=43 // pred_check
        %p298 = pneg %p143
      $region46: #{inception_head_forward.13} parent=43 // pred_check_branch
        %300 = sbr.rel (%p298) target = $region48
      $region47: #{inception_head_forward.13} parent=43 // pred_region
        %p301 = scmp.lt.s32.totalorder %s16, 1
        %s302 = scalar_select %p301, %s16, 1
        %s303 = smul.addr %s302, 2
        %s304 = scalar_lea.vmem %s4, %s303
      $region48: #{inception_head_forward.13} parent=43 // pred_fallthru
        _
    $region44: #{inception_head_forward.13} parent=5 // pred_fallthru
      _
  $region6: #{inception_head_forward.13} parent=0 // loop_footer
    %s14 = sadd.s32 1, %s10
  $region7: #{inception_head_forward.13} parent=0 // loop_footer_branch
    %9 = sbr.rel target = $region3
  $region8: #{inception_head_forward.13} parent=0 // loop_exit
    _

// kernel: inception_head_forward.8
$region0: #{inception_head_forward.8}
  #allocation0 [shape = 'u32[]', space=smem, size = 0x4, offset = 0x4, fixed_abs, tag = 'smem constant byte address 0x4 - core index']
  #allocation1 [shape = 'u32[144,128]{1,0:T(1,128)}', space=vmem, size = 0x12000, scoped, tag = 'internal scratch']
  %s0 = inlined_call_operand.vmem [shape: bf16[2,256,128], index: 0, kind: input, shape index: {}]
  %s1 = inlined_call_operand.vmem [shape: bf16[9,128,128], index: 1, kind: input, shape index: {}]
  %s2 = inlined_call_operand.vmem [shape: f32[1,128], index: 2, kind: input, shape index: {}]
  %s3 = inlined_call_operand.vmem [shape: bf16[2,208,128], index: 3, kind: output, shape index: {}]
  %s4 = sld [smem:[#allocation0]]
  $region45: #{inception_head_forward.8} parent=0
    _
  %s6 = ssub.s32 1, %s4
  %s7 = scalar_select 0, %s6, %s4
  loop: start=0, step=1, limit=4
  $region2: #{inception_head_forward.8} parent=0 // loop_pre_header
    _
  $region3: #{inception_head_forward.8} parent=0 // loop_header
    %s9 = sphi 0, %s13
    %p10 = scmp.ge.s32.totalorder %s9, 4
    %s19 = sphi 0, %s21
    %s22 = sphi 0, %s19
    %s23 = sphi 0, %s22
    %s39 = sphi 0, %s23
    %s43 = sphi 0, %s43
    %s45 = sphi 0, %s43
    %s46 = sphi 0, %s45
    %s60 = sphi 0, %s46
    %s64 = sphi 0, %s64
    %s66 = sphi 0, %s64
    %s67 = sphi 0, %s66
    %s81 = sphi 0, %s67
    %s87 = sphi 0, %s89
    %s90 = sphi 0, %s87
    %s91 = sphi 0, %s90
    %s107 = sphi 0, %s91
  $region4: #{inception_head_forward.8} parent=0 // loop_header_branch
    %12 = sbr.rel (%p10) target = $region8
  $region5: #{inception_head_forward.8} parent=0 // loop_body
    %s14 = ssub.s32 %s9, 1
    %s15 = ssub.s32 %s9, 2
    %s16 = sadd.s32 %s9, 1
    %s17 = ssub.s32 %s9, %s16
    %p18 = scmp.eq.s32.totalorder %s17, 0
    %s20 = sadd.s32 %s19, 1
    %s21 = scalar_select %p18, %s19, %s20
    %p24 = pneg %p18
    %p25 = scmp.eq.s32.totalorder %s9, 1
    %p26 = por %p24, %p25
    %p27 = scmp.ne.s32.totalorder %s19, %s22
    %p28 = scmp.eq.s32.totalorder %s9, 0
    %p29 = por %p27, %p28
    %p30 = scmp.ne.s32.totalorder %s19, %s22
    %p31 = scmp.eq.s32.totalorder %s14, 1
    %p32 = por %p30, %p31
    %p33 = scmp.ne.s32.totalorder %s22, %s23
    %p34 = scmp.eq.s32.totalorder %s14, 0
    %p35 = por %p33, %p34
    %p36 = scmp.ne.s32.totalorder %s22, %s23
    %p37 = scmp.eq.s32.totalorder %s15, 1
    %p38 = por %p36, %p37
    %p40 = scmp.ne.s32.totalorder %s23, %s39
    %p41 = scmp.eq.s32.totalorder %s15, 0
    %p42 = por %p40, %p41
    %s44 = sadd.s32 %s43, 1
    %p47 = scmp.eq.s32.totalorder %s9, 1
    %p48 = scmp.ne.s32.totalorder %s43, %s45
    %p49 = scmp.eq.s32.totalorder %s9, 0
    %p50 = por %p48, %p49
    %p51 = scmp.ne.s32.totalorder %s43, %s45
    %p52 = scmp.eq.s32.totalorder %s14, 1
    %p53 = por %p51, %p52
    %p54 = scmp.ne.s32.totalorder %s45, %s46
    %p55 = scmp.eq.s32.totalorder %s14, 0
    %p56 = por %p54, %p55
    %p57 = scmp.ne.s32.totalorder %s45, %s46
    %p58 = scmp.eq.s32.totalorder %s15, 1
    %p59 = por %p57, %p58
    %p61 = scmp.ne.s32.totalorder %s46, %s60
    %p62 = scmp.eq.s32.totalorder %s15, 0
    %p63 = por %p61, %p62
    %s65 = sadd.s32 %s64, 1
    %p68 = scmp.eq.s32.totalorder %s9, 1
    %p69 = scmp.ne.s32.totalorder %s64, %s66
    %p70 = scmp.eq.s32.totalorder %s9, 0
    %p71 = por %p69, %p70
    %p72 = scmp.ne.s32.totalorder %s64, %s66
    %p73 = scmp.eq.s32.totalorder %s14, 1
    %p74 = por %p72, %p73
    %p75 = scmp.ne.s32.totalorder %s66, %s67
    %p76 = scmp.eq.s32.totalorder %s14, 0
    %p77 = por %p75, %p76
    %p78 = scmp.ne.s32.totalorder %s66, %s67
    %p79 = scmp.eq.s32.totalorder %s15, 1
    %p80 = por %p78, %p79
    %p82 = scmp.ne.s32.totalorder %s67, %s81
    %p83 = scmp.eq.s32.totalorder %s15, 0
    %p84 = por %p82, %p83
    %s85 = ssub.s32 %s9, %s16
    %p86 = scmp.eq.s32.totalorder %s85, 0
    %s88 = sadd.s32 %s87, 1
    %s89 = scalar_select %p86, %s87, %s88
    %p92 = pneg %p86
    %p93 = scmp.eq.s32.totalorder %s9, 1
    %p94 = por %p92, %p93
    %p95 = scmp.ne.s32.totalorder %s87, %s90
    %p96 = scmp.eq.s32.totalorder %s9, 0
    %p97 = por %p95, %p96
    %p98 = scmp.ne.s32.totalorder %s87, %s90
    %p99 = scmp.eq.s32.totalorder %s14, 1
    %p100 = por %p98, %p99
    %p101 = scmp.ne.s32.totalorder %s90, %s91
    %p102 = scmp.eq.s32.totalorder %s14, 0
    %p103 = por %p101, %p102
    %p104 = scmp.ne.s32.totalorder %s90, %s91
    %p105 = scmp.eq.s32.totalorder %s15, 1
    %p106 = por %p104, %p105
    %p108 = scmp.ne.s32.totalorder %s91, %s107
    %p109 = scmp.eq.s32.totalorder %s15, 0
    %p110 = por %p108, %p109
    %p111 = scmp.le.s32.totalorder 1, %s9
    %p112 = scmp.lt.s32.totalorder %s9, 3
    %p113 = pnand %p111, %p112
    %p114 = pneg %p113
    // Predicated region
    $region9: #{inception_head_forward.8} parent=5 // pred_check
      _
    $region10: #{inception_head_forward.8} parent=5 // pred_check_branch
      %116 = sbr.rel (%p113) target = $region12
    $region11: #{inception_head_forward.8} parent=5 // pred_region
      %s117 = ssub.s32 %s9, 1
      // Predicated region
      $region13: #{inception_head_forward.8} parent=11 // pred_check
        %p118 = pneg %p56
      $region14: #{inception_head_forward.8} parent=11 // pred_check_branch
        %120 = sbr.rel (%p118) target = $region16
      $region15: #{inception_head_forward.8} parent=11 // pred_region
        _
      $region16: #{inception_head_forward.8} parent=11 // pred_fallthru
        _
      // Predicated region
      $region17: #{inception_head_forward.8} parent=11 // pred_check
        %p121 = pneg %p77
      $region18: #{inception_head_forward.8} parent=11 // pred_check_branch
        %123 = sbr.rel (%p121) target = $region20
      $region19: #{inception_head_forward.8} parent=11 // pred_region
        _
      $region20: #{inception_head_forward.8} parent=11 // pred_fallthru
        _
    $region12: #{inception_head_forward.8} parent=5 // pred_fallthru
      _
    %p124 = scmp.lt.s32.totalorder %s9, 2
    // Predicated region
    $region21: #{inception_head_forward.8} parent=5 // pred_check
      %p125 = pneg %p124
    $region22: #{inception_head_forward.8} parent=5 // pred_check_branch
      %127 = sbr.rel (%p125) target = $region24
    $region23: #{inception_head_forward.8} parent=5 // pred_region
      // Predicated region
      $region25: #{inception_head_forward.8} parent=23 // pred_check
        %p128 = pneg %p29
      $region26: #{inception_head_forward.8} parent=23 // pred_check_branch
        %130 = sbr.rel (%p128) target = $region28
      $region27: #{inception_head_forward.8} parent=23 // pred_region
        %p131 = scmp.lt.s32.totalorder %s9, 1
        %s132 = scalar_select %p131, %s9, 1
        %s133 = smul.addr %s132, 32
        %s134 = smul.addr %s133, 4
        %s135 = scalar_lea.vmem %s0, %s134
      $region28: #{inception_head_forward.8} parent=23 // pred_fallthru
        _
    $region24: #{inception_head_forward.8} parent=5 // pred_fallthru
      _
    %p136 = scmp.le.s32.totalorder 1, %s9
    %p137 = scmp.lt.s32.totalorder %s9, 3
    %p138 = pnand %p136, %p137
    %p139 = pneg %p138
    // Predicated region
    $region29: #{inception_head_forward.8} parent=5 // pred_check
      _
    $region30: #{inception_head_forward.8} parent=5 // pred_check_branch
      %141 = sbr.rel (%p138) target = $region32
    $region31: #{inception_head_forward.8} parent=5 // pred_region
      %s142 = ssub.s32 %s9, 1
      %p143 = scmp.lt.s32.totalorder %s14, 1
      %s144 = scalar_select %p143, %s14, 1
      %s145 = smul.addr %s144, 32
      %s146 = smul.addr %s145, 4
      %s147 = scalar_lea.vmem %s0, %s146
      %p148 = pneg %p35
      %p149 = pneg %p32
      %p150 = pneg %p56
      %p151 = pneg %p53
      %p152 = pneg %p77
      %p153 = pneg %p74
      %p154 = pneg %p103
      %p155 = pneg %p100
      %p156 = scmp.lt.s32.totalorder %s14, 1
      %s157 = scalar_select %p156, %s14, 1
      %s158 = smul.addr %s157, 26
      %s159 = smul.addr %s158, 4
      %s160 = scalar_lea.vmem %s3, %s159
      %p161 = scmp.lt.s32.totalorder %s14, 1
      %s162 = scalar_select %p161, %s14, 1
      %s163 = smul.addr %s162, 32
      %s164 = smul.addr %s163, 4
      %s165 = scalar_lea.vmem %s0, %s164
      %p166 = scmp.lt.s32.totalorder %s14, 1
      %s167 = scalar_select %p166, %s14, 1
      %s168 = smul.addr %s167, 26
      %s169 = smul.addr %s168, 4
      %s170 = scalar_lea.vmem %s3, %s169
      %v172 = vld [vmem:[%s165] sm:$0xf]
      %v173 = vld [vmem:[%s165 + $0x4] sm:$0xf]
      %v174 = vld [vmem:[%s165 + $0x8] sm:$0xf]
      %v175 = vld [vmem:[%s165 + $0xc] sm:$0xf]
      %v176 = vld [vmem:[%s165 + $0x10] sm:$0xf]
      %v177 = vld [vmem:[%s165 + $0x14] sm:$0xf]
      %v178 = vld [vmem:[%s165 + $0x18] sm:$0xf]
      %v179 = vld [vmem:[%s165 + $0x1c] sm:$0xf]
      %v180 = vld [vmem:[%s165 + $0x20] sm:$0xf]
      %v181 = vld [vmem:[%s165 + $0x24] sm:$0xf]
      %v182 = vld [vmem:[%s165 + $0x28] sm:$0xf]
      %v183 = vld [vmem:[%s165 + $0x2c] sm:$0xf]
      %v184 = vld [vmem:[%s165 + $0x30] sm:$0xf]
      %v185 = vld [vmem:[%s165 + $0x34] sm:$0xf]
      %v186 = vld [vmem:[%s165 + $0x38] sm:$0xf]
      %v187 = vld [vmem:[%s165 + $0x3c] sm:$0xf]
      %v188 = vld [vmem:[%s165 + $0x40] sm:$0xf]
      %v189 = vld [vmem:[%s165 + $0x44] sm:$0xf]
      %v190 = vld [vmem:[%s165 + $0x48] sm:$0xf]
      %v191 = vld [vmem:[%s165 + $0x4c] sm:$0xf]
      %v192 = vld [vmem:[%s165 + $0x50] sm:$0xf]
      %v193 = vld [vmem:[%s165 + $0x54] sm:$0xf]
      %v194 = vld [vmem:[%s165 + $0x58] sm:$0xf]
      %v195 = vld [vmem:[%s165 + $0x5c] sm:$0xf]
      %v196 = vld [vmem:[%s165 + $0x60] sm:$0xf]
      %v197 = vld [vmem:[%s165 + $0x64] sm:$0xf]
      %v198 = vld [vmem:[%s1] sm:$0xf]
      %v199 = vld [vmem:[%s1 + $0x4] sm:$0xf]
      %v200 = vld [vmem:[%s1 + $0x8] sm:$0xf]
      %v201 = vld [vmem:[%s1 + $0xc] sm:$0xf]
      %v202 = vld [vmem:[%s1 + $0x10] sm:$0xf]
      %v203 = vld [vmem:[%s1 + $0x14] sm:$0xf]
      %v204 = vld [vmem:[%s1 + $0x18] sm:$0xf]
      %v205 = vld [vmem:[%s1 + $0x1c] sm:$0xf]
      %v206 = vld [vmem:[%s1 + $0x20] sm:$0xf]
      %v207 = vld [vmem:[%s1 + $0x24] sm:$0xf]
      %v208 = vld [vmem:[%s1 + $0x28] sm:$0xf]
      %v209 = vld [vmem:[%s1 + $0x2c] sm:$0xf]
      %v210 = vld [vmem:[%s1 + $0x30] sm:$0xf]
      %v211 = vld [vmem:[%s1 + $0x34] sm:$0xf]
      %v212 = vld [vmem:[%s1 + $0x38] sm:$0xf]
      %v213 = vld [vmem:[%s1 + $0x3c] sm:$0xf]
      %v214 = vld [vmem:[%s165 + $0x68] sm:$0x1]
      %s215 = scalar_lea.vmem %s1, 64
      %v216 = vld [vmem:[%s215] sm:$0xf]
      %v217 = vld [vmem:[%s215 + $0x4] sm:$0xf]
      %v218 = vld [vmem:[%s215 + $0x8] sm:$0xf]
      %v219 = vld [vmem:[%s215 + $0xc] sm:$0xf]
      %v220 = vld [vmem:[%s215 + $0x10] sm:$0xf]
      %v221 = vld [vmem:[%s215 + $0x14] sm:$0xf]
      %v222 = vld [vmem:[%s215 + $0x18] sm:$0xf]
      %v223 = vld [vmem:[%s215 + $0x1c] sm:$0xf]
      %v224 = vld [vmem:[%s215 + $0x20] sm:$0xf]
      %v225 = vld [vmem:[%s215 + $0x24] sm:$0xf]
      %v226 = vld [vmem:[%s215 + $0x28] sm:$0xf]
      %v227 = vld [vmem:[%s215 + $0x2c] sm:$0xf]
      %v228 = vld [vmem:[%s215 + $0x30] sm:$0xf]
      %v229 = vld [vmem:[%s215 + $0x34] sm:$0xf]
      %v230 = vld [vmem:[%s215 + $0x38] sm:$0xf]
      %v231 = vld [vmem:[%s215 + $0x3c] sm:$0xf]
      %v259 = vunpack.c.l.b16 %v172
      %v260 = vunpack.c.l.b16 %v173
      %v261 = vunpack.c.l.b16 %v174
      %v262 = vunpack.c.l.b16 %v175
      %v263 = vunpack.c.l.b16 %v176
      %v264 = vunpack.c.l.b16 %v177
      %v265 = vunpack.c.l.b16 %v178
      %v266 = vunpack.c.l.b16 %v179
      %v267 = vunpack.c.l.b16 %v180
      %v268 = vunpack.c.l.b16 %v181
      %v269 = vunpack.c.l.b16 %v182
      %v270 = vunpack.c.l.b16 %v183
      %v271 = vunpack.c.l.b16 %v184
      %v272 = vunpack.c.l.b16 %v185
      %v273 = vunpack.c.l.b16 %v186
      %v274 = vunpack.c.l.b16 %v187
      %v275 = vunpack.c.l.b16 %v188
      %v276 = vunpack.c.l.b16 %v189
      %v277 = vunpack.c.l.b16 %v190
      %v278 = vunpack.c.l.b16 %v191
      %v279 = vunpack.c.l.b16 %v192
      %v280 = vunpack.c.l.b16 %v193
      %v281 = vunpack.c.l.b16 %v194
      %v282 = vunpack.c.l.b16 %v195
      %v283 = vunpack.c.l.b16 %v196
      %v284 = vunpack.c.l.b16 %v197
      %v285 = vunpack.c.l.b16 %v214
      %v286 = vpack.c.b16 %v260, %v259
      %v287 = vpack.c.b16 %v262, %v261
      %v288 = vpack.c.b16 %v264, %v263
      %v289 = vpack.c.b16 %v266, %v265
      %v290 = vpack.c.b16 %v268, %v267
      %v291 = vpack.c.b16 %v270, %v269
      %v292 = vpack.c.b16 %v272, %v271
      %v293 = vpack.c.b16 %v274, %v273
      %v294 = vpack.c.b16 %v276, %v275
      %v295 = vpack.c.b16 %v278, %v277
      %v296 = vpack.c.b16 %v280, %v279
      %v297 = vpack.c.b16 %v282, %v281
      %v298 = vpack.c.b16 %v284, %v283
      %v299 = vpack.c.b16 %v285, %v285
      %vm300 = vsmask.f32 7424
      %v302 = vshrl.u32 %v286, 16
      %v304 = vshll.u32 %v286, 16
      %v306 = vrot.slane %v304, 1
      %v307 = vor.u32 %v302, %v306
      %v309 = vshll.u32 %v287, 16
      %v311 = vrot.slane %v309, 1
      %v312 = vsel %vm300, %v307, %v311
      %v313 = vshrl.u32 %v287, 16
      %v315 = vor.u32 %v313, %v311
      %v317 = vshll.u32 %v288, 16
      %v319 = vrot.slane %v317, 1
      %v320 = vsel %vm300, %v315, %v319
      %v321 = vshrl.u32 %v288, 16
      %v323 = vor.u32 %v321, %v319
      %v325 = vshll.u32 %v289, 16
      %v327 = vrot.slane %v325, 1
      %v328 = vsel %vm300, %v323, %v327
      %v329 = vshrl.u32 %v289, 16
      %v331 = vor.u32 %v329, %v327
      %v333 = vshll.u32 %v290, 16
      %v335 = vrot.slane %v333, 1
      %v336 = vsel %vm300, %v331, %v335
      %v337 = vshrl.u32 %v290, 16
      %v339 = vor.u32 %v337, %v335
      %v341 = vshll.u32 %v291, 16
      %v343 = vrot.slane %v341, 1
      %v344 = vsel %vm300, %v339, %v343
      %v345 = vshrl.u32 %v291, 16
      %v347 = vor.u32 %v345, %v343
      %v349 = vshll.u32 %v292, 16
      %v351 = vrot.slane %v349, 1
      %v352 = vsel %vm300, %v347, %v351
      %v353 = vshrl.u32 %v292, 16
      %v355 = vor.u32 %v353, %v351
      %v357 = vshll.u32 %v293, 16
      %v359 = vrot.slane %v357, 1
      %v360 = vsel %vm300, %v355, %v359
      %v361 = vshrl.u32 %v293, 16
      %v363 = vor.u32 %v361, %v359
      %v365 = vshll.u32 %v294, 16
      %v367 = vrot.slane %v365, 1
      %v368 = vsel %vm300, %v363, %v367
      %v369 = vshrl.u32 %v294, 16
      %v371 = vor.u32 %v369, %v367
      %v373 = vshll.u32 %v295, 16
      %v375 = vrot.slane %v373, 1
      %v376 = vsel %vm300, %v371, %v375
      %v377 = vshrl.u32 %v295, 16
      %v379 = vor.u32 %v377, %v375
      %v381 = vshll.u32 %v296, 16
      %v383 = vrot.slane %v381, 1
      %v384 = vsel %vm300, %v379, %v383
      %v385 = vshrl.u32 %v296, 16
      %v387 = vor.u32 %v385, %v383
      %v389 = vshll.u32 %v297, 16
      %v391 = vrot.slane %v389, 1
      %v392 = vsel %vm300, %v387, %v391
      %v393 = vshrl.u32 %v297, 16
      %v395 = vor.u32 %v393, %v391
      %v397 = vshll.u32 %v298, 16
      %v399 = vrot.slane %v397, 1
      %v400 = vsel %vm300, %v395, %v399
      %v401 = vshrl.u32 %v298, 16
      %v403 = vor.u32 %v401, %v399
      %v405 = vshll.u32 %v299, 16
      %v407 = vrot.slane %v405, 1
      %v408 = vsel %vm300, %v403, %v407
      %v438 = vunpack.c.l.b16 %v216
      %v439 = vunpack.c.l.b16 %v217
      %v440 = vunpack.c.l.b16 %v218
      %v441 = vunpack.c.l.b16 %v219
      %v442 = vunpack.c.l.b16 %v220
      %v443 = vunpack.c.l.b16 %v221
      %v444 = vunpack.c.l.b16 %v222
      %v445 = vunpack.c.l.b16 %v223
      %v446 = vunpack.c.l.b16 %v224
      %v447 = vunpack.c.l.b16 %v225
      %v448 = vunpack.c.l.b16 %v226
      %v449 = vunpack.c.l.b16 %v227
      %v450 = vunpack.c.l.b16 %v228
      %v451 = vunpack.c.l.b16 %v229
      %v452 = vunpack.c.l.b16 %v230
      %v453 = vunpack.c.l.b16 %v231
      %v454 = vpack.c.b16 %v439, %v438
      %v455 = vpack.c.b16 %v441, %v440
      %v456 = vpack.c.b16 %v443, %v442
      %v457 = vpack.c.b16 %v445, %v444
      %v458 = vpack.c.b16 %v447, %v446
      %v459 = vpack.c.b16 %v449, %v448
      %v460 = vpack.c.b16 %v451, %v450
      %v461 = vpack.c.b16 %v453, %v452
      %470 = vmatprep.subr.bf16.mxu0 0
      %471 = vmatpush1.bf16.msra.mxu0 %v454
      %472 = vmatprep.subr.bf16.mxu0 0
      %473 = vmatpush1.bf16.msra.mxu0 %v455
      %474 = vmatprep.subr.bf16.mxu0 0
      %475 = vmatpush1.bf16.msra.mxu0 %v456
      %476 = vmatprep.subr.bf16.mxu0 0
      %477 = vmatpush1.bf16.msra.mxu0 %v457
      %478 = vmatprep.subr.bf16.mxu0 0
      %479 = vmatpush1.bf16.msra.mxu0 %v458
      %480 = vmatprep.subr.bf16.mxu0 0
      %481 = vmatpush1.bf16.msra.mxu0 %v459
      %482 = vmatprep.subr.bf16.mxu0 0
      %483 = vmatpush1.bf16.msra.mxu0 %v460
      %484 = vmatprep.subr.bf16.mxu0 0
      %485 = vmatpush1.bf16.msra.mxu0 %v461
      %486 = vmatprep.subr.bf16.mxu0 0
      %487 = vmatpush1.bf16.msra.mxu0 0
      %488 = vmatprep.subr.bf16.mxu0 0
      %489 = vmatpush1.bf16.msra.mxu0 0
      %490 = vmatprep.subr.bf16.mxu0 0
      %491 = vmatpush1.bf16.msra.mxu0 0
      %492 = vmatprep.subr.bf16.mxu0 0
      %493 = vmatpush1.bf16.msra.mxu0 0
      %494 = vmatprep.subr.bf16.mxu0 0
      %495 = vmatpush1.bf16.msra.mxu0 0
      %496 = vmatprep.subr.bf16.mxu0 0
      %497 = vmatpush1.bf16.msra.mxu0 0
      %498 = vmatprep.subr.bf16.mxu0 0
      %499 = vmatpush1.bf16.msra.mxu0 0
      %500 = vmatprep.subr.bf16.mxu0 0
      %501 = vmatpush1.bf16.msra.mxu0 0
      %502 = vmatprep.mubr.bf16.mxu0 0
      %503 = vmatmul.mubr.bf16.gmra.mrb[0].mxu0 %v312
      %v504 = vpop.f32.mrb[0].mxu0
      %v505 = vadd.f32 0.0, %v504
      %v506 = vpop.f32.mrb[0].mxu0
      %v507 = vpop.f32.mrb[0].mxu0
      %v508 = vadd.f32 0.0, %v507
      %v509 = vpop.f32.mrb[0].mxu0
      %510 = vmatprep.mubr.bf16.mxu0 0
      %511 = vmatmul.mubr.bf16.gmra.mrb[0].mxu0 %v320
      %v512 = vpop.f32.mrb[0].mxu0
      %v513 = vadd.f32 0.0, %v512
      %v514 = vpop.f32.mrb[0].mxu0
      %v515 = vpop.f32.mrb[0].mxu0
      %v516 = vadd.f32 0.0, %v515
      %v517 = vpop.f32.mrb[0].mxu0
      %518 = vmatprep.mubr.bf16.mxu0 0
      %519 = vmatmul.mubr.bf16.gmra.mrb[0].mxu0 %v328
      %v520 = vpop.f32.mrb[0].mxu0
      %v521 = vadd.f32 0.0, %v520
      %v522 = vpop.f32.mrb[0].mxu0
      %v523 = vpop.f32.mrb[0].mxu0
      %v524 = vadd.f32 0.0, %v523
      %v525 = vpop.f32.mrb[0].mxu0
      %526 = vmatprep.mubr.bf16.mxu0 0
      %527 = vmatmul.mubr.bf16.gmra.mrb[0].mxu0 %v336
      %v528 = vpop.f32.mrb[0].mxu0
      %v529 = vadd.f32 0.0, %v528
      %v530 = vpop.f32.mrb[0].mxu0
      %v531 = vpop.f32.mrb[0].mxu0
      %v532 = vadd.f32 0.0, %v531
      %v533 = vpop.f32.mrb[0].mxu0
      %534 = vmatprep.mubr.bf16.mxu0 0
      %535 = vmatmul.mubr.bf16.gmra.mrb[0].mxu0 %v344
      %v536 = vpop.f32.mrb[0].mxu0
      %v537 = vadd.f32 0.0, %v536
      %v538 = vpop.f32.mrb[0].mxu0
      %v539 = vpop.f32.mrb[0].mxu0
      %v540 = vadd.f32 0.0, %v539
      %v541 = vpop.f32.mrb[0].mxu0
      %542 = vmatprep.mubr.bf16.mxu0 0
      %543 = vmatmul.mubr.bf16.gmra.mrb[0].mxu0 %v352
      %v544 = vpop.f32.mrb[0].mxu0
      %v545 = vadd.f32 0.0, %v544
      %v546 = vpop.f32.mrb[0].mxu0
      %v547 = vpop.f32.mrb[0].mxu0
      %v548 = vadd.f32 0.0, %v547
      %v549 = vpop.f32.mrb[0].mxu0
      %550 = vmatprep.mubr.bf16.mxu0 0
      %551 = vmatmul.mubr.bf16.gmra.mrb[0].mxu0 %v360
      %v552 = vpop.f32.mrb[0].mxu0
      %v553 = vadd.f32 0.0, %v552
      %v554 = vpop.f32.mrb[0].mxu0
      %v555 = vpop.f32.mrb[0].mxu0
      %v556 = vadd.f32 0.0, %v555
      %v557 = vpop.f32.mrb[0].mxu0
      %558 = vmatprep.mubr.bf16.mxu0 0
      %559 = vmatmul.mubr.bf16.gmra.mrb[0].mxu0 %v368
      %v560 = vpop.f32.mrb[0].mxu0
      %v561 = vadd.f32 0.0, %v560
      %v562 = vpop.f32.mrb[0].mxu0
      %v563 = vpop.f32.mrb[0].mxu0
      %v564 = vadd.f32 0.0, %v563
      %v565 = vpop.f32.mrb[0].mxu0
      %566 = vmatprep.mubr.bf16.mxu0 0
      %567 = vmatmul.mubr.bf16.gmra.mrb[0].mxu0 %v376
      %v568 = vpop.f32.mrb[0].mxu0
      %v569 = vadd.f32 0.0, %v568
      %v570 = vpop.f32.mrb[0].mxu0
      %v571 = vpop.f32.mrb[0].mxu0
      %v572 = vadd.f32 0.0, %v571
      %v573 = vpop.f32.mrb[0].mxu0
      %574 = vmatprep.mubr.bf16.mxu0 0
      %575 = vmatmul.mubr.bf16.gmra.mrb[0].mxu0 %v384
      %v576 = vpop.f32.mrb[0].mxu0
      %v577 = vadd.f32 0.0, %v576
      %v578 = vpop.f32.mrb[0].mxu0
      %v579 = vpop.f32.mrb[0].mxu0
      %v580 = vadd.f32 0.0, %v579
      %v581 = vpop.f32.mrb[0].mxu0
      %582 = vmatprep.mubr.bf16.mxu0 0
      %583 = vmatmul.mubr.bf16.gmra.mrb[0].mxu0 %v392
      %v584 = vpop.f32.mrb[0].mxu0
      %v585 = vadd.f32 0.0, %v584
      %v586 = vpop.f32.mrb[0].mxu0
      %v587 = vpop.f32.mrb[0].mxu0
      %v588 = vadd.f32 0.0, %v587
      %v589 = vpop.f32.mrb[0].mxu0
      %590 = vmatprep.mubr.bf16.mxu0 0
      %591 = vmatmul.mubr.bf16.gmra.mrb[0].mxu0 %v400
      %v592 = vpop.f32.mrb[0].mxu0
      %v593 = vadd.f32 0.0, %v592
      %v594 = vpop.f32.mrb[0].mxu0
      %v595 = vpop.f32.mrb[0].mxu0
      %v596 = vadd.f32 0.0, %v595
      %v597 = vpop.f32.mrb[0].mxu0
      %598 = vmatprep.mubr.bf16.mxu0 0
      %599 = vmatmul.mubr.bf16.gmra.mrb[0].mxu0 %v408
      %v600 = vpop.f32.mrb[0].mxu0
      %v601 = vadd.f32 0.0, %v600
      %v602 = vpop.f32.mrb[0].mxu0
      %v603 = vpop.f32.mrb[0].mxu0
      %v604 = vadd.f32 0.0, %v603
      %v605 = vpop.f32.mrb[0].mxu0
      %606 = vdwg.mxu0
      %v636 = vunpack.c.l.b16 %v198
      %v637 = vunpack.c.l.b16 %v199
      %v638 = vunpack.c.l.b16 %v200
      %v639 = vunpack.c.l.b16 %v201
      %v640 = vunpack.c.l.b16 %v202
      %v641 = vunpack.c.l.b16 %v203
      %v642 = vunpack.c.l.b16 %v204
      %v643 = vunpack.c.l.b16 %v205
      %v644 = vunpack.c.l.b16 %v206
      %v645 = vunpack.c.l.b16 %v207
      %v646 = vunpack.c.l.b16 %v208
      %v647 = vunpack.c.l.b16 %v209
      %v648 = vunpack.c.l.b16 %v210
      %v649 = vunpack.c.l.b16 %v211
      %v650 = vunpack.c.l.b16 %v212
      %v651 = vunpack.c.l.b16 %v213
      %v652 = vpack.c.b16 %v637, %v636
      %v653 = vpack.c.b16 %v639, %v638
      %v654 = vpack.c.b16 %v641, %v640
      %v655 = vpack.c.b16 %v643, %v642
      %v656 = vpack.c.b16 %v645, %v644
      %v657 = vpack.c.b16 %v647, %v646
      %v658 = vpack.c.b16 %v649, %v648
      %v659 = vpack.c.b16 %v651, %v650
      %668 = vmatprep.subr.bf16.mxu0 0
      %669 = vmatpush1.bf16.msra.mxu0 %v652
      %670 = vmatprep.subr.bf16.mxu0 0
      %671 = vmatpush1.bf16.msra.mxu0 %v653
      %672 = vmatprep.subr.bf16.mxu0 0
      %673 = vmatpush1.bf16.msra.mxu0 %v654
      %674 = vmatprep.subr.bf16.mxu0 0
      %675 = vmatpush1.bf16.msra.mxu0 %v655
      %676 = vmatprep.subr.bf16.mxu0 0
      %677 = vmatpush1.bf16.msra.mxu0 %v656
      %678 = vmatprep.subr.bf16.mxu0 0
      %679 = vmatpush1.bf16.msra.mxu0 %v657
      %680 = vmatprep.subr.bf16.mxu0 0
      %681 = vmatpush1.bf16.msra.mxu0 %v658
      %682 = vmatprep.subr.bf16.mxu0 0
      %683 = vmatpush1.bf16.msra.mxu0 %v659
      %684 = vmatprep.subr.bf16.mxu0 0
      %685 = vmatpush1.bf16.msra.mxu0 0
      %686 = vmatprep.subr.bf16.mxu0 0
      %687 = vmatpush1.bf16.msra.mxu0 0
      %688 = vmatprep.subr.bf16.mxu0 0
      %689 = vmatpush1.bf16.msra.mxu0 0
      %690 = vmatprep.subr.bf16.mxu0 0
      %691 = vmatpush1.bf16.msra.mxu0 0
      %692 = vmatprep.subr.bf16.mxu0 0
      %693 = vmatpush1.bf16.msra.mxu0 0
      %694 = vmatprep.subr.bf16.mxu0 0
      %695 = vmatpush1.bf16.msra.mxu0 0
      %696 = vmatprep.subr.bf16.mxu0 0
      %697 = vmatpush1.bf16.msra.mxu0 0
      %698 = vmatprep.subr.bf16.mxu0 0
      %699 = vmatpush1.bf16.msra.mxu0 0
      %700 = vmatprep.mubr.bf16.mxu0 0
      %701 = vmatmul.mubr.bf16.gmra.mrb[0].mxu0 %v286
      %v702 = vpop.f32.mrb[0].mxu0
      %v703 = vadd.f32 %v505, %v702
      %v704 = vpop.f32.mrb[0].mxu0
      %v705 = vpop.f32.mrb[0].mxu0
      %v706 = vadd.f32 %v508, %v705
      %v707 = vpop.f32.mrb[0].mxu0
      %708 = vmatprep.mubr.bf16.mxu0 0
      %709 = vmatmul.mubr.bf16.gmra.mrb[0].mxu0 %v287
      %v710 = vpop.f32.mrb[0].mxu0
      %v711 = vadd.f32 %v513, %v710
      %v712 = vpop.f32.mrb[0].mxu0
      %v713 = vpop.f32.mrb[0].mxu0
      %v714 = vadd.f32 %v516, %v713
      %v715 = vpop.f32.mrb[0].mxu0
      %716 = vmatprep.mubr.bf16.mxu0 0
      %717 = vmatmul.mubr.bf16.gmra.mrb[0].mxu0 %v288
      %v718 = vpop.f32.mrb[0].mxu0
      %v719 = vadd.f32 %v521, %v718
      %v720 = vpop.f32.mrb[0].mxu0
      %v721 = vpop.f32.mrb[0].mxu0
      %v722 = vadd.f32 %v524, %v721
      %v723 = vpop.f32.mrb[0].mxu0
      %724 = vmatprep.mubr.bf16.mxu0 0
      %725 = vmatmul.mubr.bf16.gmra.mrb[0].mxu0 %v289
      %v726 = vpop.f32.mrb[0].mxu0
      %v727 = vadd.f32 %v529, %v726
      %v728 = vpop.f32.mrb[0].mxu0
      %v729 = vpop.f32.mrb[0].mxu0
      %v730 = vadd.f32 %v532, %v729
      %v731 = vpop.f32.mrb[0].mxu0
      %732 = vmatprep.mubr.bf16.mxu0 0
      %733 = vmatmul.mubr.bf16.gmra.mrb[0].mxu0 %v290
      %v734 = vpop.f32.mrb[0].mxu0
      %v735 = vadd.f32 %v537, %v734
      %v736 = vpop.f32.mrb[0].mxu0
      %v737 = vpop.f32.mrb[0].mxu0
      %v738 = vadd.f32 %v540, %v737
      %v739 = vpop.f32.mrb[0].mxu0
      %740 = vmatprep.mubr.bf16.mxu0 0
      %741 = vmatmul.mubr.bf16.gmra.mrb[0].mxu0 %v291
      %v742 = vpop.f32.mrb[0].mxu0
      %v743 = vadd.f32 %v545, %v742
      %v744 = vpop.f32.mrb[0].mxu0
      %v745 = vpop.f32.mrb[0].mxu0
      %v746 = vadd.f32 %v548, %v745
      %v747 = vpop.f32.mrb[0].mxu0
      %748 = vmatprep.mubr.bf16.mxu0 0
      %749 = vmatmul.mubr.bf16.gmra.mrb[0].mxu0 %v292
      %v750 = vpop.f32.mrb[0].mxu0
      %v751 = vadd.f32 %v553, %v750
      %v752 = vpop.f32.mrb[0].mxu0
      %v753 = vpop.f32.mrb[0].mxu0
      %v754 = vadd.f32 %v556, %v753
      %v755 = vpop.f32.mrb[0].mxu0
      %756 = vmatprep.mubr.bf16.mxu0 0
      %757 = vmatmul.mubr.bf16.gmra.mrb[0].mxu0 %v293
      %v758 = vpop.f32.mrb[0].mxu0
      %v759 = vadd.f32 %v561, %v758
      %v760 = vpop.f32.mrb[0].mxu0
      %v761 = vpop.f32.mrb[0].mxu0
      %v762 = vadd.f32 %v564, %v761
      %v763 = vpop.f32.mrb[0].mxu0
      %764 = vmatprep.mubr.bf16.mxu0 0
      %765 = vmatmul.mubr.bf16.gmra.mrb[0].mxu0 %v294
      %v766 = vpop.f32.mrb[0].mxu0
      %v767 = vadd.f32 %v569, %v766
      %v768 = vpop.f32.mrb[0].mxu0
      %v769 = vpop.f32.mrb[0].mxu0
      %v770 = vadd.f32 %v572, %v769
      %v771 = vpop.f32.mrb[0].mxu0
      %772 = vmatprep.mubr.bf16.mxu0 0
      %773 = vmatmul.mubr.bf16.gmra.mrb[0].mxu0 %v295
      %v774 = vpop.f32.mrb[0].mxu0
      %v775 = vadd.f32 %v577, %v774
      %v776 = vpop.f32.mrb[0].mxu0
      %v777 = vpop.f32.mrb[0].mxu0
      %v778 = vadd.f32 %v580, %v777
      %v779 = vpop.f32.mrb[0].mxu0
      %780 = vmatprep.mubr.bf16.mxu0 0
      %781 = vmatmul.mubr.bf16.gmra.mrb[0].mxu0 %v296
      %v782 = vpop.f32.mrb[0].mxu0
      %v783 = vadd.f32 %v585, %v782
      %v784 = vpop.f32.mrb[0].mxu0
      %v785 = vpop.f32.mrb[0].mxu0
      %v786 = vadd.f32 %v588, %v785
      %v787 = vpop.f32.mrb[0].mxu0
      %788 = vmatprep.mubr.bf16.mxu0 0
      %789 = vmatmul.mubr.bf16.gmra.mrb[0].mxu0 %v297
      %v790 = vpop.f32.mrb[0].mxu0
      %v791 = vadd.f32 %v593, %v790
      %v792 = vpop.f32.mrb[0].mxu0
      %v793 = vpop.f32.mrb[0].mxu0
      %v794 = vadd.f32 %v596, %v793
      %v795 = vpop.f32.mrb[0].mxu0
      %796 = vmatprep.mubr.bf16.mxu0 0
      %797 = vmatmul.mubr.bf16.gmra.mrb[0].mxu0 %v298
      %v798 = vpop.f32.mrb[0].mxu0
      %v799 = vadd.f32 %v601, %v798
      %v800 = vpop.f32.mrb[0].mxu0
      %v801 = vpop.f32.mrb[0].mxu0
      %v802 = vadd.f32 %v604, %v801
      %v803 = vpop.f32.mrb[0].mxu0
      %804 = vdwg.mxu0
      %v805 = vld [vmem:[%s165] sm:$0xe]
      %s806 = scalar_lea.vmem %s1, 128
      %v807 = vld [vmem:[%s806] sm:$0xf]
      %v808 = vld [vmem:[%s806 + $0x4] sm:$0xf]
      %v809 = vld [vmem:[%s806 + $0x8] sm:$0xf]
      %v810 = vld [vmem:[%s806 + $0xc] sm:$0xf]
      %v811 = vld [vmem:[%s806 + $0x10] sm:$0xf]
      %v812 = vld [vmem:[%s806 + $0x14] sm:$0xf]
      %v813 = vld [vmem:[%s806 + $0x18] sm:$0xf]
      %v814 = vld [vmem:[%s806 + $0x1c] sm:$0xf]
      %v815 = vld [vmem:[%s806 + $0x20] sm:$0xf]
      %v816 = vld [vmem:[%s806 + $0x24] sm:$0xf]
      %v817 = vld [vmem:[%s806 + $0x28] sm:$0xf]
      %v818 = vld [vmem:[%s806 + $0x2c] sm:$0xf]
      %v819 = vld [vmem:[%s806 + $0x30] sm:$0xf]
      %v820 = vld [vmem:[%s806 + $0x34] sm:$0xf]
      %v821 = vld [vmem:[%s806 + $0x38] sm:$0xf]
      %v822 = vld [vmem:[%s806 + $0x3c] sm:$0xf]
      %v824 = vunpack.c.l.b16 %v805
      %v825 = vpack.c.b16 %v260, %v824
      %vm826 = vcmask 1046528
      %v827 = vrot.slane %v825, 1
      %v828 = vrot.slane %v287, 1
      %v829 = vsel %vm826, %v827, %v828
      %v830 = vrot.slane %v288, 1
      %v831 = vsel %vm826, %v828, %v830
      %v832 = vrot.slane %v289, 1
      %v833 = vsel %vm826, %v830, %v832
      %v834 = vrot.slane %v290, 1
      %v835 = vsel %vm826, %v832, %v834
      %v836 = vrot.slane %v291, 1
      %v837 = vsel %vm826, %v834, %v836
      %v838 = vrot.slane %v292, 1
      %v839 = vsel %vm826, %v836, %v838
      %v840 = vrot.slane %v293, 1
      %v841 = vsel %vm826, %v838, %v840
      %v842 = vrot.slane %v294, 1
      %v843 = vsel %vm826, %v840, %v842
      %v844 = vrot.slane %v295, 1
      %v845 = vsel %vm826, %v842, %v844
      %v846 = vrot.slane %v296, 1
      %v847 = vsel %vm826, %v844, %v846
      %v848 = vrot.slane %v297, 1
      %v849 = vsel %vm826, %v846, %v848
      %v850 = vrot.slane %v298, 1
      %v851 = vsel %vm826, %v848, %v850
      %v852 = vrot.slane %v299, 1
      %v853 = vsel %vm826, %v850, %v852
      %v883 = vunpack.c.l.b16 %v807
      %v884 = vunpack.c.l.b16 %v808
      %v885 = vunpack.c.l.b16 %v809
      %v886 = vunpack.c.l.b16 %v810
      %v887 = vunpack.c.l.b16 %v811
      %v888 = vunpack.c.l.b16 %v812
      %v889 = vunpack.c.l.b16 %v813
      %v890 = vunpack.c.l.b16 %v814
      %v891 = vunpack.c.l.b16 %v815
      %v892 = vunpack.c.l.b16 %v816
      %v893 = vunpack.c.l.b16 %v817
      %v894 = vunpack.c.l.b16 %v818
      %v895 = vunpack.c.l.b16 %v819
      %v896 = vunpack.c.l.b16 %v820
      %v897 = vunpack.c.l.b16 %v821
      %v898 = vunpack.c.l.b16 %v822
      %v899 = vpack.c.b16 %v884, %v883
      %v900 = vpack.c.b16 %v886, %v885
      %v901 = vpack.c.b16 %v888, %v887
      %v902 = vpack.c.b16 %v890, %v889
      %v903 = vpack.c.b16 %v892, %v891
      %v904 = vpack.c.b16 %v894, %v893
      %v905 = vpack.c.b16 %v896, %v895
      %v906 = vpack.c.b16 %v898, %v897
      %915 = vmatprep.subr.bf16.mxu0 0
      %916 = vmatpush1.bf16.msra.mxu0 %v899
      %917 = vmatprep.subr.bf16.mxu0 0
      %918 = vmatpush1.bf16.msra.mxu0 %v900
      %919 = vmatprep.subr.bf16.mxu0 0
      %920 = vmatpush1.bf16.msra.mxu0 %v901
      %921 = vmatprep.subr.bf16.mxu0 0
      %922 = vmatpush1.bf16.msra.mxu0 %v902
      %923 = vmatprep.subr.bf16.mxu0 0
      %924 = vmatpush1.bf16.msra.mxu0 %v903
      %925 = vmatprep.subr.bf16.mxu0 0
      %926 = vmatpush1.bf16.msra.mxu0 %v904
      %927 = vmatprep.subr.bf16.mxu0 0
      %928 = vmatpush1.bf16.msra.mxu0 %v905
      %929 = vmatprep.subr.bf16.mxu0 0
      %930 = vmatpush1.bf16.msra.mxu0 %v906
      %931 = vmatprep.subr.bf16.mxu0 0
      %932 = vmatpush1.bf16.msra.mxu0 0
      %933 = vmatprep.subr.bf16.mxu0 0
      %934 = vmatpush1.bf16.msra.mxu0 0
      %935 = vmatprep.subr.bf16.mxu0 0
      %936 = vmatpush1.bf16.msra.mxu0 0
      %937 = vmatprep.subr.bf16.mxu0 0
      %938 = vmatpush1.bf16.msra.mxu0 0
      %939 = vmatprep.subr.bf16.mxu0 0
      %940 = vmatpush1.bf16.msra.mxu0 0
      %941 = vmatprep.subr.bf16.mxu0 0
      %942 = vmatpush1.bf16.msra.mxu0 0
      %943 = vmatprep.subr.bf16.mxu0 0
      %944 = vmatpush1.bf16.msra.mxu0 0
      %945 = vmatprep.subr.bf16.mxu0 0
      %946 = vmatpush1.bf16.msra.mxu0 0
      %947 = vmatprep.mubr.bf16.mxu0 0
      %948 = vmatmul.mubr.bf16.gmra.mrb[0].mxu0 %v829
      %v949 = vpop.f32.mrb[0].mxu0
      %v950 = vadd.f32 0.0, %v949
      %v951 = vpop.f32.mrb[0].mxu0
      %v952 = vpop.f32.mrb[0].mxu0
      %v953 = vadd.f32 0.0, %v952
      %v954 = vpop.f32.mrb[0].mxu0
      %955 = vmatprep.mubr.bf16.mxu0 0
      %956 = vmatmul.mubr.bf16.gmra.mrb[0].mxu0 %v831
      %v957 = vpop.f32.mrb[0].mxu0
      %v958 = vadd.f32 0.0, %v957
      %v959 = vpop.f32.mrb[0].mxu0
      %v960 = vpop.f32.mrb[0].mxu0
      %v961 = vadd.f32 0.0, %v960
      %v962 = vpop.f32.mrb[0].mxu0
      %963 = vmatprep.mubr.bf16.mxu0 0
      %964 = vmatmul.mubr.bf16.gmra.mrb[0].mxu0 %v833
      %v965 = vpop.f32.mrb[0].mxu0
      %v966 = vadd.f32 0.0, %v965
      %v967 = vpop.f32.mrb[0].mxu0
      %v968 = vpop.f32.mrb[0].mxu0
      %v969 = vadd.f32 0.0, %v968
      %v970 = vpop.f32.mrb[0].mxu0
      %971 = vmatprep.mubr.bf16.mxu0 0
      %972 = vmatmul.mubr.bf16.gmra.mrb[0].mxu0 %v835
      %v973 = vpop.f32.mrb[0].mxu0
      %v974 = vadd.f32 0.0, %v973
      %v975 = vpop.f32.mrb[0].mxu0
      %v976 = vpop.f32.mrb[0].mxu0
      %v977 = vadd.f32 0.0, %v976
      %v978 = vpop.f32.mrb[0].mxu0
      %979 = vmatprep.mubr.bf16.mxu0 0
      %980 = vmatmul.mubr.bf16.gmra.mrb[0].mxu0 %v837
      %v981 = vpop.f32.mrb[0].mxu0
      %v982 = vadd.f32 0.0, %v981
      %v983 = vpop.f32.mrb[0].mxu0
      %v984 = vpop.f32.mrb[0].mxu0
      %v985 = vadd.f32 0.0, %v984
      %v986 = vpop.f32.mrb[0].mxu0
      %987 = vmatprep.mubr.bf16.mxu0 0
      %988 = vmatmul.mubr.bf16.gmra.mrb[0].mxu0 %v839
      %v989 = vpop.f32.mrb[0].mxu0
      %v990 = vadd.f32 0.0, %v989
      %v991 = vpop.f32.mrb[0].mxu0
      %v992 = vpop.f32.mrb[0].mxu0
      %v993 = vadd.f32 0.0, %v992
      %v994 = vpop.f32.mrb[0].mxu0
      %995 = vmatprep.mubr.bf16.mxu0 0
      %996 = vmatmul.mubr.bf16.gmra.mrb[0].mxu0 %v841
      %v997 = vpop.f32.mrb[0].mxu0
      %v998 = vadd.f32 0.0, %v997
      %v999 = vpop.f32.mrb[0].mxu0
      %v1000 = vpop.f32.mrb[0].mxu0
      %v1001 = vadd.f32 0.0, %v1000
      %v1002 = vpop.f32.mrb[0].mxu0
      %1003 = vmatprep.mubr.bf16.mxu0 0
      %1004 = vmatmul.mubr.bf16.gmra.mrb[0].mxu0 %v843
      %v1005 = vpop.f32.mrb[0].mxu0
      %v1006 = vadd.f32 0.0, %v1005
      %v1007 = vpop.f32.mrb[0].mxu0
      %v1008 = vpop.f32.mrb[0].mxu0
      %v1009 = vadd.f32 0.0, %v1008
      %v1010 = vpop.f32.mrb[0].mxu0
      %1011 = vmatprep.mubr.bf16.mxu0 0
      %1012 = vmatmul.mubr.bf16.gmra.mrb[0].mxu0 %v845
      %v1013 = vpop.f32.mrb[0].mxu0
      %v1014 = vadd.f32 0.0, %v1013
      %v1015 = vpop.f32.mrb[0].mxu0
      %v1016 = vpop.f32.mrb[0].mxu0
      %v1017 = vadd.f32 0.0, %v1016
      %v1018 = vpop.f32.mrb[0].mxu0
      %1019 = vmatprep.mubr.bf16.mxu0 0
      %1020 = vmatmul.mubr.bf16.gmra.mrb[0].mxu0 %v847
      %v1021 = vpop.f32.mrb[0].mxu0
      %v1022 = vadd.f32 0.0, %v1021
      %v1023 = vpop.f32.mrb[0].mxu0
      %v1024 = vpop.f32.mrb[0].mxu0
      %v1025 = vadd.f32 0.0, %v1024
      %v1026 = vpop.f32.mrb[0].mxu0
      %1027 = vmatprep.mubr.bf16.mxu0 0
      %1028 = vmatmul.mubr.bf16.gmra.mrb[0].mxu0 %v849
      %v1029 = vpop.f32.mrb[0].mxu0
      %v1030 = vadd.f32 0.0, %v1029
      %v1031 = vpop.f32.mrb[0].mxu0
      %v1032 = vpop.f32.mrb[0].mxu0
      %v1033 = vadd.f32 0.0, %v1032
      %v1034 = vpop.f32.mrb[0].mxu0
      %1035 = vmatprep.mubr.bf16.mxu0 0
      %1036 = vmatmul.mubr.bf16.gmra.mrb[0].mxu0 %v851
      %v1037 = vpop.f32.mrb[0].mxu0
      %v1038 = vadd.f32 0.0, %v1037
      %v1039 = vpop.f32.mrb[0].mxu0
      %v1040 = vpop.f32.mrb[0].mxu0
      %v1041 = vadd.f32 0.0, %v1040
      %v1042 = vpop.f32.mrb[0].mxu0
      %1043 = vmatprep.mubr.bf16.mxu0 0
      %1044 = vmatmul.mubr.bf16.gmra.mrb[0].mxu0 %v853
      %v1045 = vpop.f32.mrb[0].mxu0
      %v1046 = vadd.f32 0.0, %v1045
      %v1047 = vpop.f32.mrb[0].mxu0
      %v1048 = vpop.f32.mrb[0].mxu0
      %v1049 = vadd.f32 0.0, %v1048
      %v1050 = vpop.f32.mrb[0].mxu0
      %1051 = vdwg.mxu0
      %v1052 = vadd.f32 %v703, %v950
      %v1053 = vadd.f32 %v706, %v953
      %v1054 = vadd.f32 %v711, %v958
      %v1055 = vadd.f32 %v714, %v961
      %v1056 = vadd.f32 %v719, %v966
      %v1057 = vadd.f32 %v722, %v969
      %v1058 = vadd.f32 %v727, %v974
      %v1059 = vadd.f32 %v730, %v977
      %v1060 = vadd.f32 %v735, %v982
      %v1061 = vadd.f32 %v738, %v985
      %v1062 = vadd.f32 %v743, %v990
      %v1063 = vadd.f32 %v746, %v993
      %v1064 = vadd.f32 %v751, %v998
      %v1065 = vadd.f32 %v754, %v1001
      %v1066 = vadd.f32 %v759, %v1006
      %v1067 = vadd.f32 %v762, %v1009
      %v1068 = vadd.f32 %v767, %v1014
      %v1069 = vadd.f32 %v770, %v1017
      %v1070 = vadd.f32 %v775, %v1022
      %v1071 = vadd.f32 %v778, %v1025
      %v1072 = vadd.f32 %v783, %v1030
      %v1073 = vadd.f32 %v786, %v1033
      %v1074 = vadd.f32 %v791, %v1038
      %v1075 = vadd.f32 %v794, %v1041
      %v1076 = vadd.f32 %v799, %v1046
      %v1077 = vadd.f32 %v802, %v1049
      %v1078 = vld [vmem:[%s165 + $0x8] sm:$0xf]
      %v1079 = vld [vmem:[%s165 + $0xc] sm:$0xf]
      %v1080 = vld [vmem:[%s165 + $0x10] sm:$0xf]
      %v1081 = vld [vmem:[%s165 + $0x14] sm:$0xf]
      %v1082 = vld [vmem:[%s165 + $0x18] sm:$0xf]
      %v1083 = vld [vmem:[%s165 + $0x1c] sm:$0xf]
      %v1084 = vld [vmem:[%s165 + $0x20] sm:$0xf]
      %v1085 = vld [vmem:[%s165 + $0x24] sm:$0xf]
      %v1086 = vld [vmem:[%s165 + $0x28] sm:$0xf]
      %v1087 = vld [vmem:[%s165 + $0x2c] sm:$0xf]
      %v1088 = vld [vmem:[%s165 + $0x30] sm:$0xf]
      %v1089 = vld [vmem:[%s165 + $0x34] sm:$0xf]
      %v1090 = vld [vmem:[%s165 + $0x38] sm:$0xf]
      %v1091 = vld [vmem:[%s165 + $0x3c] sm:$0xf]
      %v1092 = vld [vmem:[%s165 + $0x40] sm:$0xf]
      %v1093 = vld [vmem:[%s165 + $0x44] sm:$0xf]
      %v1094 = vld [vmem:[%s165 + $0x48] sm:$0xf]
      %v1095 = vld [vmem:[%s165 + $0x4c] sm:$0xf]
      %v1096 = vld [vmem:[%s165 + $0x50] sm:$0xf]
      %v1097 = vld [vmem:[%s165 + $0x54] sm:$0xf]
      %v1098 = vld [vmem:[%s165 + $0x58] sm:$0xf]
      %v1099 = vld [vmem:[%s165 + $0x5c] sm:$0xf]
      %v1100 = vld [vmem:[%s165 + $0x60] sm:$0xf]
      %v1101 = vld [vmem:[%s165 + $0x64] sm:$0xf]
      %v1102 = vld [vmem:[%s165 + $0x68] sm:$0xf]
      %v1103 = vld [vmem:[%s165 + $0x6c] sm:$0xf]
      %s1104 = scalar_lea.vmem %s1, 192
      %v1105 = vld [vmem:[%s1104] sm:$0xf]
      %v1106 = vld [vmem:[%s1104 + $0x4] sm:$0xf]
      %v1107 = vld [vmem:[%s1104 + $0x8] sm:$0xf]
      %v1108 = vld [vmem:[%s1104 + $0xc] sm:$0xf]
      %v1109 = vld [vmem:[%s1104 + $0x10] sm:$0xf]
      %v1110 = vld [vmem:[%s1104 + $0x14] sm:$0xf]
      %v1111 = vld [vmem:[%s1104 + $0x18] sm:$0xf]
      %v1112 = vld [vmem:[%s1104 + $0x1c] sm:$0xf]
      %v1113 = vld [vmem:[%s1104 + $0x20] sm:$0xf]
      %v1114 = vld [vmem:[%s1104 + $0x24] sm:$0xf]
      %v1115 = vld [vmem:[%s1104 + $0x28] sm:$0xf]
      %v1116 = vld [vmem:[%s1104 + $0x2c] sm:$0xf]
      %v1117 = vld [vmem:[%s1104 + $0x30] sm:$0xf]
      %v1118 = vld [vmem:[%s1104 + $0x34] sm:$0xf]
      %v1119 = vld [vmem:[%s1104 + $0x38] sm:$0xf]
      %v1120 = vld [vmem:[%s1104 + $0x3c] sm:$0xf]
      %v1147 = vunpack.c.l.b16 %v1078
      %v1148 = vunpack.c.l.b16 %v1079
      %v1149 = vunpack.c.l.b16 %v1080
      %v1150 = vunpack.c.l.b16 %v1081
      %v1151 = vunpack.c.l.b16 %v1082
      %v1152 = vunpack.c.l.b16 %v1083
      %v1153 = vunpack.c.l.b16 %v1084
      %v1154 = vunpack.c.l.b16 %v1085
      %v1155 = vunpack.c.l.b16 %v1086
      %v1156 = vunpack.c.l.b16 %v1087
      %v1157 = vunpack.c.l.b16 %v1088
      %v1158 = vunpack.c.l.b16 %v1089
      %v1159 = vunpack.c.l.b16 %v1090
      %v1160 = vunpack.c.l.b16 %v1091
      %v1161 = vunpack.c.l.b16 %v1092
      %v1162 = vunpack.c.l.b16 %v1093
      %v1163 = vunpack.c.l.b16 %v1094
      %v1164 = vunpack.c.l.b16 %v1095
      %v1165 = vunpack.c.l.b16 %v1096
      %v1166 = vunpack.c.l.b16 %v1097
      %v1167 = vunpack.c.l.b16 %v1098
      %v1168 = vunpack.c.l.b16 %v1099
      %v1169 = vunpack.c.l.b16 %v1100
      %v1170 = vunpack.c.l.b16 %v1101
      %v1171 = vunpack.c.l.b16 %v1102
      %v1172 = vunpack.c.l.b16 %v1103
      %v1173 = vpack.c.b16 %v1148, %v1147
      %v1174 = vpack.c.b16 %v1150, %v1149
      %v1175 = vpack.c.b16 %v1152, %v1151
      %v1176 = vpack.c.b16 %v1154, %v1153
      %v1177 = vpack.c.b16 %v1156, %v1155
      %v1178 = vpack.c.b16 %v1158, %v1157
      %v1179 = vpack.c.b16 %v1160, %v1159
      %v1180 = vpack.c.b16 %v1162, %v1161
      %v1181 = vpack.c.b16 %v1164, %v1163
      %v1182 = vpack.c.b16 %v1166, %v1165
      %v1183 = vpack.c.b16 %v1168, %v1167
      %v1184 = vpack.c.b16 %v1170, %v1169
      %v1185 = vpack.c.b16 %v1172, %v1171
      %v1215 = vunpack.c.l.b16 %v1105
      %v1216 = vunpack.c.l.b16 %v1106
      %v1217 = vunpack.c.l.b16 %v1107
      %v1218 = vunpack.c.l.b16 %v1108
      %v1219 = vunpack.c.l.b16 %v1109
      %v1220 = vunpack.c.l.b16 %v1110
      %v1221 = vunpack.c.l.b16 %v1111
      %v1222 = vunpack.c.l.b16 %v1112
      %v1223 = vunpack.c.l.b16 %v1113
      %v1224 = vunpack.c.l.b16 %v1114
      %v1225 = vunpack.c.l.b16 %v1115
      %v1226 = vunpack.c.l.b16 %v1116
      %v1227 = vunpack.c.l.b16 %v1117
      %v1228 = vunpack.c.l.b16 %v1118
      %v1229 = vunpack.c.l.b16 %v1119
      %v1230 = vunpack.c.l.b16 %v1120
      %v1231 = vpack.c.b16 %v1216, %v1215
      %v1232 = vpack.c.b16 %v1218, %v1217
      %v1233 = vpack.c.b16 %v1220, %v1219
      %v1234 = vpack.c.b16 %v1222, %v1221
      %v1235 = vpack.c.b16 %v1224, %v1223
      %v1236 = vpack.c.b16 %v1226, %v1225
      %v1237 = vpack.c.b16 %v1228, %v1227
      %v1238 = vpack.c.b16 %v1230, %v1229
      %1247 = vmatprep.subr.bf16.mxu0 0
      %1248 = vmatpush1.bf16.msra.mxu0 %v1231
      %1249 = vmatprep.subr.bf16.mxu0 0
      %1250 = vmatpush1.bf16.msra.mxu0 %v1232
      %1251 = vmatprep.subr.bf16.mxu0 0
      %1252 = vmatpush1.bf16.msra.mxu0 %v1233
      %1253 = vmatprep.subr.bf16.mxu0 0
      %1254 = vmatpush1.bf16.msra.mxu0 %v1234
      %1255 = vmatprep.subr.bf16.mxu0 0
      %1256 = vmatpush1.bf16.msra.mxu0 %v1235
      %1257 = vmatprep.subr.bf16.mxu0 0
      %1258 = vmatpush1.bf16.msra.mxu0 %v1236
      %1259 = vmatprep.subr.bf16.mxu0 0
      %1260 = vmatpush1.bf16.msra.mxu0 %v1237
      %1261 = vmatprep.subr.bf16.mxu0 0
      %1262 = vmatpush1.bf16.msra.mxu0 %v1238
      %1263 = vmatprep.subr.bf16.mxu0 0
      %1264 = vmatpush1.bf16.msra.mxu0 0
      %1265 = vmatprep.subr.bf16.mxu0 0
      %1266 = vmatpush1.bf16.msra.mxu0 0
      %1267 = vmatprep.subr.bf16.mxu0 0
      %1268 = vmatpush1.bf16.msra.mxu0 0
      %1269 = vmatprep.subr.bf16.mxu0 0
      %1270 = vmatpush1.bf16.msra.mxu0 0
      %1271 = vmatprep.subr.bf16.mxu0 0
      %1272 = vmatpush1.bf16.msra.mxu0 0
      %1273 = vmatprep.subr.bf16.mxu0 0
      %1274 = vmatpush1.bf16.msra.mxu0 0
      %1275 = vmatprep.subr.bf16.mxu0 0
      %1276 = vmatpush1.bf16.msra.mxu0 0
      %1277 = vmatprep.subr.bf16.mxu0 0
      %1278 = vmatpush1.bf16.msra.mxu0 0
      %1279 = vmatprep.mubr.bf16.mxu0 0
      %1280 = vmatmul.mubr.bf16.gmra.mrb[0].mxu0 %v1173
      %v1281 = vpop.f32.mrb[0].mxu0
      %v1282 = vadd.f32 0.0, %v1281
      %v1283 = vpop.f32.mrb[0].mxu0
      %v1284 = vpop.f32.mrb[0].mxu0
      %v1285 = vadd.f32 0.0, %v1284
      %v1286 = vpop.f32.mrb[0].mxu0
      %1287 = vmatprep.mubr.bf16.mxu0 0
      %1288 = vmatmul.mubr.bf16.gmra.mrb[0].mxu0 %v1174
      %v1289 = vpop.f32.mrb[0].mxu0
      %v1290 = vadd.f32 0.0, %v1289
      %v1291 = vpop.f32.mrb[0].mxu0
      %v1292 = vpop.f32.mrb[0].mxu0
      %v1293 = vadd.f32 0.0, %v1292
      %v1294 = vpop.f32.mrb[0].mxu0
      %1295 = vmatprep.mubr.bf16.mxu0 0
      %1296 = vmatmul.mubr.bf16.gmra.mrb[0].mxu0 %v1175
      %v1297 = vpop.f32.mrb[0].mxu0
      %v1298 = vadd.f32 0.0, %v1297
      %v1299 = vpop.f32.mrb[0].mxu0
      %v1300 = vpop.f32.mrb[0].mxu0
      %v1301 = vadd.f32 0.0, %v1300
      %v1302 = vpop.f32.mrb[0].mxu0
      %1303 = vmatprep.mubr.bf16.mxu0 0
      %1304 = vmatmul.mubr.bf16.gmra.mrb[0].mxu0 %v1176
      %v1305 = vpop.f32.mrb[0].mxu0
      %v1306 = vadd.f32 0.0, %v1305
      %v1307 = vpop.f32.mrb[0].mxu0
      %v1308 = vpop.f32.mrb[0].mxu0
      %v1309 = vadd.f32 0.0, %v1308
      %v1310 = vpop.f32.mrb[0].mxu0
      %1311 = vmatprep.mubr.bf16.mxu0 0
      %1312 = vmatmul.mubr.bf16.gmra.mrb[0].mxu0 %v1177
      %v1313 = vpop.f32.mrb[0].mxu0
      %v1314 = vadd.f32 0.0, %v1313
      %v1315 = vpop.f32.mrb[0].mxu0
      %v1316 = vpop.f32.mrb[0].mxu0
      %v1317 = vadd.f32 0.0, %v1316
      %v1318 = vpop.f32.mrb[0].mxu0
      %1319 = vmatprep.mubr.bf16.mxu0 0
      %1320 = vmatmul.mubr.bf16.gmra.mrb[0].mxu0 %v1178
      %v1321 = vpop.f32.mrb[0].mxu0
      %v1322 = vadd.f32 0.0, %v1321
      %v1323 = vpop.f32.mrb[0].mxu0
      %v1324 = vpop.f32.mrb[0].mxu0
      %v1325 = vadd.f32 0.0, %v1324
      %v1326 = vpop.f32.mrb[0].mxu0
      %1327 = vmatprep.mubr.bf16.mxu0 0
      %1328 = vmatmul.mubr.bf16.gmra.mrb[0].mxu0 %v1179
      %v1329 = vpop.f32.mrb[0].mxu0
      %v1330 = vadd.f32 0.0, %v1329
      %v1331 = vpop.f32.mrb[0].mxu0
      %v1332 = vpop.f32.mrb[0].mxu0
      %v1333 = vadd.f32 0.0, %v1332
      %v1334 = vpop.f32.mrb[0].mxu0
      %1335 = vmatprep.mubr.bf16.mxu0 0
      %1336 = vmatmul.mubr.bf16.gmra.mrb[0].mxu0 %v1180
      %v1337 = vpop.f32.mrb[0].mxu0
      %v1338 = vadd.f32 0.0, %v1337
      %v1339 = vpop.f32.mrb[0].mxu0
      %v1340 = vpop.f32.mrb[0].mxu0
      %v1341 = vadd.f32 0.0, %v1340
      %v1342 = vpop.f32.mrb[0].mxu0
      %1343 = vmatprep.mubr.bf16.mxu0 0
      %1344 = vmatmul.mubr.bf16.gmra.mrb[0].mxu0 %v1181
      %v1345 = vpop.f32.mrb[0].mxu0
      %v1346 = vadd.f32 0.0, %v1345
      %v1347 = vpop.f32.mrb[0].mxu0
      %v1348 = vpop.f32.mrb[0].mxu0
      %v1349 = vadd.f32 0.0, %v1348
      %v1350 = vpop.f32.mrb[0].mxu0
      %1351 = vmatprep.mubr.bf16.mxu0 0
      %1352 = vmatmul.mubr.bf16.gmra.mrb[0].mxu0 %v1182
      %v1353 = vpop.f32.mrb[0].mxu0
      %v1354 = vadd.f32 0.0, %v1353
      %v1355 = vpop.f32.mrb[0].mxu0
      %v1356 = vpop.f32.mrb[0].mxu0
      %v1357 = vadd.f32 0.0, %v1356
      %v1358 = vpop.f32.mrb[0].mxu0
      %1359 = vmatprep.mubr.bf16.mxu0 0
      %1360 = vmatmul.mubr.bf16.gmra.mrb[0].mxu0 %v1183
      %v1361 = vpop.f32.mrb[0].mxu0
      %v1362 = vadd.f32 0.0, %v1361
      %v1363 = vpop.f32.mrb[0].mxu0
      %v1364 = vpop.f32.mrb[0].mxu0
      %v1365 = vadd.f32 0.0, %v1364
      %v1366 = vpop.f32.mrb[0].mxu0
      %1367 = vmatprep.mubr.bf16.mxu0 0
      %1368 = vmatmul.mubr.bf16.gmra.mrb[0].mxu0 %v1184
      %v1369 = vpop.f32.mrb[0].mxu0
      %v1370 = vadd.f32 0.0, %v1369
      %v1371 = vpop.f32.mrb[0].mxu0
      %v1372 = vpop.f32.mrb[0].mxu0
      %v1373 = vadd.f32 0.0, %v1372
      %v1374 = vpop.f32.mrb[0].mxu0
      %1375 = vmatprep.mubr.bf16.mxu0 0
      %1376 = vmatmul.mubr.bf16.gmra.mrb[0].mxu0 %v1185
      %v1377 = vpop.f32.mrb[0].mxu0
      %v1378 = vadd.f32 0.0, %v1377
      %v1379 = vpop.f32.mrb[0].mxu0
      %v1380 = vpop.f32.mrb[0].mxu0
      %v1381 = vadd.f32 0.0, %v1380
      %v1382 = vpop.f32.mrb[0].mxu0
      %1383 = vdwg.mxu0
      %v1384 = vadd.f32 %v1052, %v1282
      %v1385 = vadd.f32 %v1053, %v1285
      %v1386 = vadd.f32 %v1054, %v1290
      %v1387 = vadd.f32 %v1055, %v1293
      %v1388 = vadd.f32 %v1056, %v1298
      %v1389 = vadd.f32 %v1057, %v1301
      %v1390 = vadd.f32 %v1058, %v1306
      %v1391 = vadd.f32 %v1059, %v1309
      %v1392 = vadd.f32 %v1060, %v1314
      %v1393 = vadd.f32 %v1061, %v1317
      %v1394 = vadd.f32 %v1062, %v1322
      %v1395 = vadd.f32 %v1063, %v1325
      %v1396 = vadd.f32 %v1064, %v1330
      %v1397 = vadd.f32 %v1065, %v1333
      %v1398 = vadd.f32 %v1066, %v1338
      %v1399 = vadd.f32 %v1067, %v1341
      %v1400 = vadd.f32 %v1068, %v1346
      %v1401 = vadd.f32 %v1069, %v1349
      %v1402 = vadd.f32 %v1070, %v1354
      %v1403 = vadd.f32 %v1071, %v1357
      %v1404 = vadd.f32 %v1072, %v1362
      %v1405 = vadd.f32 %v1073, %v1365
      %v1406 = vadd.f32 %v1074, %v1370
      %v1407 = vadd.f32 %v1075, %v1373
      %v1408 = vadd.f32 %v1076, %v1378
      %v1409 = vadd.f32 %v1077, %v1381
      %v1410 = vld [vmem:[%s165 + $0x8] sm:$0xf]
      %v1411 = vld [vmem:[%s165 + $0xc] sm:$0xf]
      %v1412 = vld [vmem:[%s165 + $0x10] sm:$0xf]
      %v1413 = vld [vmem:[%s165 + $0x14] sm:$0xf]
      %v1414 = vld [vmem:[%s165 + $0x18] sm:$0xf]
      %v1415 = vld [vmem:[%s165 + $0x1c] sm:$0xf]
      %v1416 = vld [vmem:[%s165 + $0x20] sm:$0xf]
      %v1417 = vld [vmem:[%s165 + $0x24] sm:$0xf]
      %v1418 = vld [vmem:[%s165 + $0x28] sm:$0xf]
      %v1419 = vld [vmem:[%s165 + $0x2c] sm:$0xf]
      %v1420 = vld [vmem:[%s165 + $0x30] sm:$0xf]
      %v1421 = vld [vmem:[%s165 + $0x34] sm:$0xf]
      %v1422 = vld [vmem:[%s165 + $0x38] sm:$0xf]
      %v1423 = vld [vmem:[%s165 + $0x3c] sm:$0xf]
      %v1424 = vld [vmem:[%s165 + $0x40] sm:$0xf]
      %v1425 = vld [vmem:[%s165 + $0x44] sm:$0xf]
      %v1426 = vld [vmem:[%s165 + $0x48] sm:$0xf]
      %v1427 = vld [vmem:[%s165 + $0x4c] sm:$0xf]
      %v1428 = vld [vmem:[%s165 + $0x50] sm:$0xf]
      %v1429 = vld [vmem:[%s165 + $0x54] sm:$0xf]
      %v1430 = vld [vmem:[%s165 + $0x58] sm:$0xf]
      %v1431 = vld [vmem:[%s165 + $0x5c] sm:$0xf]
      %v1432 = vld [vmem:[%s165 + $0x60] sm:$0xf]
      %v1433 = vld [vmem:[%s165 + $0x64] sm:$0xf]
      %v1434 = vld [vmem:[%s165 + $0x68] sm:$0xf]
      %v1435 = vld [vmem:[%s165 + $0x6c] sm:$0xf]
      %v1436 = vld [vmem:[%s165 + $0x70] sm:$0x1]
      %s1437 = scalar_lea.vmem %s1, 256
      %v1438 = vld [vmem:[%s1437] sm:$0xf]
      %v1439 = vld [vmem:[%s1437 + $0x4] sm:$0xf]
      %v1440 = vld [vmem:[%s1437 + $0x8] sm:$0xf]
      %v1441 = vld [vmem:[%s1437 + $0xc] sm:$0xf]
      %v1442 = vld [vmem:[%s1437 + $0x10] sm:$0xf]
      %v1443 = vld [vmem:[%s1437 + $0x14] sm:$0xf]
      %v1444 = vld [vmem:[%s1437 + $0x18] sm:$0xf]
      %v1445 = vld [vmem:[%s1437 + $0x1c] sm:$0xf]
      %v1446 = vld [vmem:[%s1437 + $0x20] sm:$0xf]
      %v1447 = vld [vmem:[%s1437 + $0x24] sm:$0xf]
      %v1448 = vld [vmem:[%s1437 + $0x28] sm:$0xf]
      %v1449 = vld [vmem:[%s1437 + $0x2c] sm:$0xf]
      %v1450 = vld [vmem:[%s1437 + $0x30] sm:$0xf]
      %v1451 = vld [vmem:[%s1437 + $0x34] sm:$0xf]
      %v1452 = vld [vmem:[%s1437 + $0x38] sm:$0xf]
      %v1453 = vld [vmem:[%s1437 + $0x3c] sm:$0xf]
      %v1481 = vunpack.c.l.b16 %v1410
      %v1482 = vunpack.c.l.b16 %v1411
      %v1483 = vunpack.c.l.b16 %v1412
      %v1484 = vunpack.c.l.b16 %v1413
      %v1485 = vunpack.c.l.b16 %v1414
      %v1486 = vunpack.c.l.b16 %v1415
      %v1487 = vunpack.c.l.b16 %v1416
      %v1488 = vunpack.c.l.b16 %v1417
      %v1489 = vunpack.c.l.b16 %v1418
      %v1490 = vunpack.c.l.b16 %v1419
      %v1491 = vunpack.c.l.b16 %v1420
      %v1492 = vunpack.c.l.b16 %v1421
      %v1493 = vunpack.c.l.b16 %v1422
      %v1494 = vunpack.c.l.b16 %v1423
      %v1495 = vunpack.c.l.b16 %v1424
      %v1496 = vunpack.c.l.b16 %v1425
      %v1497 = vunpack.c.l.b16 %v1426
      %v1498 = vunpack.c.l.b16 %v1427
      %v1499 = vunpack.c.l.b16 %v1428
      %v1500 = vunpack.c.l.b16 %v1429
      %v1501 = vunpack.c.l.b16 %v1430
      %v1502 = vunpack.c.l.b16 %v1431
      %v1503 = vunpack.c.l.b16 %v1432
      %v1504 = vunpack.c.l.b16 %v1433
      %v1505 = vunpack.c.l.b16 %v1434
      %v1506 = vunpack.c.l.b16 %v1435
      %v1507 = vunpack.c.l.b16 %v1436
      %v1508 = vpack.c.b16 %v1482, %v1481
      %v1509 = vpack.c.b16 %v1484, %v1483
      %v1510 = vpack.c.b16 %v1486, %v1485
      %v1511 = vpack.c.b16 %v1488, %v1487
      %v1512 = vpack.c.b16 %v1490, %v1489
      %v1513 = vpack.c.b16 %v1492, %v1491
      %v1514 = vpack.c.b16 %v1494, %v1493
      %v1515 = vpack.c.b16 %v1496, %v1495
      %v1516 = vpack.c.b16 %v1498, %v1497
      %v1517 = vpack.c.b16 %v1500, %v1499
      %v1518 = vpack.c.b16 %v1502, %v1501
      %v1519 = vpack.c.b16 %v1504, %v1503
      %v1520 = vpack.c.b16 %v1506, %v1505
      %v1521 = vpack.c.b16 %v1507, %v1507
      %v1523 = vshrl.u32 %v1508, 16
      %v1525 = vshll.u32 %v1508, 16
      %v1527 = vrot.slane %v1525, 1
      %v1528 = vor.u32 %v1523, %v1527
      %v1530 = vshll.u32 %v1509, 16
      %v1532 = vrot.slane %v1530, 1
      %v1533 = vsel %vm300, %v1528, %v1532
      %v1534 = vshrl.u32 %v1509, 16
      %v1536 = vor.u32 %v1534, %v1532
      %v1538 = vshll.u32 %v1510, 16
      %v1540 = vrot.slane %v1538, 1
      %v1541 = vsel %vm300, %v1536, %v1540
      %v1542 = vshrl.u32 %v1510, 16
      %v1544 = vor.u32 %v1542, %v1540
      %v1546 = vshll.u32 %v1511, 16
      %v1548 = vrot.slane %v1546, 1
      %v1549 = vsel %vm300, %v1544, %v1548
      %v1550 = vshrl.u32 %v1511, 16
      %v1552 = vor.u32 %v1550, %v1548
      %v1554 = vshll.u32 %v1512, 16
      %v1556 = vrot.slane %v1554, 1
      %v1557 = vsel %vm300, %v1552, %v1556
      %v1558 = vshrl.u32 %v1512, 16
      %v1560 = vor.u32 %v1558, %v1556
      %v1562 = vshll.u32 %v1513, 16
      %v1564 = vrot.slane %v1562, 1
      %v1565 = vsel %vm300, %v1560, %v1564
      %v1566 = vshrl.u32 %v1513, 16
      %v1568 = vor.u32 %v1566, %v1564
      %v1570 = vshll.u32 %v1514, 16
      %v1572 = vrot.slane %v1570, 1
      %v1573 = vsel %vm300, %v1568, %v1572
      %v1574 = vshrl.u32 %v1514, 16
      %v1576 = vor.u32 %v1574, %v1572
      %v1578 = vshll.u32 %v1515, 16
      %v1580 = vrot.slane %v1578, 1
      %v1581 = vsel %vm300, %v1576, %v1580
      %v1582 = vshrl.u32 %v1515, 16
      %v1584 = vor.u32 %v1582, %v1580
      %v1586 = vshll.u32 %v1516, 16
      %v1588 = vrot.slane %v1586, 1
      %v1589 = vsel %vm300, %v1584, %v1588
      %v1590 = vshrl.u32 %v1516, 16
      %v1592 = vor.u32 %v1590, %v1588
      %v1594 = vshll.u32 %v1517, 16
      %v1596 = vrot.slane %v1594, 1
      %v1597 = vsel %vm300, %v1592, %v1596
      %v1598 = vshrl.u32 %v1517, 16
      %v1600 = vor.u32 %v1598, %v1596
      %v1602 = vshll.u32 %v1518, 16
      %v1604 = vrot.slane %v1602, 1
      %v1605 = vsel %vm300, %v1600, %v1604
      %v1606 = vshrl.u32 %v1518, 16
      %v1608 = vor.u32 %v1606, %v1604
      %v1610 = vshll.u32 %v1519, 16
      %v1612 = vrot.slane %v1610, 1
      %v1613 = vsel %vm300, %v1608, %v1612
      %v1614 = vshrl.u32 %v1519, 16
      %v1616 = vor.u32 %v1614, %v1612
      %v1618 = vshll.u32 %v1520, 16
      %v1620 = vrot.slane %v1618, 1
      %v1621 = vsel %vm300, %v1616, %v1620
      %v1622 = vshrl.u32 %v1520, 16
      %v1624 = vor.u32 %v1622, %v1620
      %v1626 = vshll.u32 %v1521, 16
      %v1628 = vrot.slane %v1626, 1
      %v1629 = vsel %vm300, %v1624, %v1628
      %v1659 = vunpack.c.l.b16 %v1438
      %v1660 = vunpack.c.l.b16 %v1439
      %v1661 = vunpack.c.l.b16 %v1440
      %v1662 = vunpack.c.l.b16 %v1441
      %v1663 = vunpack.c.l.b16 %v1442
      %v1664 = vunpack.c.l.b16 %v1443
      %v1665 = vunpack.c.l.b16 %v1444
      %v1666 = vunpack.c.l.b16 %v1445
      %v1667 = vunpack.c.l.b16 %v1446
      %v1668 = vunpack.c.l.b16 %v1447
      %v1669 = vunpack.c.l.b16 %v1448
      %v1670 = vunpack.c.l.b16 %v1449
      %v1671 = vunpack.c.l.b16 %v1450
      %v1672 = vunpack.c.l.b16 %v1451
      %v1673 = vunpack.c.l.b16 %v1452
      %v1674 = vunpack.c.l.b16 %v1453
      %v1675 = vpack.c.b16 %v1660, %v1659
      %v1676 = vpack.c.b16 %v1662, %v1661
      %v1677 = vpack.c.b16 %v1664, %v1663
      %v1678 = vpack.c.b16 %v1666, %v1665
      %v1679 = vpack.c.b16 %v1668, %v1667
      %v1680 = vpack.c.b16 %v1670, %v1669
      %v1681 = vpack.c.b16 %v1672, %v1671
      %v1682 = vpack.c.b16 %v1674, %v1673
      %1691 = vmatprep.subr.bf16.mxu0 0
      %1692 = vmatpush1.bf16.msra.mxu0 %v1675
      %1693 = vmatprep.subr.bf16.mxu0 0
      %1694 = vmatpush1.bf16.msra.mxu0 %v1676
      %1695 = vmatprep.subr.bf16.mxu0 0
      %1696 = vmatpush1.bf16.msra.mxu0 %v1677
      %1697 = vmatprep.subr.bf16.mxu0 0
      %1698 = vmatpush1.bf16.msra.mxu0 %v1678
      %1699 = vmatprep.subr.bf16.mxu0 0
      %1700 = vmatpush1.bf16.msra.mxu0 %v1679
      %1701 = vmatprep.subr.bf16.mxu0 0
      %1702 = vmatpush1.bf16.msra.mxu0 %v1680
      %1703 = vmatprep.subr.bf16.mxu0 0
      %1704 = vmatpush1.bf16.msra.mxu0 %v1681
      %1705 = vmatprep.subr.bf16.mxu0 0
      %1706 = vmatpush1.bf16.msra.mxu0 %v1682
      %1707 = vmatprep.subr.bf16.mxu0 0
      %1708 = vmatpush1.bf16.msra.mxu0 0
      %1709 = vmatprep.subr.bf16.mxu0 0
      %1710 = vmatpush1.bf16.msra.mxu0 0
      %1711 = vmatprep.subr.bf16.mxu0 0
      %1712 = vmatpush1.bf16.msra.mxu0 0
      %1713 = vmatprep.subr.bf16.mxu0 0
      %1714 = vmatpush1.bf16.msra.mxu0 0
      %1715 = vmatprep.subr.bf16.mxu0 0
      %1716 = vmatpush1.bf16.msra.mxu0 0
      %1717 = vmatprep.subr.bf16.mxu0 0
      %1718 = vmatpush1.bf16.msra.mxu0 0
      %1719 = vmatprep.subr.bf16.mxu0 0
      %1720 = vmatpush1.bf16.msra.mxu0 0
      %1721 = vmatprep.subr.bf16.mxu0 0
      %1722 = vmatpush1.bf16.msra.mxu0 0
      %1723 = vmatprep.mubr.bf16.mxu0 0
      %1724 = vmatmul.mubr.bf16.gmra.mrb[0].mxu0 %v1533
      %v1725 = vpop.f32.mrb[0].mxu0
      %v1726 = vadd.f32 0.0, %v1725
      %v1727 = vpop.f32.mrb[0].mxu0
      %v1728 = vpop.f32.mrb[0].mxu0
      %v1729 = vadd.f32 0.0, %v1728
      %v1730 = vpop.f32.mrb[0].mxu0
      %1731 = vmatprep.mubr.bf16.mxu0 0
      %1732 = vmatmul.mubr.bf16.gmra.mrb[0].mxu0 %v1541
      %v1733 = vpop.f32.mrb[0].mxu0
      %v1734 = vadd.f32 0.0, %v1733
      %v1735 = vpop.f32.mrb[0].mxu0
      %v1736 = vpop.f32.mrb[0].mxu0
      %v1737 = vadd.f32 0.0, %v1736
      %v1738 = vpop.f32.mrb[0].mxu0
      %1739 = vmatprep.mubr.bf16.mxu0 0
      %1740 = vmatmul.mubr.bf16.gmra.mrb[0].mxu0 %v1549
      %v1741 = vpop.f32.mrb[0].mxu0
      %v1742 = vadd.f32 0.0, %v1741
      %v1743 = vpop.f32.mrb[0].mxu0
      %v1744 = vpop.f32.mrb[0].mxu0
      %v1745 = vadd.f32 0.0, %v1744
      %v1746 = vpop.f32.mrb[0].mxu0
      %1747 = vmatprep.mubr.bf16.mxu0 0
      %1748 = vmatmul.mubr.bf16.gmra.mrb[0].mxu0 %v1557
      %v1749 = vpop.f32.mrb[0].mxu0
      %v1750 = vadd.f32 0.0, %v1749
      %v1751 = vpop.f32.mrb[0].mxu0
      %v1752 = vpop.f32.mrb[0].mxu0
      %v1753 = vadd.f32 0.0, %v1752
      %v1754 = vpop.f32.mrb[0].mxu0
      %1755 = vmatprep.mubr.bf16.mxu0 0
      %1756 = vmatmul.mubr.bf16.gmra.mrb[0].mxu0 %v1565
      %v1757 = vpop.f32.mrb[0].mxu0
      %v1758 = vadd.f32 0.0, %v1757
      %v1759 = vpop.f32.mrb[0].mxu0
      %v1760 = vpop.f32.mrb[0].mxu0
      %v1761 = vadd.f32 0.0, %v1760
      %v1762 = vpop.f32.mrb[0].mxu0
      %1763 = vmatprep.mubr.bf16.mxu0 0
      %1764 = vmatmul.mubr.bf16.gmra.mrb[0].mxu0 %v1573
      %v1765 = vpop.f32.mrb[0].mxu0
      %v1766 = vadd.f32 0.0, %v1765
      %v1767 = vpop.f32.mrb[0].mxu0
      %v1768 = vpop.f32.mrb[0].mxu0
      %v1769 = vadd.f32 0.0, %v1768
      %v1770 = vpop.f32.mrb[0].mxu0
      %1771 = vmatprep.mubr.bf16.mxu0 0
      %1772 = vmatmul.mubr.bf16.gmra.mrb[0].mxu0 %v1581
      %v1773 = vpop.f32.mrb[0].mxu0
      %v1774 = vadd.f32 0.0, %v1773
      %v1775 = vpop.f32.mrb[0].mxu0
      %v1776 = vpop.f32.mrb[0].mxu0
      %v1777 = vadd.f32 0.0, %v1776
      %v1778 = vpop.f32.mrb[0].mxu0
      %1779 = vmatprep.mubr.bf16.mxu0 0
      %1780 = vmatmul.mubr.bf16.gmra.mrb[0].mxu0 %v1589
      %v1781 = vpop.f32.mrb[0].mxu0
      %v1782 = vadd.f32 0.0, %v1781
      %v1783 = vpop.f32.mrb[0].mxu0
      %v1784 = vpop.f32.mrb[0].mxu0
      %v1785 = vadd.f32 0.0, %v1784
      %v1786 = vpop.f32.mrb[0].mxu0
      %1787 = vmatprep.mubr.bf16.mxu0 0
      %1788 = vmatmul.mubr.bf16.gmra.mrb[0].mxu0 %v1597
      %v1789 = vpop.f32.mrb[0].mxu0
      %v1790 = vadd.f32 0.0, %v1789
      %v1791 = vpop.f32.mrb[0].mxu0
      %v1792 = vpop.f32.mrb[0].mxu0
      %v1793 = vadd.f32 0.0, %v1792
      %v1794 = vpop.f32.mrb[0].mxu0
      %1795 = vmatprep.mubr.bf16.mxu0 0
      %1796 = vmatmul.mubr.bf16.gmra.mrb[0].mxu0 %v1605
      %v1797 = vpop.f32.mrb[0].mxu0
      %v1798 = vadd.f32 0.0, %v1797
      %v1799 = vpop.f32.mrb[0].mxu0
      %v1800 = vpop.f32.mrb[0].mxu0
      %v1801 = vadd.f32 0.0, %v1800
      %v1802 = vpop.f32.mrb[0].mxu0
      %1803 = vmatprep.mubr.bf16.mxu0 0
      %1804 = vmatmul.mubr.bf16.gmra.mrb[0].mxu0 %v1613
      %v1805 = vpop.f32.mrb[0].mxu0
      %v1806 = vadd.f32 0.0, %v1805
      %v1807 = vpop.f32.mrb[0].mxu0
      %v1808 = vpop.f32.mrb[0].mxu0
      %v1809 = vadd.f32 0.0, %v1808
      %v1810 = vpop.f32.mrb[0].mxu0
      %1811 = vmatprep.mubr.bf16.mxu0 0
      %1812 = vmatmul.mubr.bf16.gmra.mrb[0].mxu0 %v1621
      %v1813 = vpop.f32.mrb[0].mxu0
      %v1814 = vadd.f32 0.0, %v1813
      %v1815 = vpop.f32.mrb[0].mxu0
      %v1816 = vpop.f32.mrb[0].mxu0
      %v1817 = vadd.f32 0.0, %v1816
      %v1818 = vpop.f32.mrb[0].mxu0
      %1819 = vmatprep.mubr.bf16.mxu0 0
      %1820 = vmatmul.mubr.bf16.gmra.mrb[0].mxu0 %v1629
      %v1821 = vpop.f32.mrb[0].mxu0
      %v1822 = vadd.f32 0.0, %v1821
      %v1823 = vpop.f32.mrb[0].mxu0
      %v1824 = vpop.f32.mrb[0].mxu0
      %v1825 = vadd.f32 0.0, %v1824
      %v1826 = vpop.f32.mrb[0].mxu0
      %1827 = vdwg.mxu0
      %v1828 = vadd.f32 %v1384, %v1726
      %v1829 = vadd.f32 %v1385, %v1729
      %v1830 = vadd.f32 %v1386, %v1734
      %v1831 = vadd.f32 %v1387, %v1737
      %v1832 = vadd.f32 %v1388, %v1742
      %v1833 = vadd.f32 %v1389, %v1745
      %v1834 = vadd.f32 %v1390, %v1750
      %v1835 = vadd.f32 %v1391, %v1753
      %v1836 = vadd.f32 %v1392, %v1758
      %v1837 = vadd.f32 %v1393, %v1761
      %v1838 = vadd.f32 %v1394, %v1766
      %v1839 = vadd.f32 %v1395, %v1769
      %v1840 = vadd.f32 %v1396, %v1774
      %v1841 = vadd.f32 %v1397, %v1777
      %v1842 = vadd.f32 %v1398, %v1782
      %v1843 = vadd.f32 %v1399, %v1785
      %v1844 = vadd.f32 %v1400, %v1790
      %v1845 = vadd.f32 %v1401, %v1793
      %v1846 = vadd.f32 %v1402, %v1798
      %v1847 = vadd.f32 %v1403, %v1801
      %v1848 = vadd.f32 %v1404, %v1806
      %v1849 = vadd.f32 %v1405, %v1809
      %v1850 = vadd.f32 %v1406, %v1814
      %v1851 = vadd.f32 %v1407, %v1817
      %v1852 = vadd.f32 %v1408, %v1822
      %v1853 = vadd.f32 %v1409, %v1825
      %v1854 = vld [vmem:[%s165 + $0x8] sm:$0xe]
      %s1855 = scalar_lea.vmem %s1, 320
      %v1856 = vld [vmem:[%s1855] sm:$0xf]
      %v1857 = vld [vmem:[%s1855 + $0x4] sm:$0xf]
      %v1858 = vld [vmem:[%s1855 + $0x8] sm:$0xf]
      %v1859 = vld [vmem:[%s1855 + $0xc] sm:$0xf]
      %v1860 = vld [vmem:[%s1855 + $0x10] sm:$0xf]
      %v1861 = vld [vmem:[%s1855 + $0x14] sm:$0xf]
      %v1862 = vld [vmem:[%s1855 + $0x18] sm:$0xf]
      %v1863 = vld [vmem:[%s1855 + $0x1c] sm:$0xf]
      %v1864 = vld [vmem:[%s1855 + $0x20] sm:$0xf]
      %v1865 = vld [vmem:[%s1855 + $0x24] sm:$0xf]
      %v1866 = vld [vmem:[%s1855 + $0x28] sm:$0xf]
      %v1867 = vld [vmem:[%s1855 + $0x2c] sm:$0xf]
      %v1868 = vld [vmem:[%s1855 + $0x30] sm:$0xf]
      %v1869 = vld [vmem:[%s1855 + $0x34] sm:$0xf]
      %v1870 = vld [vmem:[%s1855 + $0x38] sm:$0xf]
      %v1871 = vld [vmem:[%s1855 + $0x3c] sm:$0xf]
      %v1873 = vunpack.c.l.b16 %v1854
      %v1874 = vpack.c.b16 %v1482, %v1873
      %v1875 = vrot.slane %v1874, 1
      %v1876 = vrot.slane %v1509, 1
      %v1877 = vsel %vm826, %v1875, %v1876
      %v1878 = vrot.slane %v1510, 1
      %v1879 = vsel %vm826, %v1876, %v1878
      %v1880 = vrot.slane %v1511, 1
      %v1881 = vsel %vm826, %v1878, %v1880
      %v1882 = vrot.slane %v1512, 1
      %v1883 = vsel %vm826, %v1880, %v1882
      %v1884 = vrot.slane %v1513, 1
      %v1885 = vsel %vm826, %v1882, %v1884
      %v1886 = vrot.slane %v1514, 1
      %v1887 = vsel %vm826, %v1884, %v1886
      %v1888 = vrot.slane %v1515, 1
      %v1889 = vsel %vm826, %v1886, %v1888
      %v1890 = vrot.slane %v1516, 1
      %v1891 = vsel %vm826, %v1888, %v1890
      %v1892 = vrot.slane %v1517, 1
      %v1893 = vsel %vm826, %v1890, %v1892
      %v1894 = vrot.slane %v1518, 1
      %v1895 = vsel %vm826, %v1892, %v1894
      %v1896 = vrot.slane %v1519, 1
      %v1897 = vsel %vm826, %v1894, %v1896
      %v1898 = vrot.slane %v1520, 1
      %v1899 = vsel %vm826, %v1896, %v1898
      %v1900 = vrot.slane %v1521, 1
      %v1901 = vsel %vm826, %v1898, %v1900
      %v1931 = vunpack.c.l.b16 %v1856
      %v1932 = vunpack.c.l.b16 %v1857
      %v1933 = vunpack.c.l.b16 %v1858
      %v1934 = vunpack.c.l.b16 %v1859
      %v1935 = vunpack.c.l.b16 %v1860
      %v1936 = vunpack.c.l.b16 %v1861
      %v1937 = vunpack.c.l.b16 %v1862
      %v1938 = vunpack.c.l.b16 %v1863
      %v1939 = vunpack.c.l.b16 %v1864
      %v1940 = vunpack.c.l.b16 %v1865
      %v1941 = vunpack.c.l.b16 %v1866
      %v1942 = vunpack.c.l.b16 %v1867
      %v1943 = vunpack.c.l.b16 %v1868
      %v1944 = vunpack.c.l.b16 %v1869
      %v1945 = vunpack.c.l.b16 %v1870
      %v1946 = vunpack.c.l.b16 %v1871
      %v1947 = vpack.c.b16 %v1932, %v1931
      %v1948 = vpack.c.b16 %v1934, %v1933
      %v1949 = vpack.c.b16 %v1936, %v1935
      %v1950 = vpack.c.b16 %v1938, %v1937
      %v1951 = vpack.c.b16 %v1940, %v1939
      %v1952 = vpack.c.b16 %v1942, %v1941
      %v1953 = vpack.c.b16 %v1944, %v1943
      %v1954 = vpack.c.b16 %v1946, %v1945
      %1963 = vmatprep.subr.bf16.mxu0 0
      %1964 = vmatpush1.bf16.msra.mxu0 %v1947
      %1965 = vmatprep.subr.bf16.mxu0 0
      %1966 = vmatpush1.bf16.msra.mxu0 %v1948
      %1967 = vmatprep.subr.bf16.mxu0 0
      %1968 = vmatpush1.bf16.msra.mxu0 %v1949
      %1969 = vmatprep.subr.bf16.mxu0 0
      %1970 = vmatpush1.bf16.msra.mxu0 %v1950
      %1971 = vmatprep.subr.bf16.mxu0 0
      %1972 = vmatpush1.bf16.msra.mxu0 %v1951
      %1973 = vmatprep.subr.bf16.mxu0 0
      %1974 = vmatpush1.bf16.msra.mxu0 %v1952
      %1975 = vmatprep.subr.bf16.mxu0 0
      %1976 = vmatpush1.bf16.msra.mxu0 %v1953
      %1977 = vmatprep.subr.bf16.mxu0 0
      %1978 = vmatpush1.bf16.msra.mxu0 %v1954
      %1979 = vmatprep.subr.bf16.mxu0 0
      %1980 = vmatpush1.bf16.msra.mxu0 0
      %1981 = vmatprep.subr.bf16.mxu0 0
      %1982 = vmatpush1.bf16.msra.mxu0 0
      %1983 = vmatprep.subr.bf16.mxu0 0
      %1984 = vmatpush1.bf16.msra.mxu0 0
      %1985 = vmatprep.subr.bf16.mxu0 0
      %1986 = vmatpush1.bf16.msra.mxu0 0
      %1987 = vmatprep.subr.bf16.mxu0 0
      %1988 = vmatpush1.bf16.msra.mxu0 0
      %1989 = vmatprep.subr.bf16.mxu0 0
      %1990 = vmatpush1.bf16.msra.mxu0 0
      %1991 = vmatprep.subr.bf16.mxu0 0
      %1992 = vmatpush1.bf16.msra.mxu0 0
      %1993 = vmatprep.subr.bf16.mxu0 0
      %1994 = vmatpush1.bf16.msra.mxu0 0
      %1995 = vmatprep.mubr.bf16.mxu0 0
      %1996 = vmatmul.mubr.bf16.gmra.mrb[0].mxu0 %v1877
      %v1997 = vpop.f32.mrb[0].mxu0
      %v1998 = vadd.f32 0.0, %v1997
      %v1999 = vpop.f32.mrb[0].mxu0
      %v2000 = vpop.f32.mrb[0].mxu0
      %v2001 = vadd.f32 0.0, %v2000
      %v2002 = vpop.f32.mrb[0].mxu0
      %2003 = vmatprep.mubr.bf16.mxu0 0
      %2004 = vmatmul.mubr.bf16.gmra.mrb[0].mxu0 %v1879
      %v2005 = vpop.f32.mrb[0].mxu0
      %v2006 = vadd.f32 0.0, %v2005
      %v2007 = vpop.f32.mrb[0].mxu0
      %v2008 = vpop.f32.mrb[0].mxu0
      %v2009 = vadd.f32 0.0, %v2008
      %v2010 = vpop.f32.mrb[0].mxu0
      %2011 = vmatprep.mubr.bf16.mxu0 0
      %2012 = vmatmul.mubr.bf16.gmra.mrb[0].mxu0 %v1881
      %v2013 = vpop.f32.mrb[0].mxu0
      %v2014 = vadd.f32 0.0, %v2013
      %v2015 = vpop.f32.mrb[0].mxu0
      %v2016 = vpop.f32.mrb[0].mxu0
      %v2017 = vadd.f32 0.0, %v2016
      %v2018 = vpop.f32.mrb[0].mxu0
      %2019 = vmatprep.mubr.bf16.mxu0 0
      %2020 = vmatmul.mubr.bf16.gmra.mrb[0].mxu0 %v1883
      %v2021 = vpop.f32.mrb[0].mxu0
      %v2022 = vadd.f32 0.0, %v2021
      %v2023 = vpop.f32.mrb[0].mxu0
      %v2024 = vpop.f32.mrb[0].mxu0
      %v2025 = vadd.f32 0.0, %v2024
      %v2026 = vpop.f32.mrb[0].mxu0
      %2027 = vmatprep.mubr.bf16.mxu0 0
      %2028 = vmatmul.mubr.bf16.gmra.mrb[0].mxu0 %v1885
      %v2029 = vpop.f32.mrb[0].mxu0
      %v2030 = vadd.f32 0.0, %v2029
      %v2031 = vpop.f32.mrb[0].mxu0
      %v2032 = vpop.f32.mrb[0].mxu0
      %v2033 = vadd.f32 0.0, %v2032
      %v2034 = vpop.f32.mrb[0].mxu0
      %2035 = vmatprep.mubr.bf16.mxu0 0
      %2036 = vmatmul.mubr.bf16.gmra.mrb[0].mxu0 %v1887
      %v2037 = vpop.f32.mrb[0].mxu0
      %v2038 = vadd.f32 0.0, %v2037
      %v2039 = vpop.f32.mrb[0].mxu0
      %v2040 = vpop.f32.mrb[0].mxu0
      %v2041 = vadd.f32 0.0, %v2040
      %v2042 = vpop.f32.mrb[0].mxu0
      %2043 = vmatprep.mubr.bf16.mxu0 0
      %2044 = vmatmul.mubr.bf16.gmra.mrb[0].mxu0 %v1889
      %v2045 = vpop.f32.mrb[0].mxu0
      %v2046 = vadd.f32 0.0, %v2045
      %v2047 = vpop.f32.mrb[0].mxu0
      %v2048 = vpop.f32.mrb[0].mxu0
      %v2049 = vadd.f32 0.0, %v2048
      %v2050 = vpop.f32.mrb[0].mxu0
      %2051 = vmatprep.mubr.bf16.mxu0 0
      %2052 = vmatmul.mubr.bf16.gmra.mrb[0].mxu0 %v1891
      %v2053 = vpop.f32.mrb[0].mxu0
      %v2054 = vadd.f32 0.0, %v2053
      %v2055 = vpop.f32.mrb[0].mxu0
      %v2056 = vpop.f32.mrb[0].mxu0
      %v2057 = vadd.f32 0.0, %v2056
      %v2058 = vpop.f32.mrb[0].mxu0
      %2059 = vmatprep.mubr.bf16.mxu0 0
      %2060 = vmatmul.mubr.bf16.gmra.mrb[0].mxu0 %v1893
      %v2061 = vpop.f32.mrb[0].mxu0
      %v2062 = vadd.f32 0.0, %v2061
      %v2063 = vpop.f32.mrb[0].mxu0
      %v2064 = vpop.f32.mrb[0].mxu0
      %v2065 = vadd.f32 0.0, %v2064
      %v2066 = vpop.f32.mrb[0].mxu0
      %2067 = vmatprep.mubr.bf16.mxu0 0
      %2068 = vmatmul.mubr.bf16.gmra.mrb[0].mxu0 %v1895
      %v2069 = vpop.f32.mrb[0].mxu0
      %v2070 = vadd.f32 0.0, %v2069
      %v2071 = vpop.f32.mrb[0].mxu0
      %v2072 = vpop.f32.mrb[0].mxu0
      %v2073 = vadd.f32 0.0, %v2072
      %v2074 = vpop.f32.mrb[0].mxu0
      %2075 = vmatprep.mubr.bf16.mxu0 0
      %2076 = vmatmul.mubr.bf16.gmra.mrb[0].mxu0 %v1897
      %v2077 = vpop.f32.mrb[0].mxu0
      %v2078 = vadd.f32 0.0, %v2077
      %v2079 = vpop.f32.mrb[0].mxu0
      %v2080 = vpop.f32.mrb[0].mxu0
      %v2081 = vadd.f32 0.0, %v2080
      %v2082 = vpop.f32.mrb[0].mxu0
      %2083 = vmatprep.mubr.bf16.mxu0 0
      %2084 = vmatmul.mubr.bf16.gmra.mrb[0].mxu0 %v1899
      %v2085 = vpop.f32.mrb[0].mxu0
      %v2086 = vadd.f32 0.0, %v2085
      %v2087 = vpop.f32.mrb[0].mxu0
      %v2088 = vpop.f32.mrb[0].mxu0
      %v2089 = vadd.f32 0.0, %v2088
      %v2090 = vpop.f32.mrb[0].mxu0
      %2091 = vmatprep.mubr.bf16.mxu0 0
      %2092 = vmatmul.mubr.bf16.gmra.mrb[0].mxu0 %v1901
      %v2093 = vpop.f32.mrb[0].mxu0
      %v2094 = vadd.f32 0.0, %v2093
      %v2095 = vpop.f32.mrb[0].mxu0
      %v2096 = vpop.f32.mrb[0].mxu0
      %v2097 = vadd.f32 0.0, %v2096
      %v2098 = vpop.f32.mrb[0].mxu0
      %2099 = vdwg.mxu0
      %v2100 = vadd.f32 %v1828, %v1998
      %v2101 = vadd.f32 %v1829, %v2001
      %v2102 = vadd.f32 %v1830, %v2006
      %v2103 = vadd.f32 %v1831, %v2009
      %v2104 = vadd.f32 %v1832, %v2014
      %v2105 = vadd.f32 %v1833, %v2017
      %v2106 = vadd.f32 %v1834, %v2022
      %v2107 = vadd.f32 %v1835, %v2025
      %v2108 = vadd.f32 %v1836, %v2030
      %v2109 = vadd.f32 %v1837, %v2033
      %v2110 = vadd.f32 %v1838, %v2038
      %v2111 = vadd.f32 %v1839, %v2041
      %v2112 = vadd.f32 %v1840, %v2046
      %v2113 = vadd.f32 %v1841, %v2049
      %v2114 = vadd.f32 %v1842, %v2054
      %v2115 = vadd.f32 %v1843, %v2057
      %v2116 = vadd.f32 %v1844, %v2062
      %v2117 = vadd.f32 %v1845, %v2065
      %v2118 = vadd.f32 %v1846, %v2070
      %v2119 = vadd.f32 %v1847, %v2073
      %v2120 = vadd.f32 %v1848, %v2078
      %v2121 = vadd.f32 %v1849, %v2081
      %v2122 = vadd.f32 %v1850, %v2086
      %v2123 = vadd.f32 %v1851, %v2089
      %v2124 = vadd.f32 %v1852, %v2094
      %v2125 = vadd.f32 %v1853, %v2097
      %v2126 = vld [vmem:[%s165 + $0x10] sm:$0xf]
      %v2127 = vld [vmem:[%s165 + $0x14] sm:$0xf]
      %v2128 = vld [vmem:[%s165 + $0x18] sm:$0xf]
      %v2129 = vld [vmem:[%s165 + $0x1c] sm:$0xf]
      %v2130 = vld [vmem:[%s165 + $0x20] sm:$0xf]
      %v2131 = vld [vmem:[%s165 + $0x24] sm:$0xf]
      %v2132 = vld [vmem:[%s165 + $0x28] sm:$0xf]
      %v2133 = vld [vmem:[%s165 + $0x2c] sm:$0xf]
      %v2134 = vld [vmem:[%s165 + $0x30] sm:$0xf]
      %v2135 = vld [vmem:[%s165 + $0x34] sm:$0xf]
      %v2136 = vld [vmem:[%s165 + $0x38] sm:$0xf]
      %v2137 = vld [vmem:[%s165 + $0x3c] sm:$0xf]
      %v2138 = vld [vmem:[%s165 + $0x40] sm:$0xf]
      %v2139 = vld [vmem:[%s165 + $0x44] sm:$0xf]
      %v2140 = vld [vmem:[%s165 + $0x48] sm:$0xf]
      %v2141 = vld [vmem:[%s165 + $0x4c] sm:$0xf]
      %v2142 = vld [vmem:[%s165 + $0x50] sm:$0xf]
      %v2143 = vld [vmem:[%s165 + $0x54] sm:$0xf]
      %v2144 = vld [vmem:[%s165 + $0x58] sm:$0xf]
      %v2145 = vld [vmem:[%s165 + $0x5c] sm:$0xf]
      %v2146 = vld [vmem:[%s165 + $0x60] sm:$0xf]
      %v2147 = vld [vmem:[%s165 + $0x64] sm:$0xf]
      %v2148 = vld [vmem:[%s165 + $0x68] sm:$0xf]
      %v2149 = vld [vmem:[%s165 + $0x6c] sm:$0xf]
      %v2150 = vld [vmem:[%s165 + $0x70] sm:$0xf]
      %v2151 = vld [vmem:[%s165 + $0x74] sm:$0xf]
      %s2152 = scalar_lea.vmem %s1, 384
      %v2153 = vld [vmem:[%s2152] sm:$0xf]
      %v2154 = vld [vmem:[%s2152 + $0x4] sm:$0xf]
      %v2155 = vld [vmem:[%s2152 + $0x8] sm:$0xf]
      %v2156 = vld [vmem:[%s2152 + $0xc] sm:$0xf]
      %v2157 = vld [vmem:[%s2152 + $0x10] sm:$0xf]
      %v2158 = vld [vmem:[%s2152 + $0x14] sm:$0xf]
      %v2159 = vld [vmem:[%s2152 + $0x18] sm:$0xf]
      %v2160 = vld [vmem:[%s2152 + $0x1c] sm:$0xf]
      %v2161 = vld [vmem:[%s2152 + $0x20] sm:$0xf]
      %v2162 = vld [vmem:[%s2152 + $0x24] sm:$0xf]
      %v2163 = vld [vmem:[%s2152 + $0x28] sm:$0xf]
      %v2164 = vld [vmem:[%s2152 + $0x2c] sm:$0xf]
      %v2165 = vld [vmem:[%s2152 + $0x30] sm:$0xf]
      %v2166 = vld [vmem:[%s2152 + $0x34] sm:$0xf]
      %v2167 = vld [vmem:[%s2152 + $0x38] sm:$0xf]
      %v2168 = vld [vmem:[%s2152 + $0x3c] sm:$0xf]
      %v2195 = vunpack.c.l.b16 %v2126
      %v2196 = vunpack.c.l.b16 %v2127
      %v2197 = vunpack.c.l.b16 %v2128
      %v2198 = vunpack.c.l.b16 %v2129
      %v2199 = vunpack.c.l.b16 %v2130
      %v2200 = vunpack.c.l.b16 %v2131
      %v2201 = vunpack.c.l.b16 %v2132
      %v2202 = vunpack.c.l.b16 %v2133
      %v2203 = vunpack.c.l.b16 %v2134
      %v2204 = vunpack.c.l.b16 %v2135
      %v2205 = vunpack.c.l.b16 %v2136
      %v2206 = vunpack.c.l.b16 %v2137
      %v2207 = vunpack.c.l.b16 %v2138
      %v2208 = vunpack.c.l.b16 %v2139
      %v2209 = vunpack.c.l.b16 %v2140
      %v2210 = vunpack.c.l.b16 %v2141
      %v2211 = vunpack.c.l.b16 %v2142
      %v2212 = vunpack.c.l.b16 %v2143
      %v2213 = vunpack.c.l.b16 %v2144
      %v2214 = vunpack.c.l.b16 %v2145
      %v2215 = vunpack.c.l.b16 %v2146
      %v2216 = vunpack.c.l.b16 %v2147
      %v2217 = vunpack.c.l.b16 %v2148
      %v2218 = vunpack.c.l.b16 %v2149
      %v2219 = vunpack.c.l.b16 %v2150
      %v2220 = vunpack.c.l.b16 %v2151
      %v2221 = vpack.c.b16 %v2196, %v2195
      %v2222 = vpack.c.b16 %v2198, %v2197
      %v2223 = vpack.c.b16 %v2200, %v2199
      %v2224 = vpack.c.b16 %v2202, %v2201
      %v2225 = vpack.c.b16 %v2204, %v2203
      %v2226 = vpack.c.b16 %v2206, %v2205
      %v2227 = vpack.c.b16 %v2208, %v2207
      %v2228 = vpack.c.b16 %v2210, %v2209
      %v2229 = vpack.c.b16 %v2212, %v2211
      %v2230 = vpack.c.b16 %v2214, %v2213
      %v2231 = vpack.c.b16 %v2216, %v2215
      %v2232 = vpack.c.b16 %v2218, %v2217
      %v2233 = vpack.c.b16 %v2220, %v2219
      %v2263 = vunpack.c.l.b16 %v2153
      %v2264 = vunpack.c.l.b16 %v2154
      %v2265 = vunpack.c.l.b16 %v2155
      %v2266 = vunpack.c.l.b16 %v2156
      %v2267 = vunpack.c.l.b16 %v2157
      %v2268 = vunpack.c.l.b16 %v2158
      %v2269 = vunpack.c.l.b16 %v2159
      %v2270 = vunpack.c.l.b16 %v2160
      %v2271 = vunpack.c.l.b16 %v2161
      %v2272 = vunpack.c.l.b16 %v2162
      %v2273 = vunpack.c.l.b16 %v2163
      %v2274 = vunpack.c.l.b16 %v2164
      %v2275 = vunpack.c.l.b16 %v2165
      %v2276 = vunpack.c.l.b16 %v2166
      %v2277 = vunpack.c.l.b16 %v2167
      %v2278 = vunpack.c.l.b16 %v2168
      %v2279 = vpack.c.b16 %v2264, %v2263
      %v2280 = vpack.c.b16 %v2266, %v2265
      %v2281 = vpack.c.b16 %v2268, %v2267
      %v2282 = vpack.c.b16 %v2270, %v2269
      %v2283 = vpack.c.b16 %v2272, %v2271
      %v2284 = vpack.c.b16 %v2274, %v2273
      %v2285 = vpack.c.b16 %v2276, %v2275
      %v2286 = vpack.c.b16 %v2278, %v2277
      %2295 = vmatprep.subr.bf16.mxu0 0
      %2296 = vmatpush1.bf16.msra.mxu0 %v2279
      %2297 = vmatprep.subr.bf16.mxu0 0
      %2298 = vmatpush1.bf16.msra.mxu0 %v2280
      %2299 = vmatprep.subr.bf16.mxu0 0
      %2300 = vmatpush1.bf16.msra.mxu0 %v2281
      %2301 = vmatprep.subr.bf16.mxu0 0
      %2302 = vmatpush1.bf16.msra.mxu0 %v2282
      %2303 = vmatprep.subr.bf16.mxu0 0
      %2304 = vmatpush1.bf16.msra.mxu0 %v2283
      %2305 = vmatprep.subr.bf16.mxu0 0
      %2306 = vmatpush1.bf16.msra.mxu0 %v2284
      %2307 = vmatprep.subr.bf16.mxu0 0
      %2308 = vmatpush1.bf16.msra.mxu0 %v2285
      %2309 = vmatprep.subr.bf16.mxu0 0
      %2310 = vmatpush1.bf16.msra.mxu0 %v2286
      %2311 = vmatprep.subr.bf16.mxu0 0
      %2312 = vmatpush1.bf16.msra.mxu0 0
      %2313 = vmatprep.subr.bf16.mxu0 0
      %2314 = vmatpush1.bf16.msra.mxu0 0
      %2315 = vmatprep.subr.bf16.mxu0 0
      %2316 = vmatpush1.bf16.msra.mxu0 0
      %2317 = vmatprep.subr.bf16.mxu0 0
      %2318 = vmatpush1.bf16.msra.mxu0 0
      %2319 = vmatprep.subr.bf16.mxu0 0
      %2320 = vmatpush1.bf16.msra.mxu0 0
      %2321 = vmatprep.subr.bf16.mxu0 0
      %2322 = vmatpush1.bf16.msra.mxu0 0
      %2323 = vmatprep.subr.bf16.mxu0 0
      %2324 = vmatpush1.bf16.msra.mxu0 0
      %2325 = vmatprep.subr.bf16.mxu0 0
      %2326 = vmatpush1.bf16.msra.mxu0 0
      %2327 = vmatprep.mubr.bf16.mxu0 0
      %2328 = vmatmul.mubr.bf16.gmra.mrb[0].mxu0 %v2221
      %v2329 = vpop.f32.mrb[0].mxu0
      %v2330 = vadd.f32 0.0, %v2329
      %v2331 = vpop.f32.mrb[0].mxu0
      %v2332 = vpop.f32.mrb[0].mxu0
      %v2333 = vadd.f32 0.0, %v2332
      %v2334 = vpop.f32.mrb[0].mxu0
      %2335 = vmatprep.mubr.bf16.mxu0 0
      %2336 = vmatmul.mubr.bf16.gmra.mrb[0].mxu0 %v2222
      %v2337 = vpop.f32.mrb[0].mxu0
      %v2338 = vadd.f32 0.0, %v2337
      %v2339 = vpop.f32.mrb[0].mxu0
      %v2340 = vpop.f32.mrb[0].mxu0
      %v2341 = vadd.f32 0.0, %v2340
      %v2342 = vpop.f32.mrb[0].mxu0
      %2343 = vmatprep.mubr.bf16.mxu0 0
      %2344 = vmatmul.mubr.bf16.gmra.mrb[0].mxu0 %v2223
      %v2345 = vpop.f32.mrb[0].mxu0
      %v2346 = vadd.f32 0.0, %v2345
      %v2347 = vpop.f32.mrb[0].mxu0
      %v2348 = vpop.f32.mrb[0].mxu0
      %v2349 = vadd.f32 0.0, %v2348
      %v2350 = vpop.f32.mrb[0].mxu0
      %2351 = vmatprep.mubr.bf16.mxu0 0
      %2352 = vmatmul.mubr.bf16.gmra.mrb[0].mxu0 %v2224
      %v2353 = vpop.f32.mrb[0].mxu0
      %v2354 = vadd.f32 0.0, %v2353
      %v2355 = vpop.f32.mrb[0].mxu0
      %v2356 = vpop.f32.mrb[0].mxu0
      %v2357 = vadd.f32 0.0, %v2356
      %v2358 = vpop.f32.mrb[0].mxu0
      %2359 = vmatprep.mubr.bf16.mxu0 0
      %2360 = vmatmul.mubr.bf16.gmra.mrb[0].mxu0 %v2225
      %v2361 = vpop.f32.mrb[0].mxu0
      %v2362 = vadd.f32 0.0, %v2361
      %v2363 = vpop.f32.mrb[0].mxu0
      %v2364 = vpop.f32.mrb[0].mxu0
      %v2365 = vadd.f32 0.0, %v2364
      %v2366 = vpop.f32.mrb[0].mxu0
      %2367 = vmatprep.mubr.bf16.mxu0 0
      %2368 = vmatmul.mubr.bf16.gmra.mrb[0].mxu0 %v2226
      %v2369 = vpop.f32.mrb[0].mxu0
      %v2370 = vadd.f32 0.0, %v2369
      %v2371 = vpop.f32.mrb[0].mxu0
      %v2372 = vpop.f32.mrb[0].mxu0
      %v2373 = vadd.f32 0.0, %v2372
      %v2374 = vpop.f32.mrb[0].mxu0
      %2375 = vmatprep.mubr.bf16.mxu0 0
      %2376 = vmatmul.mubr.bf16.gmra.mrb[0].mxu0 %v2227
      %v2377 = vpop.f32.mrb[0].mxu0
      %v2378 = vadd.f32 0.0, %v2377
      %v2379 = vpop.f32.mrb[0].mxu0
      %v2380 = vpop.f32.mrb[0].mxu0
      %v2381 = vadd.f32 0.0, %v2380
      %v2382 = vpop.f32.mrb[0].mxu0
      %2383 = vmatprep.mubr.bf16.mxu0 0
      %2384 = vmatmul.mubr.bf16.gmra.mrb[0].mxu0 %v2228
      %v2385 = vpop.f32.mrb[0].mxu0
      %v2386 = vadd.f32 0.0, %v2385
      %v2387 = vpop.f32.mrb[0].mxu0
      %v2388 = vpop.f32.mrb[0].mxu0
      %v2389 = vadd.f32 0.0, %v2388
      %v2390 = vpop.f32.mrb[0].mxu0
      %2391 = vmatprep.mubr.bf16.mxu0 0
      %2392 = vmatmul.mubr.bf16.gmra.mrb[0].mxu0 %v2229
      %v2393 = vpop.f32.mrb[0].mxu0
      %v2394 = vadd.f32 0.0, %v2393
      %v2395 = vpop.f32.mrb[0].mxu0
      %v2396 = vpop.f32.mrb[0].mxu0
      %v2397 = vadd.f32 0.0, %v2396
      %v2398 = vpop.f32.mrb[0].mxu0
      %2399 = vmatprep.mubr.bf16.mxu0 0
      %2400 = vmatmul.mubr.bf16.gmra.mrb[0].mxu0 %v2230
      %v2401 = vpop.f32.mrb[0].mxu0
      %v2402 = vadd.f32 0.0, %v2401
      %v2403 = vpop.f32.mrb[0].mxu0
      %v2404 = vpop.f32.mrb[0].mxu0
      %v2405 = vadd.f32 0.0, %v2404
      %v2406 = vpop.f32.mrb[0].mxu0
      %2407 = vmatprep.mubr.bf16.mxu0 0
      %2408 = vmatmul.mubr.bf16.gmra.mrb[0].mxu0 %v2231
      %v2409 = vpop.f32.mrb[0].mxu0
      %v2410 = vadd.f32 0.0, %v2409
      %v2411 = vpop.f32.mrb[0].mxu0
      %v2412 = vpop.f32.mrb[0].mxu0
      %v2413 = vadd.f32 0.0, %v2412
      %v2414 = vpop.f32.mrb[0].mxu0
      %2415 = vmatprep.mubr.bf16.mxu0 0
      %2416 = vmatmul.mubr.bf16.gmra.mrb[0].mxu0 %v2232
      %v2417 = vpop.f32.mrb[0].mxu0
      %v2418 = vadd.f32 0.0, %v2417
      %v2419 = vpop.f32.mrb[0].mxu0
      %v2420 = vpop.f32.mrb[0].mxu0
      %v2421 = vadd.f32 0.0, %v2420
      %v2422 = vpop.f32.mrb[0].mxu0
      %2423 = vmatprep.mubr.bf16.mxu0 0
      %2424 = vmatmul.mubr.bf16.gmra.mrb[0].mxu0 %v2233
      %v2425 = vpop.f32.mrb[0].mxu0
      %v2426 = vadd.f32 0.0, %v2425
      %v2427 = vpop.f32.mrb[0].mxu0
      %v2428 = vpop.f32.mrb[0].mxu0
      %v2429 = vadd.f32 0.0, %v2428
      %v2430 = vpop.f32.mrb[0].mxu0
      %2431 = vdwg.mxu0
      %v2432 = vadd.f32 %v2100, %v2330
      %v2433 = vadd.f32 %v2101, %v2333
      %v2434 = vadd.f32 %v2102, %v2338
      %v2435 = vadd.f32 %v2103, %v2341
      %v2436 = vadd.f32 %v2104, %v2346
      %v2437 = vadd.f32 %v2105, %v2349
      %v2438 = vadd.f32 %v2106, %v2354
      %v2439 = vadd.f32 %v2107, %v2357
      %v2440 = vadd.f32 %v2108, %v2362
      %v2441 = vadd.f32 %v2109, %v2365
      %v2442 = vadd.f32 %v2110, %v2370
      %v2443 = vadd.f32 %v2111, %v2373
      %v2444 = vadd.f32 %v2112, %v2378
      %v2445 = vadd.f32 %v2113, %v2381
      %v2446 = vadd.f32 %v2114, %v2386
      %v2447 = vadd.f32 %v2115, %v2389
      %v2448 = vadd.f32 %v2116, %v2394
      %v2449 = vadd.f32 %v2117, %v2397
      %v2450 = vadd.f32 %v2118, %v2402
      %v2451 = vadd.f32 %v2119, %v2405
      %v2452 = vadd.f32 %v2120, %v2410
      %v2453 = vadd.f32 %v2121, %v2413
      %v2454 = vadd.f32 %v2122, %v2418
      %v2455 = vadd.f32 %v2123, %v2421
      %v2456 = vadd.f32 %v2124, %v2426
      %v2457 = vadd.f32 %v2125, %v2429
      %v2458 = vld [vmem:[%s165 + $0x10] sm:$0xf]
      %v2459 = vld [vmem:[%s165 + $0x14] sm:$0xf]
      %v2460 = vld [vmem:[%s165 + $0x18] sm:$0xf]
      %v2461 = vld [vmem:[%s165 + $0x1c] sm:$0xf]
      %v2462 = vld [vmem:[%s165 + $0x20] sm:$0xf]
      %v2463 = vld [vmem:[%s165 + $0x24] sm:$0xf]
      %v2464 = vld [vmem:[%s165 + $0x28] sm:$0xf]
      %v2465 = vld [vmem:[%s165 + $0x2c] sm:$0xf]
      %v2466 = vld [vmem:[%s165 + $0x30] sm:$0xf]
      %v2467 = vld [vmem:[%s165 + $0x34] sm:$0xf]
      %v2468 = vld [vmem:[%s165 + $0x38] sm:$0xf]
      %v2469 = vld [vmem:[%s165 + $0x3c] sm:$0xf]
      %v2470 = vld [vmem:[%s165 + $0x40] sm:$0xf]
      %v2471 = vld [vmem:[%s165 + $0x44] sm:$0xf]
      %v2472 = vld [vmem:[%s165 + $0x48] sm:$0xf]
      %v2473 = vld [vmem:[%s165 + $0x4c] sm:$0xf]
      %v2474 = vld [vmem:[%s165 + $0x50] sm:$0xf]
      %v2475 = vld [vmem:[%s165 + $0x54] sm:$0xf]
      %v2476 = vld [vmem:[%s165 + $0x58] sm:$0xf]
      %v2477 = vld [vmem:[%s165 + $0x5c] sm:$0xf]
      %v2478 = vld [vmem:[%s165 + $0x60] sm:$0xf]
      %v2479 = vld [vmem:[%s165 + $0x64] sm:$0xf]
      %v2480 = vld [vmem:[%s165 + $0x68] sm:$0xf]
      %v2481 = vld [vmem:[%s165 + $0x6c] sm:$0xf]
      %v2482 = vld [vmem:[%s165 + $0x70] sm:$0xf]
      %v2483 = vld [vmem:[%s165 + $0x74] sm:$0xf]
      %v2484 = vld [vmem:[%s165 + $0x78] sm:$0x1]
      %s2485 = scalar_lea.vmem %s1, 448
      %v2486 = vld [vmem:[%s2485] sm:$0xf]
      %v2487 = vld [vmem:[%s2485 + $0x4] sm:$0xf]
      %v2488 = vld [vmem:[%s2485 + $0x8] sm:$0xf]
      %v2489 = vld [vmem:[%s2485 + $0xc] sm:$0xf]
      %v2490 = vld [vmem:[%s2485 + $0x10] sm:$0xf]
      %v2491 = vld [vmem:[%s2485 + $0x14] sm:$0xf]
      %v2492 = vld [vmem:[%s2485 + $0x18] sm:$0xf]
      %v2493 = vld [vmem:[%s2485 + $0x1c] sm:$0xf]
      %v2494 = vld [vmem:[%s2485 + $0x20] sm:$0xf]
      %v2495 = vld [vmem:[%s2485 + $0x24] sm:$0xf]
      %v2496 = vld [vmem:[%s2485 + $0x28] sm:$0xf]
      %v2497 = vld [vmem:[%s2485 + $0x2c] sm:$0xf]
      %v2498 = vld [vmem:[%s2485 + $0x30] sm:$0xf]
      %v2499 = vld [vmem:[%s2485 + $0x34] sm:$0xf]
      %v2500 = vld [vmem:[%s2485 + $0x38] sm:$0xf]
      %v2501 = vld [vmem:[%s2485 + $0x3c] sm:$0xf]
      %v2529 = vunpack.c.l.b16 %v2458
      %v2530 = vunpack.c.l.b16 %v2459
      %v2531 = vunpack.c.l.b16 %v2460
      %v2532 = vunpack.c.l.b16 %v2461
      %v2533 = vunpack.c.l.b16 %v2462
      %v2534 = vunpack.c.l.b16 %v2463
      %v2535 = vunpack.c.l.b16 %v2464
      %v2536 = vunpack.c.l.b16 %v2465
      %v2537 = vunpack.c.l.b16 %v2466
      %v2538 = vunpack.c.l.b16 %v2467
      %v2539 = vunpack.c.l.b16 %v2468
      %v2540 = vunpack.c.l.b16 %v2469
      %v2541 = vunpack.c.l.b16 %v2470
      %v2542 = vunpack.c.l.b16 %v2471
      %v2543 = vunpack.c.l.b16 %v2472
      %v2544 = vunpack.c.l.b16 %v2473
      %v2545 = vunpack.c.l.b16 %v2474
      %v2546 = vunpack.c.l.b16 %v2475
      %v2547 = vunpack.c.l.b16 %v2476
      %v2548 = vunpack.c.l.b16 %v2477
      %v2549 = vunpack.c.l.b16 %v2478
      %v2550 = vunpack.c.l.b16 %v2479
      %v2551 = vunpack.c.l.b16 %v2480
      %v2552 = vunpack.c.l.b16 %v2481
      %v2553 = vunpack.c.l.b16 %v2482
      %v2554 = vunpack.c.l.b16 %v2483
      %v2555 = vunpack.c.l.b16 %v2484
      %v2556 = vpack.c.b16 %v2530, %v2529
      %v2557 = vpack.c.b16 %v2532, %v2531
      %v2558 = vpack.c.b16 %v2534, %v2533
      %v2559 = vpack.c.b16 %v2536, %v2535
      %v2560 = vpack.c.b16 %v2538, %v2537
      %v2561 = vpack.c.b16 %v2540, %v2539
      %v2562 = vpack.c.b16 %v2542, %v2541
      %v2563 = vpack.c.b16 %v2544, %v2543
      %v2564 = vpack.c.b16 %v2546, %v2545
      %v2565 = vpack.c.b16 %v2548, %v2547
      %v2566 = vpack.c.b16 %v2550, %v2549
      %v2567 = vpack.c.b16 %v2552, %v2551
      %v2568 = vpack.c.b16 %v2554, %v2553
      %v2569 = vpack.c.b16 %v2555, %v2555
      %v2571 = vshrl.u32 %v2556, 16
      %v2573 = vshll.u32 %v2556, 16
      %v2575 = vrot.slane %v2573, 1
      %v2576 = vor.u32 %v2571, %v2575
      %v2578 = vshll.u32 %v2557, 16
      %v2580 = vrot.slane %v2578, 1
      %v2581 = vsel %vm300, %v2576, %v2580
      %v2582 = vshrl.u32 %v2557, 16
      %v2584 = vor.u32 %v2582, %v2580
      %v2586 = vshll.u32 %v2558, 16
      %v2588 = vrot.slane %v2586, 1
      %v2589 = vsel %vm300, %v2584, %v2588
      %v2590 = vshrl.u32 %v2558, 16
      %v2592 = vor.u32 %v2590, %v2588
      %v2594 = vshll.u32 %v2559, 16
      %v2596 = vrot.slane %v2594, 1
      %v2597 = vsel %vm300, %v2592, %v2596
      %v2598 = vshrl.u32 %v2559, 16
      %v2600 = vor.u32 %v2598, %v2596
      %v2602 = vshll.u32 %v2560, 16
      %v2604 = vrot.slane %v2602, 1
      %v2605 = vsel %vm300, %v2600, %v2604
      %v2606 = vshrl.u32 %v2560, 16
      %v2608 = vor.u32 %v2606, %v2604
      %v2610 = vshll.u32 %v2561, 16
      %v2612 = vrot.slane %v2610, 1
      %v2613 = vsel %vm300, %v2608, %v2612
      %v2614 = vshrl.u32 %v2561, 16
      %v2616 = vor.u32 %v2614, %v2612
      %v2618 = vshll.u32 %v2562, 16
      %v2620 = vrot.slane %v2618, 1
      %v2621 = vsel %vm300, %v2616, %v2620
      %v2622 = vshrl.u32 %v2562, 16
      %v2624 = vor.u32 %v2622, %v2620
      %v2626 = vshll.u32 %v2563, 16
      %v2628 = vrot.slane %v2626, 1
      %v2629 = vsel %vm300, %v2624, %v2628
      %v2630 = vshrl.u32 %v2563, 16
      %v2632 = vor.u32 %v2630, %v2628
      %v2634 = vshll.u32 %v2564, 16
      %v2636 = vrot.slane %v2634, 1
      %v2637 = vsel %vm300, %v2632, %v2636
      %v2638 = vshrl.u32 %v2564, 16
      %v2640 = vor.u32 %v2638, %v2636
      %v2642 = vshll.u32 %v2565, 16
      %v2644 = vrot.slane %v2642, 1
      %v2645 = vsel %vm300, %v2640, %v2644
      %v2646 = vshrl.u32 %v2565, 16
      %v2648 = vor.u32 %v2646, %v2644
      %v2650 = vshll.u32 %v2566, 16
      %v2652 = vrot.slane %v2650, 1
      %v2653 = vsel %vm300, %v2648, %v2652
      %v2654 = vshrl.u32 %v2566, 16
      %v2656 = vor.u32 %v2654, %v2652
      %v2658 = vshll.u32 %v2567, 16
      %v2660 = vrot.slane %v2658, 1
      %v2661 = vsel %vm300, %v2656, %v2660
      %v2662 = vshrl.u32 %v2567, 16
      %v2664 = vor.u32 %v2662, %v2660
      %v2666 = vshll.u32 %v2568, 16
      %v2668 = vrot.slane %v2666, 1
      %v2669 = vsel %vm300, %v2664, %v2668
      %v2670 = vshrl.u32 %v2568, 16
      %v2672 = vor.u32 %v2670, %v2668
      %v2674 = vshll.u32 %v2569, 16
      %v2676 = vrot.slane %v2674, 1
      %v2677 = vsel %vm300, %v2672, %v2676
      %v2707 = vunpack.c.l.b16 %v2486
      %v2708 = vunpack.c.l.b16 %v2487
      %v2709 = vunpack.c.l.b16 %v2488
      %v2710 = vunpack.c.l.b16 %v2489
      %v2711 = vunpack.c.l.b16 %v2490
      %v2712 = vunpack.c.l.b16 %v2491
      %v2713 = vunpack.c.l.b16 %v2492
      %v2714 = vunpack.c.l.b16 %v2493
      %v2715 = vunpack.c.l.b16 %v2494
      %v2716 = vunpack.c.l.b16 %v2495
      %v2717 = vunpack.c.l.b16 %v2496
      %v2718 = vunpack.c.l.b16 %v2497
      %v2719 = vunpack.c.l.b16 %v2498
      %v2720 = vunpack.c.l.b16 %v2499
      %v2721 = vunpack.c.l.b16 %v2500
      %v2722 = vunpack.c.l.b16 %v2501
      %v2723 = vpack.c.b16 %v2708, %v2707
      %v2724 = vpack.c.b16 %v2710, %v2709
      %v2725 = vpack.c.b16 %v2712, %v2711
      %v2726 = vpack.c.b16 %v2714, %v2713
      %v2727 = vpack.c.b16 %v2716, %v2715
      %v2728 = vpack.c.b16 %v2718, %v2717
      %v2729 = vpack.c.b16 %v2720, %v2719
      %v2730 = vpack.c.b16 %v2722, %v2721
      %2739 = vmatprep.subr.bf16.mxu0 0
      %2740 = vmatpush1.bf16.msra.mxu0 %v2723
      %2741 = vmatprep.subr.bf16.mxu0 0
      %2742 = vmatpush1.bf16.msra.mxu0 %v2724
      %2743 = vmatprep.subr.bf16.mxu0 0
      %2744 = vmatpush1.bf16.msra.mxu0 %v2725
      %2745 = vmatprep.subr.bf16.mxu0 0
      %2746 = vmatpush1.bf16.msra.mxu0 %v2726
      %2747 = vmatprep.subr.bf16.mxu0 0
      %2748 = vmatpush1.bf16.msra.mxu0 %v2727
      %2749 = vmatprep.subr.bf16.mxu0 0
      %2750 = vmatpush1.bf16.msra.mxu0 %v2728
      %2751 = vmatprep.subr.bf16.mxu0 0
      %2752 = vmatpush1.bf16.msra.mxu0 %v2729
      %2753 = vmatprep.subr.bf16.mxu0 0
      %2754 = vmatpush1.bf16.msra.mxu0 %v2730
      %2755 = vmatprep.subr.bf16.mxu0 0
      %2756 = vmatpush1.bf16.msra.mxu0 0
      %2757 = vmatprep.subr.bf16.mxu0 0
      %2758 = vmatpush1.bf16.msra.mxu0 0
      %2759 = vmatprep.subr.bf16.mxu0 0
      %2760 = vmatpush1.bf16.msra.mxu0 0
      %2761 = vmatprep.subr.bf16.mxu0 0
      %2762 = vmatpush1.bf16.msra.mxu0 0
      %2763 = vmatprep.subr.bf16.mxu0 0
      %2764 = vmatpush1.bf16.msra.mxu0 0
      %2765 = vmatprep.subr.bf16.mxu0 0
      %2766 = vmatpush1.bf16.msra.mxu0 0
      %2767 = vmatprep.subr.bf16.mxu0 0
      %2768 = vmatpush1.bf16.msra.mxu0 0
      %2769 = vmatprep.subr.bf16.mxu0 0
      %2770 = vmatpush1.bf16.msra.mxu0 0
      %2771 = vmatprep.mubr.bf16.mxu0 0
      %2772 = vmatmul.mubr.bf16.gmra.mrb[0].mxu0 %v2581
      %v2773 = vpop.f32.mrb[0].mxu0
      %v2774 = vadd.f32 0.0, %v2773
      %v2775 = vpop.f32.mrb[0].mxu0
      %v2776 = vpop.f32.mrb[0].mxu0
      %v2777 = vadd.f32 0.0, %v2776
      %v2778 = vpop.f32.mrb[0].mxu0
      %2779 = vmatprep.mubr.bf16.mxu0 0
      %2780 = vmatmul.mubr.bf16.gmra.mrb[0].mxu0 %v2589
      %v2781 = vpop.f32.mrb[0].mxu0
      %v2782 = vadd.f32 0.0, %v2781
      %v2783 = vpop.f32.mrb[0].mxu0
      %v2784 = vpop.f32.mrb[0].mxu0
      %v2785 = vadd.f32 0.0, %v2784
      %v2786 = vpop.f32.mrb[0].mxu0
      %2787 = vmatprep.mubr.bf16.mxu0 0
      %2788 = vmatmul.mubr.bf16.gmra.mrb[0].mxu0 %v2597
      %v2789 = vpop.f32.mrb[0].mxu0
      %v2790 = vadd.f32 0.0, %v2789
      %v2791 = vpop.f32.mrb[0].mxu0
      %v2792 = vpop.f32.mrb[0].mxu0
      %v2793 = vadd.f32 0.0, %v2792
      %v2794 = vpop.f32.mrb[0].mxu0
      %2795 = vmatprep.mubr.bf16.mxu0 0
      %2796 = vmatmul.mubr.bf16.gmra.mrb[0].mxu0 %v2605
      %v2797 = vpop.f32.mrb[0].mxu0
      %v2798 = vadd.f32 0.0, %v2797
      %v2799 = vpop.f32.mrb[0].mxu0
      %v2800 = vpop.f32.mrb[0].mxu0
      %v2801 = vadd.f32 0.0, %v2800
      %v2802 = vpop.f32.mrb[0].mxu0
      %2803 = vmatprep.mubr.bf16.mxu0 0
      %2804 = vmatmul.mubr.bf16.gmra.mrb[0].mxu0 %v2613
      %v2805 = vpop.f32.mrb[0].mxu0
      %v2806 = vadd.f32 0.0, %v2805
      %v2807 = vpop.f32.mrb[0].mxu0
      %v2808 = vpop.f32.mrb[0].mxu0
      %v2809 = vadd.f32 0.0, %v2808
      %v2810 = vpop.f32.mrb[0].mxu0
      %2811 = vmatprep.mubr.bf16.mxu0 0
      %2812 = vmatmul.mubr.bf16.gmra.mrb[0].mxu0 %v2621
      %v2813 = vpop.f32.mrb[0].mxu0
      %v2814 = vadd.f32 0.0, %v2813
      %v2815 = vpop.f32.mrb[0].mxu0
      %v2816 = vpop.f32.mrb[0].mxu0
      %v2817 = vadd.f32 0.0, %v2816
      %v2818 = vpop.f32.mrb[0].mxu0
      %2819 = vmatprep.mubr.bf16.mxu0 0
      %2820 = vmatmul.mubr.bf16.gmra.mrb[0].mxu0 %v2629
      %v2821 = vpop.f32.mrb[0].mxu0
      %v2822 = vadd.f32 0.0, %v2821
      %v2823 = vpop.f32.mrb[0].mxu0
      %v2824 = vpop.f32.mrb[0].mxu0
      %v2825 = vadd.f32 0.0, %v2824
      %v2826 = vpop.f32.mrb[0].mxu0
      %2827 = vmatprep.mubr.bf16.mxu0 0
      %2828 = vmatmul.mubr.bf16.gmra.mrb[0].mxu0 %v2637
      %v2829 = vpop.f32.mrb[0].mxu0
      %v2830 = vadd.f32 0.0, %v2829
      %v2831 = vpop.f32.mrb[0].mxu0
      %v2832 = vpop.f32.mrb[0].mxu0
      %v2833 = vadd.f32 0.0, %v2832
      %v2834 = vpop.f32.mrb[0].mxu0
      %2835 = vmatprep.mubr.bf16.mxu0 0
      %2836 = vmatmul.mubr.bf16.gmra.mrb[0].mxu0 %v2645
      %v2837 = vpop.f32.mrb[0].mxu0
      %v2838 = vadd.f32 0.0, %v2837
      %v2839 = vpop.f32.mrb[0].mxu0
      %v2840 = vpop.f32.mrb[0].mxu0
      %v2841 = vadd.f32 0.0, %v2840
      %v2842 = vpop.f32.mrb[0].mxu0
      %2843 = vmatprep.mubr.bf16.mxu0 0
      %2844 = vmatmul.mubr.bf16.gmra.mrb[0].mxu0 %v2653
      %v2845 = vpop.f32.mrb[0].mxu0
      %v2846 = vadd.f32 0.0, %v2845
      %v2847 = vpop.f32.mrb[0].mxu0
      %v2848 = vpop.f32.mrb[0].mxu0
      %v2849 = vadd.f32 0.0, %v2848
      %v2850 = vpop.f32.mrb[0].mxu0
      %2851 = vmatprep.mubr.bf16.mxu0 0
      %2852 = vmatmul.mubr.bf16.gmra.mrb[0].mxu0 %v2661
      %v2853 = vpop.f32.mrb[0].mxu0
      %v2854 = vadd.f32 0.0, %v2853
      %v2855 = vpop.f32.mrb[0].mxu0
      %v2856 = vpop.f32.mrb[0].mxu0
      %v2857 = vadd.f32 0.0, %v2856
      %v2858 = vpop.f32.mrb[0].mxu0
      %2859 = vmatprep.mubr.bf16.mxu0 0
      %2860 = vmatmul.mubr.bf16.gmra.mrb[0].mxu0 %v2669
      %v2861 = vpop.f32.mrb[0].mxu0
      %v2862 = vadd.f32 0.0, %v2861
      %v2863 = vpop.f32.mrb[0].mxu0
      %v2864 = vpop.f32.mrb[0].mxu0
      %v2865 = vadd.f32 0.0, %v2864
      %v2866 = vpop.f32.mrb[0].mxu0
      %2867 = vmatprep.mubr.bf16.mxu0 0
      %2868 = vmatmul.mubr.bf16.gmra.mrb[0].mxu0 %v2677
      %v2869 = vpop.f32.mrb[0].mxu0
      %v2870 = vadd.f32 0.0, %v2869
      %v2871 = vpop.f32.mrb[0].mxu0
      %v2872 = vpop.f32.mrb[0].mxu0
      %v2873 = vadd.f32 0.0, %v2872
      %v2874 = vpop.f32.mrb[0].mxu0
      %2875 = vdwg.mxu0
      %v2876 = vadd.f32 %v2432, %v2774
      %v2877 = vadd.f32 %v2433, %v2777
      %v2878 = vadd.f32 %v2434, %v2782
      %v2879 = vadd.f32 %v2435, %v2785
      %v2880 = vadd.f32 %v2436, %v2790
      %v2881 = vadd.f32 %v2437, %v2793
      %v2882 = vadd.f32 %v2438, %v2798
      %v2883 = vadd.f32 %v2439, %v2801
      %v2884 = vadd.f32 %v2440, %v2806
      %v2885 = vadd.f32 %v2441, %v2809
      %v2886 = vadd.f32 %v2442, %v2814
      %v2887 = vadd.f32 %v2443, %v2817
      %v2888 = vadd.f32 %v2444, %v2822
      %v2889 = vadd.f32 %v2445, %v2825
      %v2890 = vadd.f32 %v2446, %v2830
      %v2891 = vadd.f32 %v2447, %v2833
      %v2892 = vadd.f32 %v2448, %v2838
      %v2893 = vadd.f32 %v2449, %v2841
      %v2894 = vadd.f32 %v2450, %v2846
      %v2895 = vadd.f32 %v2451, %v2849
      %v2896 = vadd.f32 %v2452, %v2854
      %v2897 = vadd.f32 %v2453, %v2857
      %v2898 = vadd.f32 %v2454, %v2862
      %v2899 = vadd.f32 %v2455, %v2865
      %v2900 = vadd.f32 %v2456, %v2870
      %v2901 = vadd.f32 %v2457, %v2873
      %v2902 = vld [vmem:[%s165 + $0x10] sm:$0xe]
      %s2903 = scalar_lea.vmem %s1, 512
      %v2904 = vld [vmem:[%s2903] sm:$0xf]
      %v2905 = vld [vmem:[%s2903 + $0x4] sm:$0xf]
      %v2906 = vld [vmem:[%s2903 + $0x8] sm:$0xf]
      %v2907 = vld [vmem:[%s2903 + $0xc] sm:$0xf]
      %v2908 = vld [vmem:[%s2903 + $0x10] sm:$0xf]
      %v2909 = vld [vmem:[%s2903 + $0x14] sm:$0xf]
      %v2910 = vld [vmem:[%s2903 + $0x18] sm:$0xf]
      %v2911 = vld [vmem:[%s2903 + $0x1c] sm:$0xf]
      %v2912 = vld [vmem:[%s2903 + $0x20] sm:$0xf]
      %v2913 = vld [vmem:[%s2903 + $0x24] sm:$0xf]
      %v2914 = vld [vmem:[%s2903 + $0x28] sm:$0xf]
      %v2915 = vld [vmem:[%s2903 + $0x2c] sm:$0xf]
      %v2916 = vld [vmem:[%s2903 + $0x30] sm:$0xf]
      %v2917 = vld [vmem:[%s2903 + $0x34] sm:$0xf]
      %v2918 = vld [vmem:[%s2903 + $0x38] sm:$0xf]
      %v2919 = vld [vmem:[%s2903 + $0x3c] sm:$0xf]
      %v2921 = vunpack.c.l.b16 %v2902
      %v2922 = vpack.c.b16 %v2530, %v2921
      %v2923 = vrot.slane %v2922, 1
      %v2924 = vrot.slane %v2557, 1
      %v2925 = vsel %vm826, %v2923, %v2924
      %v2926 = vrot.slane %v2558, 1
      %v2927 = vsel %vm826, %v2924, %v2926
      %v2928 = vrot.slane %v2559, 1
      %v2929 = vsel %vm826, %v2926, %v2928
      %v2930 = vrot.slane %v2560, 1
      %v2931 = vsel %vm826, %v2928, %v2930
      %v2932 = vrot.slane %v2561, 1
      %v2933 = vsel %vm826, %v2930, %v2932
      %v2934 = vrot.slane %v2562, 1
      %v2935 = vsel %vm826, %v2932, %v2934
      %v2936 = vrot.slane %v2563, 1
      %v2937 = vsel %vm826, %v2934, %v2936
      %v2938 = vrot.slane %v2564, 1
      %v2939 = vsel %vm826, %v2936, %v2938
      %v2940 = vrot.slane %v2565, 1
      %v2941 = vsel %vm826, %v2938, %v2940
      %v2942 = vrot.slane %v2566, 1
      %v2943 = vsel %vm826, %v2940, %v2942
      %v2944 = vrot.slane %v2567, 1
      %v2945 = vsel %vm826, %v2942, %v2944
      %v2946 = vrot.slane %v2568, 1
      %v2947 = vsel %vm826, %v2944, %v2946
      %v2948 = vrot.slane %v2569, 1
      %v2949 = vsel %vm826, %v2946, %v2948
      %v2979 = vunpack.c.l.b16 %v2904
      %v2980 = vunpack.c.l.b16 %v2905
      %v2981 = vunpack.c.l.b16 %v2906
      %v2982 = vunpack.c.l.b16 %v2907
      %v2983 = vunpack.c.l.b16 %v2908
      %v2984 = vunpack.c.l.b16 %v2909
      %v2985 = vunpack.c.l.b16 %v2910
      %v2986 = vunpack.c.l.b16 %v2911
      %v2987 = vunpack.c.l.b16 %v2912
      %v2988 = vunpack.c.l.b16 %v2913
      %v2989 = vunpack.c.l.b16 %v2914
      %v2990 = vunpack.c.l.b16 %v2915
      %v2991 = vunpack.c.l.b16 %v2916
      %v2992 = vunpack.c.l.b16 %v2917
      %v2993 = vunpack.c.l.b16 %v2918
      %v2994 = vunpack.c.l.b16 %v2919
      %v2995 = vpack.c.b16 %v2980, %v2979
      %v2996 = vpack.c.b16 %v2982, %v2981
      %v2997 = vpack.c.b16 %v2984, %v2983
      %v2998 = vpack.c.b16 %v2986, %v2985
      %v2999 = vpack.c.b16 %v2988, %v2987
      %v3000 = vpack.c.b16 %v2990, %v2989
      %v3001 = vpack.c.b16 %v2992, %v2991
      %v3002 = vpack.c.b16 %v2994, %v2993
      %3011 = vmatprep.subr.bf16.mxu0 0
      %3012 = vmatpush1.bf16.msra.mxu0 %v2995
      %3013 = vmatprep.subr.bf16.mxu0 0
      %3014 = vmatpush1.bf16.msra.mxu0 %v2996
      %3015 = vmatprep.subr.bf16.mxu0 0
      %3016 = vmatpush1.bf16.msra.mxu0 %v2997
      %3017 = vmatprep.subr.bf16.mxu0 0
      %3018 = vmatpush1.bf16.msra.mxu0 %v2998
      %3019 = vmatprep.subr.bf16.mxu0 0
      %3020 = vmatpush1.bf16.msra.mxu0 %v2999
      %3021 = vmatprep.subr.bf16.mxu0 0
      %3022 = vmatpush1.bf16.msra.mxu0 %v3000
      %3023 = vmatprep.subr.bf16.mxu0 0
      %3024 = vmatpush1.bf16.msra.mxu0 %v3001
      %3025 = vmatprep.subr.bf16.mxu0 0
      %3026 = vmatpush1.bf16.msra.mxu0 %v3002
      %3027 = vmatprep.subr.bf16.mxu0 0
      %3028 = vmatpush1.bf16.msra.mxu0 0
      %3029 = vmatprep.subr.bf16.mxu0 0
      %3030 = vmatpush1.bf16.msra.mxu0 0
      %3031 = vmatprep.subr.bf16.mxu0 0
      %3032 = vmatpush1.bf16.msra.mxu0 0
      %3033 = vmatprep.subr.bf16.mxu0 0
      %3034 = vmatpush1.bf16.msra.mxu0 0
      %3035 = vmatprep.subr.bf16.mxu0 0
      %3036 = vmatpush1.bf16.msra.mxu0 0
      %3037 = vmatprep.subr.bf16.mxu0 0
      %3038 = vmatpush1.bf16.msra.mxu0 0
      %3039 = vmatprep.subr.bf16.mxu0 0
      %3040 = vmatpush1.bf16.msra.mxu0 0
      %3041 = vmatprep.subr.bf16.mxu0 0
      %3042 = vmatpush1.bf16.msra.mxu0 0
      %3043 = vmatprep.mubr.bf16.mxu0 0
      %3044 = vmatmul.mubr.bf16.gmra.mrb[0].mxu0 %v2925
      %v3045 = vpop.f32.mrb[0].mxu0
      %v3046 = vadd.f32 0.0, %v3045
      %v3047 = vpop.f32.mrb[0].mxu0
      %v3048 = vpop.f32.mrb[0].mxu0
      %v3049 = vadd.f32 0.0, %v3048
      %v3050 = vpop.f32.mrb[0].mxu0
      %3051 = vmatprep.mubr.bf16.mxu0 0
      %3052 = vmatmul.mubr.bf16.gmra.mrb[0].mxu0 %v2927
      %v3053 = vpop.f32.mrb[0].mxu0
      %v3054 = vadd.f32 0.0, %v3053
      %v3055 = vpop.f32.mrb[0].mxu0
      %v3056 = vpop.f32.mrb[0].mxu0
      %v3057 = vadd.f32 0.0, %v3056
      %v3058 = vpop.f32.mrb[0].mxu0
      %3059 = vmatprep.mubr.bf16.mxu0 0
      %3060 = vmatmul.mubr.bf16.gmra.mrb[0].mxu0 %v2929
      %v3061 = vpop.f32.mrb[0].mxu0
      %v3062 = vadd.f32 0.0, %v3061
      %v3063 = vpop.f32.mrb[0].mxu0
      %v3064 = vpop.f32.mrb[0].mxu0
      %v3065 = vadd.f32 0.0, %v3064
      %v3066 = vpop.f32.mrb[0].mxu0
      %3067 = vmatprep.mubr.bf16.mxu0 0
      %3068 = vmatmul.mubr.bf16.gmra.mrb[0].mxu0 %v2931
      %v3069 = vpop.f32.mrb[0].mxu0
      %v3070 = vadd.f32 0.0, %v3069
      %v3071 = vpop.f32.mrb[0].mxu0
      %v3072 = vpop.f32.mrb[0].mxu0
      %v3073 = vadd.f32 0.0, %v3072
      %v3074 = vpop.f32.mrb[0].mxu0
      %3075 = vmatprep.mubr.bf16.mxu0 0
      %3076 = vmatmul.mubr.bf16.gmra.mrb[0].mxu0 %v2933
      %v3077 = vpop.f32.mrb[0].mxu0
      %v3078 = vadd.f32 0.0, %v3077
      %v3079 = vpop.f32.mrb[0].mxu0
      %v3080 = vpop.f32.mrb[0].mxu0
      %v3081 = vadd.f32 0.0, %v3080
      %v3082 = vpop.f32.mrb[0].mxu0
      %3083 = vmatprep.mubr.bf16.mxu0 0
      %3084 = vmatmul.mubr.bf16.gmra.mrb[0].mxu0 %v2935
      %v3085 = vpop.f32.mrb[0].mxu0
      %v3086 = vadd.f32 0.0, %v3085
      %v3087 = vpop.f32.mrb[0].mxu0
      %v3088 = vpop.f32.mrb[0].mxu0
      %v3089 = vadd.f32 0.0, %v3088
      %v3090 = vpop.f32.mrb[0].mxu0
      %3091 = vmatprep.mubr.bf16.mxu0 0
      %3092 = vmatmul.mubr.bf16.gmra.mrb[0].mxu0 %v2937
      %v3093 = vpop.f32.mrb[0].mxu0
      %v3094 = vadd.f32 0.0, %v3093
      %v3095 = vpop.f32.mrb[0].mxu0
      %v3096 = vpop.f32.mrb[0].mxu0
      %v3097 = vadd.f32 0.0, %v3096
      %v3098 = vpop.f32.mrb[0].mxu0
      %3099 = vmatprep.mubr.bf16.mxu0 0
      %3100 = vmatmul.mubr.bf16.gmra.mrb[0].mxu0 %v2939
      %v3101 = vpop.f32.mrb[0].mxu0
      %v3102 = vadd.f32 0.0, %v3101
      %v3103 = vpop.f32.mrb[0].mxu0
      %v3104 = vpop.f32.mrb[0].mxu0
      %v3105 = vadd.f32 0.0, %v3104
      %v3106 = vpop.f32.mrb[0].mxu0
      %3107 = vmatprep.mubr.bf16.mxu0 0
      %3108 = vmatmul.mubr.bf16.gmra.mrb[0].mxu0 %v2941
      %v3109 = vpop.f32.mrb[0].mxu0
      %v3110 = vadd.f32 0.0, %v3109
      %v3111 = vpop.f32.mrb[0].mxu0
      %v3112 = vpop.f32.mrb[0].mxu0
      %v3113 = vadd.f32 0.0, %v3112
      %v3114 = vpop.f32.mrb[0].mxu0
      %3115 = vmatprep.mubr.bf16.mxu0 0
      %3116 = vmatmul.mubr.bf16.gmra.mrb[0].mxu0 %v2943
      %v3117 = vpop.f32.mrb[0].mxu0
      %v3118 = vadd.f32 0.0, %v3117
      %v3119 = vpop.f32.mrb[0].mxu0
      %v3120 = vpop.f32.mrb[0].mxu0
      %v3121 = vadd.f32 0.0, %v3120
      %v3122 = vpop.f32.mrb[0].mxu0
      %3123 = vmatprep.mubr.bf16.mxu0 0
      %3124 = vmatmul.mubr.bf16.gmra.mrb[0].mxu0 %v2945
      %v3125 = vpop.f32.mrb[0].mxu0
      %v3126 = vadd.f32 0.0, %v3125
      %v3127 = vpop.f32.mrb[0].mxu0
      %v3128 = vpop.f32.mrb[0].mxu0
      %v3129 = vadd.f32 0.0, %v3128
      %v3130 = vpop.f32.mrb[0].mxu0
      %3131 = vmatprep.mubr.bf16.mxu0 0
      %3132 = vmatmul.mubr.bf16.gmra.mrb[0].mxu0 %v2947
      %v3133 = vpop.f32.mrb[0].mxu0
      %v3134 = vadd.f32 0.0, %v3133
      %v3135 = vpop.f32.mrb[0].mxu0
      %v3136 = vpop.f32.mrb[0].mxu0
      %v3137 = vadd.f32 0.0, %v3136
      %v3138 = vpop.f32.mrb[0].mxu0
      %3139 = vmatprep.mubr.bf16.mxu0 0
      %3140 = vmatmul.mubr.bf16.gmra.mrb[0].mxu0 %v2949
      %v3141 = vpop.f32.mrb[0].mxu0
      %v3142 = vadd.f32 0.0, %v3141
      %v3143 = vpop.f32.mrb[0].mxu0
      %v3144 = vpop.f32.mrb[0].mxu0
      %v3145 = vadd.f32 0.0, %v3144
      %v3146 = vpop.f32.mrb[0].mxu0
      %3147 = vdwg.mxu0
      %v3148 = vadd.f32 %v2876, %v3046
      %v3149 = vadd.f32 %v2877, %v3049
      %v3150 = vadd.f32 %v2878, %v3054
      %v3151 = vadd.f32 %v2879, %v3057
      %v3152 = vadd.f32 %v2880, %v3062
      %v3153 = vadd.f32 %v2881, %v3065
      %v3154 = vadd.f32 %v2882, %v3070
      %v3155 = vadd.f32 %v2883, %v3073
      %v3156 = vadd.f32 %v2884, %v3078
      %v3157 = vadd.f32 %v2885, %v3081
      %v3158 = vadd.f32 %v2886, %v3086
      %v3159 = vadd.f32 %v2887, %v3089
      %v3160 = vadd.f32 %v2888, %v3094
      %v3161 = vadd.f32 %v2889, %v3097
      %v3162 = vadd.f32 %v2890, %v3102
      %v3163 = vadd.f32 %v2891, %v3105
      %v3164 = vadd.f32 %v2892, %v3110
      %v3165 = vadd.f32 %v2893, %v3113
      %v3166 = vadd.f32 %v2894, %v3118
      %v3167 = vadd.f32 %v2895, %v3121
      %v3168 = vadd.f32 %v2896, %v3126
      %v3169 = vadd.f32 %v2897, %v3129
      %v3170 = vadd.f32 %v2898, %v3134
      %v3171 = vadd.f32 %v2899, %v3137
      %v3172 = vadd.f32 %v2900, %v3142
      %v3173 = vadd.f32 %v2901, %v3145
      %v3174 = vld [vmem:[%s2] sm:$0x1]
      %v3176 = vlaneseq
      %v3177 = vshrl.u32 %v3176, 7
      %v3178 = vsub.s32 0, %v3177
      %v3179 = vrot.slane %v3174, %v3178
      %v3181 = vadd.f32 %v3148, %v3179
      %v3182 = vadd.f32 %v3149, %v3179
      %v3183 = vadd.f32 %v3150, %v3179
      %v3184 = vadd.f32 %v3151, %v3179
      %v3185 = vadd.f32 %v3152, %v3179
      %v3186 = vadd.f32 %v3153, %v3179
      %v3187 = vadd.f32 %v3154, %v3179
      %v3188 = vadd.f32 %v3155, %v3179
      %v3189 = vadd.f32 %v3156, %v3179
      %v3190 = vadd.f32 %v3157, %v3179
      %v3191 = vadd.f32 %v3158, %v3179
      %v3192 = vadd.f32 %v3159, %v3179
      %v3193 = vadd.f32 %v3160, %v3179
      %v3194 = vadd.f32 %v3161, %v3179
      %v3195 = vadd.f32 %v3162, %v3179
      %v3196 = vadd.f32 %v3163, %v3179
      %v3197 = vadd.f32 %v3164, %v3179
      %v3198 = vadd.f32 %v3165, %v3179
      %v3199 = vadd.f32 %v3166, %v3179
      %v3200 = vadd.f32 %v3167, %v3179
      %v3201 = vadd.f32 %v3168, %v3179
      %v3202 = vadd.f32 %v3169, %v3179
      %v3203 = vadd.f32 %v3170, %v3179
      %v3204 = vadd.f32 %v3171, %v3179
      %v3205 = vadd.f32 %v3172, %v3179
      %v3206 = vadd.f32 %v3173, %v3179
      %v3207 = vmax.f32 %v3181, 0.0
      %v3208 = vmax.f32 %v3182, 0.0
      %v3209 = vmax.f32 %v3183, 0.0
      %v3210 = vmax.f32 %v3184, 0.0
      %v3211 = vmax.f32 %v3185, 0.0
      %v3212 = vmax.f32 %v3186, 0.0
      %v3213 = vmax.f32 %v3187, 0.0
      %v3214 = vmax.f32 %v3188, 0.0
      %v3215 = vmax.f32 %v3189, 0.0
      %v3216 = vmax.f32 %v3190, 0.0
      %v3217 = vmax.f32 %v3191, 0.0
      %v3218 = vmax.f32 %v3192, 0.0
      %v3219 = vmax.f32 %v3193, 0.0
      %v3220 = vmax.f32 %v3194, 0.0
      %v3221 = vmax.f32 %v3195, 0.0
      %v3222 = vmax.f32 %v3196, 0.0
      %v3223 = vmax.f32 %v3197, 0.0
      %v3224 = vmax.f32 %v3198, 0.0
      %v3225 = vmax.f32 %v3199, 0.0
      %v3226 = vmax.f32 %v3200, 0.0
      %v3227 = vmax.f32 %v3201, 0.0
      %v3228 = vmax.f32 %v3202, 0.0
      %v3229 = vmax.f32 %v3203, 0.0
      %v3230 = vmax.f32 %v3204, 0.0
      %v3231 = vmax.f32 %v3205, 0.0
      %v3232 = vmax.f32 %v3206, 0.0
      %v3233 = vpack.c.bf16 %v3208, %v3207
      %v3234 = vpack.c.bf16 %v3210, %v3209
      %v3235 = vpack.c.bf16 %v3212, %v3211
      %v3236 = vpack.c.bf16 %v3214, %v3213
      %v3237 = vpack.c.bf16 %v3216, %v3215
      %v3238 = vpack.c.bf16 %v3218, %v3217
      %v3239 = vpack.c.bf16 %v3220, %v3219
      %v3240 = vpack.c.bf16 %v3222, %v3221
      %v3241 = vpack.c.bf16 %v3224, %v3223
      %v3242 = vpack.c.bf16 %v3226, %v3225
      %v3243 = vpack.c.bf16 %v3228, %v3227
      %v3244 = vpack.c.bf16 %v3230, %v3229
      %v3245 = vpack.c.bf16 %v3232, %v3231
      %v3259 = vunpack.c.l.b16 %v3233
      %v3260 = vunpack.c.h.b16 %v3233
      %v3261 = vunpack.c.l.b16 %v3234
      %v3262 = vunpack.c.h.b16 %v3234
      %v3263 = vunpack.c.l.b16 %v3235
      %v3264 = vunpack.c.h.b16 %v3235
      %v3265 = vunpack.c.l.b16 %v3236
      %v3266 = vunpack.c.h.b16 %v3236
      %v3267 = vunpack.c.l.b16 %v3237
      %v3268 = vunpack.c.h.b16 %v3237
      %v3269 = vunpack.c.l.b16 %v3238
      %v3270 = vunpack.c.h.b16 %v3238
      %v3271 = vunpack.c.l.b16 %v3239
      %v3272 = vunpack.c.h.b16 %v3239
      %v3273 = vunpack.c.l.b16 %v3240
      %v3274 = vunpack.c.h.b16 %v3240
      %v3275 = vunpack.c.l.b16 %v3241
      %v3276 = vunpack.c.h.b16 %v3241
      %v3277 = vunpack.c.l.b16 %v3242
      %v3278 = vunpack.c.h.b16 %v3242
      %v3279 = vunpack.c.l.b16 %v3243
      %v3280 = vunpack.c.h.b16 %v3243
      %v3281 = vunpack.c.l.b16 %v3244
      %v3282 = vunpack.c.h.b16 %v3244
      %v3283 = vunpack.c.l.b16 %v3245
      %v3284 = vunpack.c.h.b16 %v3245
      %v3285 = vpack.c.b16 %v3259, %v3259
      %v3286 = vpack.c.b16 %v3260, %v3260
      %v3287 = vpack.c.b16 %v3261, %v3261
      %v3288 = vpack.c.b16 %v3262, %v3262
      %v3289 = vpack.c.b16 %v3263, %v3263
      %v3290 = vpack.c.b16 %v3264, %v3264
      %v3291 = vpack.c.b16 %v3265, %v3265
      %v3292 = vpack.c.b16 %v3266, %v3266
      %v3293 = vpack.c.b16 %v3267, %v3267
      %v3294 = vpack.c.b16 %v3268, %v3268
      %v3295 = vpack.c.b16 %v3269, %v3269
      %v3296 = vpack.c.b16 %v3270, %v3270
      %v3297 = vpack.c.b16 %v3271, %v3271
      %v3298 = vpack.c.b16 %v3272, %v3272
      %v3299 = vpack.c.b16 %v3273, %v3273
      %v3300 = vpack.c.b16 %v3274, %v3274
      %v3301 = vpack.c.b16 %v3275, %v3275
      %v3302 = vpack.c.b16 %v3276, %v3276
      %v3303 = vpack.c.b16 %v3277, %v3277
      %v3304 = vpack.c.b16 %v3278, %v3278
      %v3305 = vpack.c.b16 %v3279, %v3279
      %v3306 = vpack.c.b16 %v3280, %v3280
      %v3307 = vpack.c.b16 %v3281, %v3281
      %v3308 = vpack.c.b16 %v3282, %v3282
      %v3309 = vpack.c.b16 %v3283, %v3283
      %v3310 = vpack.c.b16 %v3284, %v3284
      %3337 = vst [vmem:[%s170] sm:$0xf] %v3285
      %3338 = vst [vmem:[%s170 + $0x4] sm:$0xf] %v3286
      %3339 = vst [vmem:[%s170 + $0x8] sm:$0xf] %v3287
      %3340 = vst [vmem:[%s170 + $0xc] sm:$0xf] %v3288
      %3341 = vst [vmem:[%s170 + $0x10] sm:$0xf] %v3289
      %3342 = vst [vmem:[%s170 + $0x14] sm:$0xf] %v3290
      %3343 = vst [vmem:[%s170 + $0x18] sm:$0xf] %v3291
      %3344 = vst [vmem:[%s170 + $0x1c] sm:$0xf] %v3292
      %3345 = vst [vmem:[%s170 + $0x20] sm:$0xf] %v3293
      %3346 = vst [vmem:[%s170 + $0x24] sm:$0xf] %v3294
      %3347 = vst [vmem:[%s170 + $0x28] sm:$0xf] %v3295
      %3348 = vst [vmem:[%s170 + $0x2c] sm:$0xf] %v3296
      %3349 = vst [vmem:[%s170 + $0x30] sm:$0xf] %v3297
      %3350 = vst [vmem:[%s170 + $0x34] sm:$0xf] %v3298
      %3351 = vst [vmem:[%s170 + $0x38] sm:$0xf] %v3299
      %3352 = vst [vmem:[%s170 + $0x3c] sm:$0xf] %v3300
      %3353 = vst [vmem:[%s170 + $0x40] sm:$0xf] %v3301
      %3354 = vst [vmem:[%s170 + $0x44] sm:$0xf] %v3302
      %3355 = vst [vmem:[%s170 + $0x48] sm:$0xf] %v3303
      %3356 = vst [vmem:[%s170 + $0x4c] sm:$0xf] %v3304
      %3357 = vst [vmem:[%s170 + $0x50] sm:$0xf] %v3305
      %3358 = vst [vmem:[%s170 + $0x54] sm:$0xf] %v3306
      %3359 = vst [vmem:[%s170 + $0x58] sm:$0xf] %v3307
      %3360 = vst [vmem:[%s170 + $0x5c] sm:$0xf] %v3308
      %3361 = vst [vmem:[%s170 + $0x60] sm:$0xf] %v3309
      %3362 = vst [vmem:[%s170 + $0x64] sm:$0xf] %v3310
      %p3363 = scmp.lt.s32.totalorder %s14, 1
      %s3364 = scalar_select %p3363, %s14, 1
      %s3365 = smul.addr %s3364, 26
      %s3366 = smul.addr %s3365, 4
      %s3367 = scalar_lea.vmem %s3, %s3366
      // Predicated region
      $region33: #{inception_head_forward.8} parent=31 // pred_check
        %p3368 = pneg %p100
      $region34: #{inception_head_forward.8} parent=31 // pred_check_branch
        %3370 = sbr.rel (%p3368) target = $region36
      $region35: #{inception_head_forward.8} parent=31 // pred_region
        _
      $region36: #{inception_head_forward.8} parent=31 // pred_fallthru
        _
    $region32: #{inception_head_forward.8} parent=5 // pred_fallthru
      _
    %p3371 = scmp.le.s32.totalorder 2, %s9
    // Predicated region
    $region37: #{inception_head_forward.8} parent=5 // pred_check
      %p3372 = pneg %p3371
    $region38: #{inception_head_forward.8} parent=5 // pred_check_branch
      %3374 = sbr.rel (%p3372) target = $region40
    $region39: #{inception_head_forward.8} parent=5 // pred_region
      %s3375 = ssub.s32 %s9, 2
      // Predicated region
      $region41: #{inception_head_forward.8} parent=39 // pred_check
        %p3376 = pneg %p106
      $region42: #{inception_head_forward.8} parent=39 // pred_check_branch
        %3378 = sbr.rel (%p3376) target = $region44
      $region43: #{inception_head_forward.8} parent=39 // pred_region
        %p3379 = scmp.lt.s32.totalorder %s15, 1
        %s3380 = scalar_select %p3379, %s15, 1
        %s3381 = smul.addr %s3380, 26
        %s3382 = smul.addr %s3381, 4
        %s3383 = scalar_lea.vmem %s3, %s3382
      $region44: #{inception_head_forward.8} parent=39 // pred_fallthru
        _
    $region40: #{inception_head_forward.8} parent=5 // pred_fallthru
      _
  $region6: #{inception_head_forward.8} parent=0 // loop_footer
    %s13 = sadd.s32 1, %s9
  $region7: #{inception_head_forward.8} parent=0 // loop_footer_branch
    %8 = sbr.rel target = $region3
  $region8: #{inception_head_forward.8} parent=0 // loop_exit
    _

// kernel: inception_head_forward.12
$region0: #{inception_head_forward.12}
  #allocation0 [shape = 'u32[]', space=smem, size = 0x4, offset = 0x4, fixed_abs, tag = 'smem constant byte address 0x4 - core index']
  #allocation1 [shape = 'u32[144,128]{1,0:T(1,128)}', space=vmem, size = 0x12000, scoped, tag = 'internal scratch']
  %s0 = inlined_call_operand.vmem [shape: bf16[2,56,128], index: 0, kind: input, shape index: {}]
  %s1 = inlined_call_operand.vmem [shape: bf16[9,128,256], index: 1, kind: input, shape index: {}]
  %s2 = inlined_call_operand.vmem [shape: f32[1,256], index: 2, kind: input, shape index: {}]
  %s3 = inlined_call_operand.vmem [shape: bf16[2,32,256], index: 3, kind: output, shape index: {}]
  %s4 = sld [smem:[#allocation0]]
  $region45: #{inception_head_forward.12} parent=0
    _
  %s6 = ssub.s32 1, %s4
  %s7 = scalar_select 0, %s6, %s4
  loop: start=0, step=1, limit=4
  $region2: #{inception_head_forward.12} parent=0 // loop_pre_header
    _
  $region3: #{inception_head_forward.12} parent=0 // loop_header
    %s9 = sphi 0, %s13
    %p10 = scmp.ge.s32.totalorder %s9, 4
    %s19 = sphi 0, %s21
    %s22 = sphi 0, %s19
    %s23 = sphi 0, %s22
    %s39 = sphi 0, %s23
    %s43 = sphi 0, %s43
    %s45 = sphi 0, %s43
    %s46 = sphi 0, %s45
    %s60 = sphi 0, %s46
    %s64 = sphi 0, %s64
    %s66 = sphi 0, %s64
    %s67 = sphi 0, %s66
    %s81 = sphi 0, %s67
    %s87 = sphi 0, %s89
    %s90 = sphi 0, %s87
    %s91 = sphi 0, %s90
    %s107 = sphi 0, %s91
  $region4: #{inception_head_forward.12} parent=0 // loop_header_branch
    %12 = sbr.rel (%p10) target = $region8
  $region5: #{inception_head_forward.12} parent=0 // loop_body
    %s14 = ssub.s32 %s9, 1
    %s15 = ssub.s32 %s9, 2
    %s16 = sadd.s32 %s9, 1
    %s17 = ssub.s32 %s9, %s16
    %p18 = scmp.eq.s32.totalorder %s17, 0
    %s20 = sadd.s32 %s19, 1
    %s21 = scalar_select %p18, %s19, %s20
    %p24 = pneg %p18
    %p25 = scmp.eq.s32.totalorder %s9, 1
    %p26 = por %p24, %p25
    %p27 = scmp.ne.s32.totalorder %s19, %s22
    %p28 = scmp.eq.s32.totalorder %s9, 0
    %p29 = por %p27, %p28
    %p30 = scmp.ne.s32.totalorder %s19, %s22
    %p31 = scmp.eq.s32.totalorder %s14, 1
    %p32 = por %p30, %p31
    %p33 = scmp.ne.s32.totalorder %s22, %s23
    %p34 = scmp.eq.s32.totalorder %s14, 0
    %p35 = por %p33, %p34
    %p36 = scmp.ne.s32.totalorder %s22, %s23
    %p37 = scmp.eq.s32.totalorder %s15, 1
    %p38 = por %p36, %p37
    %p40 = scmp.ne.s32.totalorder %s23, %s39
    %p41 = scmp.eq.s32.totalorder %s15, 0
    %p42 = por %p40, %p41
    %s44 = sadd.s32 %s43, 1
    %p47 = scmp.eq.s32.totalorder %s9, 1
    %p48 = scmp.ne.s32.totalorder %s43, %s45
    %p49 = scmp.eq.s32.totalorder %s9, 0
    %p50 = por %p48, %p49
    %p51 = scmp.ne.s32.totalorder %s43, %s45
    %p52 = scmp.eq.s32.totalorder %s14, 1
    %p53 = por %p51, %p52
    %p54 = scmp.ne.s32.totalorder %s45, %s46
    %p55 = scmp.eq.s32.totalorder %s14, 0
    %p56 = por %p54, %p55
    %p57 = scmp.ne.s32.totalorder %s45, %s46
    %p58 = scmp.eq.s32.totalorder %s15, 1
    %p59 = por %p57, %p58
    %p61 = scmp.ne.s32.totalorder %s46, %s60
    %p62 = scmp.eq.s32.totalorder %s15, 0
    %p63 = por %p61, %p62
    %s65 = sadd.s32 %s64, 1
    %p68 = scmp.eq.s32.totalorder %s9, 1
    %p69 = scmp.ne.s32.totalorder %s64, %s66
    %p70 = scmp.eq.s32.totalorder %s9, 0
    %p71 = por %p69, %p70
    %p72 = scmp.ne.s32.totalorder %s64, %s66
    %p73 = scmp.eq.s32.totalorder %s14, 1
    %p74 = por %p72, %p73
    %p75 = scmp.ne.s32.totalorder %s66, %s67
    %p76 = scmp.eq.s32.totalorder %s14, 0
    %p77 = por %p75, %p76
    %p78 = scmp.ne.s32.totalorder %s66, %s67
    %p79 = scmp.eq.s32.totalorder %s15, 1
    %p80 = por %p78, %p79
    %p82 = scmp.ne.s32.totalorder %s67, %s81
    %p83 = scmp.eq.s32.totalorder %s15, 0
    %p84 = por %p82, %p83
    %s85 = ssub.s32 %s9, %s16
    %p86 = scmp.eq.s32.totalorder %s85, 0
    %s88 = sadd.s32 %s87, 1
    %s89 = scalar_select %p86, %s87, %s88
    %p92 = pneg %p86
    %p93 = scmp.eq.s32.totalorder %s9, 1
    %p94 = por %p92, %p93
    %p95 = scmp.ne.s32.totalorder %s87, %s90
    %p96 = scmp.eq.s32.totalorder %s9, 0
    %p97 = por %p95, %p96
    %p98 = scmp.ne.s32.totalorder %s87, %s90
    %p99 = scmp.eq.s32.totalorder %s14, 1
    %p100 = por %p98, %p99
    %p101 = scmp.ne.s32.totalorder %s90, %s91
    %p102 = scmp.eq.s32.totalorder %s14, 0
    %p103 = por %p101, %p102
    %p104 = scmp.ne.s32.totalorder %s90, %s91
    %p105 = scmp.eq.s32.totalorder %s15, 1
    %p106 = por %p104, %p105
    %p108 = scmp.ne.s32.totalorder %s91, %s107
    %p109 = scmp.eq.s32.totalorder %s15, 0
    %p110 = por %p108, %p109
    %p111 = scmp.le.s32.totalorder 1, %s9
    %p112 = scmp.lt.s32.totalorder %s9, 3
    %p113 = pnand %p111, %p112
    %p114 = pneg %p113
    // Predicated region
    $region9: #{inception_head_forward.12} parent=5 // pred_check
      _
    $region10: #{inception_head_forward.12} parent=5 // pred_check_branch
      %116 = sbr.rel (%p113) target = $region12
    $region11: #{inception_head_forward.12} parent=5 // pred_region
      %s117 = ssub.s32 %s9, 1
      // Predicated region
      $region13: #{inception_head_forward.12} parent=11 // pred_check
        %p118 = pneg %p56
      $region14: #{inception_head_forward.12} parent=11 // pred_check_branch
        %120 = sbr.rel (%p118) target = $region16
      $region15: #{inception_head_forward.12} parent=11 // pred_region
        _
      $region16: #{inception_head_forward.12} parent=11 // pred_fallthru
        _
      // Predicated region
      $region17: #{inception_head_forward.12} parent=11 // pred_check
        %p121 = pneg %p77
      $region18: #{inception_head_forward.12} parent=11 // pred_check_branch
        %123 = sbr.rel (%p121) target = $region20
      $region19: #{inception_head_forward.12} parent=11 // pred_region
        _
      $region20: #{inception_head_forward.12} parent=11 // pred_fallthru
        _
    $region12: #{inception_head_forward.12} parent=5 // pred_fallthru
      _
    %p124 = scmp.lt.s32.totalorder %s9, 2
    // Predicated region
    $region21: #{inception_head_forward.12} parent=5 // pred_check
      %p125 = pneg %p124
    $region22: #{inception_head_forward.12} parent=5 // pred_check_branch
      %127 = sbr.rel (%p125) target = $region24
    $region23: #{inception_head_forward.12} parent=5 // pred_region
      // Predicated region
      $region25: #{inception_head_forward.12} parent=23 // pred_check
        %p128 = pneg %p29
      $region26: #{inception_head_forward.12} parent=23 // pred_check_branch
        %130 = sbr.rel (%p128) target = $region28
      $region27: #{inception_head_forward.12} parent=23 // pred_region
        %p131 = scmp.lt.s32.totalorder %s9, 1
        %s132 = scalar_select %p131, %s9, 1
        %s133 = smul.addr %s132, 7
        %s134 = smul.addr %s133, 4
        %s135 = scalar_lea.vmem %s0, %s134
      $region28: #{inception_head_forward.12} parent=23 // pred_fallthru
        _
    $region24: #{inception_head_forward.12} parent=5 // pred_fallthru
      _
    %p136 = scmp.le.s32.totalorder 1, %s9
    %p137 = scmp.lt.s32.totalorder %s9, 3
    %p138 = pnand %p136, %p137
    %p139 = pneg %p138
    // Predicated region
    $region29: #{inception_head_forward.12} parent=5 // pred_check
      _
    $region30: #{inception_head_forward.12} parent=5 // pred_check_branch
      %141 = sbr.rel (%p138) target = $region32
    $region31: #{inception_head_forward.12} parent=5 // pred_region
      %s142 = ssub.s32 %s9, 1
      %p143 = scmp.lt.s32.totalorder %s14, 1
      %s144 = scalar_select %p143, %s14, 1
      %s145 = smul.addr %s144, 7
      %s146 = smul.addr %s145, 4
      %s147 = scalar_lea.vmem %s0, %s146
      %p148 = pneg %p35
      %p149 = pneg %p32
      %p150 = pneg %p56
      %p151 = pneg %p53
      %p152 = pneg %p77
      %p153 = pneg %p74
      %p154 = pneg %p103
      %p155 = pneg %p100
      %p156 = scmp.lt.s32.totalorder %s14, 1
      %s157 = scalar_select %p156, %s14, 1
      %s158 = smul.addr %s157, 8
      %s159 = smul.addr %s158, 4
      %s160 = scalar_lea.vmem %s3, %s159
      %p161 = scmp.lt.s32.totalorder %s14, 1
      %s162 = scalar_select %p161, %s14, 1
      %s163 = smul.addr %s162, 7
      %s164 = smul.addr %s163, 4
      %s165 = scalar_lea.vmem %s0, %s164
      %p166 = scmp.lt.s32.totalorder %s14, 1
      %s167 = scalar_select %p166, %s14, 1
      %s168 = smul.addr %s167, 8
      %s169 = smul.addr %s168, 4
      %s170 = scalar_lea.vmem %s3, %s169
      %v172 = vld [vmem:[%s165] sm:$0xf]
      %v173 = vld [vmem:[%s165 + $0x4] sm:$0xf]
      %v174 = vld [vmem:[%s165 + $0x8] sm:$0xf]
      %v175 = vld [vmem:[%s165 + $0xc] sm:$0xf]
      %v176 = vld [vmem:[%s1] sm:$0xff]
      %v177 = vld [vmem:[%s1 + $0x8] sm:$0xff]
      %v178 = vld [vmem:[%s1 + $0x10] sm:$0xff]
      %v179 = vld [vmem:[%s1 + $0x18] sm:$0xff]
      %v180 = vld [vmem:[%s1 + $0x20] sm:$0xff]
      %v181 = vld [vmem:[%s1 + $0x28] sm:$0xff]
      %v182 = vld [vmem:[%s1 + $0x30] sm:$0xff]
      %v183 = vld [vmem:[%s1 + $0x38] sm:$0xff]
      %v184 = vld [vmem:[%s1 + $0x40] sm:$0xff]
      %v185 = vld [vmem:[%s1 + $0x48] sm:$0xff]
      %v186 = vld [vmem:[%s1 + $0x50] sm:$0xff]
      %v187 = vld [vmem:[%s1 + $0x58] sm:$0xff]
      %v188 = vld [vmem:[%s1 + $0x60] sm:$0xff]
      %v189 = vld [vmem:[%s1 + $0x68] sm:$0xff]
      %v190 = vld [vmem:[%s1 + $0x70] sm:$0xff]
      %v191 = vld [vmem:[%s1 + $0x78] sm:$0xff]
      %v192 = vld [vmem:[%s165 + $0x10] sm:$0x1]
      %s193 = scalar_lea.vmem %s1, 128
      %v194 = vld [vmem:[%s193] sm:$0xff]
      %v195 = vld [vmem:[%s193 + $0x8] sm:$0xff]
      %v196 = vld [vmem:[%s193 + $0x10] sm:$0xff]
      %v197 = vld [vmem:[%s193 + $0x18] sm:$0xff]
      %v198 = vld [vmem:[%s193 + $0x20] sm:$0xff]
      %v199 = vld [vmem:[%s193 + $0x28] sm:$0xff]
      %v200 = vld [vmem:[%s193 + $0x30] sm:$0xff]
      %v201 = vld [vmem:[%s193 + $0x38] sm:$0xff]
      %v202 = vld [vmem:[%s193 + $0x40] sm:$0xff]
      %v203 = vld [vmem:[%s193 + $0x48] sm:$0xff]
      %v204 = vld [vmem:[%s193 + $0x50] sm:$0xff]
      %v205 = vld [vmem:[%s193 + $0x58] sm:$0xff]
      %v206 = vld [vmem:[%s193 + $0x60] sm:$0xff]
      %v207 = vld [vmem:[%s193 + $0x68] sm:$0xff]
      %v208 = vld [vmem:[%s193 + $0x70] sm:$0xff]
      %v209 = vld [vmem:[%s193 + $0x78] sm:$0xff]
      %v215 = vunpack.c.l.b16 %v172
      %v216 = vunpack.c.l.b16 %v173
      %v217 = vunpack.c.l.b16 %v174
      %v218 = vunpack.c.l.b16 %v175
      %v219 = vunpack.c.l.b16 %v192
      %v220 = vpack.c.b16 %v216, %v215
      %v221 = vpack.c.b16 %v218, %v217
      %v222 = vpack.c.b16 %v219, %v219
      %vm223 = vsmask.f32 7424
      %v225 = vshrl.u32 %v220, 16
      %v227 = vshll.u32 %v220, 16
      %v229 = vrot.slane %v227, 1
      %v230 = vor.u32 %v225, %v229
      %v232 = vshll.u32 %v221, 16
      %v234 = vrot.slane %v232, 1
      %v235 = vsel %vm223, %v230, %v234
      %v236 = vshrl.u32 %v221, 16
      %v238 = vor.u32 %v236, %v234
      %v240 = vshll.u32 %v222, 16
      %v242 = vrot.slane %v240, 1
      %v243 = vsel %vm223, %v238, %v242
      %v262 = vunpack.c.l.b16 %v194
      %v263 = vunpack.c.h.b16 %v194
      %v264 = vunpack.c.l.b16 %v195
      %v265 = vunpack.c.h.b16 %v195
      %v266 = vunpack.c.l.b16 %v196
      %v267 = vunpack.c.h.b16 %v196
      %v268 = vunpack.c.l.b16 %v197
      %v269 = vunpack.c.h.b16 %v197
      %v270 = vunpack.c.l.b16 %v198
      %v271 = vunpack.c.h.b16 %v198
      %v272 = vunpack.c.l.b16 %v199
      %v273 = vunpack.c.h.b16 %v199
      %v274 = vunpack.c.l.b16 %v200
      %v275 = vunpack.c.h.b16 %v200
      %v276 = vunpack.c.l.b16 %v201
      %v277 = vunpack.c.h.b16 %v201
      %v278 = vunpack.c.l.b16 %v202
      %v279 = vunpack.c.h.b16 %v202
      %v280 = vunpack.c.l.b16 %v203
      %v281 = vunpack.c.h.b16 %v203
      %v282 = vunpack.c.l.b16 %v204
      %v283 = vunpack.c.h.b16 %v204
      %v284 = vunpack.c.l.b16 %v205
      %v285 = vunpack.c.h.b16 %v205
      %v286 = vunpack.c.l.b16 %v206
      %v287 = vunpack.c.h.b16 %v206
      %v288 = vunpack.c.l.b16 %v207
      %v289 = vunpack.c.h.b16 %v207
      %v290 = vunpack.c.l.b16 %v208
      %v291 = vunpack.c.h.b16 %v208
      %v292 = vunpack.c.l.b16 %v209
      %v293 = vunpack.c.h.b16 %v209
      %v294 = vpack.c.b16 %v264, %v262
      %v295 = vpack.c.b16 %v265, %v263
      %v296 = vpack.c.b16 %v268, %v266
      %v297 = vpack.c.b16 %v269, %v267
      %v298 = vpack.c.b16 %v272, %v270
      %v299 = vpack.c.b16 %v273, %v271
      %v300 = vpack.c.b16 %v276, %v274
      %v301 = vpack.c.b16 %v277, %v275
      %v302 = vpack.c.b16 %v280, %v278
      %v303 = vpack.c.b16 %v281, %v279
      %v304 = vpack.c.b16 %v284, %v282
      %v305 = vpack.c.b16 %v285, %v283
      %v306 = vpack.c.b16 %v288, %v286
      %v307 = vpack.c.b16 %v289, %v287
      %v308 = vpack.c.b16 %v292, %v290
      %v309 = vpack.c.b16 %v293, %v291
      %326 = vmatprep.subr.bf16.mxu0 %v295
      %327 = vmatpush1.bf16.msra.mxu0 %v294
      %328 = vmatprep.subr.bf16.mxu0 %v297
      %329 = vmatpush1.bf16.msra.mxu0 %v296
      %330 = vmatprep.subr.bf16.mxu0 %v299
      %331 = vmatpush1.bf16.msra.mxu0 %v298
      %332 = vmatprep.subr.bf16.mxu0 %v301
      %333 = vmatpush1.bf16.msra.mxu0 %v300
      %334 = vmatprep.subr.bf16.mxu0 %v303
      %335 = vmatpush1.bf16.msra.mxu0 %v302
      %336 = vmatprep.subr.bf16.mxu0 %v305
      %337 = vmatpush1.bf16.msra.mxu0 %v304
      %338 = vmatprep.subr.bf16.mxu0 %v307
      %339 = vmatpush1.bf16.msra.mxu0 %v306
      %340 = vmatprep.subr.bf16.mxu0 %v309
      %341 = vmatpush1.bf16.msra.mxu0 %v308
      %342 = vmatprep.subr.bf16.mxu0 0
      %343 = vmatpush1.bf16.msra.mxu0 0
      %344 = vmatprep.subr.bf16.mxu0 0
      %345 = vmatpush1.bf16.msra.mxu0 0
      %346 = vmatprep.subr.bf16.mxu0 0
      %347 = vmatpush1.bf16.msra.mxu0 0
      %348 = vmatprep.subr.bf16.mxu0 0
      %349 = vmatpush1.bf16.msra.mxu0 0
      %350 = vmatprep.subr.bf16.mxu0 0
      %351 = vmatpush1.bf16.msra.mxu0 0
      %352 = vmatprep.subr.bf16.mxu0 0
      %353 = vmatpush1.bf16.msra.mxu0 0
      %354 = vmatprep.subr.bf16.mxu0 0
      %355 = vmatpush1.bf16.msra.mxu0 0
      %356 = vmatprep.subr.bf16.mxu0 0
      %357 = vmatpush1.bf16.msra.mxu0 0
      %358 = vmatprep.mubr.bf16.mxu0 0
      %359 = vmatmul.mubr.bf16.gmra.mrb[0].mxu0 %v235
      %v360 = vpop.f32.mrb[0].mxu0
      %v361 = vadd.f32 0.0, %v360
      %v362 = vpop.f32.mrb[0].mxu0
      %v363 = vadd.f32 0.0, %v362
      %v364 = vpop.f32.mrb[0].mxu0
      %v365 = vadd.f32 0.0, %v364
      %v366 = vpop.f32.mrb[0].mxu0
      %v367 = vadd.f32 0.0, %v366
      %368 = vmatprep.mubr.bf16.mxu0 0
      %369 = vmatmul.mubr.bf16.gmra.mrb[0].mxu0 %v243
      %v370 = vpop.f32.mrb[0].mxu0
      %v371 = vadd.f32 0.0, %v370
      %v372 = vpop.f32.mrb[0].mxu0
      %v373 = vadd.f32 0.0, %v372
      %v374 = vpop.f32.mrb[0].mxu0
      %v375 = vadd.f32 0.0, %v374
      %v376 = vpop.f32.mrb[0].mxu0
      %v377 = vadd.f32 0.0, %v376
      %378 = vdwg.mxu0
      %v397 = vunpack.c.l.b16 %v176
      %v398 = vunpack.c.h.b16 %v176
      %v399 = vunpack.c.l.b16 %v177
      %v400 = vunpack.c.h.b16 %v177
      %v401 = vunpack.c.l.b16 %v178
      %v402 = vunpack.c.h.b16 %v178
      %v403 = vunpack.c.l.b16 %v179
      %v404 = vunpack.c.h.b16 %v179
      %v405 = vunpack.c.l.b16 %v180
      %v406 = vunpack.c.h.b16 %v180
      %v407 = vunpack.c.l.b16 %v181
      %v408 = vunpack.c.h.b16 %v181
      %v409 = vunpack.c.l.b16 %v182
      %v410 = vunpack.c.h.b16 %v182
      %v411 = vunpack.c.l.b16 %v183
      %v412 = vunpack.c.h.b16 %v183
      %v413 = vunpack.c.l.b16 %v184
      %v414 = vunpack.c.h.b16 %v184
      %v415 = vunpack.c.l.b16 %v185
      %v416 = vunpack.c.h.b16 %v185
      %v417 = vunpack.c.l.b16 %v186
      %v418 = vunpack.c.h.b16 %v186
      %v419 = vunpack.c.l.b16 %v187
      %v420 = vunpack.c.h.b16 %v187
      %v421 = vunpack.c.l.b16 %v188
      %v422 = vunpack.c.h.b16 %v188
      %v423 = vunpack.c.l.b16 %v189
      %v424 = vunpack.c.h.b16 %v189
      %v425 = vunpack.c.l.b16 %v190
      %v426 = vunpack.c.h.b16 %v190
      %v427 = vunpack.c.l.b16 %v191
      %v428 = vunpack.c.h.b16 %v191
      %v429 = vpack.c.b16 %v399, %v397
      %v430 = vpack.c.b16 %v400, %v398
      %v431 = vpack.c.b16 %v403, %v401
      %v432 = vpack.c.b16 %v404, %v402
      %v433 = vpack.c.b16 %v407, %v405
      %v434 = vpack.c.b16 %v408, %v406
      %v435 = vpack.c.b16 %v411, %v409
      %v436 = vpack.c.b16 %v412, %v410
      %v437 = vpack.c.b16 %v415, %v413
      %v438 = vpack.c.b16 %v416, %v414
      %v439 = vpack.c.b16 %v419, %v417
      %v440 = vpack.c.b16 %v420, %v418
      %v441 = vpack.c.b16 %v423, %v421
      %v442 = vpack.c.b16 %v424, %v422
      %v443 = vpack.c.b16 %v427, %v425
      %v444 = vpack.c.b16 %v428, %v426
      %461 = vmatprep.subr.bf16.mxu0 %v430
      %462 = vmatpush1.bf16.msra.mxu0 %v429
      %463 = vmatprep.subr.bf16.mxu0 %v432
      %464 = vmatpush1.bf16.msra.mxu0 %v431
      %465 = vmatprep.subr.bf16.mxu0 %v434
      %466 = vmatpush1.bf16.msra.mxu0 %v433
      %467 = vmatprep.subr.bf16.mxu0 %v436
      %468 = vmatpush1.bf16.msra.mxu0 %v435
      %469 = vmatprep.subr.bf16.mxu0 %v438
      %470 = vmatpush1.bf16.msra.mxu0 %v437
      %471 = vmatprep.subr.bf16.mxu0 %v440
      %472 = vmatpush1.bf16.msra.mxu0 %v439
      %473 = vmatprep.subr.bf16.mxu0 %v442
      %474 = vmatpush1.bf16.msra.mxu0 %v441
      %475 = vmatprep.subr.bf16.mxu0 %v444
      %476 = vmatpush1.bf16.msra.mxu0 %v443
      %477 = vmatprep.subr.bf16.mxu0 0
      %478 = vmatpush1.bf16.msra.mxu0 0
      %479 = vmatprep.subr.bf16.mxu0 0
      %480 = vmatpush1.bf16.msra.mxu0 0
      %481 = vmatprep.subr.bf16.mxu0 0
      %482 = vmatpush1.bf16.msra.mxu0 0
      %483 = vmatprep.subr.bf16.mxu0 0
      %484 = vmatpush1.bf16.msra.mxu0 0
      %485 = vmatprep.subr.bf16.mxu0 0
      %486 = vmatpush1.bf16.msra.mxu0 0
      %487 = vmatprep.subr.bf16.mxu0 0
      %488 = vmatpush1.bf16.msra.mxu0 0
      %489 = vmatprep.subr.bf16.mxu0 0
      %490 = vmatpush1.bf16.msra.mxu0 0
      %491 = vmatprep.subr.bf16.mxu0 0
      %492 = vmatpush1.bf16.msra.mxu0 0
      %493 = vmatprep.mubr.bf16.mxu0 0
      %494 = vmatmul.mubr.bf16.gmra.mrb[0].mxu0 %v220
      %v495 = vpop.f32.mrb[0].mxu0
      %v496 = vadd.f32 %v361, %v495
      %v497 = vpop.f32.mrb[0].mxu0
      %v498 = vadd.f32 %v363, %v497
      %v499 = vpop.f32.mrb[0].mxu0
      %v500 = vadd.f32 %v365, %v499
      %v501 = vpop.f32.mrb[0].mxu0
      %v502 = vadd.f32 %v367, %v501
      %503 = vmatprep.mubr.bf16.mxu0 0
      %504 = vmatmul.mubr.bf16.gmra.mrb[0].mxu0 %v221
      %v505 = vpop.f32.mrb[0].mxu0
      %v506 = vadd.f32 %v371, %v505
      %v507 = vpop.f32.mrb[0].mxu0
      %v508 = vadd.f32 %v373, %v507
      %v509 = vpop.f32.mrb[0].mxu0
      %v510 = vadd.f32 %v375, %v509
      %v511 = vpop.f32.mrb[0].mxu0
      %v512 = vadd.f32 %v377, %v511
      %513 = vdwg.mxu0
      %v514 = vld [vmem:[%s165] sm:$0xe]
      %s515 = scalar_lea.vmem %s1, 256
      %v516 = vld [vmem:[%s515] sm:$0xff]
      %v517 = vld [vmem:[%s515 + $0x8] sm:$0xff]
      %v518 = vld [vmem:[%s515 + $0x10] sm:$0xff]
      %v519 = vld [vmem:[%s515 + $0x18] sm:$0xff]
      %v520 = vld [vmem:[%s515 + $0x20] sm:$0xff]
      %v521 = vld [vmem:[%s515 + $0x28] sm:$0xff]
      %v522 = vld [vmem:[%s515 + $0x30] sm:$0xff]
      %v523 = vld [vmem:[%s515 + $0x38] sm:$0xff]
      %v524 = vld [vmem:[%s515 + $0x40] sm:$0xff]
      %v525 = vld [vmem:[%s515 + $0x48] sm:$0xff]
      %v526 = vld [vmem:[%s515 + $0x50] sm:$0xff]
      %v527 = vld [vmem:[%s515 + $0x58] sm:$0xff]
      %v528 = vld [vmem:[%s515 + $0x60] sm:$0xff]
      %v529 = vld [vmem:[%s515 + $0x68] sm:$0xff]
      %v530 = vld [vmem:[%s515 + $0x70] sm:$0xff]
      %v531 = vld [vmem:[%s515 + $0x78] sm:$0xff]
      %v533 = vunpack.c.l.b16 %v514
      %v534 = vpack.c.b16 %v216, %v533
      %vm535 = vcmask 1046528
      %v536 = vrot.slane %v534, 1
      %v537 = vrot.slane %v221, 1
      %v538 = vsel %vm535, %v536, %v537
      %v539 = vrot.slane %v222, 1
      %v540 = vsel %vm535, %v537, %v539
      %v559 = vunpack.c.l.b16 %v516
      %v560 = vunpack.c.h.b16 %v516
      %v561 = vunpack.c.l.b16 %v517
      %v562 = vunpack.c.h.b16 %v517
      %v563 = vunpack.c.l.b16 %v518
      %v564 = vunpack.c.h.b16 %v518
      %v565 = vunpack.c.l.b16 %v519
      %v566 = vunpack.c.h.b16 %v519
      %v567 = vunpack.c.l.b16 %v520
      %v568 = vunpack.c.h.b16 %v520
      %v569 = vunpack.c.l.b16 %v521
      %v570 = vunpack.c.h.b16 %v521
      %v571 = vunpack.c.l.b16 %v522
      %v572 = vunpack.c.h.b16 %v522
      %v573 = vunpack.c.l.b16 %v523
      %v574 = vunpack.c.h.b16 %v523
      %v575 = vunpack.c.l.b16 %v524
      %v576 = vunpack.c.h.b16 %v524
      %v577 = vunpack.c.l.b16 %v525
      %v578 = vunpack.c.h.b16 %v525
      %v579 = vunpack.c.l.b16 %v526
      %v580 = vunpack.c.h.b16 %v526
      %v581 = vunpack.c.l.b16 %v527
      %v582 = vunpack.c.h.b16 %v527
      %v583 = vunpack.c.l.b16 %v528
      %v584 = vunpack.c.h.b16 %v528
      %v585 = vunpack.c.l.b16 %v529
      %v586 = vunpack.c.h.b16 %v529
      %v587 = vunpack.c.l.b16 %v530
      %v588 = vunpack.c.h.b16 %v530
      %v589 = vunpack.c.l.b16 %v531
      %v590 = vunpack.c.h.b16 %v531
      %v591 = vpack.c.b16 %v561, %v559
      %v592 = vpack.c.b16 %v562, %v560
      %v593 = vpack.c.b16 %v565, %v563
      %v594 = vpack.c.b16 %v566, %v564
      %v595 = vpack.c.b16 %v569, %v567
      %v596 = vpack.c.b16 %v570, %v568
      %v597 = vpack.c.b16 %v573, %v571
      %v598 = vpack.c.b16 %v574, %v572
      %v599 = vpack.c.b16 %v577, %v575
      %v600 = vpack.c.b16 %v578, %v576
      %v601 = vpack.c.b16 %v581, %v579
      %v602 = vpack.c.b16 %v582, %v580
      %v603 = vpack.c.b16 %v585, %v583
      %v604 = vpack.c.b16 %v586, %v584
      %v605 = vpack.c.b16 %v589, %v587
      %v606 = vpack.c.b16 %v590, %v588
      %623 = vmatprep.subr.bf16.mxu0 %v592
      %624 = vmatpush1.bf16.msra.mxu0 %v591
      %625 = vmatprep.subr.bf16.mxu0 %v594
      %626 = vmatpush1.bf16.msra.mxu0 %v593
      %627 = vmatprep.subr.bf16.mxu0 %v596
      %628 = vmatpush1.bf16.msra.mxu0 %v595
      %629 = vmatprep.subr.bf16.mxu0 %v598
      %630 = vmatpush1.bf16.msra.mxu0 %v597
      %631 = vmatprep.subr.bf16.mxu0 %v600
      %632 = vmatpush1.bf16.msra.mxu0 %v599
      %633 = vmatprep.subr.bf16.mxu0 %v602
      %634 = vmatpush1.bf16.msra.mxu0 %v601
      %635 = vmatprep.subr.bf16.mxu0 %v604
      %636 = vmatpush1.bf16.msra.mxu0 %v603
      %637 = vmatprep.subr.bf16.mxu0 %v606
      %638 = vmatpush1.bf16.msra.mxu0 %v605
      %639 = vmatprep.subr.bf16.mxu0 0
      %640 = vmatpush1.bf16.msra.mxu0 0
      %641 = vmatprep.subr.bf16.mxu0 0
      %642 = vmatpush1.bf16.msra.mxu0 0
      %643 = vmatprep.subr.bf16.mxu0 0
      %644 = vmatpush1.bf16.msra.mxu0 0
      %645 = vmatprep.subr.bf16.mxu0 0
      %646 = vmatpush1.bf16.msra.mxu0 0
      %647 = vmatprep.subr.bf16.mxu0 0
      %648 = vmatpush1.bf16.msra.mxu0 0
      %649 = vmatprep.subr.bf16.mxu0 0
      %650 = vmatpush1.bf16.msra.mxu0 0
      %651 = vmatprep.subr.bf16.mxu0 0
      %652 = vmatpush1.bf16.msra.mxu0 0
      %653 = vmatprep.subr.bf16.mxu0 0
      %654 = vmatpush1.bf16.msra.mxu0 0
      %655 = vmatprep.mubr.bf16.mxu0 0
      %656 = vmatmul.mubr.bf16.gmra.mrb[0].mxu0 %v538
      %v657 = vpop.f32.mrb[0].mxu0
      %v658 = vadd.f32 0.0, %v657
      %v659 = vpop.f32.mrb[0].mxu0
      %v660 = vadd.f32 0.0, %v659
      %v661 = vpop.f32.mrb[0].mxu0
      %v662 = vadd.f32 0.0, %v661
      %v663 = vpop.f32.mrb[0].mxu0
      %v664 = vadd.f32 0.0, %v663
      %665 = vmatprep.mubr.bf16.mxu0 0
      %666 = vmatmul.mubr.bf16.gmra.mrb[0].mxu0 %v540
      %v667 = vpop.f32.mrb[0].mxu0
      %v668 = vadd.f32 0.0, %v667
      %v669 = vpop.f32.mrb[0].mxu0
      %v670 = vadd.f32 0.0, %v669
      %v671 = vpop.f32.mrb[0].mxu0
      %v672 = vadd.f32 0.0, %v671
      %v673 = vpop.f32.mrb[0].mxu0
      %v674 = vadd.f32 0.0, %v673
      %675 = vdwg.mxu0
      %v676 = vadd.f32 %v496, %v658
      %v677 = vadd.f32 %v498, %v660
      %v678 = vadd.f32 %v500, %v662
      %v679 = vadd.f32 %v502, %v664
      %v680 = vadd.f32 %v506, %v668
      %v681 = vadd.f32 %v508, %v670
      %v682 = vadd.f32 %v510, %v672
      %v683 = vadd.f32 %v512, %v674
      %v684 = vld [vmem:[%s165 + $0x10] sm:$0xf]
      %s685 = scalar_lea.vmem %s1, 384
      %v686 = vld [vmem:[%s685] sm:$0xff]
      %v687 = vld [vmem:[%s685 + $0x8] sm:$0xff]
      %v688 = vld [vmem:[%s685 + $0x10] sm:$0xff]
      %v689 = vld [vmem:[%s685 + $0x18] sm:$0xff]
      %v690 = vld [vmem:[%s685 + $0x20] sm:$0xff]
      %v691 = vld [vmem:[%s685 + $0x28] sm:$0xff]
      %v692 = vld [vmem:[%s685 + $0x30] sm:$0xff]
      %v693 = vld [vmem:[%s685 + $0x38] sm:$0xff]
      %v694 = vld [vmem:[%s685 + $0x40] sm:$0xff]
      %v695 = vld [vmem:[%s685 + $0x48] sm:$0xff]
      %v696 = vld [vmem:[%s685 + $0x50] sm:$0xff]
      %v697 = vld [vmem:[%s685 + $0x58] sm:$0xff]
      %v698 = vld [vmem:[%s685 + $0x60] sm:$0xff]
      %v699 = vld [vmem:[%s685 + $0x68] sm:$0xff]
      %v700 = vld [vmem:[%s685 + $0x70] sm:$0xff]
      %v701 = vld [vmem:[%s685 + $0x78] sm:$0xff]
      %v703 = vunpack.c.l.b16 %v684
      %v704 = vpack.c.b16 %v217, %v216
      %v705 = vpack.c.b16 %v703, %v218
      %v724 = vunpack.c.l.b16 %v686
      %v725 = vunpack.c.h.b16 %v686
      %v726 = vunpack.c.l.b16 %v687
      %v727 = vunpack.c.h.b16 %v687
      %v728 = vunpack.c.l.b16 %v688
      %v729 = vunpack.c.h.b16 %v688
      %v730 = vunpack.c.l.b16 %v689
      %v731 = vunpack.c.h.b16 %v689
      %v732 = vunpack.c.l.b16 %v690
      %v733 = vunpack.c.h.b16 %v690
      %v734 = vunpack.c.l.b16 %v691
      %v735 = vunpack.c.h.b16 %v691
      %v736 = vunpack.c.l.b16 %v692
      %v737 = vunpack.c.h.b16 %v692
      %v738 = vunpack.c.l.b16 %v693
      %v739 = vunpack.c.h.b16 %v693
      %v740 = vunpack.c.l.b16 %v694
      %v741 = vunpack.c.h.b16 %v694
      %v742 = vunpack.c.l.b16 %v695
      %v743 = vunpack.c.h.b16 %v695
      %v744 = vunpack.c.l.b16 %v696
      %v745 = vunpack.c.h.b16 %v696
      %v746 = vunpack.c.l.b16 %v697
      %v747 = vunpack.c.h.b16 %v697
      %v748 = vunpack.c.l.b16 %v698
      %v749 = vunpack.c.h.b16 %v698
      %v750 = vunpack.c.l.b16 %v699
      %v751 = vunpack.c.h.b16 %v699
      %v752 = vunpack.c.l.b16 %v700
      %v753 = vunpack.c.h.b16 %v700
      %v754 = vunpack.c.l.b16 %v701
      %v755 = vunpack.c.h.b16 %v701
      %v756 = vpack.c.b16 %v726, %v724
      %v757 = vpack.c.b16 %v727, %v725
      %v758 = vpack.c.b16 %v730, %v728
      %v759 = vpack.c.b16 %v731, %v729
      %v760 = vpack.c.b16 %v734, %v732
      %v761 = vpack.c.b16 %v735, %v733
      %v762 = vpack.c.b16 %v738, %v736
      %v763 = vpack.c.b16 %v739, %v737
      %v764 = vpack.c.b16 %v742, %v740
      %v765 = vpack.c.b16 %v743, %v741
      %v766 = vpack.c.b16 %v746, %v744
      %v767 = vpack.c.b16 %v747, %v745
      %v768 = vpack.c.b16 %v750, %v748
      %v769 = vpack.c.b16 %v751, %v749
      %v770 = vpack.c.b16 %v754, %v752
      %v771 = vpack.c.b16 %v755, %v753
      %788 = vmatprep.subr.bf16.mxu0 %v757
      %789 = vmatpush1.bf16.msra.mxu0 %v756
      %790 = vmatprep.subr.bf16.mxu0 %v759
      %791 = vmatpush1.bf16.msra.mxu0 %v758
      %792 = vmatprep.subr.bf16.mxu0 %v761
      %793 = vmatpush1.bf16.msra.mxu0 %v760
      %794 = vmatprep.subr.bf16.mxu0 %v763
      %795 = vmatpush1.bf16.msra.mxu0 %v762
      %796 = vmatprep.subr.bf16.mxu0 %v765
      %797 = vmatpush1.bf16.msra.mxu0 %v764
      %798 = vmatprep.subr.bf16.mxu0 %v767
      %799 = vmatpush1.bf16.msra.mxu0 %v766
      %800 = vmatprep.subr.bf16.mxu0 %v769
      %801 = vmatpush1.bf16.msra.mxu0 %v768
      %802 = vmatprep.subr.bf16.mxu0 %v771
      %803 = vmatpush1.bf16.msra.mxu0 %v770
      %804 = vmatprep.subr.bf16.mxu0 0
      %805 = vmatpush1.bf16.msra.mxu0 0
      %806 = vmatprep.subr.bf16.mxu0 0
      %807 = vmatpush1.bf16.msra.mxu0 0
      %808 = vmatprep.subr.bf16.mxu0 0
      %809 = vmatpush1.bf16.msra.mxu0 0
      %810 = vmatprep.subr.bf16.mxu0 0
      %811 = vmatpush1.bf16.msra.mxu0 0
      %812 = vmatprep.subr.bf16.mxu0 0
      %813 = vmatpush1.bf16.msra.mxu0 0
      %814 = vmatprep.subr.bf16.mxu0 0
      %815 = vmatpush1.bf16.msra.mxu0 0
      %816 = vmatprep.subr.bf16.mxu0 0
      %817 = vmatpush1.bf16.msra.mxu0 0
      %818 = vmatprep.subr.bf16.mxu0 0
      %819 = vmatpush1.bf16.msra.mxu0 0
      %820 = vmatprep.mubr.bf16.mxu0 0
      %821 = vmatmul.mubr.bf16.gmra.mrb[0].mxu0 %v704
      %v822 = vpop.f32.mrb[0].mxu0
      %v823 = vadd.f32 0.0, %v822
      %v824 = vpop.f32.mrb[0].mxu0
      %v825 = vadd.f32 0.0, %v824
      %v826 = vpop.f32.mrb[0].mxu0
      %v827 = vadd.f32 0.0, %v826
      %v828 = vpop.f32.mrb[0].mxu0
      %v829 = vadd.f32 0.0, %v828
      %830 = vmatprep.mubr.bf16.mxu0 0
      %831 = vmatmul.mubr.bf16.gmra.mrb[0].mxu0 %v705
      %v832 = vpop.f32.mrb[0].mxu0
      %v833 = vadd.f32 0.0, %v832
      %v834 = vpop.f32.mrb[0].mxu0
      %v835 = vadd.f32 0.0, %v834
      %v836 = vpop.f32.mrb[0].mxu0
      %v837 = vadd.f32 0.0, %v836
      %v838 = vpop.f32.mrb[0].mxu0
      %v839 = vadd.f32 0.0, %v838
      %840 = vdwg.mxu0
      %v841 = vadd.f32 %v676, %v823
      %v842 = vadd.f32 %v677, %v825
      %v843 = vadd.f32 %v678, %v827
      %v844 = vadd.f32 %v679, %v829
      %v845 = vadd.f32 %v680, %v833
      %v846 = vadd.f32 %v681, %v835
      %v847 = vadd.f32 %v682, %v837
      %v848 = vadd.f32 %v683, %v839
      %v849 = vld [vmem:[%s165 + $0x4] sm:$0xf]
      %v850 = vld [vmem:[%s165 + $0x8] sm:$0xf]
      %v851 = vld [vmem:[%s165 + $0xc] sm:$0xf]
      %v852 = vld [vmem:[%s165 + $0x10] sm:$0xf]
      %v853 = vld [vmem:[%s165 + $0x14] sm:$0x1]
      %s854 = scalar_lea.vmem %s1, 512
      %v855 = vld [vmem:[%s854] sm:$0xff]
      %v856 = vld [vmem:[%s854 + $0x8] sm:$0xff]
      %v857 = vld [vmem:[%s854 + $0x10] sm:$0xff]
      %v858 = vld [vmem:[%s854 + $0x18] sm:$0xff]
      %v859 = vld [vmem:[%s854 + $0x20] sm:$0xff]
      %v860 = vld [vmem:[%s854 + $0x28] sm:$0xff]
      %v861 = vld [vmem:[%s854 + $0x30] sm:$0xff]
      %v862 = vld [vmem:[%s854 + $0x38] sm:$0xff]
      %v863 = vld [vmem:[%s854 + $0x40] sm:$0xff]
      %v864 = vld [vmem:[%s854 + $0x48] sm:$0xff]
      %v865 = vld [vmem:[%s854 + $0x50] sm:$0xff]
      %v866 = vld [vmem:[%s854 + $0x58] sm:$0xff]
      %v867 = vld [vmem:[%s854 + $0x60] sm:$0xff]
      %v868 = vld [vmem:[%s854 + $0x68] sm:$0xff]
      %v869 = vld [vmem:[%s854 + $0x70] sm:$0xff]
      %v870 = vld [vmem:[%s854 + $0x78] sm:$0xff]
      %v876 = vunpack.c.l.b16 %v849
      %v877 = vunpack.c.l.b16 %v850
      %v878 = vunpack.c.l.b16 %v851
      %v879 = vunpack.c.l.b16 %v852
      %v880 = vunpack.c.l.b16 %v853
      %v881 = vpack.c.b16 %v877, %v876
      %v882 = vpack.c.b16 %v879, %v878
      %v883 = vpack.c.b16 %v880, %v880
      %v885 = vshrl.u32 %v881, 16
      %v887 = vshll.u32 %v881, 16
      %v889 = vrot.slane %v887, 1
      %v890 = vor.u32 %v885, %v889
      %v892 = vshll.u32 %v882, 16
      %v894 = vrot.slane %v892, 1
      %v895 = vsel %vm223, %v890, %v894
      %v896 = vshrl.u32 %v882, 16
      %v898 = vor.u32 %v896, %v894
      %v900 = vshll.u32 %v883, 16
      %v902 = vrot.slane %v900, 1
      %v903 = vsel %vm223, %v898, %v902
      %v922 = vunpack.c.l.b16 %v855
      %v923 = vunpack.c.h.b16 %v855
      %v924 = vunpack.c.l.b16 %v856
      %v925 = vunpack.c.h.b16 %v856
      %v926 = vunpack.c.l.b16 %v857
      %v927 = vunpack.c.h.b16 %v857
      %v928 = vunpack.c.l.b16 %v858
      %v929 = vunpack.c.h.b16 %v858
      %v930 = vunpack.c.l.b16 %v859
      %v931 = vunpack.c.h.b16 %v859
      %v932 = vunpack.c.l.b16 %v860
      %v933 = vunpack.c.h.b16 %v860
      %v934 = vunpack.c.l.b16 %v861
      %v935 = vunpack.c.h.b16 %v861
      %v936 = vunpack.c.l.b16 %v862
      %v937 = vunpack.c.h.b16 %v862
      %v938 = vunpack.c.l.b16 %v863
      %v939 = vunpack.c.h.b16 %v863
      %v940 = vunpack.c.l.b16 %v864
      %v941 = vunpack.c.h.b16 %v864
      %v942 = vunpack.c.l.b16 %v865
      %v943 = vunpack.c.h.b16 %v865
      %v944 = vunpack.c.l.b16 %v866
      %v945 = vunpack.c.h.b16 %v866
      %v946 = vunpack.c.l.b16 %v867
      %v947 = vunpack.c.h.b16 %v867
      %v948 = vunpack.c.l.b16 %v868
      %v949 = vunpack.c.h.b16 %v868
      %v950 = vunpack.c.l.b16 %v869
      %v951 = vunpack.c.h.b16 %v869
      %v952 = vunpack.c.l.b16 %v870
      %v953 = vunpack.c.h.b16 %v870
      %v954 = vpack.c.b16 %v924, %v922
      %v955 = vpack.c.b16 %v925, %v923
      %v956 = vpack.c.b16 %v928, %v926
      %v957 = vpack.c.b16 %v929, %v927
      %v958 = vpack.c.b16 %v932, %v930
      %v959 = vpack.c.b16 %v933, %v931
      %v960 = vpack.c.b16 %v936, %v934
      %v961 = vpack.c.b16 %v937, %v935
      %v962 = vpack.c.b16 %v940, %v938
      %v963 = vpack.c.b16 %v941, %v939
      %v964 = vpack.c.b16 %v944, %v942
      %v965 = vpack.c.b16 %v945, %v943
      %v966 = vpack.c.b16 %v948, %v946
      %v967 = vpack.c.b16 %v949, %v947
      %v968 = vpack.c.b16 %v952, %v950
      %v969 = vpack.c.b16 %v953, %v951
      %986 = vmatprep.subr.bf16.mxu0 %v955
      %987 = vmatpush1.bf16.msra.mxu0 %v954
      %988 = vmatprep.subr.bf16.mxu0 %v957
      %989 = vmatpush1.bf16.msra.mxu0 %v956
      %990 = vmatprep.subr.bf16.mxu0 %v959
      %991 = vmatpush1.bf16.msra.mxu0 %v958
      %992 = vmatprep.subr.bf16.mxu0 %v961
      %993 = vmatpush1.bf16.msra.mxu0 %v960
      %994 = vmatprep.subr.bf16.mxu0 %v963
      %995 = vmatpush1.bf16.msra.mxu0 %v962
      %996 = vmatprep.subr.bf16.mxu0 %v965
      %997 = vmatpush1.bf16.msra.mxu0 %v964
      %998 = vmatprep.subr.bf16.mxu0 %v967
      %999 = vmatpush1.bf16.msra.mxu0 %v966
      %1000 = vmatprep.subr.bf16.mxu0 %v969
      %1001 = vmatpush1.bf16.msra.mxu0 %v968
      %1002 = vmatprep.subr.bf16.mxu0 0
      %1003 = vmatpush1.bf16.msra.mxu0 0
      %1004 = vmatprep.subr.bf16.mxu0 0
      %1005 = vmatpush1.bf16.msra.mxu0 0
      %1006 = vmatprep.subr.bf16.mxu0 0
      %1007 = vmatpush1.bf16.msra.mxu0 0
      %1008 = vmatprep.subr.bf16.mxu0 0
      %1009 = vmatpush1.bf16.msra.mxu0 0
      %1010 = vmatprep.subr.bf16.mxu0 0
      %1011 = vmatpush1.bf16.msra.mxu0 0
      %1012 = vmatprep.subr.bf16.mxu0 0
      %1013 = vmatpush1.bf16.msra.mxu0 0
      %1014 = vmatprep.subr.bf16.mxu0 0
      %1015 = vmatpush1.bf16.msra.mxu0 0
      %1016 = vmatprep.subr.bf16.mxu0 0
      %1017 = vmatpush1.bf16.msra.mxu0 0
      %1018 = vmatprep.mubr.bf16.mxu0 0
      %1019 = vmatmul.mubr.bf16.gmra.mrb[0].mxu0 %v895
      %v1020 = vpop.f32.mrb[0].mxu0
      %v1021 = vadd.f32 0.0, %v1020
      %v1022 = vpop.f32.mrb[0].mxu0
      %v1023 = vadd.f32 0.0, %v1022
      %v1024 = vpop.f32.mrb[0].mxu0
      %v1025 = vadd.f32 0.0, %v1024
      %v1026 = vpop.f32.mrb[0].mxu0
      %v1027 = vadd.f32 0.0, %v1026
      %1028 = vmatprep.mubr.bf16.mxu0 0
      %1029 = vmatmul.mubr.bf16.gmra.mrb[0].mxu0 %v903
      %v1030 = vpop.f32.mrb[0].mxu0
      %v1031 = vadd.f32 0.0, %v1030
      %v1032 = vpop.f32.mrb[0].mxu0
      %v1033 = vadd.f32 0.0, %v1032
      %v1034 = vpop.f32.mrb[0].mxu0
      %v1035 = vadd.f32 0.0, %v1034
      %v1036 = vpop.f32.mrb[0].mxu0
      %v1037 = vadd.f32 0.0, %v1036
      %1038 = vdwg.mxu0
      %v1039 = vadd.f32 %v841, %v1021
      %v1040 = vadd.f32 %v842, %v1023
      %v1041 = vadd.f32 %v843, %v1025
      %v1042 = vadd.f32 %v844, %v1027
      %v1043 = vadd.f32 %v845, %v1031
      %v1044 = vadd.f32 %v846, %v1033
      %v1045 = vadd.f32 %v847, %v1035
      %v1046 = vadd.f32 %v848, %v1037
      %v1047 = vld [vmem:[%s165 + $0x4] sm:$0xe]
      %s1048 = scalar_lea.vmem %s1, 640
      %v1049 = vld [vmem:[%s1048] sm:$0xff]
      %v1050 = vld [vmem:[%s1048 + $0x8] sm:$0xff]
      %v1051 = vld [vmem:[%s1048 + $0x10] sm:$0xff]
      %v1052 = vld [vmem:[%s1048 + $0x18] sm:$0xff]
      %v1053 = vld [vmem:[%s1048 + $0x20] sm:$0xff]
      %v1054 = vld [vmem:[%s1048 + $0x28] sm:$0xff]
      %v1055 = vld [vmem:[%s1048 + $0x30] sm:$0xff]
      %v1056 = vld [vmem:[%s1048 + $0x38] sm:$0xff]
      %v1057 = vld [vmem:[%s1048 + $0x40] sm:$0xff]
      %v1058 = vld [vmem:[%s1048 + $0x48] sm:$0xff]
      %v1059 = vld [vmem:[%s1048 + $0x50] sm:$0xff]
      %v1060 = vld [vmem:[%s1048 + $0x58] sm:$0xff]
      %v1061 = vld [vmem:[%s1048 + $0x60] sm:$0xff]
      %v1062 = vld [vmem:[%s1048 + $0x68] sm:$0xff]
      %v1063 = vld [vmem:[%s1048 + $0x70] sm:$0xff]
      %v1064 = vld [vmem:[%s1048 + $0x78] sm:$0xff]
      %v1066 = vunpack.c.l.b16 %v1047
      %v1067 = vpack.c.b16 %v877, %v1066
      %v1068 = vrot.slane %v1067, 1
      %v1069 = vrot.slane %v882, 1
      %v1070 = vsel %vm535, %v1068, %v1069
      %v1071 = vrot.slane %v883, 1
      %v1072 = vsel %vm535, %v1069, %v1071
      %v1091 = vunpack.c.l.b16 %v1049
      %v1092 = vunpack.c.h.b16 %v1049
      %v1093 = vunpack.c.l.b16 %v1050
      %v1094 = vunpack.c.h.b16 %v1050
      %v1095 = vunpack.c.l.b16 %v1051
      %v1096 = vunpack.c.h.b16 %v1051
      %v1097 = vunpack.c.l.b16 %v1052
      %v1098 = vunpack.c.h.b16 %v1052
      %v1099 = vunpack.c.l.b16 %v1053
      %v1100 = vunpack.c.h.b16 %v1053
      %v1101 = vunpack.c.l.b16 %v1054
      %v1102 = vunpack.c.h.b16 %v1054
      %v1103 = vunpack.c.l.b16 %v1055
      %v1104 = vunpack.c.h.b16 %v1055
      %v1105 = vunpack.c.l.b16 %v1056
      %v1106 = vunpack.c.h.b16 %v1056
      %v1107 = vunpack.c.l.b16 %v1057
      %v1108 = vunpack.c.h.b16 %v1057
      %v1109 = vunpack.c.l.b16 %v1058
      %v1110 = vunpack.c.h.b16 %v1058
      %v1111 = vunpack.c.l.b16 %v1059
      %v1112 = vunpack.c.h.b16 %v1059
      %v1113 = vunpack.c.l.b16 %v1060
      %v1114 = vunpack.c.h.b16 %v1060
      %v1115 = vunpack.c.l.b16 %v1061
      %v1116 = vunpack.c.h.b16 %v1061
      %v1117 = vunpack.c.l.b16 %v1062
      %v1118 = vunpack.c.h.b16 %v1062
      %v1119 = vunpack.c.l.b16 %v1063
      %v1120 = vunpack.c.h.b16 %v1063
      %v1121 = vunpack.c.l.b16 %v1064
      %v1122 = vunpack.c.h.b16 %v1064
      %v1123 = vpack.c.b16 %v1093, %v1091
      %v1124 = vpack.c.b16 %v1094, %v1092
      %v1125 = vpack.c.b16 %v1097, %v1095
      %v1126 = vpack.c.b16 %v1098, %v1096
      %v1127 = vpack.c.b16 %v1101, %v1099
      %v1128 = vpack.c.b16 %v1102, %v1100
      %v1129 = vpack.c.b16 %v1105, %v1103
      %v1130 = vpack.c.b16 %v1106, %v1104
      %v1131 = vpack.c.b16 %v1109, %v1107
      %v1132 = vpack.c.b16 %v1110, %v1108
      %v1133 = vpack.c.b16 %v1113, %v1111
      %v1134 = vpack.c.b16 %v1114, %v1112
      %v1135 = vpack.c.b16 %v1117, %v1115
      %v1136 = vpack.c.b16 %v1118, %v1116
      %v1137 = vpack.c.b16 %v1121, %v1119
      %v1138 = vpack.c.b16 %v1122, %v1120
      %1155 = vmatprep.subr.bf16.mxu0 %v1124
      %1156 = vmatpush1.bf16.msra.mxu0 %v1123
      %1157 = vmatprep.subr.bf16.mxu0 %v1126
      %1158 = vmatpush1.bf16.msra.mxu0 %v1125
      %1159 = vmatprep.subr.bf16.mxu0 %v1128
      %1160 = vmatpush1.bf16.msra.mxu0 %v1127
      %1161 = vmatprep.subr.bf16.mxu0 %v1130
      %1162 = vmatpush1.bf16.msra.mxu0 %v1129
      %1163 = vmatprep.subr.bf16.mxu0 %v1132
      %1164 = vmatpush1.bf16.msra.mxu0 %v1131
      %1165 = vmatprep.subr.bf16.mxu0 %v1134
      %1166 = vmatpush1.bf16.msra.mxu0 %v1133
      %1167 = vmatprep.subr.bf16.mxu0 %v1136
      %1168 = vmatpush1.bf16.msra.mxu0 %v1135
      %1169 = vmatprep.subr.bf16.mxu0 %v1138
      %1170 = vmatpush1.bf16.msra.mxu0 %v1137
      %1171 = vmatprep.subr.bf16.mxu0 0
      %1172 = vmatpush1.bf16.msra.mxu0 0
      %1173 = vmatprep.subr.bf16.mxu0 0
      %1174 = vmatpush1.bf16.msra.mxu0 0
      %1175 = vmatprep.subr.bf16.mxu0 0
      %1176 = vmatpush1.bf16.msra.mxu0 0
      %1177 = vmatprep.subr.bf16.mxu0 0
      %1178 = vmatpush1.bf16.msra.mxu0 0
      %1179 = vmatprep.subr.bf16.mxu0 0
      %1180 = vmatpush1.bf16.msra.mxu0 0
      %1181 = vmatprep.subr.bf16.mxu0 0
      %1182 = vmatpush1.bf16.msra.mxu0 0
      %1183 = vmatprep.subr.bf16.mxu0 0
      %1184 = vmatpush1.bf16.msra.mxu0 0
      %1185 = vmatprep.subr.bf16.mxu0 0
      %1186 = vmatpush1.bf16.msra.mxu0 0
      %1187 = vmatprep.mubr.bf16.mxu0 0
      %1188 = vmatmul.mubr.bf16.gmra.mrb[0].mxu0 %v1070
      %v1189 = vpop.f32.mrb[0].mxu0
      %v1190 = vadd.f32 0.0, %v1189
      %v1191 = vpop.f32.mrb[0].mxu0
      %v1192 = vadd.f32 0.0, %v1191
      %v1193 = vpop.f32.mrb[0].mxu0
      %v1194 = vadd.f32 0.0, %v1193
      %v1195 = vpop.f32.mrb[0].mxu0
      %v1196 = vadd.f32 0.0, %v1195
      %1197 = vmatprep.mubr.bf16.mxu0 0
      %1198 = vmatmul.mubr.bf16.gmra.mrb[0].mxu0 %v1072
      %v1199 = vpop.f32.mrb[0].mxu0
      %v1200 = vadd.f32 0.0, %v1199
      %v1201 = vpop.f32.mrb[0].mxu0
      %v1202 = vadd.f32 0.0, %v1201
      %v1203 = vpop.f32.mrb[0].mxu0
      %v1204 = vadd.f32 0.0, %v1203
      %v1205 = vpop.f32.mrb[0].mxu0
      %v1206 = vadd.f32 0.0, %v1205
      %1207 = vdwg.mxu0
      %v1208 = vadd.f32 %v1039, %v1190
      %v1209 = vadd.f32 %v1040, %v1192
      %v1210 = vadd.f32 %v1041, %v1194
      %v1211 = vadd.f32 %v1042, %v1196
      %v1212 = vadd.f32 %v1043, %v1200
      %v1213 = vadd.f32 %v1044, %v1202
      %v1214 = vadd.f32 %v1045, %v1204
      %v1215 = vadd.f32 %v1046, %v1206
      %v1216 = vld [vmem:[%s165 + $0x14] sm:$0xf]
      %s1217 = scalar_lea.vmem %s1, 768
      %v1218 = vld [vmem:[%s1217] sm:$0xff]
      %v1219 = vld [vmem:[%s1217 + $0x8] sm:$0xff]
      %v1220 = vld [vmem:[%s1217 + $0x10] sm:$0xff]
      %v1221 = vld [vmem:[%s1217 + $0x18] sm:$0xff]
      %v1222 = vld [vmem:[%s1217 + $0x20] sm:$0xff]
      %v1223 = vld [vmem:[%s1217 + $0x28] sm:$0xff]
      %v1224 = vld [vmem:[%s1217 + $0x30] sm:$0xff]
      %v1225 = vld [vmem:[%s1217 + $0x38] sm:$0xff]
      %v1226 = vld [vmem:[%s1217 + $0x40] sm:$0xff]
      %v1227 = vld [vmem:[%s1217 + $0x48] sm:$0xff]
      %v1228 = vld [vmem:[%s1217 + $0x50] sm:$0xff]
      %v1229 = vld [vmem:[%s1217 + $0x58] sm:$0xff]
      %v1230 = vld [vmem:[%s1217 + $0x60] sm:$0xff]
      %v1231 = vld [vmem:[%s1217 + $0x68] sm:$0xff]
      %v1232 = vld [vmem:[%s1217 + $0x70] sm:$0xff]
      %v1233 = vld [vmem:[%s1217 + $0x78] sm:$0xff]
      %v1235 = vunpack.c.l.b16 %v1216
      %v1236 = vpack.c.b16 %v878, %v877
      %v1237 = vpack.c.b16 %v1235, %v879
      %v1256 = vunpack.c.l.b16 %v1218
      %v1257 = vunpack.c.h.b16 %v1218
      %v1258 = vunpack.c.l.b16 %v1219
      %v1259 = vunpack.c.h.b16 %v1219
      %v1260 = vunpack.c.l.b16 %v1220
      %v1261 = vunpack.c.h.b16 %v1220
      %v1262 = vunpack.c.l.b16 %v1221
      %v1263 = vunpack.c.h.b16 %v1221
      %v1264 = vunpack.c.l.b16 %v1222
      %v1265 = vunpack.c.h.b16 %v1222
      %v1266 = vunpack.c.l.b16 %v1223
      %v1267 = vunpack.c.h.b16 %v1223
      %v1268 = vunpack.c.l.b16 %v1224
      %v1269 = vunpack.c.h.b16 %v1224
      %v1270 = vunpack.c.l.b16 %v1225
      %v1271 = vunpack.c.h.b16 %v1225
      %v1272 = vunpack.c.l.b16 %v1226
      %v1273 = vunpack.c.h.b16 %v1226
      %v1274 = vunpack.c.l.b16 %v1227
      %v1275 = vunpack.c.h.b16 %v1227
      %v1276 = vunpack.c.l.b16 %v1228
      %v1277 = vunpack.c.h.b16 %v1228
      %v1278 = vunpack.c.l.b16 %v1229
      %v1279 = vunpack.c.h.b16 %v1229
      %v1280 = vunpack.c.l.b16 %v1230
      %v1281 = vunpack.c.h.b16 %v1230
      %v1282 = vunpack.c.l.b16 %v1231
      %v1283 = vunpack.c.h.b16 %v1231
      %v1284 = vunpack.c.l.b16 %v1232
      %v1285 = vunpack.c.h.b16 %v1232
      %v1286 = vunpack.c.l.b16 %v1233
      %v1287 = vunpack.c.h.b16 %v1233
      %v1288 = vpack.c.b16 %v1258, %v1256
      %v1289 = vpack.c.b16 %v1259, %v1257
      %v1290 = vpack.c.b16 %v1262, %v1260
      %v1291 = vpack.c.b16 %v1263, %v1261
      %v1292 = vpack.c.b16 %v1266, %v1264
      %v1293 = vpack.c.b16 %v1267, %v1265
      %v1294 = vpack.c.b16 %v1270, %v1268
      %v1295 = vpack.c.b16 %v1271, %v1269
      %v1296 = vpack.c.b16 %v1274, %v1272
      %v1297 = vpack.c.b16 %v1275, %v1273
      %v1298 = vpack.c.b16 %v1278, %v1276
      %v1299 = vpack.c.b16 %v1279, %v1277
      %v1300 = vpack.c.b16 %v1282, %v1280
      %v1301 = vpack.c.b16 %v1283, %v1281
      %v1302 = vpack.c.b16 %v1286, %v1284
      %v1303 = vpack.c.b16 %v1287, %v1285
      %1320 = vmatprep.subr.bf16.mxu0 %v1289
      %1321 = vmatpush1.bf16.msra.mxu0 %v1288
      %1322 = vmatprep.subr.bf16.mxu0 %v1291
      %1323 = vmatpush1.bf16.msra.mxu0 %v1290
      %1324 = vmatprep.subr.bf16.mxu0 %v1293
      %1325 = vmatpush1.bf16.msra.mxu0 %v1292
      %1326 = vmatprep.subr.bf16.mxu0 %v1295
      %1327 = vmatpush1.bf16.msra.mxu0 %v1294
      %1328 = vmatprep.subr.bf16.mxu0 %v1297
      %1329 = vmatpush1.bf16.msra.mxu0 %v1296
      %1330 = vmatprep.subr.bf16.mxu0 %v1299
      %1331 = vmatpush1.bf16.msra.mxu0 %v1298
      %1332 = vmatprep.subr.bf16.mxu0 %v1301
      %1333 = vmatpush1.bf16.msra.mxu0 %v1300
      %1334 = vmatprep.subr.bf16.mxu0 %v1303
      %1335 = vmatpush1.bf16.msra.mxu0 %v1302
      %1336 = vmatprep.subr.bf16.mxu0 0
      %1337 = vmatpush1.bf16.msra.mxu0 0
      %1338 = vmatprep.subr.bf16.mxu0 0
      %1339 = vmatpush1.bf16.msra.mxu0 0
      %1340 = vmatprep.subr.bf16.mxu0 0
      %1341 = vmatpush1.bf16.msra.mxu0 0
      %1342 = vmatprep.subr.bf16.mxu0 0
      %1343 = vmatpush1.bf16.msra.mxu0 0
      %1344 = vmatprep.subr.bf16.mxu0 0
      %1345 = vmatpush1.bf16.msra.mxu0 0
      %1346 = vmatprep.subr.bf16.mxu0 0
      %1347 = vmatpush1.bf16.msra.mxu0 0
      %1348 = vmatprep.subr.bf16.mxu0 0
      %1349 = vmatpush1.bf16.msra.mxu0 0
      %1350 = vmatprep.subr.bf16.mxu0 0
      %1351 = vmatpush1.bf16.msra.mxu0 0
      %1352 = vmatprep.mubr.bf16.mxu0 0
      %1353 = vmatmul.mubr.bf16.gmra.mrb[0].mxu0 %v1236
      %v1354 = vpop.f32.mrb[0].mxu0
      %v1355 = vadd.f32 0.0, %v1354
      %v1356 = vpop.f32.mrb[0].mxu0
      %v1357 = vadd.f32 0.0, %v1356
      %v1358 = vpop.f32.mrb[0].mxu0
      %v1359 = vadd.f32 0.0, %v1358
      %v1360 = vpop.f32.mrb[0].mxu0
      %v1361 = vadd.f32 0.0, %v1360
      %1362 = vmatprep.mubr.bf16.mxu0 0
      %1363 = vmatmul.mubr.bf16.gmra.mrb[0].mxu0 %v1237
      %v1364 = vpop.f32.mrb[0].mxu0
      %v1365 = vadd.f32 0.0, %v1364
      %v1366 = vpop.f32.mrb[0].mxu0
      %v1367 = vadd.f32 0.0, %v1366
      %v1368 = vpop.f32.mrb[0].mxu0
      %v1369 = vadd.f32 0.0, %v1368
      %v1370 = vpop.f32.mrb[0].mxu0
      %v1371 = vadd.f32 0.0, %v1370
      %1372 = vdwg.mxu0
      %v1373 = vadd.f32 %v1208, %v1355
      %v1374 = vadd.f32 %v1209, %v1357
      %v1375 = vadd.f32 %v1210, %v1359
      %v1376 = vadd.f32 %v1211, %v1361
      %v1377 = vadd.f32 %v1212, %v1365
      %v1378 = vadd.f32 %v1213, %v1367
      %v1379 = vadd.f32 %v1214, %v1369
      %v1380 = vadd.f32 %v1215, %v1371
      %v1381 = vld [vmem:[%s165 + $0x8] sm:$0xf]
      %v1382 = vld [vmem:[%s165 + $0xc] sm:$0xf]
      %v1383 = vld [vmem:[%s165 + $0x10] sm:$0xf]
      %v1384 = vld [vmem:[%s165 + $0x14] sm:$0xf]
      %v1385 = vld [vmem:[%s165 + $0x18] sm:$0x1]
      %s1386 = scalar_lea.vmem %s1, 896
      %v1387 = vld [vmem:[%s1386] sm:$0xff]
      %v1388 = vld [vmem:[%s1386 + $0x8] sm:$0xff]
      %v1389 = vld [vmem:[%s1386 + $0x10] sm:$0xff]
      %v1390 = vld [vmem:[%s1386 + $0x18] sm:$0xff]
      %v1391 = vld [vmem:[%s1386 + $0x20] sm:$0xff]
      %v1392 = vld [vmem:[%s1386 + $0x28] sm:$0xff]
      %v1393 = vld [vmem:[%s1386 + $0x30] sm:$0xff]
      %v1394 = vld [vmem:[%s1386 + $0x38] sm:$0xff]
      %v1395 = vld [vmem:[%s1386 + $0x40] sm:$0xff]
      %v1396 = vld [vmem:[%s1386 + $0x48] sm:$0xff]
      %v1397 = vld [vmem:[%s1386 + $0x50] sm:$0xff]
      %v1398 = vld [vmem:[%s1386 + $0x58] sm:$0xff]
      %v1399 = vld [vmem:[%s1386 + $0x60] sm:$0xff]
      %v1400 = vld [vmem:[%s1386 + $0x68] sm:$0xff]
      %v1401 = vld [vmem:[%s1386 + $0x70] sm:$0xff]
      %v1402 = vld [vmem:[%s1386 + $0x78] sm:$0xff]
      %v1408 = vunpack.c.l.b16 %v1381
      %v1409 = vunpack.c.l.b16 %v1382
      %v1410 = vunpack.c.l.b16 %v1383
      %v1411 = vunpack.c.l.b16 %v1384
      %v1412 = vunpack.c.l.b16 %v1385
      %v1413 = vpack.c.b16 %v1409, %v1408
      %v1414 = vpack.c.b16 %v1411, %v1410
      %v1415 = vpack.c.b16 %v1412, %v1412
      %v1417 = vshrl.u32 %v1413, 16
      %v1419 = vshll.u32 %v1413, 16
      %v1421 = vrot.slane %v1419, 1
      %v1422 = vor.u32 %v1417, %v1421
      %v1424 = vshll.u32 %v1414, 16
      %v1426 = vrot.slane %v1424, 1
      %v1427 = vsel %vm223, %v1422, %v1426
      %v1428 = vshrl.u32 %v1414, 16
      %v1430 = vor.u32 %v1428, %v1426
      %v1432 = vshll.u32 %v1415, 16
      %v1434 = vrot.slane %v1432, 1
      %v1435 = vsel %vm223, %v1430, %v1434
      %v1454 = vunpack.c.l.b16 %v1387
      %v1455 = vunpack.c.h.b16 %v1387
      %v1456 = vunpack.c.l.b16 %v1388
      %v1457 = vunpack.c.h.b16 %v1388
      %v1458 = vunpack.c.l.b16 %v1389
      %v1459 = vunpack.c.h.b16 %v1389
      %v1460 = vunpack.c.l.b16 %v1390
      %v1461 = vunpack.c.h.b16 %v1390
      %v1462 = vunpack.c.l.b16 %v1391
      %v1463 = vunpack.c.h.b16 %v1391
      %v1464 = vunpack.c.l.b16 %v1392
      %v1465 = vunpack.c.h.b16 %v1392
      %v1466 = vunpack.c.l.b16 %v1393
      %v1467 = vunpack.c.h.b16 %v1393
      %v1468 = vunpack.c.l.b16 %v1394
      %v1469 = vunpack.c.h.b16 %v1394
      %v1470 = vunpack.c.l.b16 %v1395
      %v1471 = vunpack.c.h.b16 %v1395
      %v1472 = vunpack.c.l.b16 %v1396
      %v1473 = vunpack.c.h.b16 %v1396
      %v1474 = vunpack.c.l.b16 %v1397
      %v1475 = vunpack.c.h.b16 %v1397
      %v1476 = vunpack.c.l.b16 %v1398
      %v1477 = vunpack.c.h.b16 %v1398
      %v1478 = vunpack.c.l.b16 %v1399
      %v1479 = vunpack.c.h.b16 %v1399
      %v1480 = vunpack.c.l.b16 %v1400
      %v1481 = vunpack.c.h.b16 %v1400
      %v1482 = vunpack.c.l.b16 %v1401
      %v1483 = vunpack.c.h.b16 %v1401
      %v1484 = vunpack.c.l.b16 %v1402
      %v1485 = vunpack.c.h.b16 %v1402
      %v1486 = vpack.c.b16 %v1456, %v1454
      %v1487 = vpack.c.b16 %v1457, %v1455
      %v1488 = vpack.c.b16 %v1460, %v1458
      %v1489 = vpack.c.b16 %v1461, %v1459
      %v1490 = vpack.c.b16 %v1464, %v1462
      %v1491 = vpack.c.b16 %v1465, %v1463
      %v1492 = vpack.c.b16 %v1468, %v1466
      %v1493 = vpack.c.b16 %v1469, %v1467
      %v1494 = vpack.c.b16 %v1472, %v1470
      %v1495 = vpack.c.b16 %v1473, %v1471
      %v1496 = vpack.c.b16 %v1476, %v1474
      %v1497 = vpack.c.b16 %v1477, %v1475
      %v1498 = vpack.c.b16 %v1480, %v1478
      %v1499 = vpack.c.b16 %v1481, %v1479
      %v1500 = vpack.c.b16 %v1484, %v1482
      %v1501 = vpack.c.b16 %v1485, %v1483
      %1518 = vmatprep.subr.bf16.mxu0 %v1487
      %1519 = vmatpush1.bf16.msra.mxu0 %v1486
      %1520 = vmatprep.subr.bf16.mxu0 %v1489
      %1521 = vmatpush1.bf16.msra.mxu0 %v1488
      %1522 = vmatprep.subr.bf16.mxu0 %v1491
      %1523 = vmatpush1.bf16.msra.mxu0 %v1490
      %1524 = vmatprep.subr.bf16.mxu0 %v1493
      %1525 = vmatpush1.bf16.msra.mxu0 %v1492
      %1526 = vmatprep.subr.bf16.mxu0 %v1495
      %1527 = vmatpush1.bf16.msra.mxu0 %v1494
      %1528 = vmatprep.subr.bf16.mxu0 %v1497
      %1529 = vmatpush1.bf16.msra.mxu0 %v1496
      %1530 = vmatprep.subr.bf16.mxu0 %v1499
      %1531 = vmatpush1.bf16.msra.mxu0 %v1498
      %1532 = vmatprep.subr.bf16.mxu0 %v1501
      %1533 = vmatpush1.bf16.msra.mxu0 %v1500
      %1534 = vmatprep.subr.bf16.mxu0 0
      %1535 = vmatpush1.bf16.msra.mxu0 0
      %1536 = vmatprep.subr.bf16.mxu0 0
      %1537 = vmatpush1.bf16.msra.mxu0 0
      %1538 = vmatprep.subr.bf16.mxu0 0
      %1539 = vmatpush1.bf16.msra.mxu0 0
      %1540 = vmatprep.subr.bf16.mxu0 0
      %1541 = vmatpush1.bf16.msra.mxu0 0
      %1542 = vmatprep.subr.bf16.mxu0 0
      %1543 = vmatpush1.bf16.msra.mxu0 0
      %1544 = vmatprep.subr.bf16.mxu0 0
      %1545 = vmatpush1.bf16.msra.mxu0 0
      %1546 = vmatprep.subr.bf16.mxu0 0
      %1547 = vmatpush1.bf16.msra.mxu0 0
      %1548 = vmatprep.subr.bf16.mxu0 0
      %1549 = vmatpush1.bf16.msra.mxu0 0
      %1550 = vmatprep.mubr.bf16.mxu0 0
      %1551 = vmatmul.mubr.bf16.gmra.mrb[0].mxu0 %v1427
      %v1552 = vpop.f32.mrb[0].mxu0
      %v1553 = vadd.f32 0.0, %v1552
      %v1554 = vpop.f32.mrb[0].mxu0
      %v1555 = vadd.f32 0.0, %v1554
      %v1556 = vpop.f32.mrb[0].mxu0
      %v1557 = vadd.f32 0.0, %v1556
      %v1558 = vpop.f32.mrb[0].mxu0
      %v1559 = vadd.f32 0.0, %v1558
      %1560 = vmatprep.mubr.bf16.mxu0 0
      %1561 = vmatmul.mubr.bf16.gmra.mrb[0].mxu0 %v1435
      %v1562 = vpop.f32.mrb[0].mxu0
      %v1563 = vadd.f32 0.0, %v1562
      %v1564 = vpop.f32.mrb[0].mxu0
      %v1565 = vadd.f32 0.0, %v1564
      %v1566 = vpop.f32.mrb[0].mxu0
      %v1567 = vadd.f32 0.0, %v1566
      %v1568 = vpop.f32.mrb[0].mxu0
      %v1569 = vadd.f32 0.0, %v1568
      %1570 = vdwg.mxu0
      %v1571 = vadd.f32 %v1373, %v1553
      %v1572 = vadd.f32 %v1374, %v1555
      %v1573 = vadd.f32 %v1375, %v1557
      %v1574 = vadd.f32 %v1376, %v1559
      %v1575 = vadd.f32 %v1377, %v1563
      %v1576 = vadd.f32 %v1378, %v1565
      %v1577 = vadd.f32 %v1379, %v1567
      %v1578 = vadd.f32 %v1380, %v1569
      %v1579 = vld [vmem:[%s165 + $0x8] sm:$0xe]
      %s1580 = scalar_lea.vmem %s1, 1024
      %v1581 = vld [vmem:[%s1580] sm:$0xff]
      %v1582 = vld [vmem:[%s1580 + $0x8] sm:$0xff]
      %v1583 = vld [vmem:[%s1580 + $0x10] sm:$0xff]
      %v1584 = vld [vmem:[%s1580 + $0x18] sm:$0xff]
      %v1585 = vld [vmem:[%s1580 + $0x20] sm:$0xff]
      %v1586 = vld [vmem:[%s1580 + $0x28] sm:$0xff]
      %v1587 = vld [vmem:[%s1580 + $0x30] sm:$0xff]
      %v1588 = vld [vmem:[%s1580 + $0x38] sm:$0xff]
      %v1589 = vld [vmem:[%s1580 + $0x40] sm:$0xff]
      %v1590 = vld [vmem:[%s1580 + $0x48] sm:$0xff]
      %v1591 = vld [vmem:[%s1580 + $0x50] sm:$0xff]
      %v1592 = vld [vmem:[%s1580 + $0x58] sm:$0xff]
      %v1593 = vld [vmem:[%s1580 + $0x60] sm:$0xff]
      %v1594 = vld [vmem:[%s1580 + $0x68] sm:$0xff]
      %v1595 = vld [vmem:[%s1580 + $0x70] sm:$0xff]
      %v1596 = vld [vmem:[%s1580 + $0x78] sm:$0xff]
      %v1598 = vunpack.c.l.b16 %v1579
      %v1599 = vpack.c.b16 %v1409, %v1598
      %v1600 = vrot.slane %v1599, 1
      %v1601 = vrot.slane %v1414, 1
      %v1602 = vsel %vm535, %v1600, %v1601
      %v1603 = vrot.slane %v1415, 1
      %v1604 = vsel %vm535, %v1601, %v1603
      %v1623 = vunpack.c.l.b16 %v1581
      %v1624 = vunpack.c.h.b16 %v1581
      %v1625 = vunpack.c.l.b16 %v1582
      %v1626 = vunpack.c.h.b16 %v1582
      %v1627 = vunpack.c.l.b16 %v1583
      %v1628 = vunpack.c.h.b16 %v1583
      %v1629 = vunpack.c.l.b16 %v1584
      %v1630 = vunpack.c.h.b16 %v1584
      %v1631 = vunpack.c.l.b16 %v1585
      %v1632 = vunpack.c.h.b16 %v1585
      %v1633 = vunpack.c.l.b16 %v1586
      %v1634 = vunpack.c.h.b16 %v1586
      %v1635 = vunpack.c.l.b16 %v1587
      %v1636 = vunpack.c.h.b16 %v1587
      %v1637 = vunpack.c.l.b16 %v1588
      %v1638 = vunpack.c.h.b16 %v1588
      %v1639 = vunpack.c.l.b16 %v1589
      %v1640 = vunpack.c.h.b16 %v1589
      %v1641 = vunpack.c.l.b16 %v1590
      %v1642 = vunpack.c.h.b16 %v1590
      %v1643 = vunpack.c.l.b16 %v1591
      %v1644 = vunpack.c.h.b16 %v1591
      %v1645 = vunpack.c.l.b16 %v1592
      %v1646 = vunpack.c.h.b16 %v1592
      %v1647 = vunpack.c.l.b16 %v1593
      %v1648 = vunpack.c.h.b16 %v1593
      %v1649 = vunpack.c.l.b16 %v1594
      %v1650 = vunpack.c.h.b16 %v1594
      %v1651 = vunpack.c.l.b16 %v1595
      %v1652 = vunpack.c.h.b16 %v1595
      %v1653 = vunpack.c.l.b16 %v1596
      %v1654 = vunpack.c.h.b16 %v1596
      %v1655 = vpack.c.b16 %v1625, %v1623
      %v1656 = vpack.c.b16 %v1626, %v1624
      %v1657 = vpack.c.b16 %v1629, %v1627
      %v1658 = vpack.c.b16 %v1630, %v1628
      %v1659 = vpack.c.b16 %v1633, %v1631
      %v1660 = vpack.c.b16 %v1634, %v1632
      %v1661 = vpack.c.b16 %v1637, %v1635
      %v1662 = vpack.c.b16 %v1638, %v1636
      %v1663 = vpack.c.b16 %v1641, %v1639
      %v1664 = vpack.c.b16 %v1642, %v1640
      %v1665 = vpack.c.b16 %v1645, %v1643
      %v1666 = vpack.c.b16 %v1646, %v1644
      %v1667 = vpack.c.b16 %v1649, %v1647
      %v1668 = vpack.c.b16 %v1650, %v1648
      %v1669 = vpack.c.b16 %v1653, %v1651
      %v1670 = vpack.c.b16 %v1654, %v1652
      %1687 = vmatprep.subr.bf16.mxu0 %v1656
      %1688 = vmatpush1.bf16.msra.mxu0 %v1655
      %1689 = vmatprep.subr.bf16.mxu0 %v1658
      %1690 = vmatpush1.bf16.msra.mxu0 %v1657
      %1691 = vmatprep.subr.bf16.mxu0 %v1660
      %1692 = vmatpush1.bf16.msra.mxu0 %v1659
      %1693 = vmatprep.subr.bf16.mxu0 %v1662
      %1694 = vmatpush1.bf16.msra.mxu0 %v1661
      %1695 = vmatprep.subr.bf16.mxu0 %v1664
      %1696 = vmatpush1.bf16.msra.mxu0 %v1663
      %1697 = vmatprep.subr.bf16.mxu0 %v1666
      %1698 = vmatpush1.bf16.msra.mxu0 %v1665
      %1699 = vmatprep.subr.bf16.mxu0 %v1668
      %1700 = vmatpush1.bf16.msra.mxu0 %v1667
      %1701 = vmatprep.subr.bf16.mxu0 %v1670
      %1702 = vmatpush1.bf16.msra.mxu0 %v1669
      %1703 = vmatprep.subr.bf16.mxu0 0
      %1704 = vmatpush1.bf16.msra.mxu0 0
      %1705 = vmatprep.subr.bf16.mxu0 0
      %1706 = vmatpush1.bf16.msra.mxu0 0
      %1707 = vmatprep.subr.bf16.mxu0 0
      %1708 = vmatpush1.bf16.msra.mxu0 0
      %1709 = vmatprep.subr.bf16.mxu0 0
      %1710 = vmatpush1.bf16.msra.mxu0 0
      %1711 = vmatprep.subr.bf16.mxu0 0
      %1712 = vmatpush1.bf16.msra.mxu0 0
      %1713 = vmatprep.subr.bf16.mxu0 0
      %1714 = vmatpush1.bf16.msra.mxu0 0
      %1715 = vmatprep.subr.bf16.mxu0 0
      %1716 = vmatpush1.bf16.msra.mxu0 0
      %1717 = vmatprep.subr.bf16.mxu0 0
      %1718 = vmatpush1.bf16.msra.mxu0 0
      %1719 = vmatprep.mubr.bf16.mxu0 0
      %1720 = vmatmul.mubr.bf16.gmra.mrb[0].mxu0 %v1602
      %v1721 = vpop.f32.mrb[0].mxu0
      %v1722 = vadd.f32 0.0, %v1721
      %v1723 = vpop.f32.mrb[0].mxu0
      %v1724 = vadd.f32 0.0, %v1723
      %v1725 = vpop.f32.mrb[0].mxu0
      %v1726 = vadd.f32 0.0, %v1725
      %v1727 = vpop.f32.mrb[0].mxu0
      %v1728 = vadd.f32 0.0, %v1727
      %1729 = vmatprep.mubr.bf16.mxu0 0
      %1730 = vmatmul.mubr.bf16.gmra.mrb[0].mxu0 %v1604
      %v1731 = vpop.f32.mrb[0].mxu0
      %v1732 = vadd.f32 0.0, %v1731
      %v1733 = vpop.f32.mrb[0].mxu0
      %v1734 = vadd.f32 0.0, %v1733
      %v1735 = vpop.f32.mrb[0].mxu0
      %v1736 = vadd.f32 0.0, %v1735
      %v1737 = vpop.f32.mrb[0].mxu0
      %v1738 = vadd.f32 0.0, %v1737
      %1739 = vdwg.mxu0
      %v1740 = vadd.f32 %v1571, %v1722
      %v1741 = vadd.f32 %v1572, %v1724
      %v1742 = vadd.f32 %v1573, %v1726
      %v1743 = vadd.f32 %v1574, %v1728
      %v1744 = vadd.f32 %v1575, %v1732
      %v1745 = vadd.f32 %v1576, %v1734
      %v1746 = vadd.f32 %v1577, %v1736
      %v1747 = vadd.f32 %v1578, %v1738
      %v1748 = vld [vmem:[%s2] sm:$0x3]
      %v1750 = vlaneseq
      %v1751 = vshrl.u32 %v1750, 7
      %v1752 = vsub.s32 0, %v1751
      %v1753 = vrot.slane %v1748, %v1752
      %v1754 = vlaneseq
      %v1755 = vshrl.u32 %v1754, 7
      %v1756 = vsub.s32 1, %v1755
      %v1757 = vrot.slane %v1748, %v1756
      %v1760 = vadd.f32 %v1740, %v1753
      %v1761 = vadd.f32 %v1741, %v1757
      %v1762 = vadd.f32 %v1742, %v1753
      %v1763 = vadd.f32 %v1743, %v1757
      %v1764 = vadd.f32 %v1744, %v1753
      %v1765 = vadd.f32 %v1745, %v1757
      %v1766 = vadd.f32 %v1746, %v1753
      %v1767 = vadd.f32 %v1747, %v1757
      %v1768 = vmax.f32 %v1760, 0.0
      %v1769 = vmax.f32 %v1761, 0.0
      %v1770 = vmax.f32 %v1762, 0.0
      %v1771 = vmax.f32 %v1763, 0.0
      %v1772 = vmax.f32 %v1764, 0.0
      %v1773 = vmax.f32 %v1765, 0.0
      %v1774 = vmax.f32 %v1766, 0.0
      %v1775 = vmax.f32 %v1767, 0.0
      %v1776 = vpack.c.bf16 %v1770, %v1768
      %v1777 = vpack.c.bf16 %v1771, %v1769
      %v1778 = vpack.c.bf16 %v1774, %v1772
      %v1779 = vpack.c.bf16 %v1775, %v1773
      %v1784 = vunpack.c.l.b16 %v1776
      %v1785 = vunpack.c.l.b16 %v1777
      %v1786 = vunpack.c.h.b16 %v1776
      %v1787 = vunpack.c.h.b16 %v1777
      %v1788 = vunpack.c.l.b16 %v1778
      %v1789 = vunpack.c.l.b16 %v1779
      %v1790 = vunpack.c.h.b16 %v1778
      %v1791 = vunpack.c.h.b16 %v1779
      %v1792 = vpack.c.b16 %v1785, %v1784
      %v1793 = vpack.c.b16 %v1787, %v1786
      %v1794 = vpack.c.b16 %v1789, %v1788
      %v1795 = vpack.c.b16 %v1791, %v1790
      %1800 = vst [vmem:[%s170] sm:$0xff] %v1792
      %1801 = vst [vmem:[%s170 + $0x8] sm:$0xff] %v1793
      %1802 = vst [vmem:[%s170 + $0x10] sm:$0xff] %v1794
      %1803 = vst [vmem:[%s170 + $0x18] sm:$0xff] %v1795
      %p1804 = scmp.lt.s32.totalorder %s14, 1
      %s1805 = scalar_select %p1804, %s14, 1
      %s1806 = smul.addr %s1805, 8
      %s1807 = smul.addr %s1806, 4
      %s1808 = scalar_lea.vmem %s3, %s1807
      // Predicated region
      $region33: #{inception_head_forward.12} parent=31 // pred_check
        %p1809 = pneg %p100
      $region34: #{inception_head_forward.12} parent=31 // pred_check_branch
        %1811 = sbr.rel (%p1809) target = $region36
      $region35: #{inception_head_forward.12} parent=31 // pred_region
        _
      $region36: #{inception_head_forward.12} parent=31 // pred_fallthru
        _
    $region32: #{inception_head_forward.12} parent=5 // pred_fallthru
      _
    %p1812 = scmp.le.s32.totalorder 2, %s9
    // Predicated region
    $region37: #{inception_head_forward.12} parent=5 // pred_check
      %p1813 = pneg %p1812
    $region38: #{inception_head_forward.12} parent=5 // pred_check_branch
      %1815 = sbr.rel (%p1813) target = $region40
    $region39: #{inception_head_forward.12} parent=5 // pred_region
      %s1816 = ssub.s32 %s9, 2
      // Predicated region
      $region41: #{inception_head_forward.12} parent=39 // pred_check
        %p1817 = pneg %p106
      $region42: #{inception_head_forward.12} parent=39 // pred_check_branch
        %1819 = sbr.rel (%p1817) target = $region44
      $region43: #{inception_head_forward.12} parent=39 // pred_region
        %p1820 = scmp.lt.s32.totalorder %s15, 1
        %s1821 = scalar_select %p1820, %s15, 1
        %s1822 = smul.addr %s1821, 8
        %s1823 = smul.addr %s1822, 4
        %s1824 = scalar_lea.vmem %s3, %s1823
      $region44: #{inception_head_forward.12} parent=39 // pred_fallthru
        _
    $region40: #{inception_head_forward.12} parent=5 // pred_fallthru
      _
  $region6: #{inception_head_forward.12} parent=0 // loop_footer
    %s13 = sadd.s32 1, %s9
  $region7: #{inception_head_forward.12} parent=0 // loop_footer_branch
    %8 = sbr.rel target = $region3
  $region8: #{inception_head_forward.12} parent=0 // loop_exit
    _

</llo_original>
